<compile_context>
chip_gen: v7x
topology: tpu7x:2x2x1
jax: 0.10.0
libtpu: 0.0.40
codegen_flags: <defaults>
</compile_context>

<pallas_src>
import numpy as np
import jax
import jax.numpy as jnp
from jax.experimental import pallas as pl
from jax.experimental.pallas import tpu as pltpu


# ----------------------------- constant matrix builders (one-time, numpy) -----------------------------
def _conv_gather_mats(H, W, k=3, stride=2, pad=1):
    """One-hot gathers G[t] (Ho*Wo, H*W) s.t. G[t] @ x_flat = tap t of the im2col patches.
    Zero padding is encoded as all-zero rows."""
    Ho = (H + 2 * pad - k) // stride + 1
    Wo = (W + 2 * pad - k) // stride + 1
    G = np.zeros((k * k, Ho * Wo, H * W), np.float32)
    for kh in range(k):
        for kw in range(k):
            t = kh * k + kw
            for i in range(Ho):
                r = i * stride + kh - pad
                if not (0 <= r < H):
                    continue
                for j in range(Wo):
                    c = j * stride + kw - pad
                    if 0 <= c < W:
                        G[t, i * Wo + j, r * W + c] = 1.0
    return G, Ho, Wo


def _tconv_window_mats(H, W):
    """2x2 stride-1 window gathers for the sub-pixel ConvTranspose2d decomposition
    (zero beyond the high edge, i.e. the output_padding=1 side)."""
    G = np.zeros((4, H * W, H * W), np.float32)
    for a in range(2):
        for b in range(2):
            t = a * 2 + b
            for m in range(H - a):
                for n in range(W - b):
                    G[t, m * W + n, (m + a) * W + (n + b)] = 1.0
    return G


def _tconv_scatter_mats(H, W):
    """Depth-to-space as an exact permutation:
    out[(2m+dy)*2W + (2n+dx), c] = phase_{dy,dx}[m*W+n, c]."""
    S = np.zeros((4, 4 * H * W, H * W), np.float32)
    Wo = 2 * W
    for dy in range(2):
        for dx in range(2):
            t = dy * 2 + dx
            for m in range(H):
                for n in range(W):
                    S[t, (2 * m + dy) * Wo + (2 * n + dx), m * W + n] = 1.0
    return S


def _tconv_phase_weight(w_t):
    """ConvTranspose2d(k=3, s=2, p=1, output_padding=1) sub-pixel phase weights.
    Rows ordered (a, b, c_in) over the 2x2 input window, cols (dy, dx, c_out) over the
    2x2 output phases.  Tap table (dy, a) -> kh: {(0,0):1, (1,0):2, (1,1):0}; (0,1) unused."""
    C_in, C_out, k, _ = w_t.shape
    assert k == 3
    tap = {(0, 0): 1, (1, 0): 2, (1, 1): 0}
    blocks = np.zeros((2, 2, C_in, 2, 2, C_out), np.float32)
    for a in (0, 1):
        for b in (0, 1):
            for dy in (0, 1):
                for dx in (0, 1):
                    if (dy, a) in tap and (dx, b) in tap:
                        blocks[a, b, :, dy, dx, :] = w_t[:, :, tap[(dy, a)], tap[(dx, b)]]
    return blocks.reshape(4 * C_in, 4 * C_out)


def pack_params(params, H, W):
    """One-time packing of weights + constant gather/scatter matrices into the exact
    kernel input order (bf16 weights/gathers, f32 biases/scatters)."""
    bf16 = jnp.bfloat16
    packed = []
    h, w = H, W

    for name in ("enc1", "enc2", "enc3"):
        wgt, bias = params[name]
        O, C, k, _ = wgt.shape
        G, h, w = _conv_gather_mats(h, w, k=k, stride=2, pad=1)
        wmat = np.transpose(np.asarray(wgt, np.float32), (2, 3, 1, 0)).reshape(k * k * C, O)
        packed += [jnp.asarray(G, bf16), jnp.asarray(wmat, bf16),
                   jnp.asarray(np.asarray(bias, np.float32).reshape(1, O))]

    for name in ("dec1", "dec2", "dec3"):
        wgt, bias = params[name]
        C_in, C_out, k, _ = wgt.shape
        Gw = _tconv_window_mats(h, w)
        S = _tconv_scatter_mats(h, w)
        wmat = _tconv_phase_weight(np.asarray(wgt, np.float32))
        bvec = np.tile(np.asarray(bias, np.float32), 4).reshape(1, 4 * C_out)
        packed += [jnp.asarray(Gw, bf16), jnp.asarray(wmat, bf16),
                   jnp.asarray(bvec), jnp.asarray(S, jnp.float32)]
        h, w = 2 * h, 2 * w

    return tuple(packed)


# ----------------------------- fused Pallas kernel -----------------------------
def _fused_ae_kernel(x_ref,
                     e1g, e1w, e1b, e2g, e2w, e2b, e3g, e3w, e3b,
                     d1g, d1w, d1b, d1s, d2g, d2w, d2b, d2s, d3g, d3w, d3b, d3s,
                     o_ref):
    f32 = jnp.float32
    bf16 = jnp.bfloat16

    def conv_block(x, g_ref, w_ref, b_ref):
        # im2col via exact one-hot gather matmuls (padding folded into g), then one
        # fused matmul + bias.  x: (P_in, C) bf16 -> returns (M, N) f32 pre-activation.
        taps = g_ref.shape[0]
        cols = [jnp.dot(g_ref[t], x, preferred_element_type=f32).astype(bf16)
                for t in range(taps)]
        patches = jnp.concatenate(cols, axis=-1)                    # (M, taps*C)
        acc = jnp.dot(patches, w_ref[...], preferred_element_type=f32)
        return acc + b_ref[...]

    def depth_to_space(phase, s_ref):
        # phase: (HW, 4*C) f32 with lanes ordered (dy, dx, c); s_ref: (4, 4*HW, HW) f32.
        # Exact f32 permutation matmul (no XLA transpose, no precision loss).
        c = phase.shape[-1] // 4
        out = None
        for k in range(4):
            blk = phase[:, k * c:(k + 1) * c]
            part = jnp.dot(s_ref[k], blk, preferred_element_type=f32)
            out = part if out is None else out + part
        return out                                                  # (4*HW, C) f32

    def relu(v):
        return jnp.maximum(v, 0.0)

    def sigmoid(v):
        # exact, numerically stable sigmoid (no approx reciprocal on the final layer)
        e = jnp.exp(-jnp.abs(v))
        return jnp.where(v >= 0.0, 1.0 / (1.0 + e), e / (1.0 + e))

    x = x_ref[0]                                                    # (H*W, 3) bf16
    # ---- encoder: Conv2d(k=3, s=2, p=1) + ReLU, x3 ----
    h = relu(conv_block(x, e1g, e1w, e1b)).astype(bf16)             # (64, 64)
    h = relu(conv_block(h, e2g, e2w, e2b)).astype(bf16)             # (16, 128)
    h = relu(conv_block(h, e3g, e3w, e3b)).astype(bf16)             # (4, 256)
    # ---- decoder: ConvTranspose2d(k=3, s=2, p=1, op=1) via sub-pixel phases ----
    h = depth_to_space(relu(conv_block(h, d1g, d1w, d1b)), d1s).astype(bf16)   # (16, 128)
    h = depth_to_space(relu(conv_block(h, d2g, d2w, d2b)), d2s).astype(bf16)   # (64, 64)
    y = depth_to_space(sigmoid(conv_block(h, d3g, d3w, d3b)), d3s)             # (256, 3)
    o_ref[0] = y.astype(o_ref.dtype)


def _full_block_spec(a):
    nd = a.ndim
    return pl.BlockSpec(a.shape, lambda i, _nd=nd: (0,) * _nd)      # VMEM-resident constant


def autoencoder_forward(packed, x):
    """x: (Nb, 3, H, W) f32 NCHW -> (Nb, 3, H, W) f32, one fused pallas_call."""
    Nb, C, H, W = x.shape
    x_flat = jnp.transpose(x, (0, 2, 3, 1)).reshape(Nb, H * W, C).astype(jnp.bfloat16)

    in_specs = [pl.BlockSpec((1, H * W, C), lambda i: (i, 0, 0))]
    in_specs += [_full_block_spec(a) for a in packed]

    out = pl.pallas_call(
        _fused_ae_kernel,
        out_shape=jax.ShapeDtypeStruct((Nb, H * W, C), jnp.float32),
        grid_spec=pltpu.PrefetchScalarGridSpec(
            num_scalar_prefetch=0,
            grid=(Nb,),                       # one image per grid step; megacore-split
            in_specs=in_specs,
            out_specs=pl.BlockSpec((1, H * W, C), lambda i: (i, 0, 0)),
        ),
        compiler_params=pltpu.CompilerParams(
            dimension_semantics=("parallel",),
            vmem_limit_bytes=32 * 1024 * 1024,
        ),
    )(x_flat, *packed)
    return jnp.transpose(out.reshape(Nb, H, W, C), (0, 3, 1, 2))


# ----------------------------- parameters -----------------------------
def init_params(key):
    """Deterministic init mirroring the module's layer shapes (kaiming-uniform-like)."""
    def conv_w(key, o, c, k):
        bound = 1.0 / jnp.sqrt(c * k * k)
        kw, kb = jax.random.split(key)
        w = jax.random.uniform(kw, (o, c, k, k), jnp.float32, -bound, bound)
        b = jax.random.uniform(kb, (o,), jnp.float32, -bound, bound)
        return w, b

    def tconv_w(key, ci, co, k):
        bound = 1.0 / jnp.sqrt(co * k * k)
        kw, kb = jax.random.split(key)
        w = jax.random.uniform(kw, (ci, co, k, k), jnp.float32, -bound, bound)
        b = jax.random.uniform(kb, (co,), jnp.float32, -bound, bound)
        return w, b

    ks = jax.random.split(key, 6)
    return {
        "enc1": conv_w(ks[0], 64, 3, 3),
        "enc2": conv_w(ks[1], 128, 64, 3),
        "enc3": conv_w(ks[2], 256, 128, 3),
        "dec1": tconv_w(ks[3], 256, 128, 3),
        "dec2": tconv_w(ks[4], 128, 64, 3),
        "dec3": tconv_w(ks[5], 64, 3, 3),
    }


# ----------------------------- pure-JAX f32 reference (for numeric validation) -----------------------------
def reference_forward(params, x):
    hi = jax.lax.Precision.HIGHEST

    def conv(h, w, b):
        y = jax.lax.conv_general_dilated(
            h, w, window_strides=(2, 2), padding=((1, 1), (1, 1)),
            dimension_numbers=("NCHW", "OIHW", "NCHW"), precision=hi)
        return y + b[None, :, None, None]

    def tconv(h, w, b):
        # ConvTranspose2d(k=3, s=2, p=1, output_padding=1) as an lhs-dilated conv
        wf = jnp.transpose(jnp.flip(w, (2, 3)), (1, 0, 2, 3))
        y = jax.lax.conv_general_dilated(
            h, wf, window_strides=(1, 1), padding=((1, 2), (1, 2)),
            lhs_dilation=(2, 2), dimension_numbers=("NCHW", "OIHW", "NCHW"), precision=hi)
        return y + b[None, :, None, None]

    h = jax.nn.relu(conv(x, *params["enc1"]))
    h = jax.nn.relu(conv(h, *params["enc2"]))
    h = jax.nn.relu(conv(h, *params["enc3"]))
    h = jax.nn.relu(tconv(h, *params["dec1"]))
    h = jax.nn.relu(tconv(h, *params["dec2"]))
    return jax.nn.sigmoid(tconv(h, *params["dec3"]))


if __name__ == "__main__":
    key = jax.random.PRNGKey(0)
    k_param, k_x = jax.random.split(key)
    params = init_params(k_param)
    x = jax.random.normal(k_x, (2, 3, 16, 16), jnp.float32)   # NCHW, like PyTorch

    packed = pack_params(params, H=16, W=16)                  # one-time packing (not per-forward)

    fwd = jax.jit(autoencoder_forward)
    y = jax.block_until_ready(fwd(packed, x))

    assert y.shape == (2, 3, 16, 16), y.shape
    assert bool(jnp.all(jnp.isfinite(y)))
    assert bool(jnp.all((y >= 0.0) & (y <= 1.0)))             # sigmoid output range

    # numeric validation vs the f32 reference (bf16 MXU math -> small, bounded drift)
    y_ref = jax.block_until_ready(jax.jit(reference_forward)(params, x))
    max_err = float(jnp.max(jnp.abs(y - y_ref)))
    assert max_err < 2.5e-2, f"max abs error vs f32 reference: {max_err}"

    print("KERNEL_OK")
</pallas_src>

<mosaic_0001>
module attributes {stable_mosaic.version = 11 : i64} {
  func.func @_fused_ae_kernel(%arg0: i32, %arg1: memref<1x256x3xbf16, #tpu.memory_space<vmem>>, %arg2: memref<9x64x256xbf16, #tpu.memory_space<vmem>>, %arg3: memref<27x64xbf16, #tpu.memory_space<vmem>>, %arg4: memref<1x64xf32, #tpu.memory_space<vmem>>, %arg5: memref<9x16x64xbf16, #tpu.memory_space<vmem>>, %arg6: memref<576x128xbf16, #tpu.memory_space<vmem>>, %arg7: memref<1x128xf32, #tpu.memory_space<vmem>>, %arg8: memref<9x4x16xbf16, #tpu.memory_space<vmem>>, %arg9: memref<1152x256xbf16, #tpu.memory_space<vmem>>, %arg10: memref<1x256xf32, #tpu.memory_space<vmem>>, %arg11: memref<4x4x4xbf16, #tpu.memory_space<vmem>>, %arg12: memref<1024x512xbf16, #tpu.memory_space<vmem>>, %arg13: memref<1x512xf32, #tpu.memory_space<vmem>>, %arg14: memref<4x16x4xf32, #tpu.memory_space<vmem>>, %arg15: memref<4x16x16xbf16, #tpu.memory_space<vmem>>, %arg16: memref<512x256xbf16, #tpu.memory_space<vmem>>, %arg17: memref<1x256xf32, #tpu.memory_space<vmem>>, %arg18: memref<4x64x16xf32, #tpu.memory_space<vmem>>, %arg19: memref<4x64x64xbf16, #tpu.memory_space<vmem>>, %arg20: memref<256x12xbf16, #tpu.memory_space<vmem>>, %arg21: memref<1x12xf32, #tpu.memory_space<vmem>>, %arg22: memref<4x256x64xf32, #tpu.memory_space<vmem>>, %arg23: memref<1x256x3xf32, #tpu.memory_space<vmem>>) attributes {dimension_semantics = [#tpu.dimension_semantics<parallel>], iteration_bounds = array<i64: 2>, scalar_prefetch = 0 : i64, scratch_operands = 0 : i64, tpu.core_type = #tpu.core_type<tc>, window_params = [{transform_indices = @transform_0, window_bounds = array<i64: 1, 256, 3>}, {pipeline_mode = #tpu.pipeline_mode<synchronous>, transform_indices = @transform_1, window_bounds = array<i64: 9, 64, 256>}, {pipeline_mode = #tpu.pipeline_mode<synchronous>, transform_indices = @transform_2, window_bounds = array<i64: 27, 64>}, {pipeline_mode = #tpu.pipeline_mode<synchronous>, transform_indices = @transform_3, window_bounds = array<i64: 1, 64>}, {pipeline_mode = #tpu.pipeline_mode<synchronous>, transform_indices = @transform_4, window_bounds = array<i64: 9, 16, 64>}, {pipeline_mode = #tpu.pipeline_mode<synchronous>, transform_indices = @transform_5, window_bounds = array<i64: 576, 128>}, {pipeline_mode = #tpu.pipeline_mode<synchronous>, transform_indices = @transform_6, window_bounds = array<i64: 1, 128>}, {pipeline_mode = #tpu.pipeline_mode<synchronous>, transform_indices = @transform_7, window_bounds = array<i64: 9, 4, 16>}, {pipeline_mode = #tpu.pipeline_mode<synchronous>, transform_indices = @transform_8, window_bounds = array<i64: 1152, 256>}, {pipeline_mode = #tpu.pipeline_mode<synchronous>, transform_indices = @transform_9, window_bounds = array<i64: 1, 256>}, {pipeline_mode = #tpu.pipeline_mode<synchronous>, transform_indices = @transform_10, window_bounds = array<i64: 4, 4, 4>}, {pipeline_mode = #tpu.pipeline_mode<synchronous>, transform_indices = @transform_11, window_bounds = array<i64: 1024, 512>}, {pipeline_mode = #tpu.pipeline_mode<synchronous>, transform_indices = @transform_12, window_bounds = array<i64: 1, 512>}, {pipeline_mode = #tpu.pipeline_mode<synchronous>, transform_indices = @transform_13, window_bounds = array<i64: 4, 16, 4>}, {pipeline_mode = #tpu.pipeline_mode<synchronous>, transform_indices = @transform_14, window_bounds = array<i64: 4, 16, 16>}, {pipeline_mode = #tpu.pipeline_mode<synchronous>, transform_indices = @transform_15, window_bounds = array<i64: 512, 256>}, {pipeline_mode = #tpu.pipeline_mode<synchronous>, transform_indices = @transform_16, window_bounds = array<i64: 1, 256>}, {pipeline_mode = #tpu.pipeline_mode<synchronous>, transform_indices = @transform_17, window_bounds = array<i64: 4, 64, 16>}, {pipeline_mode = #tpu.pipeline_mode<synchronous>, transform_indices = @transform_18, window_bounds = array<i64: 4, 64, 64>}, {pipeline_mode = #tpu.pipeline_mode<synchronous>, transform_indices = @transform_19, window_bounds = array<i64: 256, 12>}, {pipeline_mode = #tpu.pipeline_mode<synchronous>, transform_indices = @transform_20, window_bounds = array<i64: 1, 12>}, {pipeline_mode = #tpu.pipeline_mode<synchronous>, transform_indices = @transform_21, window_bounds = array<i64: 4, 256, 64>}, {transform_indices = @transform_22, window_bounds = array<i64: 1, 256, 3>}]} {
    %c0 = arith.constant 0 : index
    %c0_0 = arith.constant 0 : index
    %c0_1 = arith.constant 0 : index
    %0 = vector.load %arg1[%c0, %c0_0, %c0_1] : memref<1x256x3xbf16, #tpu.memory_space<vmem>>, vector<1x256x3xbf16>
    %1 = vector.shape_cast %0 : vector<1x256x3xbf16> to vector<256x3xbf16>
    %c0_2 = arith.constant 0 : index
    %c0_3 = arith.constant 0 : index
    %c0_4 = arith.constant 0 : index
    %2 = vector.load %arg2[%c0_2, %c0_3, %c0_4] : memref<9x64x256xbf16, #tpu.memory_space<vmem>>, vector<1x64x256xbf16>
    %3 = vector.shape_cast %2 : vector<1x64x256xbf16> to vector<64x256xbf16>
    %cst = arith.constant dense<0.000000e+00> : vector<64x3xf32>
    %4 = tpu.matmul %3, %1, %cst {dimension_numbers = #tpu.dot_dimension_numbers<[1], [0], [0], [1], [0, 0, 1, 1], [], []>} : vector<64x256xbf16>, vector<256x3xbf16>, vector<64x3xf32> -> vector<64x3xf32>
    %5 = arith.truncf %4 : vector<64x3xf32> to vector<64x3xbf16>
    %c1 = arith.constant 1 : index
    %c0_5 = arith.constant 0 : index
    %c0_6 = arith.constant 0 : index
    %6 = vector.load %arg2[%c1, %c0_5, %c0_6] : memref<9x64x256xbf16, #tpu.memory_space<vmem>>, vector<1x64x256xbf16>
    %7 = vector.shape_cast %6 : vector<1x64x256xbf16> to vector<64x256xbf16>
    %cst_7 = arith.constant dense<0.000000e+00> : vector<64x3xf32>
    %8 = tpu.matmul %7, %1, %cst_7 {dimension_numbers = #tpu.dot_dimension_numbers<[1], [0], [0], [1], [0, 0, 1, 1], [], []>} : vector<64x256xbf16>, vector<256x3xbf16>, vector<64x3xf32> -> vector<64x3xf32>
    %9 = arith.truncf %8 : vector<64x3xf32> to vector<64x3xbf16>
    %c2 = arith.constant 2 : index
    %c0_8 = arith.constant 0 : index
    %c0_9 = arith.constant 0 : index
    %10 = vector.load %arg2[%c2, %c0_8, %c0_9] : memref<9x64x256xbf16, #tpu.memory_space<vmem>>, vector<1x64x256xbf16>
    %11 = vector.shape_cast %10 : vector<1x64x256xbf16> to vector<64x256xbf16>
    %cst_10 = arith.constant dense<0.000000e+00> : vector<64x3xf32>
    %12 = tpu.matmul %11, %1, %cst_10 {dimension_numbers = #tpu.dot_dimension_numbers<[1], [0], [0], [1], [0, 0, 1, 1], [], []>} : vector<64x256xbf16>, vector<256x3xbf16>, vector<64x3xf32> -> vector<64x3xf32>
    %13 = arith.truncf %12 : vector<64x3xf32> to vector<64x3xbf16>
    %c3 = arith.constant 3 : index
    %c0_11 = arith.constant 0 : index
    %c0_12 = arith.constant 0 : index
    %14 = vector.load %arg2[%c3, %c0_11, %c0_12] : memref<9x64x256xbf16, #tpu.memory_space<vmem>>, vector<1x64x256xbf16>
    %15 = vector.shape_cast %14 : vector<1x64x256xbf16> to vector<64x256xbf16>
    %cst_13 = arith.constant dense<0.000000e+00> : vector<64x3xf32>
    %16 = tpu.matmul %15, %1, %cst_13 {dimension_numbers = #tpu.dot_dimension_numbers<[1], [0], [0], [1], [0, 0, 1, 1], [], []>} : vector<64x256xbf16>, vector<256x3xbf16>, vector<64x3xf32> -> vector<64x3xf32>
    %17 = arith.truncf %16 : vector<64x3xf32> to vector<64x3xbf16>
    %c4 = arith.constant 4 : index
    %c0_14 = arith.constant 0 : index
    %c0_15 = arith.constant 0 : index
    %18 = vector.load %arg2[%c4, %c0_14, %c0_15] : memref<9x64x256xbf16, #tpu.memory_space<vmem>>, vector<1x64x256xbf16>
    %19 = vector.shape_cast %18 : vector<1x64x256xbf16> to vector<64x256xbf16>
    %cst_16 = arith.constant dense<0.000000e+00> : vector<64x3xf32>
    %20 = tpu.matmul %19, %1, %cst_16 {dimension_numbers = #tpu.dot_dimension_numbers<[1], [0], [0], [1], [0, 0, 1, 1], [], []>} : vector<64x256xbf16>, vector<256x3xbf16>, vector<64x3xf32> -> vector<64x3xf32>
    %21 = arith.truncf %20 : vector<64x3xf32> to vector<64x3xbf16>
    %c5 = arith.constant 5 : index
    %c0_17 = arith.constant 0 : index
    %c0_18 = arith.constant 0 : index
    %22 = vector.load %arg2[%c5, %c0_17, %c0_18] : memref<9x64x256xbf16, #tpu.memory_space<vmem>>, vector<1x64x256xbf16>
    %23 = vector.shape_cast %22 : vector<1x64x256xbf16> to vector<64x256xbf16>
    %cst_19 = arith.constant dense<0.000000e+00> : vector<64x3xf32>
    %24 = tpu.matmul %23, %1, %cst_19 {dimension_numbers = #tpu.dot_dimension_numbers<[1], [0], [0], [1], [0, 0, 1, 1], [], []>} : vector<64x256xbf16>, vector<256x3xbf16>, vector<64x3xf32> -> vector<64x3xf32>
    %25 = arith.truncf %24 : vector<64x3xf32> to vector<64x3xbf16>
    %c6 = arith.constant 6 : index
    %c0_20 = arith.constant 0 : index
    %c0_21 = arith.constant 0 : index
    %26 = vector.load %arg2[%c6, %c0_20, %c0_21] : memref<9x64x256xbf16, #tpu.memory_space<vmem>>, vector<1x64x256xbf16>
    %27 = vector.shape_cast %26 : vector<1x64x256xbf16> to vector<64x256xbf16>
    %cst_22 = arith.constant dense<0.000000e+00> : vector<64x3xf32>
    %28 = tpu.matmul %27, %1, %cst_22 {dimension_numbers = #tpu.dot_dimension_numbers<[1], [0], [0], [1], [0, 0, 1, 1], [], []>} : vector<64x256xbf16>, vector<256x3xbf16>, vector<64x3xf32> -> vector<64x3xf32>
    %29 = arith.truncf %28 : vector<64x3xf32> to vector<64x3xbf16>
    %c7 = arith.constant 7 : index
    %c0_23 = arith.constant 0 : index
    %c0_24 = arith.constant 0 : index
    %30 = vector.load %arg2[%c7, %c0_23, %c0_24] : memref<9x64x256xbf16, #tpu.memory_space<vmem>>, vector<1x64x256xbf16>
    %31 = vector.shape_cast %30 : vector<1x64x256xbf16> to vector<64x256xbf16>
    %cst_25 = arith.constant dense<0.000000e+00> : vector<64x3xf32>
    %32 = tpu.matmul %31, %1, %cst_25 {dimension_numbers = #tpu.dot_dimension_numbers<[1], [0], [0], [1], [0, 0, 1, 1], [], []>} : vector<64x256xbf16>, vector<256x3xbf16>, vector<64x3xf32> -> vector<64x3xf32>
    %33 = arith.truncf %32 : vector<64x3xf32> to vector<64x3xbf16>
    %c8 = arith.constant 8 : index
    %c0_26 = arith.constant 0 : index
    %c0_27 = arith.constant 0 : index
    %34 = vector.load %arg2[%c8, %c0_26, %c0_27] : memref<9x64x256xbf16, #tpu.memory_space<vmem>>, vector<1x64x256xbf16>
    %35 = vector.shape_cast %34 : vector<1x64x256xbf16> to vector<64x256xbf16>
    %cst_28 = arith.constant dense<0.000000e+00> : vector<64x3xf32>
    %36 = tpu.matmul %35, %1, %cst_28 {dimension_numbers = #tpu.dot_dimension_numbers<[1], [0], [0], [1], [0, 0, 1, 1], [], []>} : vector<64x256xbf16>, vector<256x3xbf16>, vector<64x3xf32> -> vector<64x3xf32>
    %37 = arith.truncf %36 : vector<64x3xf32> to vector<64x3xbf16>
    %38 = tpu.concatenate %5, %9, %13, %17, %21, %25, %29, %33, %37 in 1 : vector<64x3xbf16>, vector<64x3xbf16>, vector<64x3xbf16>, vector<64x3xbf16>, vector<64x3xbf16>, vector<64x3xbf16>, vector<64x3xbf16>, vector<64x3xbf16>, vector<64x3xbf16> -> vector<64x27xbf16>
    %c0_29 = arith.constant 0 : index
    %c0_30 = arith.constant 0 : index
    %39 = vector.load %arg3[%c0_29, %c0_30] : memref<27x64xbf16, #tpu.memory_space<vmem>>, vector<27x64xbf16>
    %cst_31 = arith.constant dense<0.000000e+00> : vector<64x64xf32>
    %40 = tpu.matmul %38, %39, %cst_31 {dimension_numbers = #tpu.dot_dimension_numbers<[1], [0], [0], [1], [0, 0, 1, 1], [], []>} : vector<64x27xbf16>, vector<27x64xbf16>, vector<64x64xf32> -> vector<64x64xf32>
    %c0_32 = arith.constant 0 : index
    %c0_33 = arith.constant 0 : index
    %41 = vector.load %arg4[%c0_32, %c0_33] : memref<1x64xf32, #tpu.memory_space<vmem>>, vector<1x64xf32>
    %42 = vector.broadcast %41 : vector<1x64xf32> to vector<64x64xf32>
    %43 = arith.addf %40, %42 : vector<64x64xf32>
    %cst_34 = arith.constant 0.000000e+00 : f32
    %44 = vector.broadcast %cst_34 : f32 to vector<64x64xf32>
    %45 = arith.maximumf %43, %44 : vector<64x64xf32>
    %46 = arith.truncf %45 : vector<64x64xf32> to vector<64x64xbf16>
    %c0_35 = arith.constant 0 : index
    %c0_36 = arith.constant 0 : index
    %c0_37 = arith.constant 0 : index
    %47 = vector.load %arg5[%c0_35, %c0_36, %c0_37] : memref<9x16x64xbf16, #tpu.memory_space<vmem>>, vector<1x16x64xbf16>
    %48 = vector.shape_cast %47 : vector<1x16x64xbf16> to vector<16x64xbf16>
    %cst_38 = arith.constant dense<0.000000e+00> : vector<16x64xf32>
    %49 = tpu.matmul %48, %46, %cst_38 {dimension_numbers = #tpu.dot_dimension_numbers<[1], [0], [0], [1], [0, 0, 1, 1], [], []>} : vector<16x64xbf16>, vector<64x64xbf16>, vector<16x64xf32> -> vector<16x64xf32>
    %50 = arith.truncf %49 : vector<16x64xf32> to vector<16x64xbf16>
    %c1_39 = arith.constant 1 : index
    %c0_40 = arith.constant 0 : index
    %c0_41 = arith.constant 0 : index
    %51 = vector.load %arg5[%c1_39, %c0_40, %c0_41] : memref<9x16x64xbf16, #tpu.memory_space<vmem>>, vector<1x16x64xbf16>
    %52 = vector.shape_cast %51 : vector<1x16x64xbf16> to vector<16x64xbf16>
    %cst_42 = arith.constant dense<0.000000e+00> : vector<16x64xf32>
    %53 = tpu.matmul %52, %46, %cst_42 {dimension_numbers = #tpu.dot_dimension_numbers<[1], [0], [0], [1], [0, 0, 1, 1], [], []>} : vector<16x64xbf16>, vector<64x64xbf16>, vector<16x64xf32> -> vector<16x64xf32>
    %54 = arith.truncf %53 : vector<16x64xf32> to vector<16x64xbf16>
    %c2_43 = arith.constant 2 : index
    %c0_44 = arith.constant 0 : index
    %c0_45 = arith.constant 0 : index
    %55 = vector.load %arg5[%c2_43, %c0_44, %c0_45] : memref<9x16x64xbf16, #tpu.memory_space<vmem>>, vector<1x16x64xbf16>
    %56 = vector.shape_cast %55 : vector<1x16x64xbf16> to vector<16x64xbf16>
    %cst_46 = arith.constant dense<0.000000e+00> : vector<16x64xf32>
    %57 = tpu.matmul %56, %46, %cst_46 {dimension_numbers = #tpu.dot_dimension_numbers<[1], [0], [0], [1], [0, 0, 1, 1], [], []>} : vector<16x64xbf16>, vector<64x64xbf16>, vector<16x64xf32> -> vector<16x64xf32>
    %58 = arith.truncf %57 : vector<16x64xf32> to vector<16x64xbf16>
    %c3_47 = arith.constant 3 : index
    %c0_48 = arith.constant 0 : index
    %c0_49 = arith.constant 0 : index
    %59 = vector.load %arg5[%c3_47, %c0_48, %c0_49] : memref<9x16x64xbf16, #tpu.memory_space<vmem>>, vector<1x16x64xbf16>
    %60 = vector.shape_cast %59 : vector<1x16x64xbf16> to vector<16x64xbf16>
    %cst_50 = arith.constant dense<0.000000e+00> : vector<16x64xf32>
    %61 = tpu.matmul %60, %46, %cst_50 {dimension_numbers = #tpu.dot_dimension_numbers<[1], [0], [0], [1], [0, 0, 1, 1], [], []>} : vector<16x64xbf16>, vector<64x64xbf16>, vector<16x64xf32> -> vector<16x64xf32>
    %62 = arith.truncf %61 : vector<16x64xf32> to vector<16x64xbf16>
    %c4_51 = arith.constant 4 : index
    %c0_52 = arith.constant 0 : index
    %c0_53 = arith.constant 0 : index
    %63 = vector.load %arg5[%c4_51, %c0_52, %c0_53] : memref<9x16x64xbf16, #tpu.memory_space<vmem>>, vector<1x16x64xbf16>
    %64 = vector.shape_cast %63 : vector<1x16x64xbf16> to vector<16x64xbf16>
    %cst_54 = arith.constant dense<0.000000e+00> : vector<16x64xf32>
    %65 = tpu.matmul %64, %46, %cst_54 {dimension_numbers = #tpu.dot_dimension_numbers<[1], [0], [0], [1], [0, 0, 1, 1], [], []>} : vector<16x64xbf16>, vector<64x64xbf16>, vector<16x64xf32> -> vector<16x64xf32>
    %66 = arith.truncf %65 : vector<16x64xf32> to vector<16x64xbf16>
    %c5_55 = arith.constant 5 : index
    %c0_56 = arith.constant 0 : index
    %c0_57 = arith.constant 0 : index
    %67 = vector.load %arg5[%c5_55, %c0_56, %c0_57] : memref<9x16x64xbf16, #tpu.memory_space<vmem>>, vector<1x16x64xbf16>
    %68 = vector.shape_cast %67 : vector<1x16x64xbf16> to vector<16x64xbf16>
    %cst_58 = arith.constant dense<0.000000e+00> : vector<16x64xf32>
    %69 = tpu.matmul %68, %46, %cst_58 {dimension_numbers = #tpu.dot_dimension_numbers<[1], [0], [0], [1], [0, 0, 1, 1], [], []>} : vector<16x64xbf16>, vector<64x64xbf16>, vector<16x64xf32> -> vector<16x64xf32>
    %70 = arith.truncf %69 : vector<16x64xf32> to vector<16x64xbf16>
    %c6_59 = arith.constant 6 : index
    %c0_60 = arith.constant 0 : index
    %c0_61 = arith.constant 0 : index
    %71 = vector.load %arg5[%c6_59, %c0_60, %c0_61] : memref<9x16x64xbf16, #tpu.memory_space<vmem>>, vector<1x16x64xbf16>
    %72 = vector.shape_cast %71 : vector<1x16x64xbf16> to vector<16x64xbf16>
    %cst_62 = arith.constant dense<0.000000e+00> : vector<16x64xf32>
    %73 = tpu.matmul %72, %46, %cst_62 {dimension_numbers = #tpu.dot_dimension_numbers<[1], [0], [0], [1], [0, 0, 1, 1], [], []>} : vector<16x64xbf16>, vector<64x64xbf16>, vector<16x64xf32> -> vector<16x64xf32>
    %74 = arith.truncf %73 : vector<16x64xf32> to vector<16x64xbf16>
    %c7_63 = arith.constant 7 : index
    %c0_64 = arith.constant 0 : index
    %c0_65 = arith.constant 0 : index
    %75 = vector.load %arg5[%c7_63, %c0_64, %c0_65] : memref<9x16x64xbf16, #tpu.memory_space<vmem>>, vector<1x16x64xbf16>
    %76 = vector.shape_cast %75 : vector<1x16x64xbf16> to vector<16x64xbf16>
    %cst_66 = arith.constant dense<0.000000e+00> : vector<16x64xf32>
    %77 = tpu.matmul %76, %46, %cst_66 {dimension_numbers = #tpu.dot_dimension_numbers<[1], [0], [0], [1], [0, 0, 1, 1], [], []>} : vector<16x64xbf16>, vector<64x64xbf16>, vector<16x64xf32> -> vector<16x64xf32>
    %78 = arith.truncf %77 : vector<16x64xf32> to vector<16x64xbf16>
    %c8_67 = arith.constant 8 : index
    %c0_68 = arith.constant 0 : index
    %c0_69 = arith.constant 0 : index
    %79 = vector.load %arg5[%c8_67, %c0_68, %c0_69] : memref<9x16x64xbf16, #tpu.memory_space<vmem>>, vector<1x16x64xbf16>
    %80 = vector.shape_cast %79 : vector<1x16x64xbf16> to vector<16x64xbf16>
    %cst_70 = arith.constant dense<0.000000e+00> : vector<16x64xf32>
    %81 = tpu.matmul %80, %46, %cst_70 {dimension_numbers = #tpu.dot_dimension_numbers<[1], [0], [0], [1], [0, 0, 1, 1], [], []>} : vector<16x64xbf16>, vector<64x64xbf16>, vector<16x64xf32> -> vector<16x64xf32>
    %82 = arith.truncf %81 : vector<16x64xf32> to vector<16x64xbf16>
    %83 = tpu.concatenate %50, %54, %58, %62, %66, %70, %74, %78, %82 in 1 : vector<16x64xbf16>, vector<16x64xbf16>, vector<16x64xbf16>, vector<16x64xbf16>, vector<16x64xbf16>, vector<16x64xbf16>, vector<16x64xbf16>, vector<16x64xbf16>, vector<16x64xbf16> -> vector<16x576xbf16>
    %c0_71 = arith.constant 0 : index
    %c0_72 = arith.constant 0 : index
    %84 = vector.load %arg6[%c0_71, %c0_72] : memref<576x128xbf16, #tpu.memory_space<vmem>>, vector<576x128xbf16>
    %cst_73 = arith.constant dense<0.000000e+00> : vector<16x128xf32>
    %85 = tpu.matmul %83, %84, %cst_73 {dimension_numbers = #tpu.dot_dimension_numbers<[1], [0], [0], [1], [0, 0, 1, 1], [], []>} : vector<16x576xbf16>, vector<576x128xbf16>, vector<16x128xf32> -> vector<16x128xf32>
    %c0_74 = arith.constant 0 : index
    %c0_75 = arith.constant 0 : index
    %86 = vector.load %arg7[%c0_74, %c0_75] : memref<1x128xf32, #tpu.memory_space<vmem>>, vector<1x128xf32>
    %87 = vector.broadcast %86 : vector<1x128xf32> to vector<16x128xf32>
    %88 = arith.addf %85, %87 : vector<16x128xf32>
    %cst_76 = arith.constant 0.000000e+00 : f32
    %89 = vector.broadcast %cst_76 : f32 to vector<16x128xf32>
    %90 = arith.maximumf %88, %89 : vector<16x128xf32>
    %91 = arith.truncf %90 : vector<16x128xf32> to vector<16x128xbf16>
    %c0_77 = arith.constant 0 : index
    %c0_78 = arith.constant 0 : index
    %c0_79 = arith.constant 0 : index
    %92 = vector.load %arg8[%c0_77, %c0_78, %c0_79] : memref<9x4x16xbf16, #tpu.memory_space<vmem>>, vector<1x4x16xbf16>
    %93 = vector.shape_cast %92 : vector<1x4x16xbf16> to vector<4x16xbf16>
    %cst_80 = arith.constant dense<0.000000e+00> : vector<4x128xf32>
    %94 = tpu.matmul %93, %91, %cst_80 {dimension_numbers = #tpu.dot_dimension_numbers<[1], [0], [0], [1], [0, 0, 1, 1], [], []>} : vector<4x16xbf16>, vector<16x128xbf16>, vector<4x128xf32> -> vector<4x128xf32>
    %95 = arith.truncf %94 : vector<4x128xf32> to vector<4x128xbf16>
    %c1_81 = arith.constant 1 : index
    %c0_82 = arith.constant 0 : index
    %c0_83 = arith.constant 0 : index
    %96 = vector.load %arg8[%c1_81, %c0_82, %c0_83] : memref<9x4x16xbf16, #tpu.memory_space<vmem>>, vector<1x4x16xbf16>
    %97 = vector.shape_cast %96 : vector<1x4x16xbf16> to vector<4x16xbf16>
    %cst_84 = arith.constant dense<0.000000e+00> : vector<4x128xf32>
    %98 = tpu.matmul %97, %91, %cst_84 {dimension_numbers = #tpu.dot_dimension_numbers<[1], [0], [0], [1], [0, 0, 1, 1], [], []>} : vector<4x16xbf16>, vector<16x128xbf16>, vector<4x128xf32> -> vector<4x128xf32>
    %99 = arith.truncf %98 : vector<4x128xf32> to vector<4x128xbf16>
    %c2_85 = arith.constant 2 : index
    %c0_86 = arith.constant 0 : index
    %c0_87 = arith.constant 0 : index
    %100 = vector.load %arg8[%c2_85, %c0_86, %c0_87] : memref<9x4x16xbf16, #tpu.memory_space<vmem>>, vector<1x4x16xbf16>
    %101 = vector.shape_cast %100 : vector<1x4x16xbf16> to vector<4x16xbf16>
    %cst_88 = arith.constant dense<0.000000e+00> : vector<4x128xf32>
    %102 = tpu.matmul %101, %91, %cst_88 {dimension_numbers = #tpu.dot_dimension_numbers<[1], [0], [0], [1], [0, 0, 1, 1], [], []>} : vector<4x16xbf16>, vector<16x128xbf16>, vector<4x128xf32> -> vector<4x128xf32>
    %103 = arith.truncf %102 : vector<4x128xf32> to vector<4x128xbf16>
    %c3_89 = arith.constant 3 : index
    %c0_90 = arith.constant 0 : index
    %c0_91 = arith.constant 0 : index
    %104 = vector.load %arg8[%c3_89, %c0_90, %c0_91] : memref<9x4x16xbf16, #tpu.memory_space<vmem>>, vector<1x4x16xbf16>
    %105 = vector.shape_cast %104 : vector<1x4x16xbf16> to vector<4x16xbf16>
    %cst_92 = arith.constant dense<0.000000e+00> : vector<4x128xf32>
    %106 = tpu.matmul %105, %91, %cst_92 {dimension_numbers = #tpu.dot_dimension_numbers<[1], [0], [0], [1], [0, 0, 1, 1], [], []>} : vector<4x16xbf16>, vector<16x128xbf16>, vector<4x128xf32> -> vector<4x128xf32>
    %107 = arith.truncf %106 : vector<4x128xf32> to vector<4x128xbf16>
    %c4_93 = arith.constant 4 : index
    %c0_94 = arith.constant 0 : index
    %c0_95 = arith.constant 0 : index
    %108 = vector.load %arg8[%c4_93, %c0_94, %c0_95] : memref<9x4x16xbf16, #tpu.memory_space<vmem>>, vector<1x4x16xbf16>
    %109 = vector.shape_cast %108 : vector<1x4x16xbf16> to vector<4x16xbf16>
    %cst_96 = arith.constant dense<0.000000e+00> : vector<4x128xf32>
    %110 = tpu.matmul %109, %91, %cst_96 {dimension_numbers = #tpu.dot_dimension_numbers<[1], [0], [0], [1], [0, 0, 1, 1], [], []>} : vector<4x16xbf16>, vector<16x128xbf16>, vector<4x128xf32> -> vector<4x128xf32>
    %111 = arith.truncf %110 : vector<4x128xf32> to vector<4x128xbf16>
    %c5_97 = arith.constant 5 : index
    %c0_98 = arith.constant 0 : index
    %c0_99 = arith.constant 0 : index
    %112 = vector.load %arg8[%c5_97, %c0_98, %c0_99] : memref<9x4x16xbf16, #tpu.memory_space<vmem>>, vector<1x4x16xbf16>
    %113 = vector.shape_cast %112 : vector<1x4x16xbf16> to vector<4x16xbf16>
    %cst_100 = arith.constant dense<0.000000e+00> : vector<4x128xf32>
    %114 = tpu.matmul %113, %91, %cst_100 {dimension_numbers = #tpu.dot_dimension_numbers<[1], [0], [0], [1], [0, 0, 1, 1], [], []>} : vector<4x16xbf16>, vector<16x128xbf16>, vector<4x128xf32> -> vector<4x128xf32>
    %115 = arith.truncf %114 : vector<4x128xf32> to vector<4x128xbf16>
    %c6_101 = arith.constant 6 : index
    %c0_102 = arith.constant 0 : index
    %c0_103 = arith.constant 0 : index
    %116 = vector.load %arg8[%c6_101, %c0_102, %c0_103] : memref<9x4x16xbf16, #tpu.memory_space<vmem>>, vector<1x4x16xbf16>
    %117 = vector.shape_cast %116 : vector<1x4x16xbf16> to vector<4x16xbf16>
    %cst_104 = arith.constant dense<0.000000e+00> : vector<4x128xf32>
    %118 = tpu.matmul %117, %91, %cst_104 {dimension_numbers = #tpu.dot_dimension_numbers<[1], [0], [0], [1], [0, 0, 1, 1], [], []>} : vector<4x16xbf16>, vector<16x128xbf16>, vector<4x128xf32> -> vector<4x128xf32>
    %119 = arith.truncf %118 : vector<4x128xf32> to vector<4x128xbf16>
    %c7_105 = arith.constant 7 : index
    %c0_106 = arith.constant 0 : index
    %c0_107 = arith.constant 0 : index
    %120 = vector.load %arg8[%c7_105, %c0_106, %c0_107] : memref<9x4x16xbf16, #tpu.memory_space<vmem>>, vector<1x4x16xbf16>
    %121 = vector.shape_cast %120 : vector<1x4x16xbf16> to vector<4x16xbf16>
    %cst_108 = arith.constant dense<0.000000e+00> : vector<4x128xf32>
    %122 = tpu.matmul %121, %91, %cst_108 {dimension_numbers = #tpu.dot_dimension_numbers<[1], [0], [0], [1], [0, 0, 1, 1], [], []>} : vector<4x16xbf16>, vector<16x128xbf16>, vector<4x128xf32> -> vector<4x128xf32>
    %123 = arith.truncf %122 : vector<4x128xf32> to vector<4x128xbf16>
    %c8_109 = arith.constant 8 : index
    %c0_110 = arith.constant 0 : index
    %c0_111 = arith.constant 0 : index
    %124 = vector.load %arg8[%c8_109, %c0_110, %c0_111] : memref<9x4x16xbf16, #tpu.memory_space<vmem>>, vector<1x4x16xbf16>
    %125 = vector.shape_cast %124 : vector<1x4x16xbf16> to vector<4x16xbf16>
    %cst_112 = arith.constant dense<0.000000e+00> : vector<4x128xf32>
    %126 = tpu.matmul %125, %91, %cst_112 {dimension_numbers = #tpu.dot_dimension_numbers<[1], [0], [0], [1], [0, 0, 1, 1], [], []>} : vector<4x16xbf16>, vector<16x128xbf16>, vector<4x128xf32> -> vector<4x128xf32>
    %127 = arith.truncf %126 : vector<4x128xf32> to vector<4x128xbf16>
    %128 = tpu.concatenate %95, %99, %103, %107, %111, %115, %119, %123, %127 in 1 : vector<4x128xbf16>, vector<4x128xbf16>, vector<4x128xbf16>, vector<4x128xbf16>, vector<4x128xbf16>, vector<4x128xbf16>, vector<4x128xbf16>, vector<4x128xbf16>, vector<4x128xbf16> -> vector<4x1152xbf16>
    %c0_113 = arith.constant 0 : index
    %c0_114 = arith.constant 0 : index
    %129 = vector.load %arg9[%c0_113, %c0_114] : memref<1152x256xbf16, #tpu.memory_space<vmem>>, vector<1152x256xbf16>
    %cst_115 = arith.constant dense<0.000000e+00> : vector<4x256xf32>
    %130 = tpu.matmul %128, %129, %cst_115 {dimension_numbers = #tpu.dot_dimension_numbers<[1], [0], [0], [1], [0, 0, 1, 1], [], []>} : vector<4x1152xbf16>, vector<1152x256xbf16>, vector<4x256xf32> -> vector<4x256xf32>
    %c0_116 = arith.constant 0 : index
    %c0_117 = arith.constant 0 : index
    %131 = vector.load %arg10[%c0_116, %c0_117] : memref<1x256xf32, #tpu.memory_space<vmem>>, vector<1x256xf32>
    %132 = vector.broadcast %131 : vector<1x256xf32> to vector<4x256xf32>
    %133 = arith.addf %130, %132 : vector<4x256xf32>
    %cst_118 = arith.constant 0.000000e+00 : f32
    %134 = vector.broadcast %cst_118 : f32 to vector<4x256xf32>
    %135 = arith.maximumf %133, %134 : vector<4x256xf32>
    %136 = arith.truncf %135 : vector<4x256xf32> to vector<4x256xbf16>
    %c0_119 = arith.constant 0 : index
    %c0_120 = arith.constant 0 : index
    %c0_121 = arith.constant 0 : index
    %137 = vector.load %arg11[%c0_119, %c0_120, %c0_121] : memref<4x4x4xbf16, #tpu.memory_space<vmem>>, vector<1x4x4xbf16>
    %138 = vector.shape_cast %137 : vector<1x4x4xbf16> to vector<4x4xbf16>
    %cst_122 = arith.constant dense<0.000000e+00> : vector<4x256xf32>
    %139 = tpu.matmul %138, %136, %cst_122 {dimension_numbers = #tpu.dot_dimension_numbers<[1], [0], [0], [1], [0, 0, 1, 1], [], []>} : vector<4x4xbf16>, vector<4x256xbf16>, vector<4x256xf32> -> vector<4x256xf32>
    %140 = arith.truncf %139 : vector<4x256xf32> to vector<4x256xbf16>
    %c1_123 = arith.constant 1 : index
    %c0_124 = arith.constant 0 : index
    %c0_125 = arith.constant 0 : index
    %141 = vector.load %arg11[%c1_123, %c0_124, %c0_125] : memref<4x4x4xbf16, #tpu.memory_space<vmem>>, vector<1x4x4xbf16>
    %142 = vector.shape_cast %141 : vector<1x4x4xbf16> to vector<4x4xbf16>
    %cst_126 = arith.constant dense<0.000000e+00> : vector<4x256xf32>
    %143 = tpu.matmul %142, %136, %cst_126 {dimension_numbers = #tpu.dot_dimension_numbers<[1], [0], [0], [1], [0, 0, 1, 1], [], []>} : vector<4x4xbf16>, vector<4x256xbf16>, vector<4x256xf32> -> vector<4x256xf32>
    %144 = arith.truncf %143 : vector<4x256xf32> to vector<4x256xbf16>
    %c2_127 = arith.constant 2 : index
    %c0_128 = arith.constant 0 : index
    %c0_129 = arith.constant 0 : index
    %145 = vector.load %arg11[%c2_127, %c0_128, %c0_129] : memref<4x4x4xbf16, #tpu.memory_space<vmem>>, vector<1x4x4xbf16>
    %146 = vector.shape_cast %145 : vector<1x4x4xbf16> to vector<4x4xbf16>
    %cst_130 = arith.constant dense<0.000000e+00> : vector<4x256xf32>
    %147 = tpu.matmul %146, %136, %cst_130 {dimension_numbers = #tpu.dot_dimension_numbers<[1], [0], [0], [1], [0, 0, 1, 1], [], []>} : vector<4x4xbf16>, vector<4x256xbf16>, vector<4x256xf32> -> vector<4x256xf32>
    %148 = arith.truncf %147 : vector<4x256xf32> to vector<4x256xbf16>
    %c3_131 = arith.constant 3 : index
    %c0_132 = arith.constant 0 : index
    %c0_133 = arith.constant 0 : index
    %149 = vector.load %arg11[%c3_131, %c0_132, %c0_133] : memref<4x4x4xbf16, #tpu.memory_space<vmem>>, vector<1x4x4xbf16>
    %150 = vector.shape_cast %149 : vector<1x4x4xbf16> to vector<4x4xbf16>
    %cst_134 = arith.constant dense<0.000000e+00> : vector<4x256xf32>
    %151 = tpu.matmul %150, %136, %cst_134 {dimension_numbers = #tpu.dot_dimension_numbers<[1], [0], [0], [1], [0, 0, 1, 1], [], []>} : vector<4x4xbf16>, vector<4x256xbf16>, vector<4x256xf32> -> vector<4x256xf32>
    %152 = arith.truncf %151 : vector<4x256xf32> to vector<4x256xbf16>
    %153 = tpu.concatenate %140, %144, %148, %152 in 1 : vector<4x256xbf16>, vector<4x256xbf16>, vector<4x256xbf16>, vector<4x256xbf16> -> vector<4x1024xbf16>
    %c0_135 = arith.constant 0 : index
    %c0_136 = arith.constant 0 : index
    %154 = vector.load %arg12[%c0_135, %c0_136] : memref<1024x512xbf16, #tpu.memory_space<vmem>>, vector<1024x512xbf16>
    %cst_137 = arith.constant dense<0.000000e+00> : vector<4x512xf32>
    %155 = tpu.matmul %153, %154, %cst_137 {dimension_numbers = #tpu.dot_dimension_numbers<[1], [0], [0], [1], [0, 0, 1, 1], [], []>} : vector<4x1024xbf16>, vector<1024x512xbf16>, vector<4x512xf32> -> vector<4x512xf32>
    %c0_138 = arith.constant 0 : index
    %c0_139 = arith.constant 0 : index
    %156 = vector.load %arg13[%c0_138, %c0_139] : memref<1x512xf32, #tpu.memory_space<vmem>>, vector<1x512xf32>
    %157 = vector.broadcast %156 : vector<1x512xf32> to vector<4x512xf32>
    %158 = arith.addf %155, %157 : vector<4x512xf32>
    %cst_140 = arith.constant 0.000000e+00 : f32
    %159 = vector.broadcast %cst_140 : f32 to vector<4x512xf32>
    %160 = arith.maximumf %158, %159 : vector<4x512xf32>
    %161 = vector.extract_strided_slice %160 {offsets = [0, 0], sizes = [4, 128], strides = [1, 1]} : vector<4x512xf32> to vector<4x128xf32>
    %c0_141 = arith.constant 0 : index
    %c0_142 = arith.constant 0 : index
    %c0_143 = arith.constant 0 : index
    %162 = vector.load %arg14[%c0_141, %c0_142, %c0_143] : memref<4x16x4xf32, #tpu.memory_space<vmem>>, vector<1x16x4xf32>
    %163 = vector.shape_cast %162 : vector<1x16x4xf32> to vector<16x4xf32>
    %cst_144 = arith.constant dense<0.000000e+00> : vector<16x128xf32>
    %164 = tpu.matmul %163, %161, %cst_144 {dimension_numbers = #tpu.dot_dimension_numbers<[1], [0], [0], [1], [0, 0, 1, 1], [], []>} : vector<16x4xf32>, vector<4x128xf32>, vector<16x128xf32> -> vector<16x128xf32>
    %165 = vector.extract_strided_slice %160 {offsets = [0, 128], sizes = [4, 128], strides = [1, 1]} : vector<4x512xf32> to vector<4x128xf32>
    %c1_145 = arith.constant 1 : index
    %c0_146 = arith.constant 0 : index
    %c0_147 = arith.constant 0 : index
    %166 = vector.load %arg14[%c1_145, %c0_146, %c0_147] : memref<4x16x4xf32, #tpu.memory_space<vmem>>, vector<1x16x4xf32>
    %167 = vector.shape_cast %166 : vector<1x16x4xf32> to vector<16x4xf32>
    %cst_148 = arith.constant dense<0.000000e+00> : vector<16x128xf32>
    %168 = tpu.matmul %167, %165, %cst_148 {dimension_numbers = #tpu.dot_dimension_numbers<[1], [0], [0], [1], [0, 0, 1, 1], [], []>} : vector<16x4xf32>, vector<4x128xf32>, vector<16x128xf32> -> vector<16x128xf32>
    %169 = arith.addf %164, %168 : vector<16x128xf32>
    %170 = vector.extract_strided_slice %160 {offsets = [0, 256], sizes = [4, 128], strides = [1, 1]} : vector<4x512xf32> to vector<4x128xf32>
    %c2_149 = arith.constant 2 : index
    %c0_150 = arith.constant 0 : index
    %c0_151 = arith.constant 0 : index
    %171 = vector.load %arg14[%c2_149, %c0_150, %c0_151] : memref<4x16x4xf32, #tpu.memory_space<vmem>>, vector<1x16x4xf32>
    %172 = vector.shape_cast %171 : vector<1x16x4xf32> to vector<16x4xf32>
    %cst_152 = arith.constant dense<0.000000e+00> : vector<16x128xf32>
    %173 = tpu.matmul %172, %170, %cst_152 {dimension_numbers = #tpu.dot_dimension_numbers<[1], [0], [0], [1], [0, 0, 1, 1], [], []>} : vector<16x4xf32>, vector<4x128xf32>, vector<16x128xf32> -> vector<16x128xf32>
    %174 = arith.addf %169, %173 : vector<16x128xf32>
    %175 = vector.extract_strided_slice %160 {offsets = [0, 384], sizes = [4, 128], strides = [1, 1]} : vector<4x512xf32> to vector<4x128xf32>
    %c3_153 = arith.constant 3 : index
    %c0_154 = arith.constant 0 : index
    %c0_155 = arith.constant 0 : index
    %176 = vector.load %arg14[%c3_153, %c0_154, %c0_155] : memref<4x16x4xf32, #tpu.memory_space<vmem>>, vector<1x16x4xf32>
    %177 = vector.shape_cast %176 : vector<1x16x4xf32> to vector<16x4xf32>
    %cst_156 = arith.constant dense<0.000000e+00> : vector<16x128xf32>
    %178 = tpu.matmul %177, %175, %cst_156 {dimension_numbers = #tpu.dot_dimension_numbers<[1], [0], [0], [1], [0, 0, 1, 1], [], []>} : vector<16x4xf32>, vector<4x128xf32>, vector<16x128xf32> -> vector<16x128xf32>
    %179 = arith.addf %174, %178 : vector<16x128xf32>
    %180 = arith.truncf %179 : vector<16x128xf32> to vector<16x128xbf16>
    %c0_157 = arith.constant 0 : index
    %c0_158 = arith.constant 0 : index
    %c0_159 = arith.constant 0 : index
    %181 = vector.load %arg15[%c0_157, %c0_158, %c0_159] : memref<4x16x16xbf16, #tpu.memory_space<vmem>>, vector<1x16x16xbf16>
    %182 = vector.shape_cast %181 : vector<1x16x16xbf16> to vector<16x16xbf16>
    %cst_160 = arith.constant dense<0.000000e+00> : vector<16x128xf32>
    %183 = tpu.matmul %182, %180, %cst_160 {dimension_numbers = #tpu.dot_dimension_numbers<[1], [0], [0], [1], [0, 0, 1, 1], [], []>} : vector<16x16xbf16>, vector<16x128xbf16>, vector<16x128xf32> -> vector<16x128xf32>
    %184 = arith.truncf %183 : vector<16x128xf32> to vector<16x128xbf16>
    %c1_161 = arith.constant 1 : index
    %c0_162 = arith.constant 0 : index
    %c0_163 = arith.constant 0 : index
    %185 = vector.load %arg15[%c1_161, %c0_162, %c0_163] : memref<4x16x16xbf16, #tpu.memory_space<vmem>>, vector<1x16x16xbf16>
    %186 = vector.shape_cast %185 : vector<1x16x16xbf16> to vector<16x16xbf16>
    %cst_164 = arith.constant dense<0.000000e+00> : vector<16x128xf32>
    %187 = tpu.matmul %186, %180, %cst_164 {dimension_numbers = #tpu.dot_dimension_numbers<[1], [0], [0], [1], [0, 0, 1, 1], [], []>} : vector<16x16xbf16>, vector<16x128xbf16>, vector<16x128xf32> -> vector<16x128xf32>
    %188 = arith.truncf %187 : vector<16x128xf32> to vector<16x128xbf16>
    %c2_165 = arith.constant 2 : index
    %c0_166 = arith.constant 0 : index
    %c0_167 = arith.constant 0 : index
    %189 = vector.load %arg15[%c2_165, %c0_166, %c0_167] : memref<4x16x16xbf16, #tpu.memory_space<vmem>>, vector<1x16x16xbf16>
    %190 = vector.shape_cast %189 : vector<1x16x16xbf16> to vector<16x16xbf16>
    %cst_168 = arith.constant dense<0.000000e+00> : vector<16x128xf32>
    %191 = tpu.matmul %190, %180, %cst_168 {dimension_numbers = #tpu.dot_dimension_numbers<[1], [0], [0], [1], [0, 0, 1, 1], [], []>} : vector<16x16xbf16>, vector<16x128xbf16>, vector<16x128xf32> -> vector<16x128xf32>
    %192 = arith.truncf %191 : vector<16x128xf32> to vector<16x128xbf16>
    %c3_169 = arith.constant 3 : index
    %c0_170 = arith.constant 0 : index
    %c0_171 = arith.constant 0 : index
    %193 = vector.load %arg15[%c3_169, %c0_170, %c0_171] : memref<4x16x16xbf16, #tpu.memory_space<vmem>>, vector<1x16x16xbf16>
    %194 = vector.shape_cast %193 : vector<1x16x16xbf16> to vector<16x16xbf16>
    %cst_172 = arith.constant dense<0.000000e+00> : vector<16x128xf32>
    %195 = tpu.matmul %194, %180, %cst_172 {dimension_numbers = #tpu.dot_dimension_numbers<[1], [0], [0], [1], [0, 0, 1, 1], [], []>} : vector<16x16xbf16>, vector<16x128xbf16>, vector<16x128xf32> -> vector<16x128xf32>
    %196 = arith.truncf %195 : vector<16x128xf32> to vector<16x128xbf16>
    %197 = tpu.concatenate %184, %188, %192, %196 in 1 : vector<16x128xbf16>, vector<16x128xbf16>, vector<16x128xbf16>, vector<16x128xbf16> -> vector<16x512xbf16>
    %c0_173 = arith.constant 0 : index
    %c0_174 = arith.constant 0 : index
    %198 = vector.load %arg16[%c0_173, %c0_174] : memref<512x256xbf16, #tpu.memory_space<vmem>>, vector<512x256xbf16>
    %cst_175 = arith.constant dense<0.000000e+00> : vector<16x256xf32>
    %199 = tpu.matmul %197, %198, %cst_175 {dimension_numbers = #tpu.dot_dimension_numbers<[1], [0], [0], [1], [0, 0, 1, 1], [], []>} : vector<16x512xbf16>, vector<512x256xbf16>, vector<16x256xf32> -> vector<16x256xf32>
    %c0_176 = arith.constant 0 : index
    %c0_177 = arith.constant 0 : index
    %200 = vector.load %arg17[%c0_176, %c0_177] : memref<1x256xf32, #tpu.memory_space<vmem>>, vector<1x256xf32>
    %201 = vector.broadcast %200 : vector<1x256xf32> to vector<16x256xf32>
    %202 = arith.addf %199, %201 : vector<16x256xf32>
    %cst_178 = arith.constant 0.000000e+00 : f32
    %203 = vector.broadcast %cst_178 : f32 to vector<16x256xf32>
    %204 = arith.maximumf %202, %203 : vector<16x256xf32>
    %205 = vector.extract_strided_slice %204 {offsets = [0, 0], sizes = [16, 64], strides = [1, 1]} : vector<16x256xf32> to vector<16x64xf32>
    %c0_179 = arith.constant 0 : index
    %c0_180 = arith.constant 0 : index
    %c0_181 = arith.constant 0 : index
    %206 = vector.load %arg18[%c0_179, %c0_180, %c0_181] : memref<4x64x16xf32, #tpu.memory_space<vmem>>, vector<1x64x16xf32>
    %207 = vector.shape_cast %206 : vector<1x64x16xf32> to vector<64x16xf32>
    %cst_182 = arith.constant dense<0.000000e+00> : vector<64x64xf32>
    %208 = tpu.matmul %207, %205, %cst_182 {dimension_numbers = #tpu.dot_dimension_numbers<[1], [0], [0], [1], [0, 0, 1, 1], [], []>} : vector<64x16xf32>, vector<16x64xf32>, vector<64x64xf32> -> vector<64x64xf32>
    %209 = vector.extract_strided_slice %204 {offsets = [0, 64], sizes = [16, 64], strides = [1, 1]} : vector<16x256xf32> to vector<16x64xf32>
    %c1_183 = arith.constant 1 : index
    %c0_184 = arith.constant 0 : index
    %c0_185 = arith.constant 0 : index
    %210 = vector.load %arg18[%c1_183, %c0_184, %c0_185] : memref<4x64x16xf32, #tpu.memory_space<vmem>>, vector<1x64x16xf32>
    %211 = vector.shape_cast %210 : vector<1x64x16xf32> to vector<64x16xf32>
    %cst_186 = arith.constant dense<0.000000e+00> : vector<64x64xf32>
    %212 = tpu.matmul %211, %209, %cst_186 {dimension_numbers = #tpu.dot_dimension_numbers<[1], [0], [0], [1], [0, 0, 1, 1], [], []>} : vector<64x16xf32>, vector<16x64xf32>, vector<64x64xf32> -> vector<64x64xf32>
    %213 = arith.addf %208, %212 : vector<64x64xf32>
    %214 = vector.extract_strided_slice %204 {offsets = [0, 128], sizes = [16, 64], strides = [1, 1]} : vector<16x256xf32> to vector<16x64xf32>
    %c2_187 = arith.constant 2 : index
    %c0_188 = arith.constant 0 : index
    %c0_189 = arith.constant 0 : index
    %215 = vector.load %arg18[%c2_187, %c0_188, %c0_189] : memref<4x64x16xf32, #tpu.memory_space<vmem>>, vector<1x64x16xf32>
    %216 = vector.shape_cast %215 : vector<1x64x16xf32> to vector<64x16xf32>
    %cst_190 = arith.constant dense<0.000000e+00> : vector<64x64xf32>
    %217 = tpu.matmul %216, %214, %cst_190 {dimension_numbers = #tpu.dot_dimension_numbers<[1], [0], [0], [1], [0, 0, 1, 1], [], []>} : vector<64x16xf32>, vector<16x64xf32>, vector<64x64xf32> -> vector<64x64xf32>
    %218 = arith.addf %213, %217 : vector<64x64xf32>
    %219 = vector.extract_strided_slice %204 {offsets = [0, 192], sizes = [16, 64], strides = [1, 1]} : vector<16x256xf32> to vector<16x64xf32>
    %c3_191 = arith.constant 3 : index
    %c0_192 = arith.constant 0 : index
    %c0_193 = arith.constant 0 : index
    %220 = vector.load %arg18[%c3_191, %c0_192, %c0_193] : memref<4x64x16xf32, #tpu.memory_space<vmem>>, vector<1x64x16xf32>
    %221 = vector.shape_cast %220 : vector<1x64x16xf32> to vector<64x16xf32>
    %cst_194 = arith.constant dense<0.000000e+00> : vector<64x64xf32>
    %222 = tpu.matmul %221, %219, %cst_194 {dimension_numbers = #tpu.dot_dimension_numbers<[1], [0], [0], [1], [0, 0, 1, 1], [], []>} : vector<64x16xf32>, vector<16x64xf32>, vector<64x64xf32> -> vector<64x64xf32>
    %223 = arith.addf %218, %222 : vector<64x64xf32>
    %224 = arith.truncf %223 : vector<64x64xf32> to vector<64x64xbf16>
    %c0_195 = arith.constant 0 : index
    %c0_196 = arith.constant 0 : index
    %c0_197 = arith.constant 0 : index
    %225 = vector.load %arg19[%c0_195, %c0_196, %c0_197] : memref<4x64x64xbf16, #tpu.memory_space<vmem>>, vector<1x64x64xbf16>
    %226 = vector.shape_cast %225 : vector<1x64x64xbf16> to vector<64x64xbf16>
    %cst_198 = arith.constant dense<0.000000e+00> : vector<64x64xf32>
    %227 = tpu.matmul %226, %224, %cst_198 {dimension_numbers = #tpu.dot_dimension_numbers<[1], [0], [0], [1], [0, 0, 1, 1], [], []>} : vector<64x64xbf16>, vector<64x64xbf16>, vector<64x64xf32> -> vector<64x64xf32>
    %228 = arith.truncf %227 : vector<64x64xf32> to vector<64x64xbf16>
    %c1_199 = arith.constant 1 : index
    %c0_200 = arith.constant 0 : index
    %c0_201 = arith.constant 0 : index
    %229 = vector.load %arg19[%c1_199, %c0_200, %c0_201] : memref<4x64x64xbf16, #tpu.memory_space<vmem>>, vector<1x64x64xbf16>
    %230 = vector.shape_cast %229 : vector<1x64x64xbf16> to vector<64x64xbf16>
    %cst_202 = arith.constant dense<0.000000e+00> : vector<64x64xf32>
    %231 = tpu.matmul %230, %224, %cst_202 {dimension_numbers = #tpu.dot_dimension_numbers<[1], [0], [0], [1], [0, 0, 1, 1], [], []>} : vector<64x64xbf16>, vector<64x64xbf16>, vector<64x64xf32> -> vector<64x64xf32>
    %232 = arith.truncf %231 : vector<64x64xf32> to vector<64x64xbf16>
    %c2_203 = arith.constant 2 : index
    %c0_204 = arith.constant 0 : index
    %c0_205 = arith.constant 0 : index
    %233 = vector.load %arg19[%c2_203, %c0_204, %c0_205] : memref<4x64x64xbf16, #tpu.memory_space<vmem>>, vector<1x64x64xbf16>
    %234 = vector.shape_cast %233 : vector<1x64x64xbf16> to vector<64x64xbf16>
    %cst_206 = arith.constant dense<0.000000e+00> : vector<64x64xf32>
    %235 = tpu.matmul %234, %224, %cst_206 {dimension_numbers = #tpu.dot_dimension_numbers<[1], [0], [0], [1], [0, 0, 1, 1], [], []>} : vector<64x64xbf16>, vector<64x64xbf16>, vector<64x64xf32> -> vector<64x64xf32>
    %236 = arith.truncf %235 : vector<64x64xf32> to vector<64x64xbf16>
    %c3_207 = arith.constant 3 : index
    %c0_208 = arith.constant 0 : index
    %c0_209 = arith.constant 0 : index
    %237 = vector.load %arg19[%c3_207, %c0_208, %c0_209] : memref<4x64x64xbf16, #tpu.memory_space<vmem>>, vector<1x64x64xbf16>
    %238 = vector.shape_cast %237 : vector<1x64x64xbf16> to vector<64x64xbf16>
    %cst_210 = arith.constant dense<0.000000e+00> : vector<64x64xf32>
    %239 = tpu.matmul %238, %224, %cst_210 {dimension_numbers = #tpu.dot_dimension_numbers<[1], [0], [0], [1], [0, 0, 1, 1], [], []>} : vector<64x64xbf16>, vector<64x64xbf16>, vector<64x64xf32> -> vector<64x64xf32>
    %240 = arith.truncf %239 : vector<64x64xf32> to vector<64x64xbf16>
    %241 = tpu.concatenate %228, %232, %236, %240 in 1 : vector<64x64xbf16>, vector<64x64xbf16>, vector<64x64xbf16>, vector<64x64xbf16> -> vector<64x256xbf16>
    %c0_211 = arith.constant 0 : index
    %c0_212 = arith.constant 0 : index
    %242 = vector.load %arg20[%c0_211, %c0_212] : memref<256x12xbf16, #tpu.memory_space<vmem>>, vector<256x12xbf16>
    %cst_213 = arith.constant dense<0.000000e+00> : vector<64x12xf32>
    %243 = tpu.matmul %241, %242, %cst_213 {dimension_numbers = #tpu.dot_dimension_numbers<[1], [0], [0], [1], [0, 0, 1, 1], [], []>} : vector<64x256xbf16>, vector<256x12xbf16>, vector<64x12xf32> -> vector<64x12xf32>
    %c0_214 = arith.constant 0 : index
    %c0_215 = arith.constant 0 : index
    %244 = vector.load %arg21[%c0_214, %c0_215] : memref<1x12xf32, #tpu.memory_space<vmem>>, vector<1x12xf32>
    %245 = vector.broadcast %244 : vector<1x12xf32> to vector<64x12xf32>
    %246 = arith.addf %243, %245 : vector<64x12xf32>
    %247 = math.absf %246 : vector<64x12xf32>
    %cst_216 = arith.constant 0.000000e+00 : f32
    %248 = vector.broadcast %cst_216 : f32 to vector<64x12xf32>
    %249 = arith.subf %248, %247 : vector<64x12xf32>
    %250 = math.exp %249 : vector<64x12xf32>
    %cst_217 = arith.constant 0.000000e+00 : f32
    %251 = vector.broadcast %cst_217 : f32 to vector<64x12xf32>
    %252 = arith.cmpf oge, %246, %251 : vector<64x12xf32>
    %cst_218 = arith.constant 1.000000e+00 : f32
    %253 = vector.broadcast %cst_218 : f32 to vector<64x12xf32>
    %254 = arith.addf %253, %250 : vector<64x12xf32>
    %cst_219 = arith.constant 1.000000e+00 : f32
    %255 = vector.broadcast %cst_219 : f32 to vector<64x12xf32>
    %256 = arith.divf %255, %254 : vector<64x12xf32>
    %cst_220 = arith.constant 1.000000e+00 : f32
    %257 = vector.broadcast %cst_220 : f32 to vector<64x12xf32>
    %258 = arith.addf %257, %250 : vector<64x12xf32>
    %259 = arith.divf %250, %258 : vector<64x12xf32>
    %260 = arith.select %252, %256, %259 : vector<64x12xi1>, vector<64x12xf32>
    %261 = vector.extract_strided_slice %260 {offsets = [0, 0], sizes = [64, 3], strides = [1, 1]} : vector<64x12xf32> to vector<64x3xf32>
    %c0_221 = arith.constant 0 : index
    %c0_222 = arith.constant 0 : index
    %c0_223 = arith.constant 0 : index
    %262 = vector.load %arg22[%c0_221, %c0_222, %c0_223] : memref<4x256x64xf32, #tpu.memory_space<vmem>>, vector<1x256x64xf32>
    %263 = vector.shape_cast %262 : vector<1x256x64xf32> to vector<256x64xf32>
    %cst_224 = arith.constant dense<0.000000e+00> : vector<256x3xf32>
    %264 = tpu.matmul %263, %261, %cst_224 {dimension_numbers = #tpu.dot_dimension_numbers<[1], [0], [0], [1], [0, 0, 1, 1], [], []>} : vector<256x64xf32>, vector<64x3xf32>, vector<256x3xf32> -> vector<256x3xf32>
    %265 = vector.extract_strided_slice %260 {offsets = [0, 3], sizes = [64, 3], strides = [1, 1]} : vector<64x12xf32> to vector<64x3xf32>
    %c1_225 = arith.constant 1 : index
    %c0_226 = arith.constant 0 : index
    %c0_227 = arith.constant 0 : index
    %266 = vector.load %arg22[%c1_225, %c0_226, %c0_227] : memref<4x256x64xf32, #tpu.memory_space<vmem>>, vector<1x256x64xf32>
    %267 = vector.shape_cast %266 : vector<1x256x64xf32> to vector<256x64xf32>
    %cst_228 = arith.constant dense<0.000000e+00> : vector<256x3xf32>
    %268 = tpu.matmul %267, %265, %cst_228 {dimension_numbers = #tpu.dot_dimension_numbers<[1], [0], [0], [1], [0, 0, 1, 1], [], []>} : vector<256x64xf32>, vector<64x3xf32>, vector<256x3xf32> -> vector<256x3xf32>
    %269 = arith.addf %264, %268 : vector<256x3xf32>
    %270 = vector.extract_strided_slice %260 {offsets = [0, 6], sizes = [64, 3], strides = [1, 1]} : vector<64x12xf32> to vector<64x3xf32>
    %c2_229 = arith.constant 2 : index
    %c0_230 = arith.constant 0 : index
    %c0_231 = arith.constant 0 : index
    %271 = vector.load %arg22[%c2_229, %c0_230, %c0_231] : memref<4x256x64xf32, #tpu.memory_space<vmem>>, vector<1x256x64xf32>
    %272 = vector.shape_cast %271 : vector<1x256x64xf32> to vector<256x64xf32>
    %cst_232 = arith.constant dense<0.000000e+00> : vector<256x3xf32>
    %273 = tpu.matmul %272, %270, %cst_232 {dimension_numbers = #tpu.dot_dimension_numbers<[1], [0], [0], [1], [0, 0, 1, 1], [], []>} : vector<256x64xf32>, vector<64x3xf32>, vector<256x3xf32> -> vector<256x3xf32>
    %274 = arith.addf %269, %273 : vector<256x3xf32>
    %275 = vector.extract_strided_slice %260 {offsets = [0, 9], sizes = [64, 3], strides = [1, 1]} : vector<64x12xf32> to vector<64x3xf32>
    %c3_233 = arith.constant 3 : index
    %c0_234 = arith.constant 0 : index
    %c0_235 = arith.constant 0 : index
    %276 = vector.load %arg22[%c3_233, %c0_234, %c0_235] : memref<4x256x64xf32, #tpu.memory_space<vmem>>, vector<1x256x64xf32>
    %277 = vector.shape_cast %276 : vector<1x256x64xf32> to vector<256x64xf32>
    %cst_236 = arith.constant dense<0.000000e+00> : vector<256x3xf32>
    %278 = tpu.matmul %277, %275, %cst_236 {dimension_numbers = #tpu.dot_dimension_numbers<[1], [0], [0], [1], [0, 0, 1, 1], [], []>} : vector<256x64xf32>, vector<64x3xf32>, vector<256x3xf32> -> vector<256x3xf32>
    %279 = arith.addf %274, %278 : vector<256x3xf32>
    %c0_237 = arith.constant 0 : index
    %c0_238 = arith.constant 0 : index
    %c0_239 = arith.constant 0 : index
    %280 = vector.load %arg23[%c0_237, %c0_238, %c0_239] : memref<1x256x3xf32, #tpu.memory_space<vmem>>, vector<1x256x3xf32>
    %281 = vector.shape_cast %280 : vector<1x256x3xf32> to vector<256x3xf32>
    %282 = vector.shape_cast %279 : vector<256x3xf32> to vector<1x256x3xf32>
    tpu.vector_store %arg23[%c0_237, %c0_238, %c0_239], %282 {strides = array<i32>} : memref<1x256x3xf32, #tpu.memory_space<vmem>>, vector<1x256x3xf32>,
    return
  }
  func.func @transform_0(%arg0: i32) -> (i32, i32, i32) {
    %c0_i32 = arith.constant 0 : i32
    %c0_i32_0 = arith.constant 0 : i32
    %c0_i32_1 = arith.constant 0 : i32
    return %arg0, %c0_i32, %c0_i32_0 : i32, i32, i32
  }
  func.func @transform_1(%arg0: i32) -> (i32, i32, i32) {
    %c0_i32 = arith.constant 0 : i32
    %c0_i32_0 = arith.constant 0 : i32
    %c0_i32_1 = arith.constant 0 : i32
    %c0_i32_2 = arith.constant 0 : i32
    return %c0_i32, %c0_i32_0, %c0_i32_1 : i32, i32, i32
  }
  func.func @transform_2(%arg0: i32) -> (i32, i32) {
    %c0_i32 = arith.constant 0 : i32
    %c0_i32_0 = arith.constant 0 : i32
    %c0_i32_1 = arith.constant 0 : i32
    return %c0_i32, %c0_i32_0 : i32, i32
  }
  func.func @transform_3(%arg0: i32) -> (i32, i32) {
    %c0_i32 = arith.constant 0 : i32
    %c0_i32_0 = arith.constant 0 : i32
    %c0_i32_1 = arith.constant 0 : i32
    return %c0_i32, %c0_i32_0 : i32, i32
  }
  func.func @transform_4(%arg0: i32) -> (i32, i32, i32) {
    %c0_i32 = arith.constant 0 : i32
    %c0_i32_0 = arith.constant 0 : i32
    %c0_i32_1 = arith.constant 0 : i32
    %c0_i32_2 = arith.constant 0 : i32
    return %c0_i32, %c0_i32_0, %c0_i32_1 : i32, i32, i32
  }
  func.func @transform_5(%arg0: i32) -> (i32, i32) {
    %c0_i32 = arith.constant 0 : i32
    %c0_i32_0 = arith.constant 0 : i32
    %c0_i32_1 = arith.constant 0 : i32
    return %c0_i32, %c0_i32_0 : i32, i32
  }
  func.func @transform_6(%arg0: i32) -> (i32, i32) {
    %c0_i32 = arith.constant 0 : i32
    %c0_i32_0 = arith.constant 0 : i32
    %c0_i32_1 = arith.constant 0 : i32
    return %c0_i32, %c0_i32_0 : i32, i32
  }
  func.func @transform_7(%arg0: i32) -> (i32, i32, i32) {
    %c0_i32 = arith.constant 0 : i32
    %c0_i32_0 = arith.constant 0 : i32
    %c0_i32_1 = arith.constant 0 : i32
    %c0_i32_2 = arith.constant 0 : i32
    return %c0_i32, %c0_i32_0, %c0_i32_1 : i32, i32, i32
  }
  func.func @transform_8(%arg0: i32) -> (i32, i32) {
    %c0_i32 = arith.constant 0 : i32
    %c0_i32_0 = arith.constant 0 : i32
    %c0_i32_1 = arith.constant 0 : i32
    return %c0_i32, %c0_i32_0 : i32, i32
  }
  func.func @transform_9(%arg0: i32) -> (i32, i32) {
    %c0_i32 = arith.constant 0 : i32
    %c0_i32_0 = arith.constant 0 : i32
    %c0_i32_1 = arith.constant 0 : i32
    return %c0_i32, %c0_i32_0 : i32, i32
  }
  func.func @transform_10(%arg0: i32) -> (i32, i32, i32) {
    %c0_i32 = arith.constant 0 : i32
    %c0_i32_0 = arith.constant 0 : i32
    %c0_i32_1 = arith.constant 0 : i32
    %c0_i32_2 = arith.constant 0 : i32
    return %c0_i32, %c0_i32_0, %c0_i32_1 : i32, i32, i32
  }
  func.func @transform_11(%arg0: i32) -> (i32, i32) {
    %c0_i32 = arith.constant 0 : i32
    %c0_i32_0 = arith.constant 0 : i32
    %c0_i32_1 = arith.constant 0 : i32
    return %c0_i32, %c0_i32_0 : i32, i32
  }
  func.func @transform_12(%arg0: i32) -> (i32, i32) {
    %c0_i32 = arith.constant 0 : i32
    %c0_i32_0 = arith.constant 0 : i32
    %c0_i32_1 = arith.constant 0 : i32
    return %c0_i32, %c0_i32_0 : i32, i32
  }
  func.func @transform_13(%arg0: i32) -> (i32, i32, i32) {
    %c0_i32 = arith.constant 0 : i32
    %c0_i32_0 = arith.constant 0 : i32
    %c0_i32_1 = arith.constant 0 : i32
    %c0_i32_2 = arith.constant 0 : i32
    return %c0_i32, %c0_i32_0, %c0_i32_1 : i32, i32, i32
  }
  func.func @transform_14(%arg0: i32) -> (i32, i32, i32) {
    %c0_i32 = arith.constant 0 : i32
    %c0_i32_0 = arith.constant 0 : i32
    %c0_i32_1 = arith.constant 0 : i32
    %c0_i32_2 = arith.constant 0 : i32
    return %c0_i32, %c0_i32_0, %c0_i32_1 : i32, i32, i32
  }
  func.func @transform_15(%arg0: i32) -> (i32, i32) {
    %c0_i32 = arith.constant 0 : i32
    %c0_i32_0 = arith.constant 0 : i32
    %c0_i32_1 = arith.constant 0 : i32
    return %c0_i32, %c0_i32_0 : i32, i32
  }
  func.func @transform_16(%arg0: i32) -> (i32, i32) {
    %c0_i32 = arith.constant 0 : i32
    %c0_i32_0 = arith.constant 0 : i32
    %c0_i32_1 = arith.constant 0 : i32
    return %c0_i32, %c0_i32_0 : i32, i32
  }
  func.func @transform_17(%arg0: i32) -> (i32, i32, i32) {
    %c0_i32 = arith.constant 0 : i32
    %c0_i32_0 = arith.constant 0 : i32
    %c0_i32_1 = arith.constant 0 : i32
    %c0_i32_2 = arith.constant 0 : i32
    return %c0_i32, %c0_i32_0, %c0_i32_1 : i32, i32, i32
  }
  func.func @transform_18(%arg0: i32) -> (i32, i32, i32) {
    %c0_i32 = arith.constant 0 : i32
    %c0_i32_0 = arith.constant 0 : i32
    %c0_i32_1 = arith.constant 0 : i32
    %c0_i32_2 = arith.constant 0 : i32
    return %c0_i32, %c0_i32_0, %c0_i32_1 : i32, i32, i32
  }
  func.func @transform_19(%arg0: i32) -> (i32, i32) {
    %c0_i32 = arith.constant 0 : i32
    %c0_i32_0 = arith.constant 0 : i32
    %c0_i32_1 = arith.constant 0 : i32
    return %c0_i32, %c0_i32_0 : i32, i32
  }
  func.func @transform_20(%arg0: i32) -> (i32, i32) {
    %c0_i32 = arith.constant 0 : i32
    %c0_i32_0 = arith.constant 0 : i32
    %c0_i32_1 = arith.constant 0 : i32
    return %c0_i32, %c0_i32_0 : i32, i32
  }
  func.func @transform_21(%arg0: i32) -> (i32, i32, i32) {
    %c0_i32 = arith.constant 0 : i32
    %c0_i32_0 = arith.constant 0 : i32
    %c0_i32_1 = arith.constant 0 : i32
    %c0_i32_2 = arith.constant 0 : i32
    return %c0_i32, %c0_i32_0, %c0_i32_1 : i32, i32, i32
  }
  func.func @transform_22(%arg0: i32) -> (i32, i32, i32) {
    %c0_i32 = arith.constant 0 : i32
    %c0_i32_0 = arith.constant 0 : i32
    %c0_i32_1 = arith.constant 0 : i32
    return %arg0, %c0_i32, %c0_i32_0 : i32, i32, i32
  }
}

</mosaic_0001>

<llo_original>
// kernel: autoencoder_forward.1
$region0: #{autoencoder_forward.1}
  #allocation0 [shape = 'u32[]', space=smem, size = 0x4, offset = 0x4, fixed_abs, tag = 'smem constant byte address 0x4 - core index']
  #allocation1 [shape = 'u32[144,128]{1,0:T(1,128)}', space=vmem, size = 0x12000, scoped, tag = 'internal scratch']
  %s0 = inlined_call_operand.vmem [shape: bf16[2,256,3], index: 0, kind: input, shape index: {}]
  %s1 = inlined_call_operand.hbm [shape: bf16[9,64,256], index: 1, kind: input, shape index: {}]
  %s2 = inlined_call_operand.hbm [shape: bf16[27,64], index: 2, kind: input, shape index: {}]
  %s3 = inlined_call_operand.hbm [shape: f32[1,64], index: 3, kind: input, shape index: {}]
  %s4 = inlined_call_operand.hbm [shape: bf16[9,16,64], index: 4, kind: input, shape index: {}]
  %s5 = inlined_call_operand.hbm [shape: bf16[576,128], index: 5, kind: input, shape index: {}]
  %s6 = inlined_call_operand.hbm [shape: f32[1,128], index: 6, kind: input, shape index: {}]
  %s7 = inlined_call_operand.hbm [shape: bf16[9,4,16], index: 7, kind: input, shape index: {}]
  %s8 = inlined_call_operand.hbm [shape: bf16[1152,256], index: 8, kind: input, shape index: {}]
  %s9 = inlined_call_operand.hbm [shape: f32[1,256], index: 9, kind: input, shape index: {}]
  %s10 = inlined_call_operand.hbm [shape: bf16[4,4,4], index: 10, kind: input, shape index: {}]
  %s11 = inlined_call_operand.vmem [shape: bf16[1024,512], index: 11, kind: input, shape index: {}]
  %s12 = inlined_call_operand.hbm [shape: f32[1,512], index: 12, kind: input, shape index: {}]
  %s13 = inlined_call_operand.vmem [shape: f32[4,16,4], index: 13, kind: input, shape index: {}]
  %s14 = inlined_call_operand.hbm [shape: bf16[4,16,16], index: 14, kind: input, shape index: {}]
  %s15 = inlined_call_operand.hbm [shape: bf16[512,256], index: 15, kind: input, shape index: {}]
  %s16 = inlined_call_operand.hbm [shape: f32[1,256], index: 16, kind: input, shape index: {}]
  %s17 = inlined_call_operand.vmem [shape: f32[4,64,16], index: 17, kind: input, shape index: {}]
  %s18 = inlined_call_operand.hbm [shape: bf16[4,64,64], index: 18, kind: input, shape index: {}]
  %s19 = inlined_call_operand.vmem [shape: bf16[256,12], index: 19, kind: input, shape index: {}]
  %s20 = inlined_call_operand.hbm [shape: f32[1,12], index: 20, kind: input, shape index: {}]
  %s21 = inlined_call_operand.vmem [shape: f32[4,256,64], index: 21, kind: input, shape index: {}]
  %s22 = inlined_call_operand.vmem [shape: f32[2,256,3], index: 22, kind: output, shape index: {}]
  %s23 = sld [smem:[#allocation0]]
  $region185: #{autoencoder_forward.1} parent=0
    _
  %s25 = ssub.s32 1, %s23
  %s26 = scalar_select 0, %s25, %s23
  $region1: #{autoencoder_forward.1} parent=0
    #allocation2 [shape = 'u8[294912]{0}', space=vmem, size = 0x48000, scoped, tag = 'input window, operand 1, single buffered']
    #allocation3 [shape = 's32[2]{0}', space=sflag, size = 0x8, scoped, tag = 'scoped memory for autoencoder_forward.1']
    #allocation4 [shape = 'u8[8192]{0}', space=vmem, size = 0x2000, scoped, tag = 'input window, operand 2, single buffered']
    #allocation5 [shape = 's32[1]{0}', space=sflag, size = 0x4, scoped, tag = 'scoped memory for autoencoder_forward.1']
    #allocation6 [shape = 'u8[512]{0}', space=vmem, size = 0x400, scoped, tag = 'input window, operand 3, single buffered']
    #allocation7 [shape = 'u8[36864]{0}', space=vmem, size = 0x9000, scoped, tag = 'input window, operand 4, single buffered']
    #allocation8 [shape = 's32[1]{0}', space=sflag, size = 0x4, scoped, tag = 'scoped memory for autoencoder_forward.1']
    #allocation9 [shape = 'u8[147456]{0}', space=vmem, size = 0x24000, scoped, tag = 'input window, operand 5, single buffered']
    #allocation10 [shape = 'u8[512]{0}', space=vmem, size = 0x400, scoped, tag = 'input window, operand 6, single buffered']
    #allocation11 [shape = 's32[1]{0}', space=sflag, size = 0x4, scoped, tag = 'scoped memory for autoencoder_forward.1']
    #allocation12 [shape = 'u8[9216]{0}', space=vmem, size = 0x2400, scoped, tag = 'input window, operand 7, single buffered']
    #allocation13 [shape = 'u8[589824]{0}', space=vmem, size = 0x90000, scoped, tag = 'input window, operand 8, single buffered']
    #allocation14 [shape = 's32[1]{0}', space=sflag, size = 0x4, scoped, tag = 'scoped memory for autoencoder_forward.1']
    #allocation15 [shape = 'u8[1024]{0}', space=vmem, size = 0x400, scoped, tag = 'input window, operand 9, single buffered']
    #allocation16 [shape = 'u8[4096]{0}', space=vmem, size = 0x1000, scoped, tag = 'input window, operand 10, single buffered']
    #allocation17 [shape = 's32[1]{0}', space=sflag, size = 0x4, scoped, tag = 'scoped memory for autoencoder_forward.1']
    #allocation18 [shape = 'u8[2048]{0}', space=vmem, size = 0x800, scoped, tag = 'input window, operand 12, single buffered']
    #allocation19 [shape = 'u8[16384]{0}', space=vmem, size = 0x4000, scoped, tag = 'input window, operand 14, single buffered']
    #allocation20 [shape = 's32[1]{0}', space=sflag, size = 0x4, scoped, tag = 'scoped memory for autoencoder_forward.1']
    #allocation21 [shape = 'u8[262144]{0}', space=vmem, size = 0x40000, scoped, tag = 'input window, operand 15, single buffered']
    #allocation22 [shape = 'u8[1024]{0}', space=vmem, size = 0x400, scoped, tag = 'input window, operand 16, single buffered']
    #allocation23 [shape = 's32[1]{0}', space=sflag, size = 0x4, scoped, tag = 'scoped memory for autoencoder_forward.1']
    #allocation24 [shape = 'u8[65536]{0}', space=vmem, size = 0x10000, scoped, tag = 'input window, operand 18, single buffered']
    #allocation25 [shape = 'u8[512]{0}', space=vmem, size = 0x400, scoped, tag = 'input window, operand 20, single buffered']
    #allocation26 [shape = 's32[1]{0}', space=sflag, size = 0x4, scoped, tag = 'scoped memory for autoencoder_forward.1']
    %27 = vsyncpa [#allocation3], 0
    %28 = vsyncpa [#allocation5], 0
    %29 = vsyncpa [#allocation8], 0
    %30 = vsyncpa [#allocation11], 0
    %31 = vsyncpa [#allocation14], 0
    %32 = vsyncpa [#allocation17], 0
    %33 = vsyncpa [#allocation20], 0
    %34 = vsyncpa [#allocation23], 0
    %35 = vsyncpa [#allocation26], 0
    loop: start=0, step=1, limit=4
    $region2: #{autoencoder_forward.1} parent=1 // loop_pre_header
      _
    $region3: #{autoencoder_forward.1} parent=1 // loop_header
      %s37 = sphi 0, %s41
      %p38 = scmp.ge.s32.totalorder %s37, 4
      %s47 = sphi 0, %s49
      %s50 = sphi 0, %s47
      %s51 = sphi 0, %s50
      %s67 = sphi 0, %s51
      %s71 = sphi 0, %s71
      %s73 = sphi 0, %s71
      %s74 = sphi 0, %s73
      %s88 = sphi 0, %s74
      %s92 = sphi 0, %s92
      %s94 = sphi 0, %s92
      %s95 = sphi 0, %s94
      %s109 = sphi 0, %s95
      %s113 = sphi 0, %s113
      %s115 = sphi 0, %s113
      %s116 = sphi 0, %s115
      %s130 = sphi 0, %s116
      %s134 = sphi 0, %s134
      %s136 = sphi 0, %s134
      %s137 = sphi 0, %s136
      %s151 = sphi 0, %s137
      %s155 = sphi 0, %s155
      %s157 = sphi 0, %s155
      %s158 = sphi 0, %s157
      %s172 = sphi 0, %s158
      %s176 = sphi 0, %s176
      %s178 = sphi 0, %s176
      %s179 = sphi 0, %s178
      %s193 = sphi 0, %s179
      %s197 = sphi 0, %s197
      %s199 = sphi 0, %s197
      %s200 = sphi 0, %s199
      %s214 = sphi 0, %s200
      %s218 = sphi 0, %s218
      %s220 = sphi 0, %s218
      %s221 = sphi 0, %s220
      %s235 = sphi 0, %s221
      %s239 = sphi 0, %s239
      %s241 = sphi 0, %s239
      %s242 = sphi 0, %s241
      %s256 = sphi 0, %s242
      %s260 = sphi 0, %s260
      %s262 = sphi 0, %s260
      %s263 = sphi 0, %s262
      %s277 = sphi 0, %s263
      %s281 = sphi 0, %s281
      %s283 = sphi 0, %s281
      %s284 = sphi 0, %s283
      %s298 = sphi 0, %s284
      %s302 = sphi 0, %s302
      %s304 = sphi 0, %s302
      %s305 = sphi 0, %s304
      %s319 = sphi 0, %s305
      %s323 = sphi 0, %s323
      %s325 = sphi 0, %s323
      %s326 = sphi 0, %s325
      %s340 = sphi 0, %s326
      %s344 = sphi 0, %s344
      %s346 = sphi 0, %s344
      %s347 = sphi 0, %s346
      %s361 = sphi 0, %s347
      %s365 = sphi 0, %s365
      %s367 = sphi 0, %s365
      %s368 = sphi 0, %s367
      %s382 = sphi 0, %s368
      %s386 = sphi 0, %s386
      %s388 = sphi 0, %s386
      %s389 = sphi 0, %s388
      %s403 = sphi 0, %s389
      %s407 = sphi 0, %s407
      %s409 = sphi 0, %s407
      %s410 = sphi 0, %s409
      %s424 = sphi 0, %s410
      %s428 = sphi 0, %s428
      %s430 = sphi 0, %s428
      %s431 = sphi 0, %s430
      %s445 = sphi 0, %s431
      %s449 = sphi 0, %s449
      %s451 = sphi 0, %s449
      %s452 = sphi 0, %s451
      %s466 = sphi 0, %s452
      %s470 = sphi 0, %s470
      %s472 = sphi 0, %s470
      %s473 = sphi 0, %s472
      %s487 = sphi 0, %s473
      %s491 = sphi 0, %s491
      %s493 = sphi 0, %s491
      %s494 = sphi 0, %s493
      %s508 = sphi 0, %s494
      %s514 = sphi 0, %s516
      %s517 = sphi 0, %s514
      %s518 = sphi 0, %s517
      %s534 = sphi 0, %s518
    $region4: #{autoencoder_forward.1} parent=1 // loop_header_branch
      %40 = sbr.rel (%p38) target = $region8
    $region5: #{autoencoder_forward.1} parent=1 // loop_body
      %s42 = ssub.s32 %s37, 1
      %s43 = ssub.s32 %s37, 2
      %s44 = sadd.s32 %s37, 1
      %s45 = ssub.s32 %s37, %s44
      %p46 = scmp.eq.s32.totalorder %s45, 0
      %s48 = sadd.s32 %s47, 1
      %s49 = scalar_select %p46, %s47, %s48
      %p52 = pneg %p46
      %p53 = scmp.eq.s32.totalorder %s37, 1
      %p54 = por %p52, %p53
      %p55 = scmp.ne.s32.totalorder %s47, %s50
      %p56 = scmp.eq.s32.totalorder %s37, 0
      %p57 = por %p55, %p56
      %p58 = scmp.ne.s32.totalorder %s47, %s50
      %p59 = scmp.eq.s32.totalorder %s42, 1
      %p60 = por %p58, %p59
      %p61 = scmp.ne.s32.totalorder %s50, %s51
      %p62 = scmp.eq.s32.totalorder %s42, 0
      %p63 = por %p61, %p62
      %p64 = scmp.ne.s32.totalorder %s50, %s51
      %p65 = scmp.eq.s32.totalorder %s43, 1
      %p66 = por %p64, %p65
      %p68 = scmp.ne.s32.totalorder %s51, %s67
      %p69 = scmp.eq.s32.totalorder %s43, 0
      %p70 = por %p68, %p69
      %s72 = sadd.s32 %s71, 1
      %p75 = scmp.eq.s32.totalorder %s37, 1
      %p76 = scmp.ne.s32.totalorder %s71, %s73
      %p77 = scmp.eq.s32.totalorder %s37, 0
      %p78 = por %p76, %p77
      %p79 = scmp.ne.s32.totalorder %s71, %s73
      %p80 = scmp.eq.s32.totalorder %s42, 1
      %p81 = por %p79, %p80
      %p82 = scmp.ne.s32.totalorder %s73, %s74
      %p83 = scmp.eq.s32.totalorder %s42, 0
      %p84 = por %p82, %p83
      %p85 = scmp.ne.s32.totalorder %s73, %s74
      %p86 = scmp.eq.s32.totalorder %s43, 1
      %p87 = por %p85, %p86
      %p89 = scmp.ne.s32.totalorder %s74, %s88
      %p90 = scmp.eq.s32.totalorder %s43, 0
      %p91 = por %p89, %p90
      %s93 = sadd.s32 %s92, 1
      %p96 = scmp.eq.s32.totalorder %s37, 1
      %p97 = scmp.ne.s32.totalorder %s92, %s94
      %p98 = scmp.eq.s32.totalorder %s37, 0
      %p99 = por %p97, %p98
      %p100 = scmp.ne.s32.totalorder %s92, %s94
      %p101 = scmp.eq.s32.totalorder %s42, 1
      %p102 = por %p100, %p101
      %p103 = scmp.ne.s32.totalorder %s94, %s95
      %p104 = scmp.eq.s32.totalorder %s42, 0
      %p105 = por %p103, %p104
      %p106 = scmp.ne.s32.totalorder %s94, %s95
      %p107 = scmp.eq.s32.totalorder %s43, 1
      %p108 = por %p106, %p107
      %p110 = scmp.ne.s32.totalorder %s95, %s109
      %p111 = scmp.eq.s32.totalorder %s43, 0
      %p112 = por %p110, %p111
      %s114 = sadd.s32 %s113, 1
      %p117 = scmp.eq.s32.totalorder %s37, 1
      %p118 = scmp.ne.s32.totalorder %s113, %s115
      %p119 = scmp.eq.s32.totalorder %s37, 0
      %p120 = por %p118, %p119
      %p121 = scmp.ne.s32.totalorder %s113, %s115
      %p122 = scmp.eq.s32.totalorder %s42, 1
      %p123 = por %p121, %p122
      %p124 = scmp.ne.s32.totalorder %s115, %s116
      %p125 = scmp.eq.s32.totalorder %s42, 0
      %p126 = por %p124, %p125
      %p127 = scmp.ne.s32.totalorder %s115, %s116
      %p128 = scmp.eq.s32.totalorder %s43, 1
      %p129 = por %p127, %p128
      %p131 = scmp.ne.s32.totalorder %s116, %s130
      %p132 = scmp.eq.s32.totalorder %s43, 0
      %p133 = por %p131, %p132
      %s135 = sadd.s32 %s134, 1
      %p138 = scmp.eq.s32.totalorder %s37, 1
      %p139 = scmp.ne.s32.totalorder %s134, %s136
      %p140 = scmp.eq.s32.totalorder %s37, 0
      %p141 = por %p139, %p140
      %p142 = scmp.ne.s32.totalorder %s134, %s136
      %p143 = scmp.eq.s32.totalorder %s42, 1
      %p144 = por %p142, %p143
      %p145 = scmp.ne.s32.totalorder %s136, %s137
      %p146 = scmp.eq.s32.totalorder %s42, 0
      %p147 = por %p145, %p146
      %p148 = scmp.ne.s32.totalorder %s136, %s137
      %p149 = scmp.eq.s32.totalorder %s43, 1
      %p150 = por %p148, %p149
      %p152 = scmp.ne.s32.totalorder %s137, %s151
      %p153 = scmp.eq.s32.totalorder %s43, 0
      %p154 = por %p152, %p153
      %s156 = sadd.s32 %s155, 1
      %p159 = scmp.eq.s32.totalorder %s37, 1
      %p160 = scmp.ne.s32.totalorder %s155, %s157
      %p161 = scmp.eq.s32.totalorder %s37, 0
      %p162 = por %p160, %p161
      %p163 = scmp.ne.s32.totalorder %s155, %s157
      %p164 = scmp.eq.s32.totalorder %s42, 1
      %p165 = por %p163, %p164
      %p166 = scmp.ne.s32.totalorder %s157, %s158
      %p167 = scmp.eq.s32.totalorder %s42, 0
      %p168 = por %p166, %p167
      %p169 = scmp.ne.s32.totalorder %s157, %s158
      %p170 = scmp.eq.s32.totalorder %s43, 1
      %p171 = por %p169, %p170
      %p173 = scmp.ne.s32.totalorder %s158, %s172
      %p174 = scmp.eq.s32.totalorder %s43, 0
      %p175 = por %p173, %p174
      %s177 = sadd.s32 %s176, 1
      %p180 = scmp.eq.s32.totalorder %s37, 1
      %p181 = scmp.ne.s32.totalorder %s176, %s178
      %p182 = scmp.eq.s32.totalorder %s37, 0
      %p183 = por %p181, %p182
      %p184 = scmp.ne.s32.totalorder %s176, %s178
      %p185 = scmp.eq.s32.totalorder %s42, 1
      %p186 = por %p184, %p185
      %p187 = scmp.ne.s32.totalorder %s178, %s179
      %p188 = scmp.eq.s32.totalorder %s42, 0
      %p189 = por %p187, %p188
      %p190 = scmp.ne.s32.totalorder %s178, %s179
      %p191 = scmp.eq.s32.totalorder %s43, 1
      %p192 = por %p190, %p191
      %p194 = scmp.ne.s32.totalorder %s179, %s193
      %p195 = scmp.eq.s32.totalorder %s43, 0
      %p196 = por %p194, %p195
      %s198 = sadd.s32 %s197, 1
      %p201 = scmp.eq.s32.totalorder %s37, 1
      %p202 = scmp.ne.s32.totalorder %s197, %s199
      %p203 = scmp.eq.s32.totalorder %s37, 0
      %p204 = por %p202, %p203
      %p205 = scmp.ne.s32.totalorder %s197, %s199
      %p206 = scmp.eq.s32.totalorder %s42, 1
      %p207 = por %p205, %p206
      %p208 = scmp.ne.s32.totalorder %s199, %s200
      %p209 = scmp.eq.s32.totalorder %s42, 0
      %p210 = por %p208, %p209
      %p211 = scmp.ne.s32.totalorder %s199, %s200
      %p212 = scmp.eq.s32.totalorder %s43, 1
      %p213 = por %p211, %p212
      %p215 = scmp.ne.s32.totalorder %s200, %s214
      %p216 = scmp.eq.s32.totalorder %s43, 0
      %p217 = por %p215, %p216
      %s219 = sadd.s32 %s218, 1
      %p222 = scmp.eq.s32.totalorder %s37, 1
      %p223 = scmp.ne.s32.totalorder %s218, %s220
      %p224 = scmp.eq.s32.totalorder %s37, 0
      %p225 = por %p223, %p224
      %p226 = scmp.ne.s32.totalorder %s218, %s220
      %p227 = scmp.eq.s32.totalorder %s42, 1
      %p228 = por %p226, %p227
      %p229 = scmp.ne.s32.totalorder %s220, %s221
      %p230 = scmp.eq.s32.totalorder %s42, 0
      %p231 = por %p229, %p230
      %p232 = scmp.ne.s32.totalorder %s220, %s221
      %p233 = scmp.eq.s32.totalorder %s43, 1
      %p234 = por %p232, %p233
      %p236 = scmp.ne.s32.totalorder %s221, %s235
      %p237 = scmp.eq.s32.totalorder %s43, 0
      %p238 = por %p236, %p237
      %s240 = sadd.s32 %s239, 1
      %p243 = scmp.eq.s32.totalorder %s37, 1
      %p244 = scmp.ne.s32.totalorder %s239, %s241
      %p245 = scmp.eq.s32.totalorder %s37, 0
      %p246 = por %p244, %p245
      %p247 = scmp.ne.s32.totalorder %s239, %s241
      %p248 = scmp.eq.s32.totalorder %s42, 1
      %p249 = por %p247, %p248
      %p250 = scmp.ne.s32.totalorder %s241, %s242
      %p251 = scmp.eq.s32.totalorder %s42, 0
      %p252 = por %p250, %p251
      %p253 = scmp.ne.s32.totalorder %s241, %s242
      %p254 = scmp.eq.s32.totalorder %s43, 1
      %p255 = por %p253, %p254
      %p257 = scmp.ne.s32.totalorder %s242, %s256
      %p258 = scmp.eq.s32.totalorder %s43, 0
      %p259 = por %p257, %p258
      %s261 = sadd.s32 %s260, 1
      %p264 = scmp.eq.s32.totalorder %s37, 1
      %p265 = scmp.ne.s32.totalorder %s260, %s262
      %p266 = scmp.eq.s32.totalorder %s37, 0
      %p267 = por %p265, %p266
      %p268 = scmp.ne.s32.totalorder %s260, %s262
      %p269 = scmp.eq.s32.totalorder %s42, 1
      %p270 = por %p268, %p269
      %p271 = scmp.ne.s32.totalorder %s262, %s263
      %p272 = scmp.eq.s32.totalorder %s42, 0
      %p273 = por %p271, %p272
      %p274 = scmp.ne.s32.totalorder %s262, %s263
      %p275 = scmp.eq.s32.totalorder %s43, 1
      %p276 = por %p274, %p275
      %p278 = scmp.ne.s32.totalorder %s263, %s277
      %p279 = scmp.eq.s32.totalorder %s43, 0
      %p280 = por %p278, %p279
      %s282 = sadd.s32 %s281, 1
      %p285 = scmp.eq.s32.totalorder %s37, 1
      %p286 = scmp.ne.s32.totalorder %s281, %s283
      %p287 = scmp.eq.s32.totalorder %s37, 0
      %p288 = por %p286, %p287
      %p289 = scmp.ne.s32.totalorder %s281, %s283
      %p290 = scmp.eq.s32.totalorder %s42, 1
      %p291 = por %p289, %p290
      %p292 = scmp.ne.s32.totalorder %s283, %s284
      %p293 = scmp.eq.s32.totalorder %s42, 0
      %p294 = por %p292, %p293
      %p295 = scmp.ne.s32.totalorder %s283, %s284
      %p296 = scmp.eq.s32.totalorder %s43, 1
      %p297 = por %p295, %p296
      %p299 = scmp.ne.s32.totalorder %s284, %s298
      %p300 = scmp.eq.s32.totalorder %s43, 0
      %p301 = por %p299, %p300
      %s303 = sadd.s32 %s302, 1
      %p306 = scmp.eq.s32.totalorder %s37, 1
      %p307 = scmp.ne.s32.totalorder %s302, %s304
      %p308 = scmp.eq.s32.totalorder %s37, 0
      %p309 = por %p307, %p308
      %p310 = scmp.ne.s32.totalorder %s302, %s304
      %p311 = scmp.eq.s32.totalorder %s42, 1
      %p312 = por %p310, %p311
      %p313 = scmp.ne.s32.totalorder %s304, %s305
      %p314 = scmp.eq.s32.totalorder %s42, 0
      %p315 = por %p313, %p314
      %p316 = scmp.ne.s32.totalorder %s304, %s305
      %p317 = scmp.eq.s32.totalorder %s43, 1
      %p318 = por %p316, %p317
      %p320 = scmp.ne.s32.totalorder %s305, %s319
      %p321 = scmp.eq.s32.totalorder %s43, 0
      %p322 = por %p320, %p321
      %s324 = sadd.s32 %s323, 1
      %p327 = scmp.eq.s32.totalorder %s37, 1
      %p328 = scmp.ne.s32.totalorder %s323, %s325
      %p329 = scmp.eq.s32.totalorder %s37, 0
      %p330 = por %p328, %p329
      %p331 = scmp.ne.s32.totalorder %s323, %s325
      %p332 = scmp.eq.s32.totalorder %s42, 1
      %p333 = por %p331, %p332
      %p334 = scmp.ne.s32.totalorder %s325, %s326
      %p335 = scmp.eq.s32.totalorder %s42, 0
      %p336 = por %p334, %p335
      %p337 = scmp.ne.s32.totalorder %s325, %s326
      %p338 = scmp.eq.s32.totalorder %s43, 1
      %p339 = por %p337, %p338
      %p341 = scmp.ne.s32.totalorder %s326, %s340
      %p342 = scmp.eq.s32.totalorder %s43, 0
      %p343 = por %p341, %p342
      %s345 = sadd.s32 %s344, 1
      %p348 = scmp.eq.s32.totalorder %s37, 1
      %p349 = scmp.ne.s32.totalorder %s344, %s346
      %p350 = scmp.eq.s32.totalorder %s37, 0
      %p351 = por %p349, %p350
      %p352 = scmp.ne.s32.totalorder %s344, %s346
      %p353 = scmp.eq.s32.totalorder %s42, 1
      %p354 = por %p352, %p353
      %p355 = scmp.ne.s32.totalorder %s346, %s347
      %p356 = scmp.eq.s32.totalorder %s42, 0
      %p357 = por %p355, %p356
      %p358 = scmp.ne.s32.totalorder %s346, %s347
      %p359 = scmp.eq.s32.totalorder %s43, 1
      %p360 = por %p358, %p359
      %p362 = scmp.ne.s32.totalorder %s347, %s361
      %p363 = scmp.eq.s32.totalorder %s43, 0
      %p364 = por %p362, %p363
      %s366 = sadd.s32 %s365, 1
      %p369 = scmp.eq.s32.totalorder %s37, 1
      %p370 = scmp.ne.s32.totalorder %s365, %s367
      %p371 = scmp.eq.s32.totalorder %s37, 0
      %p372 = por %p370, %p371
      %p373 = scmp.ne.s32.totalorder %s365, %s367
      %p374 = scmp.eq.s32.totalorder %s42, 1
      %p375 = por %p373, %p374
      %p376 = scmp.ne.s32.totalorder %s367, %s368
      %p377 = scmp.eq.s32.totalorder %s42, 0
      %p378 = por %p376, %p377
      %p379 = scmp.ne.s32.totalorder %s367, %s368
      %p380 = scmp.eq.s32.totalorder %s43, 1
      %p381 = por %p379, %p380
      %p383 = scmp.ne.s32.totalorder %s368, %s382
      %p384 = scmp.eq.s32.totalorder %s43, 0
      %p385 = por %p383, %p384
      %s387 = sadd.s32 %s386, 1
      %p390 = scmp.eq.s32.totalorder %s37, 1
      %p391 = scmp.ne.s32.totalorder %s386, %s388
      %p392 = scmp.eq.s32.totalorder %s37, 0
      %p393 = por %p391, %p392
      %p394 = scmp.ne.s32.totalorder %s386, %s388
      %p395 = scmp.eq.s32.totalorder %s42, 1
      %p396 = por %p394, %p395
      %p397 = scmp.ne.s32.totalorder %s388, %s389
      %p398 = scmp.eq.s32.totalorder %s42, 0
      %p399 = por %p397, %p398
      %p400 = scmp.ne.s32.totalorder %s388, %s389
      %p401 = scmp.eq.s32.totalorder %s43, 1
      %p402 = por %p400, %p401
      %p404 = scmp.ne.s32.totalorder %s389, %s403
      %p405 = scmp.eq.s32.totalorder %s43, 0
      %p406 = por %p404, %p405
      %s408 = sadd.s32 %s407, 1
      %p411 = scmp.eq.s32.totalorder %s37, 1
      %p412 = scmp.ne.s32.totalorder %s407, %s409
      %p413 = scmp.eq.s32.totalorder %s37, 0
      %p414 = por %p412, %p413
      %p415 = scmp.ne.s32.totalorder %s407, %s409
      %p416 = scmp.eq.s32.totalorder %s42, 1
      %p417 = por %p415, %p416
      %p418 = scmp.ne.s32.totalorder %s409, %s410
      %p419 = scmp.eq.s32.totalorder %s42, 0
      %p420 = por %p418, %p419
      %p421 = scmp.ne.s32.totalorder %s409, %s410
      %p422 = scmp.eq.s32.totalorder %s43, 1
      %p423 = por %p421, %p422
      %p425 = scmp.ne.s32.totalorder %s410, %s424
      %p426 = scmp.eq.s32.totalorder %s43, 0
      %p427 = por %p425, %p426
      %s429 = sadd.s32 %s428, 1
      %p432 = scmp.eq.s32.totalorder %s37, 1
      %p433 = scmp.ne.s32.totalorder %s428, %s430
      %p434 = scmp.eq.s32.totalorder %s37, 0
      %p435 = por %p433, %p434
      %p436 = scmp.ne.s32.totalorder %s428, %s430
      %p437 = scmp.eq.s32.totalorder %s42, 1
      %p438 = por %p436, %p437
      %p439 = scmp.ne.s32.totalorder %s430, %s431
      %p440 = scmp.eq.s32.totalorder %s42, 0
      %p441 = por %p439, %p440
      %p442 = scmp.ne.s32.totalorder %s430, %s431
      %p443 = scmp.eq.s32.totalorder %s43, 1
      %p444 = por %p442, %p443
      %p446 = scmp.ne.s32.totalorder %s431, %s445
      %p447 = scmp.eq.s32.totalorder %s43, 0
      %p448 = por %p446, %p447
      %s450 = sadd.s32 %s449, 1
      %p453 = scmp.eq.s32.totalorder %s37, 1
      %p454 = scmp.ne.s32.totalorder %s449, %s451
      %p455 = scmp.eq.s32.totalorder %s37, 0
      %p456 = por %p454, %p455
      %p457 = scmp.ne.s32.totalorder %s449, %s451
      %p458 = scmp.eq.s32.totalorder %s42, 1
      %p459 = por %p457, %p458
      %p460 = scmp.ne.s32.totalorder %s451, %s452
      %p461 = scmp.eq.s32.totalorder %s42, 0
      %p462 = por %p460, %p461
      %p463 = scmp.ne.s32.totalorder %s451, %s452
      %p464 = scmp.eq.s32.totalorder %s43, 1
      %p465 = por %p463, %p464
      %p467 = scmp.ne.s32.totalorder %s452, %s466
      %p468 = scmp.eq.s32.totalorder %s43, 0
      %p469 = por %p467, %p468
      %s471 = sadd.s32 %s470, 1
      %p474 = scmp.eq.s32.totalorder %s37, 1
      %p475 = scmp.ne.s32.totalorder %s470, %s472
      %p476 = scmp.eq.s32.totalorder %s37, 0
      %p477 = por %p475, %p476
      %p478 = scmp.ne.s32.totalorder %s470, %s472
      %p479 = scmp.eq.s32.totalorder %s42, 1
      %p480 = por %p478, %p479
      %p481 = scmp.ne.s32.totalorder %s472, %s473
      %p482 = scmp.eq.s32.totalorder %s42, 0
      %p483 = por %p481, %p482
      %p484 = scmp.ne.s32.totalorder %s472, %s473
      %p485 = scmp.eq.s32.totalorder %s43, 1
      %p486 = por %p484, %p485
      %p488 = scmp.ne.s32.totalorder %s473, %s487
      %p489 = scmp.eq.s32.totalorder %s43, 0
      %p490 = por %p488, %p489
      %s492 = sadd.s32 %s491, 1
      %p495 = scmp.eq.s32.totalorder %s37, 1
      %p496 = scmp.ne.s32.totalorder %s491, %s493
      %p497 = scmp.eq.s32.totalorder %s37, 0
      %p498 = por %p496, %p497
      %p499 = scmp.ne.s32.totalorder %s491, %s493
      %p500 = scmp.eq.s32.totalorder %s42, 1
      %p501 = por %p499, %p500
      %p502 = scmp.ne.s32.totalorder %s493, %s494
      %p503 = scmp.eq.s32.totalorder %s42, 0
      %p504 = por %p502, %p503
      %p505 = scmp.ne.s32.totalorder %s493, %s494
      %p506 = scmp.eq.s32.totalorder %s43, 1
      %p507 = por %p505, %p506
      %p509 = scmp.ne.s32.totalorder %s494, %s508
      %p510 = scmp.eq.s32.totalorder %s43, 0
      %p511 = por %p509, %p510
      %s512 = ssub.s32 %s37, %s44
      %p513 = scmp.eq.s32.totalorder %s512, 0
      %s515 = sadd.s32 %s514, 1
      %s516 = scalar_select %p513, %s514, %s515
      %p519 = pneg %p513
      %p520 = scmp.eq.s32.totalorder %s37, 1
      %p521 = por %p519, %p520
      %p522 = scmp.ne.s32.totalorder %s514, %s517
      %p523 = scmp.eq.s32.totalorder %s37, 0
      %p524 = por %p522, %p523
      %p525 = scmp.ne.s32.totalorder %s514, %s517
      %p526 = scmp.eq.s32.totalorder %s42, 1
      %p527 = por %p525, %p526
      %p528 = scmp.ne.s32.totalorder %s517, %s518
      %p529 = scmp.eq.s32.totalorder %s42, 0
      %p530 = por %p528, %p529
      %p531 = scmp.ne.s32.totalorder %s517, %s518
      %p532 = scmp.eq.s32.totalorder %s43, 1
      %p533 = por %p531, %p532
      %p535 = scmp.ne.s32.totalorder %s518, %s534
      %p536 = scmp.eq.s32.totalorder %s43, 0
      %p537 = por %p535, %p536
      %p538 = scmp.le.s32.totalorder 1, %s37
      %p539 = scmp.lt.s32.totalorder %s37, 3
      %p540 = pnand %p538, %p539
      %p541 = pneg %p540
      // Predicated region
      $region9: #{autoencoder_forward.1} parent=5 // pred_check
        _
      $region10: #{autoencoder_forward.1} parent=5 // pred_check_branch
        %543 = sbr.rel (%p540) target = $region12
      $region11: #{autoencoder_forward.1} parent=5 // pred_region
        %s544 = ssub.s32 %s37, 1
        // Predicated region
        $region13: #{autoencoder_forward.1} parent=11 // pred_check
          %p545 = pneg %p84
        $region14: #{autoencoder_forward.1} parent=11 // pred_check_branch
          %547 = sbr.rel (%p545) target = $region16
        $region15: #{autoencoder_forward.1} parent=11 // pred_region
          %s549 = ssub.s32 9216, 9216
          %550 = vsyncadd [#allocation3], %s549
          %s551 = sshll.u32 [#allocation2], 4
          %s552 = int_to_ptr.vmem [resolvable:$true] %s551
          %557 = dma.hbm_to_vmem [thread:$0]  %s1, 9216, %s552, [#allocation3], 128, 128, 8
        $region16: #{autoencoder_forward.1} parent=11 // pred_fallthru
          _
        // Predicated region
        $region17: #{autoencoder_forward.1} parent=11 // pred_check
          %p558 = pneg %p105
        $region18: #{autoencoder_forward.1} parent=11 // pred_check_branch
          %560 = sbr.rel (%p558) target = $region20
        $region19: #{autoencoder_forward.1} parent=11 // pred_region
          %s562 = ssub.s32 256, 256
          %563 = vsyncadd [#allocation5], %s562
          %s564 = sshll.u32 [#allocation4], 4
          %s565 = int_to_ptr.vmem [resolvable:$true] %s564
          %570 = dma.hbm_to_vmem [thread:$0]  %s2, 256, %s565, [#allocation5], 64, 64, 4
        $region20: #{autoencoder_forward.1} parent=11 // pred_fallthru
          _
        // Predicated region
        $region21: #{autoencoder_forward.1} parent=11 // pred_check
          %p571 = pneg %p126
        $region22: #{autoencoder_forward.1} parent=11 // pred_check_branch
          %573 = sbr.rel (%p571) target = $region24
        $region23: #{autoencoder_forward.1} parent=11 // pred_region
          %s575 = ssub.s32 16, 16
          %576 = vsyncadd [#allocation5], %s575
          %s578 = sshll.u32 [#allocation6], 4
          %s579 = int_to_ptr.vmem [resolvable:$true] %s578
          %581 = dma.hbm_to_vmem [thread:$0]  %s3, 16, %s579, [#allocation5]
        $region24: #{autoencoder_forward.1} parent=11 // pred_fallthru
          _
        // Predicated region
        $region25: #{autoencoder_forward.1} parent=11 // pred_check
          %p582 = pneg %p147
        $region26: #{autoencoder_forward.1} parent=11 // pred_check_branch
          %584 = sbr.rel (%p582) target = $region28
        $region27: #{autoencoder_forward.1} parent=11 // pred_region
          %s586 = ssub.s32 1152, 1152
          %587 = vsyncadd [#allocation8], %s586
          %s588 = sshll.u32 [#allocation7], 4
          %s589 = int_to_ptr.vmem [resolvable:$true] %s588
          %594 = dma.hbm_to_vmem [thread:$0]  %s4, 1152, %s589, [#allocation8], 64, 64, 4
        $region28: #{autoencoder_forward.1} parent=11 // pred_fallthru
          _
        // Predicated region
        $region29: #{autoencoder_forward.1} parent=11 // pred_check
          %p595 = pneg %p168
        $region30: #{autoencoder_forward.1} parent=11 // pred_check_branch
          %597 = sbr.rel (%p595) target = $region32
        $region31: #{autoencoder_forward.1} parent=11 // pred_region
          %s599 = ssub.s32 4608, 4608
          %600 = vsyncadd [#allocation8], %s599
          %s601 = sshll.u32 [#allocation9], 4
          %s602 = int_to_ptr.vmem [resolvable:$true] %s601
          %607 = dma.hbm_to_vmem [thread:$0]  %s5, 4608, %s602, [#allocation8], 64, 64, 4
        $region32: #{autoencoder_forward.1} parent=11 // pred_fallthru
          _
        // Predicated region
        $region33: #{autoencoder_forward.1} parent=11 // pred_check
          %p608 = pneg %p189
        $region34: #{autoencoder_forward.1} parent=11 // pred_check_branch
          %610 = sbr.rel (%p608) target = $region36
        $region35: #{autoencoder_forward.1} parent=11 // pred_region
          %s612 = ssub.s32 16, 16
          %613 = vsyncadd [#allocation11], %s612
          %s615 = sshll.u32 [#allocation10], 4
          %s616 = int_to_ptr.vmem [resolvable:$true] %s615
          %618 = dma.hbm_to_vmem [thread:$0]  %s6, 16, %s616, [#allocation11]
        $region36: #{autoencoder_forward.1} parent=11 // pred_fallthru
          _
        // Predicated region
        $region37: #{autoencoder_forward.1} parent=11 // pred_check
          %p619 = pneg %p210
        $region38: #{autoencoder_forward.1} parent=11 // pred_check_branch
          %621 = sbr.rel (%p619) target = $region40
        $region39: #{autoencoder_forward.1} parent=11 // pred_region
          %s623 = ssub.s32 288, 288
          %624 = vsyncadd [#allocation11], %s623
          %s625 = sshll.u32 [#allocation12], 4
          %s626 = int_to_ptr.vmem [resolvable:$true] %s625
          %631 = dma.hbm_to_vmem [thread:$0]  %s7, 288, %s626, [#allocation11], 32, 32, 2
        $region40: #{autoencoder_forward.1} parent=11 // pred_fallthru
          _
        // Predicated region
        $region41: #{autoencoder_forward.1} parent=11 // pred_check
          %p632 = pneg %p231
        $region42: #{autoencoder_forward.1} parent=11 // pred_check_branch
          %634 = sbr.rel (%p632) target = $region44
        $region43: #{autoencoder_forward.1} parent=11 // pred_region
          %s636 = ssub.s32 18432, 18432
          %637 = vsyncadd [#allocation14], %s636
          %s638 = sshll.u32 [#allocation13], 4
          %s639 = int_to_ptr.vmem [resolvable:$true] %s638
          %644 = dma.hbm_to_vmem [thread:$0]  %s8, 18432, %s639, [#allocation14], 128, 128, 8
        $region44: #{autoencoder_forward.1} parent=11 // pred_fallthru
          _
        // Predicated region
        $region45: #{autoencoder_forward.1} parent=11 // pred_check
          %p645 = pneg %p252
        $region46: #{autoencoder_forward.1} parent=11 // pred_check_branch
          %647 = sbr.rel (%p645) target = $region48
        $region47: #{autoencoder_forward.1} parent=11 // pred_region
          %s649 = ssub.s32 32, 32
          %650 = vsyncadd [#allocation14], %s649
          %s652 = sshll.u32 [#allocation15], 4
          %s653 = int_to_ptr.vmem [resolvable:$true] %s652
          %655 = dma.hbm_to_vmem [thread:$0]  %s9, 32, %s653, [#allocation14]
        $region48: #{autoencoder_forward.1} parent=11 // pred_fallthru
          _
        // Predicated region
        $region49: #{autoencoder_forward.1} parent=11 // pred_check
          %p656 = pneg %p273
        $region50: #{autoencoder_forward.1} parent=11 // pred_check_branch
          %658 = sbr.rel (%p656) target = $region52
        $region51: #{autoencoder_forward.1} parent=11 // pred_region
          %s660 = ssub.s32 128, 128
          %661 = vsyncadd [#allocation17], %s660
          %s662 = sshll.u32 [#allocation16], 4
          %s663 = int_to_ptr.vmem [resolvable:$true] %s662
          %668 = dma.hbm_to_vmem [thread:$0]  %s10, 128, %s663, [#allocation17], 32, 32, 2
        $region52: #{autoencoder_forward.1} parent=11 // pred_fallthru
          _
        // Predicated region
        $region53: #{autoencoder_forward.1} parent=11 // pred_check
          %p669 = pneg %p294
        $region54: #{autoencoder_forward.1} parent=11 // pred_check_branch
          %671 = sbr.rel (%p669) target = $region56
        $region55: #{autoencoder_forward.1} parent=11 // pred_region
          _
        $region56: #{autoencoder_forward.1} parent=11 // pred_fallthru
          _
        // Predicated region
        $region57: #{autoencoder_forward.1} parent=11 // pred_check
          %p672 = pneg %p315
        $region58: #{autoencoder_forward.1} parent=11 // pred_check_branch
          %674 = sbr.rel (%p672) target = $region60
        $region59: #{autoencoder_forward.1} parent=11 // pred_region
          %s676 = ssub.s32 64, 64
          %677 = vsyncadd [#allocation17], %s676
          %s679 = sshll.u32 [#allocation18], 4
          %s680 = int_to_ptr.vmem [resolvable:$true] %s679
          %682 = dma.hbm_to_vmem [thread:$0]  %s12, 64, %s680, [#allocation17]
        $region60: #{autoencoder_forward.1} parent=11 // pred_fallthru
          _
        // Predicated region
        $region61: #{autoencoder_forward.1} parent=11 // pred_check
          %p683 = pneg %p336
        $region62: #{autoencoder_forward.1} parent=11 // pred_check_branch
          %685 = sbr.rel (%p683) target = $region64
        $region63: #{autoencoder_forward.1} parent=11 // pred_region
          _
        $region64: #{autoencoder_forward.1} parent=11 // pred_fallthru
          _
        // Predicated region
        $region65: #{autoencoder_forward.1} parent=11 // pred_check
          %p686 = pneg %p357
        $region66: #{autoencoder_forward.1} parent=11 // pred_check_branch
          %688 = sbr.rel (%p686) target = $region68
        $region67: #{autoencoder_forward.1} parent=11 // pred_region
          %s690 = ssub.s32 512, 512
          %691 = vsyncadd [#allocation20], %s690
          %s692 = sshll.u32 [#allocation19], 4
          %s693 = int_to_ptr.vmem [resolvable:$true] %s692
          %698 = dma.hbm_to_vmem [thread:$0]  %s14, 512, %s693, [#allocation20], 64, 64, 4
        $region68: #{autoencoder_forward.1} parent=11 // pred_fallthru
          _
        // Predicated region
        $region69: #{autoencoder_forward.1} parent=11 // pred_check
          %p699 = pneg %p378
        $region70: #{autoencoder_forward.1} parent=11 // pred_check_branch
          %701 = sbr.rel (%p699) target = $region72
        $region71: #{autoencoder_forward.1} parent=11 // pred_region
          %s703 = ssub.s32 8192, 8192
          %704 = vsyncadd [#allocation20], %s703
          %s705 = sshll.u32 [#allocation21], 4
          %s706 = int_to_ptr.vmem [resolvable:$true] %s705
          %711 = dma.hbm_to_vmem [thread:$0]  %s15, 8192, %s706, [#allocation20], 128, 128, 8
        $region72: #{autoencoder_forward.1} parent=11 // pred_fallthru
          _
        // Predicated region
        $region73: #{autoencoder_forward.1} parent=11 // pred_check
          %p712 = pneg %p399
        $region74: #{autoencoder_forward.1} parent=11 // pred_check_branch
          %714 = sbr.rel (%p712) target = $region76
        $region75: #{autoencoder_forward.1} parent=11 // pred_region
          %s716 = ssub.s32 32, 32
          %717 = vsyncadd [#allocation23], %s716
          %s719 = sshll.u32 [#allocation22], 4
          %s720 = int_to_ptr.vmem [resolvable:$true] %s719
          %722 = dma.hbm_to_vmem [thread:$0]  %s16, 32, %s720, [#allocation23]
        $region76: #{autoencoder_forward.1} parent=11 // pred_fallthru
          _
        // Predicated region
        $region77: #{autoencoder_forward.1} parent=11 // pred_check
          %p723 = pneg %p420
        $region78: #{autoencoder_forward.1} parent=11 // pred_check_branch
          %725 = sbr.rel (%p723) target = $region80
        $region79: #{autoencoder_forward.1} parent=11 // pred_region
          _
        $region80: #{autoencoder_forward.1} parent=11 // pred_fallthru
          _
        // Predicated region
        $region81: #{autoencoder_forward.1} parent=11 // pred_check
          %p726 = pneg %p441
        $region82: #{autoencoder_forward.1} parent=11 // pred_check_branch
          %728 = sbr.rel (%p726) target = $region84
        $region83: #{autoencoder_forward.1} parent=11 // pred_region
          %s730 = ssub.s32 2048, 2048
          %731 = vsyncadd [#allocation23], %s730
          %s732 = sshll.u32 [#allocation24], 4
          %s733 = int_to_ptr.vmem [resolvable:$true] %s732
          %738 = dma.hbm_to_vmem [thread:$0]  %s18, 2048, %s733, [#allocation23], 64, 64, 4
        $region84: #{autoencoder_forward.1} parent=11 // pred_fallthru
          _
        // Predicated region
        $region85: #{autoencoder_forward.1} parent=11 // pred_check
          %p739 = pneg %p462
        $region86: #{autoencoder_forward.1} parent=11 // pred_check_branch
          %741 = sbr.rel (%p739) target = $region88
        $region87: #{autoencoder_forward.1} parent=11 // pred_region
          _
        $region88: #{autoencoder_forward.1} parent=11 // pred_fallthru
          _
        // Predicated region
        $region89: #{autoencoder_forward.1} parent=11 // pred_check
          %p742 = pneg %p483
        $region90: #{autoencoder_forward.1} parent=11 // pred_check_branch
          %744 = sbr.rel (%p742) target = $region92
        $region91: #{autoencoder_forward.1} parent=11 // pred_region
          %s746 = ssub.s32 16, 16
          %747 = vsyncadd [#allocation26], %s746
          %s749 = sshll.u32 [#allocation25], 4
          %s750 = int_to_ptr.vmem [resolvable:$true] %s749
          %752 = dma.hbm_to_vmem [thread:$0]  %s20, 16, %s750, [#allocation26]
        $region92: #{autoencoder_forward.1} parent=11 // pred_fallthru
          _
        // Predicated region
        $region93: #{autoencoder_forward.1} parent=11 // pred_check
          %p753 = pneg %p504
        $region94: #{autoencoder_forward.1} parent=11 // pred_check_branch
          %755 = sbr.rel (%p753) target = $region96
        $region95: #{autoencoder_forward.1} parent=11 // pred_region
          _
        $region96: #{autoencoder_forward.1} parent=11 // pred_fallthru
          _
      $region12: #{autoencoder_forward.1} parent=5 // pred_fallthru
        _
      %p756 = scmp.lt.s32.totalorder %s37, 2
      // Predicated region
      $region97: #{autoencoder_forward.1} parent=5 // pred_check
        %p757 = pneg %p756
      $region98: #{autoencoder_forward.1} parent=5 // pred_check_branch
        %759 = sbr.rel (%p757) target = $region100
      $region99: #{autoencoder_forward.1} parent=5 // pred_region
        // Predicated region
        $region101: #{autoencoder_forward.1} parent=99 // pred_check
          %p760 = pneg %p57
        $region102: #{autoencoder_forward.1} parent=99 // pred_check_branch
          %762 = sbr.rel (%p760) target = $region104
        $region103: #{autoencoder_forward.1} parent=99 // pred_region
          %p763 = scmp.lt.s32.totalorder %s37, 1
          %s764 = scalar_select %p763, %s37, 1
          %s765 = smul.addr %s764, 32
          %s766 = smul.addr %s765, 4
          %s767 = scalar_lea.vmem %s0, %s766
        $region104: #{autoencoder_forward.1} parent=99 // pred_fallthru
          _
      $region100: #{autoencoder_forward.1} parent=5 // pred_fallthru
        _
      %p768 = scmp.le.s32.totalorder 1, %s37
      %p769 = scmp.lt.s32.totalorder %s37, 3
      %p770 = pnand %p768, %p769
      %p771 = pneg %p770
      // Predicated region
      $region105: #{autoencoder_forward.1} parent=5 // pred_check
        _
      $region106: #{autoencoder_forward.1} parent=5 // pred_check_branch
        %773 = sbr.rel (%p770) target = $region108
      $region107: #{autoencoder_forward.1} parent=5 // pred_region
        %s774 = ssub.s32 %s37, 1
        // Predicated region
        $region109: #{autoencoder_forward.1} parent=107 // pred_check
          %p775 = pneg %p84
        $region110: #{autoencoder_forward.1} parent=107 // pred_check_branch
          %777 = sbr.rel (%p775) target = $region112
        $region111: #{autoencoder_forward.1} parent=107 // pred_region
          %778 = dma.done [#allocation3], 9216
        $region112: #{autoencoder_forward.1} parent=107 // pred_fallthru
          _
        // Predicated region
        $region113: #{autoencoder_forward.1} parent=107 // pred_check
          %p779 = pneg %p105
        $region114: #{autoencoder_forward.1} parent=107 // pred_check_branch
          %781 = sbr.rel (%p779) target = $region116
        $region115: #{autoencoder_forward.1} parent=107 // pred_region
          %782 = dma.done [#allocation5], 256
        $region116: #{autoencoder_forward.1} parent=107 // pred_fallthru
          _
        // Predicated region
        $region117: #{autoencoder_forward.1} parent=107 // pred_check
          %p783 = pneg %p126
        $region118: #{autoencoder_forward.1} parent=107 // pred_check_branch
          %785 = sbr.rel (%p783) target = $region120
        $region119: #{autoencoder_forward.1} parent=107 // pred_region
          %786 = dma.done [#allocation5], 16
        $region120: #{autoencoder_forward.1} parent=107 // pred_fallthru
          _
        // Predicated region
        $region121: #{autoencoder_forward.1} parent=107 // pred_check
          %p787 = pneg %p147
        $region122: #{autoencoder_forward.1} parent=107 // pred_check_branch
          %789 = sbr.rel (%p787) target = $region124
        $region123: #{autoencoder_forward.1} parent=107 // pred_region
          %790 = dma.done [#allocation8], 1152
        $region124: #{autoencoder_forward.1} parent=107 // pred_fallthru
          _
        // Predicated region
        $region125: #{autoencoder_forward.1} parent=107 // pred_check
          %p791 = pneg %p168
        $region126: #{autoencoder_forward.1} parent=107 // pred_check_branch
          %793 = sbr.rel (%p791) target = $region128
        $region127: #{autoencoder_forward.1} parent=107 // pred_region
          %794 = dma.done [#allocation8], 4608
        $region128: #{autoencoder_forward.1} parent=107 // pred_fallthru
          _
        // Predicated region
        $region129: #{autoencoder_forward.1} parent=107 // pred_check
          %p795 = pneg %p189
        $region130: #{autoencoder_forward.1} parent=107 // pred_check_branch
          %797 = sbr.rel (%p795) target = $region132
        $region131: #{autoencoder_forward.1} parent=107 // pred_region
          %798 = dma.done [#allocation11], 16
        $region132: #{autoencoder_forward.1} parent=107 // pred_fallthru
          _
        // Predicated region
        $region133: #{autoencoder_forward.1} parent=107 // pred_check
          %p799 = pneg %p210
        $region134: #{autoencoder_forward.1} parent=107 // pred_check_branch
          %801 = sbr.rel (%p799) target = $region136
        $region135: #{autoencoder_forward.1} parent=107 // pred_region
          %802 = dma.done [#allocation11], 288
        $region136: #{autoencoder_forward.1} parent=107 // pred_fallthru
          _
        // Predicated region
        $region137: #{autoencoder_forward.1} parent=107 // pred_check
          %p803 = pneg %p231
        $region138: #{autoencoder_forward.1} parent=107 // pred_check_branch
          %805 = sbr.rel (%p803) target = $region140
        $region139: #{autoencoder_forward.1} parent=107 // pred_region
          %806 = dma.done [#allocation14], 18432
        $region140: #{autoencoder_forward.1} parent=107 // pred_fallthru
          _
        // Predicated region
        $region141: #{autoencoder_forward.1} parent=107 // pred_check
          %p807 = pneg %p252
        $region142: #{autoencoder_forward.1} parent=107 // pred_check_branch
          %809 = sbr.rel (%p807) target = $region144
        $region143: #{autoencoder_forward.1} parent=107 // pred_region
          %810 = dma.done [#allocation14], 32
        $region144: #{autoencoder_forward.1} parent=107 // pred_fallthru
          _
        // Predicated region
        $region145: #{autoencoder_forward.1} parent=107 // pred_check
          %p811 = pneg %p273
        $region146: #{autoencoder_forward.1} parent=107 // pred_check_branch
          %813 = sbr.rel (%p811) target = $region148
        $region147: #{autoencoder_forward.1} parent=107 // pred_region
          %814 = dma.done [#allocation17], 128
        $region148: #{autoencoder_forward.1} parent=107 // pred_fallthru
          _
        // Predicated region
        $region149: #{autoencoder_forward.1} parent=107 // pred_check
          %p815 = pneg %p315
        $region150: #{autoencoder_forward.1} parent=107 // pred_check_branch
          %817 = sbr.rel (%p815) target = $region152
        $region151: #{autoencoder_forward.1} parent=107 // pred_region
          %818 = dma.done [#allocation17], 64
        $region152: #{autoencoder_forward.1} parent=107 // pred_fallthru
          _
        // Predicated region
        $region153: #{autoencoder_forward.1} parent=107 // pred_check
          %p819 = pneg %p357
        $region154: #{autoencoder_forward.1} parent=107 // pred_check_branch
          %821 = sbr.rel (%p819) target = $region156
        $region155: #{autoencoder_forward.1} parent=107 // pred_region
          %822 = dma.done [#allocation20], 512
        $region156: #{autoencoder_forward.1} parent=107 // pred_fallthru
          _
        // Predicated region
        $region157: #{autoencoder_forward.1} parent=107 // pred_check
          %p823 = pneg %p378
        $region158: #{autoencoder_forward.1} parent=107 // pred_check_branch
          %825 = sbr.rel (%p823) target = $region160
        $region159: #{autoencoder_forward.1} parent=107 // pred_region
          %826 = dma.done [#allocation20], 8192
        $region160: #{autoencoder_forward.1} parent=107 // pred_fallthru
          _
        // Predicated region
        $region161: #{autoencoder_forward.1} parent=107 // pred_check
          %p827 = pneg %p399
        $region162: #{autoencoder_forward.1} parent=107 // pred_check_branch
          %829 = sbr.rel (%p827) target = $region164
        $region163: #{autoencoder_forward.1} parent=107 // pred_region
          %830 = dma.done [#allocation23], 32
        $region164: #{autoencoder_forward.1} parent=107 // pred_fallthru
          _
        // Predicated region
        $region165: #{autoencoder_forward.1} parent=107 // pred_check
          %p831 = pneg %p441
        $region166: #{autoencoder_forward.1} parent=107 // pred_check_branch
          %833 = sbr.rel (%p831) target = $region168
        $region167: #{autoencoder_forward.1} parent=107 // pred_region
          %834 = dma.done [#allocation23], 2048
        $region168: #{autoencoder_forward.1} parent=107 // pred_fallthru
          _
        // Predicated region
        $region169: #{autoencoder_forward.1} parent=107 // pred_check
          %p835 = pneg %p483
        $region170: #{autoencoder_forward.1} parent=107 // pred_check_branch
          %837 = sbr.rel (%p835) target = $region172
        $region171: #{autoencoder_forward.1} parent=107 // pred_region
          %838 = dma.done [#allocation26], 16
        $region172: #{autoencoder_forward.1} parent=107 // pred_fallthru
          _
        %p839 = scmp.lt.s32.totalorder %s42, 1
        %s840 = scalar_select %p839, %s42, 1
        %s841 = smul.addr %s840, 32
        %s842 = smul.addr %s841, 4
        %s843 = scalar_lea.vmem %s0, %s842
        %p844 = pneg %p63
        %p845 = pneg %p60
        %p846 = pneg %p84
        %p847 = pneg %p81
        %p848 = pneg %p105
        %p849 = pneg %p102
        %p850 = pneg %p126
        %p851 = pneg %p123
        %p852 = pneg %p147
        %p853 = pneg %p144
        %p854 = pneg %p168
        %p855 = pneg %p165
        %p856 = pneg %p189
        %p857 = pneg %p186
        %p858 = pneg %p210
        %p859 = pneg %p207
        %p860 = pneg %p231
        %p861 = pneg %p228
        %p862 = pneg %p252
        %p863 = pneg %p249
        %p864 = pneg %p273
        %p865 = pneg %p270
        %p866 = pneg %p294
        %p867 = pneg %p291
        %p868 = pneg %p315
        %p869 = pneg %p312
        %p870 = pneg %p336
        %p871 = pneg %p333
        %p872 = pneg %p357
        %p873 = pneg %p354
        %p874 = pneg %p378
        %p875 = pneg %p375
        %p876 = pneg %p399
        %p877 = pneg %p396
        %p878 = pneg %p420
        %p879 = pneg %p417
        %p880 = pneg %p441
        %p881 = pneg %p438
        %p882 = pneg %p462
        %p883 = pneg %p459
        %p884 = pneg %p483
        %p885 = pneg %p480
        %p886 = pneg %p504
        %p887 = pneg %p501
        %p888 = pneg %p530
        %p889 = pneg %p527
        %p890 = scmp.lt.s32.totalorder %s42, 1
        %s891 = scalar_select %p890, %s42, 1
        %s892 = smul.addr %s891, 32
        %s893 = smul.addr %s892, 8
        %s894 = scalar_lea.vmem %s22, %s893
        %p895 = scmp.lt.s32.totalorder %s42, 1
        %s896 = scalar_select %p895, %s42, 1
        %s897 = smul.addr %s896, 32
        %s898 = smul.addr %s897, 4
        %s899 = scalar_lea.vmem %s0, %s898
        %p900 = scmp.lt.s32.totalorder %s42, 1
        %s901 = scalar_select %p900, %s42, 1
        %s902 = smul.addr %s901, 32
        %s903 = smul.addr %s902, 8
        %s904 = scalar_lea.vmem %s22, %s903
        %v906 = vld [vmem:[%s899] sm:$0xf]
        %v907 = vld [vmem:[%s899 + $0x4] sm:$0xf]
        %v908 = vld [vmem:[%s899 + $0x8] sm:$0xf]
        %v909 = vld [vmem:[%s899 + $0xc] sm:$0xf]
        %v910 = vld [vmem:[%s899 + $0x10] sm:$0xf]
        %v911 = vld [vmem:[%s899 + $0x14] sm:$0xf]
        %v912 = vld [vmem:[%s899 + $0x18] sm:$0xf]
        %v913 = vld [vmem:[%s899 + $0x1c] sm:$0xf]
        %v914 = vld [vmem:[%s899 + $0x20] sm:$0xf]
        %v915 = vld [vmem:[%s899 + $0x24] sm:$0xf]
        %v916 = vld [vmem:[%s899 + $0x28] sm:$0xf]
        %v917 = vld [vmem:[%s899 + $0x2c] sm:$0xf]
        %v918 = vld [vmem:[%s899 + $0x30] sm:$0xf]
        %v919 = vld [vmem:[%s899 + $0x34] sm:$0xf]
        %v920 = vld [vmem:[%s899 + $0x38] sm:$0xf]
        %v921 = vld [vmem:[%s899 + $0x3c] sm:$0xf]
        %v922 = vld [vmem:[%s899 + $0x40] sm:$0xf]
        %v923 = vld [vmem:[%s899 + $0x44] sm:$0xf]
        %v924 = vld [vmem:[%s899 + $0x48] sm:$0xf]
        %v925 = vld [vmem:[%s899 + $0x4c] sm:$0xf]
        %v926 = vld [vmem:[%s899 + $0x50] sm:$0xf]
        %v927 = vld [vmem:[%s899 + $0x54] sm:$0xf]
        %v928 = vld [vmem:[%s899 + $0x58] sm:$0xf]
        %v929 = vld [vmem:[%s899 + $0x5c] sm:$0xf]
        %v930 = vld [vmem:[%s899 + $0x60] sm:$0xf]
        %v931 = vld [vmem:[%s899 + $0x64] sm:$0xf]
        %v932 = vld [vmem:[%s899 + $0x68] sm:$0xf]
        %v933 = vld [vmem:[%s899 + $0x6c] sm:$0xf]
        %v934 = vld [vmem:[%s899 + $0x70] sm:$0xf]
        %v935 = vld [vmem:[%s899 + $0x74] sm:$0xf]
        %v936 = vld [vmem:[%s899 + $0x78] sm:$0xf]
        %v937 = vld [vmem:[%s899 + $0x7c] sm:$0xf]
        %v938 = vld [vmem:[#allocation2] sm:$0xff]
        %v939 = vld [vmem:[#allocation2 + $0x8] sm:$0xff]
        %v940 = vld [vmem:[#allocation2 + $0x10] sm:$0xff]
        %v941 = vld [vmem:[#allocation2 + $0x18] sm:$0xff]
        %v942 = vld [vmem:[#allocation2 + $0x20] sm:$0xff]
        %v943 = vld [vmem:[#allocation2 + $0x28] sm:$0xff]
        %v944 = vld [vmem:[#allocation2 + $0x30] sm:$0xff]
        %v945 = vld [vmem:[#allocation2 + $0x38] sm:$0xff]
        %v954 = vunpack.c.l.b16 %v938
        %v955 = vunpack.c.h.b16 %v938
        %v956 = vunpack.c.l.b16 %v939
        %v957 = vunpack.c.h.b16 %v939
        %v958 = vunpack.c.l.b16 %v940
        %v959 = vunpack.c.h.b16 %v940
        %v960 = vunpack.c.l.b16 %v941
        %v961 = vunpack.c.h.b16 %v941
        %v962 = vunpack.c.l.b16 %v942
        %v963 = vunpack.c.h.b16 %v942
        %v964 = vunpack.c.l.b16 %v943
        %v965 = vunpack.c.h.b16 %v943
        %v966 = vunpack.c.l.b16 %v944
        %v967 = vunpack.c.h.b16 %v944
        %v968 = vunpack.c.l.b16 %v945
        %v969 = vunpack.c.h.b16 %v945
        %v970 = vpack.c.b16 %v956, %v954
        %v971 = vpack.c.b16 %v957, %v955
        %v972 = vpack.c.b16 %v960, %v958
        %v973 = vpack.c.b16 %v961, %v959
        %v974 = vpack.c.b16 %v964, %v962
        %v975 = vpack.c.b16 %v965, %v963
        %v976 = vpack.c.b16 %v968, %v966
        %v977 = vpack.c.b16 %v969, %v967
        %v1018 = vunpack.c.l.b16 %v906
        %v1019 = vunpack.c.l.b16 %v907
        %v1020 = vunpack.c.l.b16 %v908
        %v1021 = vunpack.c.l.b16 %v909
        %v1022 = vunpack.c.l.b16 %v910
        %v1023 = vunpack.c.l.b16 %v911
        %v1024 = vunpack.c.l.b16 %v912
        %v1025 = vunpack.c.l.b16 %v913
        %v1026 = vunpack.c.l.b16 %v914
        %v1027 = vunpack.c.l.b16 %v915
        %v1028 = vunpack.c.l.b16 %v916
        %v1029 = vunpack.c.l.b16 %v917
        %v1030 = vunpack.c.l.b16 %v918
        %v1031 = vunpack.c.l.b16 %v919
        %v1032 = vunpack.c.l.b16 %v920
        %v1033 = vunpack.c.l.b16 %v921
        %v1034 = vunpack.c.l.b16 %v922
        %v1035 = vunpack.c.l.b16 %v923
        %v1036 = vunpack.c.l.b16 %v924
        %v1037 = vunpack.c.l.b16 %v925
        %v1038 = vunpack.c.l.b16 %v926
        %v1039 = vunpack.c.l.b16 %v927
        %v1040 = vunpack.c.l.b16 %v928
        %v1041 = vunpack.c.l.b16 %v929
        %v1042 = vunpack.c.l.b16 %v930
        %v1043 = vunpack.c.l.b16 %v931
        %v1044 = vunpack.c.l.b16 %v932
        %v1045 = vunpack.c.l.b16 %v933
        %v1046 = vunpack.c.l.b16 %v934
        %v1047 = vunpack.c.l.b16 %v935
        %v1048 = vunpack.c.l.b16 %v936
        %v1049 = vunpack.c.l.b16 %v937
        %v1050 = vpack.c.b16 %v1019, %v1018
        %v1051 = vpack.c.b16 %v1021, %v1020
        %v1052 = vpack.c.b16 %v1023, %v1022
        %v1053 = vpack.c.b16 %v1025, %v1024
        %v1054 = vpack.c.b16 %v1027, %v1026
        %v1055 = vpack.c.b16 %v1029, %v1028
        %v1056 = vpack.c.b16 %v1031, %v1030
        %v1057 = vpack.c.b16 %v1033, %v1032
        %v1058 = vpack.c.b16 %v1035, %v1034
        %v1059 = vpack.c.b16 %v1037, %v1036
        %v1060 = vpack.c.b16 %v1039, %v1038
        %v1061 = vpack.c.b16 %v1041, %v1040
        %v1062 = vpack.c.b16 %v1043, %v1042
        %v1063 = vpack.c.b16 %v1045, %v1044
        %v1064 = vpack.c.b16 %v1047, %v1046
        %v1065 = vpack.c.b16 %v1049, %v1048
        %1082 = vmatprep.subr.bf16.mxu0 0
        %1083 = vmatpush1.bf16.msra.mxu0 %v1050
        %1084 = vmatprep.subr.bf16.mxu0 0
        %1085 = vmatpush1.bf16.msra.mxu0 %v1051
        %1086 = vmatprep.subr.bf16.mxu0 0
        %1087 = vmatpush1.bf16.msra.mxu0 %v1052
        %1088 = vmatprep.subr.bf16.mxu0 0
        %1089 = vmatpush1.bf16.msra.mxu0 %v1053
        %1090 = vmatprep.subr.bf16.mxu0 0
        %1091 = vmatpush1.bf16.msra.mxu0 %v1054
        %1092 = vmatprep.subr.bf16.mxu0 0
        %1093 = vmatpush1.bf16.msra.mxu0 %v1055
        %1094 = vmatprep.subr.bf16.mxu0 0
        %1095 = vmatpush1.bf16.msra.mxu0 %v1056
        %1096 = vmatprep.subr.bf16.mxu0 0
        %1097 = vmatpush1.bf16.msra.mxu0 %v1057
        %1098 = vmatprep.subr.bf16.mxu0 0
        %1099 = vmatpush1.bf16.msra.mxu0 %v1058
        %1100 = vmatprep.subr.bf16.mxu0 0
        %1101 = vmatpush1.bf16.msra.mxu0 %v1059
        %1102 = vmatprep.subr.bf16.mxu0 0
        %1103 = vmatpush1.bf16.msra.mxu0 %v1060
        %1104 = vmatprep.subr.bf16.mxu0 0
        %1105 = vmatpush1.bf16.msra.mxu0 %v1061
        %1106 = vmatprep.subr.bf16.mxu0 0
        %1107 = vmatpush1.bf16.msra.mxu0 %v1062
        %1108 = vmatprep.subr.bf16.mxu0 0
        %1109 = vmatpush1.bf16.msra.mxu0 %v1063
        %1110 = vmatprep.subr.bf16.mxu0 0
        %1111 = vmatpush1.bf16.msra.mxu0 %v1064
        %1112 = vmatprep.subr.bf16.mxu0 0
        %1113 = vmatpush1.bf16.msra.mxu0 %v1065
        %1114 = vmatprep.mubr.bf16.mxu0 %v971
        %1115 = vmatmul.mubr.bf16.gmra.mrb[0].mxu0 %v970
        %v1116 = vpop.f32.mrb[0].mxu0
        %v1117 = vadd.f32 0.0, %v1116
        %v1118 = vpop.f32.mrb[0].mxu0
        %v1119 = vpop.f32.mrb[0].mxu0
        %v1120 = vadd.f32 0.0, %v1119
        %v1121 = vpop.f32.mrb[0].mxu0
        %1122 = vmatprep.mubr.bf16.mxu0 %v973
        %1123 = vmatmul.mubr.bf16.gmra.mrb[0].mxu0 %v972
        %v1124 = vpop.f32.mrb[0].mxu0
        %v1125 = vadd.f32 0.0, %v1124
        %v1126 = vpop.f32.mrb[0].mxu0
        %v1127 = vpop.f32.mrb[0].mxu0
        %v1128 = vadd.f32 0.0, %v1127
        %v1129 = vpop.f32.mrb[0].mxu0
        %1130 = vmatprep.mubr.bf16.mxu0 %v975
        %1131 = vmatmul.mubr.bf16.gmra.mrb[0].mxu0 %v974
        %v1132 = vpop.f32.mrb[0].mxu0
        %v1133 = vadd.f32 0.0, %v1132
        %v1134 = vpop.f32.mrb[0].mxu0
        %v1135 = vpop.f32.mrb[0].mxu0
        %v1136 = vadd.f32 0.0, %v1135
        %v1137 = vpop.f32.mrb[0].mxu0
        %1138 = vmatprep.mubr.bf16.mxu0 %v977
        %1139 = vmatmul.mubr.bf16.gmra.mrb[0].mxu0 %v976
        %v1140 = vpop.f32.mrb[0].mxu0
        %v1141 = vadd.f32 0.0, %v1140
        %v1142 = vpop.f32.mrb[0].mxu0
        %v1143 = vpop.f32.mrb[0].mxu0
        %v1144 = vadd.f32 0.0, %v1143
        %v1145 = vpop.f32.mrb[0].mxu0
        %1146 = vdwg.mxu0
        %v1147 = vpack.c.bf16 %v1120, %v1117
        %v1148 = vpack.c.bf16 %v1128, %v1125
        %v1149 = vpack.c.bf16 %v1136, %v1133
        %v1150 = vpack.c.bf16 %v1144, %v1141
        %s1151 = scalar_lea.vmem [#allocation2], 64
        %v1152 = vld [vmem:[%s1151] sm:$0xff]
        %v1153 = vld [vmem:[%s1151 + $0x8] sm:$0xff]
        %v1154 = vld [vmem:[%s1151 + $0x10] sm:$0xff]
        %v1155 = vld [vmem:[%s1151 + $0x18] sm:$0xff]
        %v1156 = vld [vmem:[%s1151 + $0x20] sm:$0xff]
        %v1157 = vld [vmem:[%s1151 + $0x28] sm:$0xff]
        %v1158 = vld [vmem:[%s1151 + $0x30] sm:$0xff]
        %v1159 = vld [vmem:[%s1151 + $0x38] sm:$0xff]
        %v1168 = vunpack.c.l.b16 %v1152
        %v1169 = vunpack.c.h.b16 %v1152
        %v1170 = vunpack.c.l.b16 %v1153
        %v1171 = vunpack.c.h.b16 %v1153
        %v1172 = vunpack.c.l.b16 %v1154
        %v1173 = vunpack.c.h.b16 %v1154
        %v1174 = vunpack.c.l.b16 %v1155
        %v1175 = vunpack.c.h.b16 %v1155
        %v1176 = vunpack.c.l.b16 %v1156
        %v1177 = vunpack.c.h.b16 %v1156
        %v1178 = vunpack.c.l.b16 %v1157
        %v1179 = vunpack.c.h.b16 %v1157
        %v1180 = vunpack.c.l.b16 %v1158
        %v1181 = vunpack.c.h.b16 %v1158
        %v1182 = vunpack.c.l.b16 %v1159
        %v1183 = vunpack.c.h.b16 %v1159
        %v1184 = vpack.c.b16 %v1170, %v1168
        %v1185 = vpack.c.b16 %v1171, %v1169
        %v1186 = vpack.c.b16 %v1174, %v1172
        %v1187 = vpack.c.b16 %v1175, %v1173
        %v1188 = vpack.c.b16 %v1178, %v1176
        %v1189 = vpack.c.b16 %v1179, %v1177
        %v1190 = vpack.c.b16 %v1182, %v1180
        %v1191 = vpack.c.b16 %v1183, %v1181
        %1200 = vmatprep.subr.bf16.mxu0 0
        %1201 = vmatpush1.bf16.msra.mxu0 %v1050
        %1202 = vmatprep.subr.bf16.mxu0 0
        %1203 = vmatpush1.bf16.msra.mxu0 %v1051
        %1204 = vmatprep.subr.bf16.mxu0 0
        %1205 = vmatpush1.bf16.msra.mxu0 %v1052
        %1206 = vmatprep.subr.bf16.mxu0 0
        %1207 = vmatpush1.bf16.msra.mxu0 %v1053
        %1208 = vmatprep.subr.bf16.mxu0 0
        %1209 = vmatpush1.bf16.msra.mxu0 %v1054
        %1210 = vmatprep.subr.bf16.mxu0 0
        %1211 = vmatpush1.bf16.msra.mxu0 %v1055
        %1212 = vmatprep.subr.bf16.mxu0 0
        %1213 = vmatpush1.bf16.msra.mxu0 %v1056
        %1214 = vmatprep.subr.bf16.mxu0 0
        %1215 = vmatpush1.bf16.msra.mxu0 %v1057
        %1216 = vmatprep.subr.bf16.mxu0 0
        %1217 = vmatpush1.bf16.msra.mxu0 %v1058
        %1218 = vmatprep.subr.bf16.mxu0 0
        %1219 = vmatpush1.bf16.msra.mxu0 %v1059
        %1220 = vmatprep.subr.bf16.mxu0 0
        %1221 = vmatpush1.bf16.msra.mxu0 %v1060
        %1222 = vmatprep.subr.bf16.mxu0 0
        %1223 = vmatpush1.bf16.msra.mxu0 %v1061
        %1224 = vmatprep.subr.bf16.mxu0 0
        %1225 = vmatpush1.bf16.msra.mxu0 %v1062
        %1226 = vmatprep.subr.bf16.mxu0 0
        %1227 = vmatpush1.bf16.msra.mxu0 %v1063
        %1228 = vmatprep.subr.bf16.mxu0 0
        %1229 = vmatpush1.bf16.msra.mxu0 %v1064
        %1230 = vmatprep.subr.bf16.mxu0 0
        %1231 = vmatpush1.bf16.msra.mxu0 %v1065
        %1232 = vmatprep.mubr.bf16.mxu0 %v1185
        %1233 = vmatmul.mubr.bf16.gmra.mrb[0].mxu0 %v1184
        %v1234 = vpop.f32.mrb[0].mxu0
        %v1235 = vadd.f32 0.0, %v1234
        %v1236 = vpop.f32.mrb[0].mxu0
        %v1237 = vpop.f32.mrb[0].mxu0
        %v1238 = vadd.f32 0.0, %v1237
        %v1239 = vpop.f32.mrb[0].mxu0
        %1240 = vmatprep.mubr.bf16.mxu0 %v1187
        %1241 = vmatmul.mubr.bf16.gmra.mrb[0].mxu0 %v1186
        %v1242 = vpop.f32.mrb[0].mxu0
        %v1243 = vadd.f32 0.0, %v1242
        %v1244 = vpop.f32.mrb[0].mxu0
        %v1245 = vpop.f32.mrb[0].mxu0
        %v1246 = vadd.f32 0.0, %v1245
        %v1247 = vpop.f32.mrb[0].mxu0
        %1248 = vmatprep.mubr.bf16.mxu0 %v1189
        %1249 = vmatmul.mubr.bf16.gmra.mrb[0].mxu0 %v1188
        %v1250 = vpop.f32.mrb[0].mxu0
        %v1251 = vadd.f32 0.0, %v1250
        %v1252 = vpop.f32.mrb[0].mxu0
        %v1253 = vpop.f32.mrb[0].mxu0
        %v1254 = vadd.f32 0.0, %v1253
        %v1255 = vpop.f32.mrb[0].mxu0
        %1256 = vmatprep.mubr.bf16.mxu0 %v1191
        %1257 = vmatmul.mubr.bf16.gmra.mrb[0].mxu0 %v1190
        %v1258 = vpop.f32.mrb[0].mxu0
        %v1259 = vadd.f32 0.0, %v1258
        %v1260 = vpop.f32.mrb[0].mxu0
        %v1261 = vpop.f32.mrb[0].mxu0
        %v1262 = vadd.f32 0.0, %v1261
        %v1263 = vpop.f32.mrb[0].mxu0
        %1264 = vdwg.mxu0
        %v1265 = vpack.c.bf16 %v1238, %v1235
        %v1266 = vpack.c.bf16 %v1246, %v1243
        %v1267 = vpack.c.bf16 %v1254, %v1251
        %v1268 = vpack.c.bf16 %v1262, %v1259
        %s1269 = scalar_lea.vmem [#allocation2], 128
        %v1270 = vld [vmem:[%s1269] sm:$0xff]
        %v1271 = vld [vmem:[%s1269 + $0x8] sm:$0xff]
        %v1272 = vld [vmem:[%s1269 + $0x10] sm:$0xff]
        %v1273 = vld [vmem:[%s1269 + $0x18] sm:$0xff]
        %v1274 = vld [vmem:[%s1269 + $0x20] sm:$0xff]
        %v1275 = vld [vmem:[%s1269 + $0x28] sm:$0xff]
        %v1276 = vld [vmem:[%s1269 + $0x30] sm:$0xff]
        %v1277 = vld [vmem:[%s1269 + $0x38] sm:$0xff]
        %v1286 = vunpack.c.l.b16 %v1270
        %v1287 = vunpack.c.h.b16 %v1270
        %v1288 = vunpack.c.l.b16 %v1271
        %v1289 = vunpack.c.h.b16 %v1271
        %v1290 = vunpack.c.l.b16 %v1272
        %v1291 = vunpack.c.h.b16 %v1272
        %v1292 = vunpack.c.l.b16 %v1273
        %v1293 = vunpack.c.h.b16 %v1273
        %v1294 = vunpack.c.l.b16 %v1274
        %v1295 = vunpack.c.h.b16 %v1274
        %v1296 = vunpack.c.l.b16 %v1275
        %v1297 = vunpack.c.h.b16 %v1275
        %v1298 = vunpack.c.l.b16 %v1276
        %v1299 = vunpack.c.h.b16 %v1276
        %v1300 = vunpack.c.l.b16 %v1277
        %v1301 = vunpack.c.h.b16 %v1277
        %v1302 = vpack.c.b16 %v1288, %v1286
        %v1303 = vpack.c.b16 %v1289, %v1287
        %v1304 = vpack.c.b16 %v1292, %v1290
        %v1305 = vpack.c.b16 %v1293, %v1291
        %v1306 = vpack.c.b16 %v1296, %v1294
        %v1307 = vpack.c.b16 %v1297, %v1295
        %v1308 = vpack.c.b16 %v1300, %v1298
        %v1309 = vpack.c.b16 %v1301, %v1299
        %1318 = vmatprep.subr.bf16.mxu0 0
        %1319 = vmatpush1.bf16.msra.mxu0 %v1050
        %1320 = vmatprep.subr.bf16.mxu0 0
        %1321 = vmatpush1.bf16.msra.mxu0 %v1051
        %1322 = vmatprep.subr.bf16.mxu0 0
        %1323 = vmatpush1.bf16.msra.mxu0 %v1052
        %1324 = vmatprep.subr.bf16.mxu0 0
        %1325 = vmatpush1.bf16.msra.mxu0 %v1053
        %1326 = vmatprep.subr.bf16.mxu0 0
        %1327 = vmatpush1.bf16.msra.mxu0 %v1054
        %1328 = vmatprep.subr.bf16.mxu0 0
        %1329 = vmatpush1.bf16.msra.mxu0 %v1055
        %1330 = vmatprep.subr.bf16.mxu0 0
        %1331 = vmatpush1.bf16.msra.mxu0 %v1056
        %1332 = vmatprep.subr.bf16.mxu0 0
        %1333 = vmatpush1.bf16.msra.mxu0 %v1057
        %1334 = vmatprep.subr.bf16.mxu0 0
        %1335 = vmatpush1.bf16.msra.mxu0 %v1058
        %1336 = vmatprep.subr.bf16.mxu0 0
        %1337 = vmatpush1.bf16.msra.mxu0 %v1059
        %1338 = vmatprep.subr.bf16.mxu0 0
        %1339 = vmatpush1.bf16.msra.mxu0 %v1060
        %1340 = vmatprep.subr.bf16.mxu0 0
        %1341 = vmatpush1.bf16.msra.mxu0 %v1061
        %1342 = vmatprep.subr.bf16.mxu0 0
        %1343 = vmatpush1.bf16.msra.mxu0 %v1062
        %1344 = vmatprep.subr.bf16.mxu0 0
        %1345 = vmatpush1.bf16.msra.mxu0 %v1063
        %1346 = vmatprep.subr.bf16.mxu0 0
        %1347 = vmatpush1.bf16.msra.mxu0 %v1064
        %1348 = vmatprep.subr.bf16.mxu0 0
        %1349 = vmatpush1.bf16.msra.mxu0 %v1065
        %1350 = vmatprep.mubr.bf16.mxu0 %v1303
        %1351 = vmatmul.mubr.bf16.gmra.mrb[0].mxu0 %v1302
        %v1352 = vpop.f32.mrb[0].mxu0
        %v1353 = vadd.f32 0.0, %v1352
        %v1354 = vpop.f32.mrb[0].mxu0
        %v1355 = vpop.f32.mrb[0].mxu0
        %v1356 = vadd.f32 0.0, %v1355
        %v1357 = vpop.f32.mrb[0].mxu0
        %1358 = vmatprep.mubr.bf16.mxu0 %v1305
        %1359 = vmatmul.mubr.bf16.gmra.mrb[0].mxu0 %v1304
        %v1360 = vpop.f32.mrb[0].mxu0
        %v1361 = vadd.f32 0.0, %v1360
        %v1362 = vpop.f32.mrb[0].mxu0
        %v1363 = vpop.f32.mrb[0].mxu0
        %v1364 = vadd.f32 0.0, %v1363
        %v1365 = vpop.f32.mrb[0].mxu0
        %1366 = vmatprep.mubr.bf16.mxu0 %v1307
        %1367 = vmatmul.mubr.bf16.gmra.mrb[0].mxu0 %v1306
        %v1368 = vpop.f32.mrb[0].mxu0
        %v1369 = vadd.f32 0.0, %v1368
        %v1370 = vpop.f32.mrb[0].mxu0
        %v1371 = vpop.f32.mrb[0].mxu0
        %v1372 = vadd.f32 0.0, %v1371
        %v1373 = vpop.f32.mrb[0].mxu0
        %1374 = vmatprep.mubr.bf16.mxu0 %v1309
        %1375 = vmatmul.mubr.bf16.gmra.mrb[0].mxu0 %v1308
        %v1376 = vpop.f32.mrb[0].mxu0
        %v1377 = vadd.f32 0.0, %v1376
        %v1378 = vpop.f32.mrb[0].mxu0
        %v1379 = vpop.f32.mrb[0].mxu0
        %v1380 = vadd.f32 0.0, %v1379
        %v1381 = vpop.f32.mrb[0].mxu0
        %1382 = vdwg.mxu0
        %v1383 = vpack.c.bf16 %v1356, %v1353
        %v1384 = vpack.c.bf16 %v1364, %v1361
        %v1385 = vpack.c.bf16 %v1372, %v1369
        %v1386 = vpack.c.bf16 %v1380, %v1377
        %s1387 = scalar_lea.vmem [#allocation2], 192
        %v1388 = vld [vmem:[%s1387] sm:$0xff]
        %v1389 = vld [vmem:[%s1387 + $0x8] sm:$0xff]
        %v1390 = vld [vmem:[%s1387 + $0x10] sm:$0xff]
        %v1391 = vld [vmem:[%s1387 + $0x18] sm:$0xff]
        %v1392 = vld [vmem:[%s1387 + $0x20] sm:$0xff]
        %v1393 = vld [vmem:[%s1387 + $0x28] sm:$0xff]
        %v1394 = vld [vmem:[%s1387 + $0x30] sm:$0xff]
        %v1395 = vld [vmem:[%s1387 + $0x38] sm:$0xff]
        %v1404 = vunpack.c.l.b16 %v1388
        %v1405 = vunpack.c.h.b16 %v1388
        %v1406 = vunpack.c.l.b16 %v1389
        %v1407 = vunpack.c.h.b16 %v1389
        %v1408 = vunpack.c.l.b16 %v1390
        %v1409 = vunpack.c.h.b16 %v1390
        %v1410 = vunpack.c.l.b16 %v1391
        %v1411 = vunpack.c.h.b16 %v1391
        %v1412 = vunpack.c.l.b16 %v1392
        %v1413 = vunpack.c.h.b16 %v1392
        %v1414 = vunpack.c.l.b16 %v1393
        %v1415 = vunpack.c.h.b16 %v1393
        %v1416 = vunpack.c.l.b16 %v1394
        %v1417 = vunpack.c.h.b16 %v1394
        %v1418 = vunpack.c.l.b16 %v1395
        %v1419 = vunpack.c.h.b16 %v1395
        %v1420 = vpack.c.b16 %v1406, %v1404
        %v1421 = vpack.c.b16 %v1407, %v1405
        %v1422 = vpack.c.b16 %v1410, %v1408
        %v1423 = vpack.c.b16 %v1411, %v1409
        %v1424 = vpack.c.b16 %v1414, %v1412
        %v1425 = vpack.c.b16 %v1415, %v1413
        %v1426 = vpack.c.b16 %v1418, %v1416
        %v1427 = vpack.c.b16 %v1419, %v1417
        %1436 = vmatprep.subr.bf16.mxu0 0
        %1437 = vmatpush1.bf16.msra.mxu0 %v1050
        %1438 = vmatprep.subr.bf16.mxu0 0
        %1439 = vmatpush1.bf16.msra.mxu0 %v1051
        %1440 = vmatprep.subr.bf16.mxu0 0
        %1441 = vmatpush1.bf16.msra.mxu0 %v1052
        %1442 = vmatprep.subr.bf16.mxu0 0
        %1443 = vmatpush1.bf16.msra.mxu0 %v1053
        %1444 = vmatprep.subr.bf16.mxu0 0
        %1445 = vmatpush1.bf16.msra.mxu0 %v1054
        %1446 = vmatprep.subr.bf16.mxu0 0
        %1447 = vmatpush1.bf16.msra.mxu0 %v1055
        %1448 = vmatprep.subr.bf16.mxu0 0
        %1449 = vmatpush1.bf16.msra.mxu0 %v1056
        %1450 = vmatprep.subr.bf16.mxu0 0
        %1451 = vmatpush1.bf16.msra.mxu0 %v1057
        %1452 = vmatprep.subr.bf16.mxu0 0
        %1453 = vmatpush1.bf16.msra.mxu0 %v1058
        %1454 = vmatprep.subr.bf16.mxu0 0
        %1455 = vmatpush1.bf16.msra.mxu0 %v1059
        %1456 = vmatprep.subr.bf16.mxu0 0
        %1457 = vmatpush1.bf16.msra.mxu0 %v1060
        %1458 = vmatprep.subr.bf16.mxu0 0
        %1459 = vmatpush1.bf16.msra.mxu0 %v1061
        %1460 = vmatprep.subr.bf16.mxu0 0
        %1461 = vmatpush1.bf16.msra.mxu0 %v1062
        %1462 = vmatprep.subr.bf16.mxu0 0
        %1463 = vmatpush1.bf16.msra.mxu0 %v1063
        %1464 = vmatprep.subr.bf16.mxu0 0
        %1465 = vmatpush1.bf16.msra.mxu0 %v1064
        %1466 = vmatprep.subr.bf16.mxu0 0
        %1467 = vmatpush1.bf16.msra.mxu0 %v1065
        %1468 = vmatprep.mubr.bf16.mxu0 %v1421
        %1469 = vmatmul.mubr.bf16.gmra.mrb[0].mxu0 %v1420
        %v1470 = vpop.f32.mrb[0].mxu0
        %v1471 = vadd.f32 0.0, %v1470
        %v1472 = vpop.f32.mrb[0].mxu0
        %v1473 = vpop.f32.mrb[0].mxu0
        %v1474 = vadd.f32 0.0, %v1473
        %v1475 = vpop.f32.mrb[0].mxu0
        %1476 = vmatprep.mubr.bf16.mxu0 %v1423
        %1477 = vmatmul.mubr.bf16.gmra.mrb[0].mxu0 %v1422
        %v1478 = vpop.f32.mrb[0].mxu0
        %v1479 = vadd.f32 0.0, %v1478
        %v1480 = vpop.f32.mrb[0].mxu0
        %v1481 = vpop.f32.mrb[0].mxu0
        %v1482 = vadd.f32 0.0, %v1481
        %v1483 = vpop.f32.mrb[0].mxu0
        %1484 = vmatprep.mubr.bf16.mxu0 %v1425
        %1485 = vmatmul.mubr.bf16.gmra.mrb[0].mxu0 %v1424
        %v1486 = vpop.f32.mrb[0].mxu0
        %v1487 = vadd.f32 0.0, %v1486
        %v1488 = vpop.f32.mrb[0].mxu0
        %v1489 = vpop.f32.mrb[0].mxu0
        %v1490 = vadd.f32 0.0, %v1489
        %v1491 = vpop.f32.mrb[0].mxu0
        %1492 = vmatprep.mubr.bf16.mxu0 %v1427
        %1493 = vmatmul.mubr.bf16.gmra.mrb[0].mxu0 %v1426
        %v1494 = vpop.f32.mrb[0].mxu0
        %v1495 = vadd.f32 0.0, %v1494
        %v1496 = vpop.f32.mrb[0].mxu0
        %v1497 = vpop.f32.mrb[0].mxu0
        %v1498 = vadd.f32 0.0, %v1497
        %v1499 = vpop.f32.mrb[0].mxu0
        %1500 = vdwg.mxu0
        %v1501 = vpack.c.bf16 %v1474, %v1471
        %v1502 = vpack.c.bf16 %v1482, %v1479
        %v1503 = vpack.c.bf16 %v1490, %v1487
        %v1504 = vpack.c.bf16 %v1498, %v1495
        %s1505 = scalar_lea.vmem [#allocation2], 256
        %v1506 = vld [vmem:[%s1505] sm:$0xff]
        %v1507 = vld [vmem:[%s1505 + $0x8] sm:$0xff]
        %v1508 = vld [vmem:[%s1505 + $0x10] sm:$0xff]
        %v1509 = vld [vmem:[%s1505 + $0x18] sm:$0xff]
        %v1510 = vld [vmem:[%s1505 + $0x20] sm:$0xff]
        %v1511 = vld [vmem:[%s1505 + $0x28] sm:$0xff]
        %v1512 = vld [vmem:[%s1505 + $0x30] sm:$0xff]
        %v1513 = vld [vmem:[%s1505 + $0x38] sm:$0xff]
        %v1522 = vunpack.c.l.b16 %v1506
        %v1523 = vunpack.c.h.b16 %v1506
        %v1524 = vunpack.c.l.b16 %v1507
        %v1525 = vunpack.c.h.b16 %v1507
        %v1526 = vunpack.c.l.b16 %v1508
        %v1527 = vunpack.c.h.b16 %v1508
        %v1528 = vunpack.c.l.b16 %v1509
        %v1529 = vunpack.c.h.b16 %v1509
        %v1530 = vunpack.c.l.b16 %v1510
        %v1531 = vunpack.c.h.b16 %v1510
        %v1532 = vunpack.c.l.b16 %v1511
        %v1533 = vunpack.c.h.b16 %v1511
        %v1534 = vunpack.c.l.b16 %v1512
        %v1535 = vunpack.c.h.b16 %v1512
        %v1536 = vunpack.c.l.b16 %v1513
        %v1537 = vunpack.c.h.b16 %v1513
        %v1538 = vpack.c.b16 %v1524, %v1522
        %v1539 = vpack.c.b16 %v1525, %v1523
        %v1540 = vpack.c.b16 %v1528, %v1526
        %v1541 = vpack.c.b16 %v1529, %v1527
        %v1542 = vpack.c.b16 %v1532, %v1530
        %v1543 = vpack.c.b16 %v1533, %v1531
        %v1544 = vpack.c.b16 %v1536, %v1534
        %v1545 = vpack.c.b16 %v1537, %v1535
        %1554 = vmatprep.subr.bf16.mxu0 0
        %1555 = vmatpush1.bf16.msra.mxu0 %v1050
        %1556 = vmatprep.subr.bf16.mxu0 0
        %1557 = vmatpush1.bf16.msra.mxu0 %v1051
        %1558 = vmatprep.subr.bf16.mxu0 0
        %1559 = vmatpush1.bf16.msra.mxu0 %v1052
        %1560 = vmatprep.subr.bf16.mxu0 0
        %1561 = vmatpush1.bf16.msra.mxu0 %v1053
        %1562 = vmatprep.subr.bf16.mxu0 0
        %1563 = vmatpush1.bf16.msra.mxu0 %v1054
        %1564 = vmatprep.subr.bf16.mxu0 0
        %1565 = vmatpush1.bf16.msra.mxu0 %v1055
        %1566 = vmatprep.subr.bf16.mxu0 0
        %1567 = vmatpush1.bf16.msra.mxu0 %v1056
        %1568 = vmatprep.subr.bf16.mxu0 0
        %1569 = vmatpush1.bf16.msra.mxu0 %v1057
        %1570 = vmatprep.subr.bf16.mxu0 0
        %1571 = vmatpush1.bf16.msra.mxu0 %v1058
        %1572 = vmatprep.subr.bf16.mxu0 0
        %1573 = vmatpush1.bf16.msra.mxu0 %v1059
        %1574 = vmatprep.subr.bf16.mxu0 0
        %1575 = vmatpush1.bf16.msra.mxu0 %v1060
        %1576 = vmatprep.subr.bf16.mxu0 0
        %1577 = vmatpush1.bf16.msra.mxu0 %v1061
        %1578 = vmatprep.subr.bf16.mxu0 0
        %1579 = vmatpush1.bf16.msra.mxu0 %v1062
        %1580 = vmatprep.subr.bf16.mxu0 0
        %1581 = vmatpush1.bf16.msra.mxu0 %v1063
        %1582 = vmatprep.subr.bf16.mxu0 0
        %1583 = vmatpush1.bf16.msra.mxu0 %v1064
        %1584 = vmatprep.subr.bf16.mxu0 0
        %1585 = vmatpush1.bf16.msra.mxu0 %v1065
        %1586 = vmatprep.mubr.bf16.mxu0 %v1539
        %1587 = vmatmul.mubr.bf16.gmra.mrb[0].mxu0 %v1538
        %v1588 = vpop.f32.mrb[0].mxu0
        %v1589 = vadd.f32 0.0, %v1588
        %v1590 = vpop.f32.mrb[0].mxu0
        %v1591 = vpop.f32.mrb[0].mxu0
        %v1592 = vadd.f32 0.0, %v1591
        %v1593 = vpop.f32.mrb[0].mxu0
        %1594 = vmatprep.mubr.bf16.mxu0 %v1541
        %1595 = vmatmul.mubr.bf16.gmra.mrb[0].mxu0 %v1540
        %v1596 = vpop.f32.mrb[0].mxu0
        %v1597 = vadd.f32 0.0, %v1596
        %v1598 = vpop.f32.mrb[0].mxu0
        %v1599 = vpop.f32.mrb[0].mxu0
        %v1600 = vadd.f32 0.0, %v1599
        %v1601 = vpop.f32.mrb[0].mxu0
        %1602 = vmatprep.mubr.bf16.mxu0 %v1543
        %1603 = vmatmul.mubr.bf16.gmra.mrb[0].mxu0 %v1542
        %v1604 = vpop.f32.mrb[0].mxu0
        %v1605 = vadd.f32 0.0, %v1604
        %v1606 = vpop.f32.mrb[0].mxu0
        %v1607 = vpop.f32.mrb[0].mxu0
        %v1608 = vadd.f32 0.0, %v1607
        %v1609 = vpop.f32.mrb[0].mxu0
        %1610 = vmatprep.mubr.bf16.mxu0 %v1545
        %1611 = vmatmul.mubr.bf16.gmra.mrb[0].mxu0 %v1544
        %v1612 = vpop.f32.mrb[0].mxu0
        %v1613 = vadd.f32 0.0, %v1612
        %v1614 = vpop.f32.mrb[0].mxu0
        %v1615 = vpop.f32.mrb[0].mxu0
        %v1616 = vadd.f32 0.0, %v1615
        %v1617 = vpop.f32.mrb[0].mxu0
        %1618 = vdwg.mxu0
        %v1619 = vpack.c.bf16 %v1592, %v1589
        %v1620 = vpack.c.bf16 %v1600, %v1597
        %v1621 = vpack.c.bf16 %v1608, %v1605
        %v1622 = vpack.c.bf16 %v1616, %v1613
        %s1623 = scalar_lea.vmem [#allocation2], 320
        %v1624 = vld [vmem:[%s1623] sm:$0xff]
        %v1625 = vld [vmem:[%s1623 + $0x8] sm:$0xff]
        %v1626 = vld [vmem:[%s1623 + $0x10] sm:$0xff]
        %v1627 = vld [vmem:[%s1623 + $0x18] sm:$0xff]
        %v1628 = vld [vmem:[%s1623 + $0x20] sm:$0xff]
        %v1629 = vld [vmem:[%s1623 + $0x28] sm:$0xff]
        %v1630 = vld [vmem:[%s1623 + $0x30] sm:$0xff]
        %v1631 = vld [vmem:[%s1623 + $0x38] sm:$0xff]
        %v1640 = vunpack.c.l.b16 %v1624
        %v1641 = vunpack.c.h.b16 %v1624
        %v1642 = vunpack.c.l.b16 %v1625
        %v1643 = vunpack.c.h.b16 %v1625
        %v1644 = vunpack.c.l.b16 %v1626
        %v1645 = vunpack.c.h.b16 %v1626
        %v1646 = vunpack.c.l.b16 %v1627
        %v1647 = vunpack.c.h.b16 %v1627
        %v1648 = vunpack.c.l.b16 %v1628
        %v1649 = vunpack.c.h.b16 %v1628
        %v1650 = vunpack.c.l.b16 %v1629
        %v1651 = vunpack.c.h.b16 %v1629
        %v1652 = vunpack.c.l.b16 %v1630
        %v1653 = vunpack.c.h.b16 %v1630
        %v1654 = vunpack.c.l.b16 %v1631
        %v1655 = vunpack.c.h.b16 %v1631
        %v1656 = vpack.c.b16 %v1642, %v1640
        %v1657 = vpack.c.b16 %v1643, %v1641
        %v1658 = vpack.c.b16 %v1646, %v1644
        %v1659 = vpack.c.b16 %v1647, %v1645
        %v1660 = vpack.c.b16 %v1650, %v1648
        %v1661 = vpack.c.b16 %v1651, %v1649
        %v1662 = vpack.c.b16 %v1654, %v1652
        %v1663 = vpack.c.b16 %v1655, %v1653
        %1672 = vmatprep.subr.bf16.mxu0 0
        %1673 = vmatpush1.bf16.msra.mxu0 %v1050
        %1674 = vmatprep.subr.bf16.mxu0 0
        %1675 = vmatpush1.bf16.msra.mxu0 %v1051
        %1676 = vmatprep.subr.bf16.mxu0 0
        %1677 = vmatpush1.bf16.msra.mxu0 %v1052
        %1678 = vmatprep.subr.bf16.mxu0 0
        %1679 = vmatpush1.bf16.msra.mxu0 %v1053
        %1680 = vmatprep.subr.bf16.mxu0 0
        %1681 = vmatpush1.bf16.msra.mxu0 %v1054
        %1682 = vmatprep.subr.bf16.mxu0 0
        %1683 = vmatpush1.bf16.msra.mxu0 %v1055
        %1684 = vmatprep.subr.bf16.mxu0 0
        %1685 = vmatpush1.bf16.msra.mxu0 %v1056
        %1686 = vmatprep.subr.bf16.mxu0 0
        %1687 = vmatpush1.bf16.msra.mxu0 %v1057
        %1688 = vmatprep.subr.bf16.mxu0 0
        %1689 = vmatpush1.bf16.msra.mxu0 %v1058
        %1690 = vmatprep.subr.bf16.mxu0 0
        %1691 = vmatpush1.bf16.msra.mxu0 %v1059
        %1692 = vmatprep.subr.bf16.mxu0 0
        %1693 = vmatpush1.bf16.msra.mxu0 %v1060
        %1694 = vmatprep.subr.bf16.mxu0 0
        %1695 = vmatpush1.bf16.msra.mxu0 %v1061
        %1696 = vmatprep.subr.bf16.mxu0 0
        %1697 = vmatpush1.bf16.msra.mxu0 %v1062
        %1698 = vmatprep.subr.bf16.mxu0 0
        %1699 = vmatpush1.bf16.msra.mxu0 %v1063
        %1700 = vmatprep.subr.bf16.mxu0 0
        %1701 = vmatpush1.bf16.msra.mxu0 %v1064
        %1702 = vmatprep.subr.bf16.mxu0 0
        %1703 = vmatpush1.bf16.msra.mxu0 %v1065
        %1704 = vmatprep.mubr.bf16.mxu0 %v1657
        %1705 = vmatmul.mubr.bf16.gmra.mrb[0].mxu0 %v1656
        %v1706 = vpop.f32.mrb[0].mxu0
        %v1707 = vadd.f32 0.0, %v1706
        %v1708 = vpop.f32.mrb[0].mxu0
        %v1709 = vpop.f32.mrb[0].mxu0
        %v1710 = vadd.f32 0.0, %v1709
        %v1711 = vpop.f32.mrb[0].mxu0
        %1712 = vmatprep.mubr.bf16.mxu0 %v1659
        %1713 = vmatmul.mubr.bf16.gmra.mrb[0].mxu0 %v1658
        %v1714 = vpop.f32.mrb[0].mxu0
        %v1715 = vadd.f32 0.0, %v1714
        %v1716 = vpop.f32.mrb[0].mxu0
        %v1717 = vpop.f32.mrb[0].mxu0
        %v1718 = vadd.f32 0.0, %v1717
        %v1719 = vpop.f32.mrb[0].mxu0
        %1720 = vmatprep.mubr.bf16.mxu0 %v1661
        %1721 = vmatmul.mubr.bf16.gmra.mrb[0].mxu0 %v1660
        %v1722 = vpop.f32.mrb[0].mxu0
        %v1723 = vadd.f32 0.0, %v1722
        %v1724 = vpop.f32.mrb[0].mxu0
        %v1725 = vpop.f32.mrb[0].mxu0
        %v1726 = vadd.f32 0.0, %v1725
        %v1727 = vpop.f32.mrb[0].mxu0
        %1728 = vmatprep.mubr.bf16.mxu0 %v1663
        %1729 = vmatmul.mubr.bf16.gmra.mrb[0].mxu0 %v1662
        %v1730 = vpop.f32.mrb[0].mxu0
        %v1731 = vadd.f32 0.0, %v1730
        %v1732 = vpop.f32.mrb[0].mxu0
        %v1733 = vpop.f32.mrb[0].mxu0
        %v1734 = vadd.f32 0.0, %v1733
        %v1735 = vpop.f32.mrb[0].mxu0
        %1736 = vdwg.mxu0
        %v1737 = vpack.c.bf16 %v1710, %v1707
        %v1738 = vpack.c.bf16 %v1718, %v1715
        %v1739 = vpack.c.bf16 %v1726, %v1723
        %v1740 = vpack.c.bf16 %v1734, %v1731
        %s1741 = scalar_lea.vmem [#allocation2], 384
        %v1742 = vld [vmem:[%s1741] sm:$0xff]
        %v1743 = vld [vmem:[%s1741 + $0x8] sm:$0xff]
        %v1744 = vld [vmem:[%s1741 + $0x10] sm:$0xff]
        %v1745 = vld [vmem:[%s1741 + $0x18] sm:$0xff]
        %v1746 = vld [vmem:[%s1741 + $0x20] sm:$0xff]
        %v1747 = vld [vmem:[%s1741 + $0x28] sm:$0xff]
        %v1748 = vld [vmem:[%s1741 + $0x30] sm:$0xff]
        %v1749 = vld [vmem:[%s1741 + $0x38] sm:$0xff]
        %v1758 = vunpack.c.l.b16 %v1742
        %v1759 = vunpack.c.h.b16 %v1742
        %v1760 = vunpack.c.l.b16 %v1743
        %v1761 = vunpack.c.h.b16 %v1743
        %v1762 = vunpack.c.l.b16 %v1744
        %v1763 = vunpack.c.h.b16 %v1744
        %v1764 = vunpack.c.l.b16 %v1745
        %v1765 = vunpack.c.h.b16 %v1745
        %v1766 = vunpack.c.l.b16 %v1746
        %v1767 = vunpack.c.h.b16 %v1746
        %v1768 = vunpack.c.l.b16 %v1747
        %v1769 = vunpack.c.h.b16 %v1747
        %v1770 = vunpack.c.l.b16 %v1748
        %v1771 = vunpack.c.h.b16 %v1748
        %v1772 = vunpack.c.l.b16 %v1749
        %v1773 = vunpack.c.h.b16 %v1749
        %v1774 = vpack.c.b16 %v1760, %v1758
        %v1775 = vpack.c.b16 %v1761, %v1759
        %v1776 = vpack.c.b16 %v1764, %v1762
        %v1777 = vpack.c.b16 %v1765, %v1763
        %v1778 = vpack.c.b16 %v1768, %v1766
        %v1779 = vpack.c.b16 %v1769, %v1767
        %v1780 = vpack.c.b16 %v1772, %v1770
        %v1781 = vpack.c.b16 %v1773, %v1771
        %1790 = vmatprep.subr.bf16.mxu0 0
        %1791 = vmatpush1.bf16.msra.mxu0 %v1050
        %1792 = vmatprep.subr.bf16.mxu0 0
        %1793 = vmatpush1.bf16.msra.mxu0 %v1051
        %1794 = vmatprep.subr.bf16.mxu0 0
        %1795 = vmatpush1.bf16.msra.mxu0 %v1052
        %1796 = vmatprep.subr.bf16.mxu0 0
        %1797 = vmatpush1.bf16.msra.mxu0 %v1053
        %1798 = vmatprep.subr.bf16.mxu0 0
        %1799 = vmatpush1.bf16.msra.mxu0 %v1054
        %1800 = vmatprep.subr.bf16.mxu0 0
        %1801 = vmatpush1.bf16.msra.mxu0 %v1055
        %1802 = vmatprep.subr.bf16.mxu0 0
        %1803 = vmatpush1.bf16.msra.mxu0 %v1056
        %1804 = vmatprep.subr.bf16.mxu0 0
        %1805 = vmatpush1.bf16.msra.mxu0 %v1057
        %1806 = vmatprep.subr.bf16.mxu0 0
        %1807 = vmatpush1.bf16.msra.mxu0 %v1058
        %1808 = vmatprep.subr.bf16.mxu0 0
        %1809 = vmatpush1.bf16.msra.mxu0 %v1059
        %1810 = vmatprep.subr.bf16.mxu0 0
        %1811 = vmatpush1.bf16.msra.mxu0 %v1060
        %1812 = vmatprep.subr.bf16.mxu0 0
        %1813 = vmatpush1.bf16.msra.mxu0 %v1061
        %1814 = vmatprep.subr.bf16.mxu0 0
        %1815 = vmatpush1.bf16.msra.mxu0 %v1062
        %1816 = vmatprep.subr.bf16.mxu0 0
        %1817 = vmatpush1.bf16.msra.mxu0 %v1063
        %1818 = vmatprep.subr.bf16.mxu0 0
        %1819 = vmatpush1.bf16.msra.mxu0 %v1064
        %1820 = vmatprep.subr.bf16.mxu0 0
        %1821 = vmatpush1.bf16.msra.mxu0 %v1065
        %1822 = vmatprep.mubr.bf16.mxu0 %v1775
        %1823 = vmatmul.mubr.bf16.gmra.mrb[0].mxu0 %v1774
        %v1824 = vpop.f32.mrb[0].mxu0
        %v1825 = vadd.f32 0.0, %v1824
        %v1826 = vpop.f32.mrb[0].mxu0
        %v1827 = vpop.f32.mrb[0].mxu0
        %v1828 = vadd.f32 0.0, %v1827
        %v1829 = vpop.f32.mrb[0].mxu0
        %1830 = vmatprep.mubr.bf16.mxu0 %v1777
        %1831 = vmatmul.mubr.bf16.gmra.mrb[0].mxu0 %v1776
        %v1832 = vpop.f32.mrb[0].mxu0
        %v1833 = vadd.f32 0.0, %v1832
        %v1834 = vpop.f32.mrb[0].mxu0
        %v1835 = vpop.f32.mrb[0].mxu0
        %v1836 = vadd.f32 0.0, %v1835
        %v1837 = vpop.f32.mrb[0].mxu0
        %1838 = vmatprep.mubr.bf16.mxu0 %v1779
        %1839 = vmatmul.mubr.bf16.gmra.mrb[0].mxu0 %v1778
        %v1840 = vpop.f32.mrb[0].mxu0
        %v1841 = vadd.f32 0.0, %v1840
        %v1842 = vpop.f32.mrb[0].mxu0
        %v1843 = vpop.f32.mrb[0].mxu0
        %v1844 = vadd.f32 0.0, %v1843
        %v1845 = vpop.f32.mrb[0].mxu0
        %1846 = vmatprep.mubr.bf16.mxu0 %v1781
        %1847 = vmatmul.mubr.bf16.gmra.mrb[0].mxu0 %v1780
        %v1848 = vpop.f32.mrb[0].mxu0
        %v1849 = vadd.f32 0.0, %v1848
        %v1850 = vpop.f32.mrb[0].mxu0
        %v1851 = vpop.f32.mrb[0].mxu0
        %v1852 = vadd.f32 0.0, %v1851
        %v1853 = vpop.f32.mrb[0].mxu0
        %1854 = vdwg.mxu0
        %v1855 = vpack.c.bf16 %v1828, %v1825
        %v1856 = vpack.c.bf16 %v1836, %v1833
        %v1857 = vpack.c.bf16 %v1844, %v1841
        %v1858 = vpack.c.bf16 %v1852, %v1849
        %s1859 = scalar_lea.vmem [#allocation2], 448
        %v1860 = vld [vmem:[%s1859] sm:$0xff]
        %v1861 = vld [vmem:[%s1859 + $0x8] sm:$0xff]
        %v1862 = vld [vmem:[%s1859 + $0x10] sm:$0xff]
        %v1863 = vld [vmem:[%s1859 + $0x18] sm:$0xff]
        %v1864 = vld [vmem:[%s1859 + $0x20] sm:$0xff]
        %v1865 = vld [vmem:[%s1859 + $0x28] sm:$0xff]
        %v1866 = vld [vmem:[%s1859 + $0x30] sm:$0xff]
        %v1867 = vld [vmem:[%s1859 + $0x38] sm:$0xff]
        %v1876 = vunpack.c.l.b16 %v1860
        %v1877 = vunpack.c.h.b16 %v1860
        %v1878 = vunpack.c.l.b16 %v1861
        %v1879 = vunpack.c.h.b16 %v1861
        %v1880 = vunpack.c.l.b16 %v1862
        %v1881 = vunpack.c.h.b16 %v1862
        %v1882 = vunpack.c.l.b16 %v1863
        %v1883 = vunpack.c.h.b16 %v1863
        %v1884 = vunpack.c.l.b16 %v1864
        %v1885 = vunpack.c.h.b16 %v1864
        %v1886 = vunpack.c.l.b16 %v1865
        %v1887 = vunpack.c.h.b16 %v1865
        %v1888 = vunpack.c.l.b16 %v1866
        %v1889 = vunpack.c.h.b16 %v1866
        %v1890 = vunpack.c.l.b16 %v1867
        %v1891 = vunpack.c.h.b16 %v1867
        %v1892 = vpack.c.b16 %v1878, %v1876
        %v1893 = vpack.c.b16 %v1879, %v1877
        %v1894 = vpack.c.b16 %v1882, %v1880
        %v1895 = vpack.c.b16 %v1883, %v1881
        %v1896 = vpack.c.b16 %v1886, %v1884
        %v1897 = vpack.c.b16 %v1887, %v1885
        %v1898 = vpack.c.b16 %v1890, %v1888
        %v1899 = vpack.c.b16 %v1891, %v1889
        %1908 = vmatprep.subr.bf16.mxu0 0
        %1909 = vmatpush1.bf16.msra.mxu0 %v1050
        %1910 = vmatprep.subr.bf16.mxu0 0
        %1911 = vmatpush1.bf16.msra.mxu0 %v1051
        %1912 = vmatprep.subr.bf16.mxu0 0
        %1913 = vmatpush1.bf16.msra.mxu0 %v1052
        %1914 = vmatprep.subr.bf16.mxu0 0
        %1915 = vmatpush1.bf16.msra.mxu0 %v1053
        %1916 = vmatprep.subr.bf16.mxu0 0
        %1917 = vmatpush1.bf16.msra.mxu0 %v1054
        %1918 = vmatprep.subr.bf16.mxu0 0
        %1919 = vmatpush1.bf16.msra.mxu0 %v1055
        %1920 = vmatprep.subr.bf16.mxu0 0
        %1921 = vmatpush1.bf16.msra.mxu0 %v1056
        %1922 = vmatprep.subr.bf16.mxu0 0
        %1923 = vmatpush1.bf16.msra.mxu0 %v1057
        %1924 = vmatprep.subr.bf16.mxu0 0
        %1925 = vmatpush1.bf16.msra.mxu0 %v1058
        %1926 = vmatprep.subr.bf16.mxu0 0
        %1927 = vmatpush1.bf16.msra.mxu0 %v1059
        %1928 = vmatprep.subr.bf16.mxu0 0
        %1929 = vmatpush1.bf16.msra.mxu0 %v1060
        %1930 = vmatprep.subr.bf16.mxu0 0
        %1931 = vmatpush1.bf16.msra.mxu0 %v1061
        %1932 = vmatprep.subr.bf16.mxu0 0
        %1933 = vmatpush1.bf16.msra.mxu0 %v1062
        %1934 = vmatprep.subr.bf16.mxu0 0
        %1935 = vmatpush1.bf16.msra.mxu0 %v1063
        %1936 = vmatprep.subr.bf16.mxu0 0
        %1937 = vmatpush1.bf16.msra.mxu0 %v1064
        %1938 = vmatprep.subr.bf16.mxu0 0
        %1939 = vmatpush1.bf16.msra.mxu0 %v1065
        %1940 = vmatprep.mubr.bf16.mxu0 %v1893
        %1941 = vmatmul.mubr.bf16.gmra.mrb[0].mxu0 %v1892
        %v1942 = vpop.f32.mrb[0].mxu0
        %v1943 = vadd.f32 0.0, %v1942
        %v1944 = vpop.f32.mrb[0].mxu0
        %v1945 = vpop.f32.mrb[0].mxu0
        %v1946 = vadd.f32 0.0, %v1945
        %v1947 = vpop.f32.mrb[0].mxu0
        %1948 = vmatprep.mubr.bf16.mxu0 %v1895
        %1949 = vmatmul.mubr.bf16.gmra.mrb[0].mxu0 %v1894
        %v1950 = vpop.f32.mrb[0].mxu0
        %v1951 = vadd.f32 0.0, %v1950
        %v1952 = vpop.f32.mrb[0].mxu0
        %v1953 = vpop.f32.mrb[0].mxu0
        %v1954 = vadd.f32 0.0, %v1953
        %v1955 = vpop.f32.mrb[0].mxu0
        %1956 = vmatprep.mubr.bf16.mxu0 %v1897
        %1957 = vmatmul.mubr.bf16.gmra.mrb[0].mxu0 %v1896
        %v1958 = vpop.f32.mrb[0].mxu0
        %v1959 = vadd.f32 0.0, %v1958
        %v1960 = vpop.f32.mrb[0].mxu0
        %v1961 = vpop.f32.mrb[0].mxu0
        %v1962 = vadd.f32 0.0, %v1961
        %v1963 = vpop.f32.mrb[0].mxu0
        %1964 = vmatprep.mubr.bf16.mxu0 %v1899
        %1965 = vmatmul.mubr.bf16.gmra.mrb[0].mxu0 %v1898
        %v1966 = vpop.f32.mrb[0].mxu0
        %v1967 = vadd.f32 0.0, %v1966
        %v1968 = vpop.f32.mrb[0].mxu0
        %v1969 = vpop.f32.mrb[0].mxu0
        %v1970 = vadd.f32 0.0, %v1969
        %v1971 = vpop.f32.mrb[0].mxu0
        %1972 = vdwg.mxu0
        %v1973 = vpack.c.bf16 %v1946, %v1943
        %v1974 = vpack.c.bf16 %v1954, %v1951
        %v1975 = vpack.c.bf16 %v1962, %v1959
        %v1976 = vpack.c.bf16 %v1970, %v1967
        %s1977 = scalar_lea.vmem [#allocation2], 512
        %v1978 = vld [vmem:[%s1977] sm:$0xff]
        %v1979 = vld [vmem:[%s1977 + $0x8] sm:$0xff]
        %v1980 = vld [vmem:[%s1977 + $0x10] sm:$0xff]
        %v1981 = vld [vmem:[%s1977 + $0x18] sm:$0xff]
        %v1982 = vld [vmem:[%s1977 + $0x20] sm:$0xff]
        %v1983 = vld [vmem:[%s1977 + $0x28] sm:$0xff]
        %v1984 = vld [vmem:[%s1977 + $0x30] sm:$0xff]
        %v1985 = vld [vmem:[%s1977 + $0x38] sm:$0xff]
        %v1994 = vunpack.c.l.b16 %v1978
        %v1995 = vunpack.c.h.b16 %v1978
        %v1996 = vunpack.c.l.b16 %v1979
        %v1997 = vunpack.c.h.b16 %v1979
        %v1998 = vunpack.c.l.b16 %v1980
        %v1999 = vunpack.c.h.b16 %v1980
        %v2000 = vunpack.c.l.b16 %v1981
        %v2001 = vunpack.c.h.b16 %v1981
        %v2002 = vunpack.c.l.b16 %v1982
        %v2003 = vunpack.c.h.b16 %v1982
        %v2004 = vunpack.c.l.b16 %v1983
        %v2005 = vunpack.c.h.b16 %v1983
        %v2006 = vunpack.c.l.b16 %v1984
        %v2007 = vunpack.c.h.b16 %v1984
        %v2008 = vunpack.c.l.b16 %v1985
        %v2009 = vunpack.c.h.b16 %v1985
        %v2010 = vpack.c.b16 %v1996, %v1994
        %v2011 = vpack.c.b16 %v1997, %v1995
        %v2012 = vpack.c.b16 %v2000, %v1998
        %v2013 = vpack.c.b16 %v2001, %v1999
        %v2014 = vpack.c.b16 %v2004, %v2002
        %v2015 = vpack.c.b16 %v2005, %v2003
        %v2016 = vpack.c.b16 %v2008, %v2006
        %v2017 = vpack.c.b16 %v2009, %v2007
        %2026 = vmatprep.subr.bf16.mxu0 0
        %2027 = vmatpush1.bf16.msra.mxu0 %v1050
        %2028 = vmatprep.subr.bf16.mxu0 0
        %2029 = vmatpush1.bf16.msra.mxu0 %v1051
        %2030 = vmatprep.subr.bf16.mxu0 0
        %2031 = vmatpush1.bf16.msra.mxu0 %v1052
        %2032 = vmatprep.subr.bf16.mxu0 0
        %2033 = vmatpush1.bf16.msra.mxu0 %v1053
        %2034 = vmatprep.subr.bf16.mxu0 0
        %2035 = vmatpush1.bf16.msra.mxu0 %v1054
        %2036 = vmatprep.subr.bf16.mxu0 0
        %2037 = vmatpush1.bf16.msra.mxu0 %v1055
        %2038 = vmatprep.subr.bf16.mxu0 0
        %2039 = vmatpush1.bf16.msra.mxu0 %v1056
        %2040 = vmatprep.subr.bf16.mxu0 0
        %2041 = vmatpush1.bf16.msra.mxu0 %v1057
        %2042 = vmatprep.subr.bf16.mxu0 0
        %2043 = vmatpush1.bf16.msra.mxu0 %v1058
        %2044 = vmatprep.subr.bf16.mxu0 0
        %2045 = vmatpush1.bf16.msra.mxu0 %v1059
        %2046 = vmatprep.subr.bf16.mxu0 0
        %2047 = vmatpush1.bf16.msra.mxu0 %v1060
        %2048 = vmatprep.subr.bf16.mxu0 0
        %2049 = vmatpush1.bf16.msra.mxu0 %v1061
        %2050 = vmatprep.subr.bf16.mxu0 0
        %2051 = vmatpush1.bf16.msra.mxu0 %v1062
        %2052 = vmatprep.subr.bf16.mxu0 0
        %2053 = vmatpush1.bf16.msra.mxu0 %v1063
        %2054 = vmatprep.subr.bf16.mxu0 0
        %2055 = vmatpush1.bf16.msra.mxu0 %v1064
        %2056 = vmatprep.subr.bf16.mxu0 0
        %2057 = vmatpush1.bf16.msra.mxu0 %v1065
        %2058 = vmatprep.mubr.bf16.mxu0 %v2011
        %2059 = vmatmul.mubr.bf16.gmra.mrb[0].mxu0 %v2010
        %v2060 = vpop.f32.mrb[0].mxu0
        %v2061 = vadd.f32 0.0, %v2060
        %v2062 = vpop.f32.mrb[0].mxu0
        %v2063 = vpop.f32.mrb[0].mxu0
        %v2064 = vadd.f32 0.0, %v2063
        %v2065 = vpop.f32.mrb[0].mxu0
        %2066 = vmatprep.mubr.bf16.mxu0 %v2013
        %2067 = vmatmul.mubr.bf16.gmra.mrb[0].mxu0 %v2012
        %v2068 = vpop.f32.mrb[0].mxu0
        %v2069 = vadd.f32 0.0, %v2068
        %v2070 = vpop.f32.mrb[0].mxu0
        %v2071 = vpop.f32.mrb[0].mxu0
        %v2072 = vadd.f32 0.0, %v2071
        %v2073 = vpop.f32.mrb[0].mxu0
        %2074 = vmatprep.mubr.bf16.mxu0 %v2015
        %2075 = vmatmul.mubr.bf16.gmra.mrb[0].mxu0 %v2014
        %v2076 = vpop.f32.mrb[0].mxu0
        %v2077 = vadd.f32 0.0, %v2076
        %v2078 = vpop.f32.mrb[0].mxu0
        %v2079 = vpop.f32.mrb[0].mxu0
        %v2080 = vadd.f32 0.0, %v2079
        %v2081 = vpop.f32.mrb[0].mxu0
        %2082 = vmatprep.mubr.bf16.mxu0 %v2017
        %2083 = vmatmul.mubr.bf16.gmra.mrb[0].mxu0 %v2016
        %v2084 = vpop.f32.mrb[0].mxu0
        %v2085 = vadd.f32 0.0, %v2084
        %v2086 = vpop.f32.mrb[0].mxu0
        %v2087 = vpop.f32.mrb[0].mxu0
        %v2088 = vadd.f32 0.0, %v2087
        %v2089 = vpop.f32.mrb[0].mxu0
        %2090 = vdwg.mxu0
        %v2091 = vpack.c.bf16 %v2064, %v2061
        %v2092 = vpack.c.bf16 %v2072, %v2069
        %v2093 = vpack.c.bf16 %v2080, %v2077
        %v2094 = vpack.c.bf16 %v2088, %v2085
        %2099 = vrot.lane.b32.xlu0 %v1265, 3
        %v2100 = vpop.permute.xlu0 %2099
        %2101 = vrot.lane.b32.xlu0 %v1266, 3
        %v2102 = vpop.permute.xlu0 %2101
        %2103 = vrot.lane.b32.xlu0 %v1267, 3
        %v2104 = vpop.permute.xlu0 %2103
        %2105 = vrot.lane.b32.xlu0 %v1268, 3
        %v2106 = vpop.permute.xlu0 %2105
        %2111 = vrot.lane.b32.xlu0 %v1383, 6
        %v2112 = vpop.permute.xlu0 %2111
        %2113 = vrot.lane.b32.xlu0 %v1384, 6
        %v2114 = vpop.permute.xlu0 %2113
        %2115 = vrot.lane.b32.xlu0 %v1385, 6
        %v2116 = vpop.permute.xlu0 %2115
        %2117 = vrot.lane.b32.xlu0 %v1386, 6
        %v2118 = vpop.permute.xlu0 %2117
        %2123 = vrot.lane.b32.xlu0 %v1501, 9
        %v2124 = vpop.permute.xlu0 %2123
        %2125 = vrot.lane.b32.xlu0 %v1502, 9
        %v2126 = vpop.permute.xlu0 %2125
        %2127 = vrot.lane.b32.xlu0 %v1503, 9
        %v2128 = vpop.permute.xlu0 %2127
        %2129 = vrot.lane.b32.xlu0 %v1504, 9
        %v2130 = vpop.permute.xlu0 %2129
        %2135 = vrot.lane.b32.xlu0 %v1619, 12
        %v2136 = vpop.permute.xlu0 %2135
        %2137 = vrot.lane.b32.xlu0 %v1620, 12
        %v2138 = vpop.permute.xlu0 %2137
        %2139 = vrot.lane.b32.xlu0 %v1621, 12
        %v2140 = vpop.permute.xlu0 %2139
        %2141 = vrot.lane.b32.xlu0 %v1622, 12
        %v2142 = vpop.permute.xlu0 %2141
        %2147 = vrot.lane.b32.xlu0 %v1737, 15
        %v2148 = vpop.permute.xlu0 %2147
        %2149 = vrot.lane.b32.xlu0 %v1738, 15
        %v2150 = vpop.permute.xlu0 %2149
        %2151 = vrot.lane.b32.xlu0 %v1739, 15
        %v2152 = vpop.permute.xlu0 %2151
        %2153 = vrot.lane.b32.xlu0 %v1740, 15
        %v2154 = vpop.permute.xlu0 %2153
        %2159 = vrot.lane.b32.xlu0 %v1855, 18
        %v2160 = vpop.permute.xlu0 %2159
        %2161 = vrot.lane.b32.xlu0 %v1856, 18
        %v2162 = vpop.permute.xlu0 %2161
        %2163 = vrot.lane.b32.xlu0 %v1857, 18
        %v2164 = vpop.permute.xlu0 %2163
        %2165 = vrot.lane.b32.xlu0 %v1858, 18
        %v2166 = vpop.permute.xlu0 %2165
        %2171 = vrot.lane.b32.xlu0 %v1973, 21
        %v2172 = vpop.permute.xlu0 %2171
        %2173 = vrot.lane.b32.xlu0 %v1974, 21
        %v2174 = vpop.permute.xlu0 %2173
        %2175 = vrot.lane.b32.xlu0 %v1975, 21
        %v2176 = vpop.permute.xlu0 %2175
        %2177 = vrot.lane.b32.xlu0 %v1976, 21
        %v2178 = vpop.permute.xlu0 %2177
        %2183 = vrot.lane.b32.xlu0 %v2091, 24
        %v2184 = vpop.permute.xlu0 %2183
        %2185 = vrot.lane.b32.xlu0 %v2092, 24
        %v2186 = vpop.permute.xlu0 %2185
        %2187 = vrot.lane.b32.xlu0 %v2093, 24
        %v2188 = vpop.permute.xlu0 %2187
        %2189 = vrot.lane.b32.xlu0 %v2094, 24
        %v2190 = vpop.permute.xlu0 %2189
        %vm2191 = vcmask 23552
        %v2194 = vsel %vm2191, %v1147, %v2100
        %v2197 = vsel %vm2191, %v1148, %v2102
        %v2200 = vsel %vm2191, %v1149, %v2104
        %v2203 = vsel %vm2191, %v1150, %v2106
        %vm2204 = vcmask 48128
        %v2206 = vsel %vm2204, %v2194, %v2112
        %v2208 = vsel %vm2204, %v2197, %v2114
        %v2210 = vsel %vm2204, %v2200, %v2116
        %v2212 = vsel %vm2204, %v2203, %v2118
        %vm2213 = vcmask 72704
        %v2215 = vsel %vm2213, %v2206, %v2124
        %v2217 = vsel %vm2213, %v2208, %v2126
        %v2219 = vsel %vm2213, %v2210, %v2128
        %v2221 = vsel %vm2213, %v2212, %v2130
        %vm2222 = vcmask 97280
        %v2224 = vsel %vm2222, %v2215, %v2136
        %v2226 = vsel %vm2222, %v2217, %v2138
        %v2228 = vsel %vm2222, %v2219, %v2140
        %v2230 = vsel %vm2222, %v2221, %v2142
        %vm2231 = vcmask 121856
        %v2233 = vsel %vm2231, %v2224, %v2148
        %v2235 = vsel %vm2231, %v2226, %v2150
        %v2237 = vsel %vm2231, %v2228, %v2152
        %v2239 = vsel %vm2231, %v2230, %v2154
        %vm2240 = vcmask 146432
        %v2242 = vsel %vm2240, %v2233, %v2160
        %v2244 = vsel %vm2240, %v2235, %v2162
        %v2246 = vsel %vm2240, %v2237, %v2164
        %v2248 = vsel %vm2240, %v2239, %v2166
        %vm2249 = vcmask 171008
        %v2251 = vsel %vm2249, %v2242, %v2172
        %v2253 = vsel %vm2249, %v2244, %v2174
        %v2255 = vsel %vm2249, %v2246, %v2176
        %v2257 = vsel %vm2249, %v2248, %v2178
        %vm2258 = vcmask 195584
        %v2260 = vsel %vm2258, %v2251, %v2184
        %v2262 = vsel %vm2258, %v2253, %v2186
        %v2264 = vsel %vm2258, %v2255, %v2188
        %v2266 = vsel %vm2258, %v2257, %v2190
        %v2267 = vld [vmem:[#allocation4] sm:$0xf]
        %v2268 = vld [vmem:[#allocation4 + $0x4] sm:$0xf]
        %v2269 = vld [vmem:[#allocation4 + $0x8] sm:$0xf]
        %v2270 = vld [vmem:[#allocation4 + $0xc] sm:$0x3]
        %v2271 = vld [vmem:[#allocation6] sm:$0x1]
        %v2273 = vlaneseq
        %v2274 = vshrl.u32 %v2273, 7
        %v2275 = vsub.s32 0, %v2274
        %v2276 = vrot.slane %v2271, %v2275
        %v2282 = vunpack.c.l.b16 %v2267
        %v2283 = vunpack.c.l.b16 %v2268
        %v2284 = vunpack.c.l.b16 %v2269
        %v2285 = vunpack.c.l.b16 %v2270
        %v2286 = vpack.c.b16 %v2283, %v2282
        %v2287 = vpack.c.b16 %v2285, %v2284
        %vm2289 = vcmask 220160
        %v2290 = vsel %vm2289, %v2260, 0
        %v2292 = vsel %vm2289, %v2262, 0
        %v2294 = vsel %vm2289, %v2264, 0
        %v2296 = vsel %vm2289, %v2266, 0
        %vm2298 = vcmask 1044480
        %vm2299 = vcmask 1045504
        %v2300 = vsel %vm2298, 4294967295, 65535
        %v2301 = vsel %vm2299, %v2300, 0
        %v2303 = vand.u32 %v2287, %v2301
        %2305 = vmatprep.subr.bf16.mxu0 0
        %2306 = vmatpush1.bf16.msra.mxu0 %v2286
        %2307 = vmatprep.subr.bf16.mxu0 0
        %2308 = vmatpush1.bf16.msra.mxu0 %v2303
        %2309 = vmatprep.subr.bf16.mxu0 0
        %2310 = vmatpush1.bf16.msra.mxu0 0
        %2311 = vmatprep.subr.bf16.mxu0 0
        %2312 = vmatpush1.bf16.msra.mxu0 0
        %2313 = vmatprep.subr.bf16.mxu0 0
        %2314 = vmatpush1.bf16.msra.mxu0 0
        %2315 = vmatprep.subr.bf16.mxu0 0
        %2316 = vmatpush1.bf16.msra.mxu0 0
        %2317 = vmatprep.subr.bf16.mxu0 0
        %2318 = vmatpush1.bf16.msra.mxu0 0
        %2319 = vmatprep.subr.bf16.mxu0 0
        %2320 = vmatpush1.bf16.msra.mxu0 0
        %2321 = vmatprep.subr.bf16.mxu0 0
        %2322 = vmatpush1.bf16.msra.mxu0 0
        %2323 = vmatprep.subr.bf16.mxu0 0
        %2324 = vmatpush1.bf16.msra.mxu0 0
        %2325 = vmatprep.subr.bf16.mxu0 0
        %2326 = vmatpush1.bf16.msra.mxu0 0
        %2327 = vmatprep.subr.bf16.mxu0 0
        %2328 = vmatpush1.bf16.msra.mxu0 0
        %2329 = vmatprep.subr.bf16.mxu0 0
        %2330 = vmatpush1.bf16.msra.mxu0 0
        %2331 = vmatprep.subr.bf16.mxu0 0
        %2332 = vmatpush1.bf16.msra.mxu0 0
        %2333 = vmatprep.subr.bf16.mxu0 0
        %2334 = vmatpush1.bf16.msra.mxu0 0
        %2335 = vmatprep.subr.bf16.mxu0 0
        %2336 = vmatpush1.bf16.msra.mxu0 0
        %2337 = vmatprep.mubr.bf16.mxu0 0
        %2338 = vmatmul.mubr.bf16.gmra.mrb[0].mxu0 %v2290
        %v2339 = vpop.f32.mrb[0].mxu0
        %v2340 = vadd.f32 %v2276, %v2339
        %v2341 = vpop.f32.mrb[0].mxu0
        %v2342 = vpop.f32.mrb[0].mxu0
        %v2343 = vadd.f32 %v2276, %v2342
        %v2344 = vpop.f32.mrb[0].mxu0
        %2345 = vmatprep.mubr.bf16.mxu0 0
        %2346 = vmatmul.mubr.bf16.gmra.mrb[0].mxu0 %v2292
        %v2347 = vpop.f32.mrb[0].mxu0
        %v2348 = vadd.f32 %v2276, %v2347
        %v2349 = vpop.f32.mrb[0].mxu0
        %v2350 = vpop.f32.mrb[0].mxu0
        %v2351 = vadd.f32 %v2276, %v2350
        %v2352 = vpop.f32.mrb[0].mxu0
        %2353 = vmatprep.mubr.bf16.mxu0 0
        %2354 = vmatmul.mubr.bf16.gmra.mrb[0].mxu0 %v2294
        %v2355 = vpop.f32.mrb[0].mxu0
        %v2356 = vadd.f32 %v2276, %v2355
        %v2357 = vpop.f32.mrb[0].mxu0
        %v2358 = vpop.f32.mrb[0].mxu0
        %v2359 = vadd.f32 %v2276, %v2358
        %v2360 = vpop.f32.mrb[0].mxu0
        %2361 = vmatprep.mubr.bf16.mxu0 0
        %2362 = vmatmul.mubr.bf16.gmra.mrb[0].mxu0 %v2296
        %v2363 = vpop.f32.mrb[0].mxu0
        %v2364 = vadd.f32 %v2276, %v2363
        %v2365 = vpop.f32.mrb[0].mxu0
        %v2366 = vpop.f32.mrb[0].mxu0
        %v2367 = vadd.f32 %v2276, %v2366
        %v2368 = vpop.f32.mrb[0].mxu0
        %2369 = vdwg.mxu0
        %v2370 = vmax.f32 %v2340, 0.0
        %v2371 = vmax.f32 %v2343, 0.0
        %v2372 = vmax.f32 %v2348, 0.0
        %v2373 = vmax.f32 %v2351, 0.0
        %v2374 = vmax.f32 %v2356, 0.0
        %v2375 = vmax.f32 %v2359, 0.0
        %v2376 = vmax.f32 %v2364, 0.0
        %v2377 = vmax.f32 %v2367, 0.0
        %v2378 = vpack.c.bf16 %v2371, %v2370
        %v2379 = vpack.c.bf16 %v2373, %v2372
        %v2380 = vpack.c.bf16 %v2375, %v2374
        %v2381 = vpack.c.bf16 %v2377, %v2376
        %v2382 = vld [vmem:[#allocation7] sm:$0xf]
        %v2383 = vld [vmem:[#allocation7 + $0x4] sm:$0xf]
        %v2386 = vunpack.c.l.b16 %v2382
        %v2387 = vunpack.c.l.b16 %v2383
        %v2388 = vpack.c.b16 %v2387, %v2386
        %vm2389 = vcmask 523264
        %v2391 = vsel %vm2389, %v2388, 0
        %2393 = vmatprep.subr.bf16.mxu0 0
        %2394 = vmatpush1.bf16.msra.mxu0 %v2378
        %2395 = vmatprep.subr.bf16.mxu0 0
        %2396 = vmatpush1.bf16.msra.mxu0 %v2379
        %2397 = vmatprep.subr.bf16.mxu0 0
        %2398 = vmatpush1.bf16.msra.mxu0 %v2380
        %2399 = vmatprep.subr.bf16.mxu0 0
        %2400 = vmatpush1.bf16.msra.mxu0 %v2381
        %2401 = vmatprep.subr.bf16.mxu0 0
        %2402 = vmatpush1.bf16.msra.mxu0 0
        %2403 = vmatprep.subr.bf16.mxu0 0
        %2404 = vmatpush1.bf16.msra.mxu0 0
        %2405 = vmatprep.subr.bf16.mxu0 0
        %2406 = vmatpush1.bf16.msra.mxu0 0
        %2407 = vmatprep.subr.bf16.mxu0 0
        %2408 = vmatpush1.bf16.msra.mxu0 0
        %2409 = vmatprep.subr.bf16.mxu0 0
        %2410 = vmatpush1.bf16.msra.mxu0 0
        %2411 = vmatprep.subr.bf16.mxu0 0
        %2412 = vmatpush1.bf16.msra.mxu0 0
        %2413 = vmatprep.subr.bf16.mxu0 0
        %2414 = vmatpush1.bf16.msra.mxu0 0
        %2415 = vmatprep.subr.bf16.mxu0 0
        %2416 = vmatpush1.bf16.msra.mxu0 0
        %2417 = vmatprep.subr.bf16.mxu0 0
        %2418 = vmatpush1.bf16.msra.mxu0 0
        %2419 = vmatprep.subr.bf16.mxu0 0
        %2420 = vmatpush1.bf16.msra.mxu0 0
        %2421 = vmatprep.subr.bf16.mxu0 0
        %2422 = vmatpush1.bf16.msra.mxu0 0
        %2423 = vmatprep.subr.bf16.mxu0 0
        %2424 = vmatpush1.bf16.msra.mxu0 0
        %2425 = vmatprep.mubr.bf16.mxu0 0
        %2426 = vmatmul.mubr.bf16.gmra.mrb[0].mxu0 %v2391
        %v2427 = vpop.f32.mrb[0].mxu0
        %v2428 = vadd.f32 0.0, %v2427
        %v2429 = vpop.f32.mrb[0].mxu0
        %v2430 = vpop.f32.mrb[0].mxu0
        %v2431 = vadd.f32 0.0, %v2430
        %v2432 = vpop.f32.mrb[0].mxu0
        %2433 = vdwg.mxu0
        %v2434 = vpack.c.bf16 %v2431, %v2428
        %s2435 = scalar_lea.vmem [#allocation7], 8
        %v2436 = vld [vmem:[%s2435] sm:$0xf]
        %v2437 = vld [vmem:[%s2435 + $0x4] sm:$0xf]
        %v2440 = vunpack.c.l.b16 %v2436
        %v2441 = vunpack.c.l.b16 %v2437
        %v2442 = vpack.c.b16 %v2441, %v2440
        %v2444 = vsel %vm2389, %v2442, 0
        %2446 = vmatprep.subr.bf16.mxu0 0
        %2447 = vmatpush1.bf16.msra.mxu0 %v2378
        %2448 = vmatprep.subr.bf16.mxu0 0
        %2449 = vmatpush1.bf16.msra.mxu0 %v2379
        %2450 = vmatprep.subr.bf16.mxu0 0
        %2451 = vmatpush1.bf16.msra.mxu0 %v2380
        %2452 = vmatprep.subr.bf16.mxu0 0
        %2453 = vmatpush1.bf16.msra.mxu0 %v2381
        %2454 = vmatprep.subr.bf16.mxu0 0
        %2455 = vmatpush1.bf16.msra.mxu0 0
        %2456 = vmatprep.subr.bf16.mxu0 0
        %2457 = vmatpush1.bf16.msra.mxu0 0
        %2458 = vmatprep.subr.bf16.mxu0 0
        %2459 = vmatpush1.bf16.msra.mxu0 0
        %2460 = vmatprep.subr.bf16.mxu0 0
        %2461 = vmatpush1.bf16.msra.mxu0 0
        %2462 = vmatprep.subr.bf16.mxu0 0
        %2463 = vmatpush1.bf16.msra.mxu0 0
        %2464 = vmatprep.subr.bf16.mxu0 0
        %2465 = vmatpush1.bf16.msra.mxu0 0
        %2466 = vmatprep.subr.bf16.mxu0 0
        %2467 = vmatpush1.bf16.msra.mxu0 0
        %2468 = vmatprep.subr.bf16.mxu0 0
        %2469 = vmatpush1.bf16.msra.mxu0 0
        %2470 = vmatprep.subr.bf16.mxu0 0
        %2471 = vmatpush1.bf16.msra.mxu0 0
        %2472 = vmatprep.subr.bf16.mxu0 0
        %2473 = vmatpush1.bf16.msra.mxu0 0
        %2474 = vmatprep.subr.bf16.mxu0 0
        %2475 = vmatpush1.bf16.msra.mxu0 0
        %2476 = vmatprep.subr.bf16.mxu0 0
        %2477 = vmatpush1.bf16.msra.mxu0 0
        %2478 = vmatprep.mubr.bf16.mxu0 0
        %2479 = vmatmul.mubr.bf16.gmra.mrb[0].mxu0 %v2444
        %v2480 = vpop.f32.mrb[0].mxu0
        %v2481 = vadd.f32 0.0, %v2480
        %v2482 = vpop.f32.mrb[0].mxu0
        %v2483 = vpop.f32.mrb[0].mxu0
        %v2484 = vadd.f32 0.0, %v2483
        %v2485 = vpop.f32.mrb[0].mxu0
        %2486 = vdwg.mxu0
        %v2487 = vpack.c.bf16 %v2484, %v2481
        %s2488 = scalar_lea.vmem [#allocation7], 16
        %v2489 = vld [vmem:[%s2488] sm:$0xf]
        %v2490 = vld [vmem:[%s2488 + $0x4] sm:$0xf]
        %v2493 = vunpack.c.l.b16 %v2489
        %v2494 = vunpack.c.l.b16 %v2490
        %v2495 = vpack.c.b16 %v2494, %v2493
        %v2497 = vsel %vm2389, %v2495, 0
        %2499 = vmatprep.subr.bf16.mxu0 0
        %2500 = vmatpush1.bf16.msra.mxu0 %v2378
        %2501 = vmatprep.subr.bf16.mxu0 0
        %2502 = vmatpush1.bf16.msra.mxu0 %v2379
        %2503 = vmatprep.subr.bf16.mxu0 0
        %2504 = vmatpush1.bf16.msra.mxu0 %v2380
        %2505 = vmatprep.subr.bf16.mxu0 0
        %2506 = vmatpush1.bf16.msra.mxu0 %v2381
        %2507 = vmatprep.subr.bf16.mxu0 0
        %2508 = vmatpush1.bf16.msra.mxu0 0
        %2509 = vmatprep.subr.bf16.mxu0 0
        %2510 = vmatpush1.bf16.msra.mxu0 0
        %2511 = vmatprep.subr.bf16.mxu0 0
        %2512 = vmatpush1.bf16.msra.mxu0 0
        %2513 = vmatprep.subr.bf16.mxu0 0
        %2514 = vmatpush1.bf16.msra.mxu0 0
        %2515 = vmatprep.subr.bf16.mxu0 0
        %2516 = vmatpush1.bf16.msra.mxu0 0
        %2517 = vmatprep.subr.bf16.mxu0 0
        %2518 = vmatpush1.bf16.msra.mxu0 0
        %2519 = vmatprep.subr.bf16.mxu0 0
        %2520 = vmatpush1.bf16.msra.mxu0 0
        %2521 = vmatprep.subr.bf16.mxu0 0
        %2522 = vmatpush1.bf16.msra.mxu0 0
        %2523 = vmatprep.subr.bf16.mxu0 0
        %2524 = vmatpush1.bf16.msra.mxu0 0
        %2525 = vmatprep.subr.bf16.mxu0 0
        %2526 = vmatpush1.bf16.msra.mxu0 0
        %2527 = vmatprep.subr.bf16.mxu0 0
        %2528 = vmatpush1.bf16.msra.mxu0 0
        %2529 = vmatprep.subr.bf16.mxu0 0
        %2530 = vmatpush1.bf16.msra.mxu0 0
        %2531 = vmatprep.mubr.bf16.mxu0 0
        %2532 = vmatmul.mubr.bf16.gmra.mrb[0].mxu0 %v2497
        %v2533 = vpop.f32.mrb[0].mxu0
        %v2534 = vadd.f32 0.0, %v2533
        %v2535 = vpop.f32.mrb[0].mxu0
        %v2536 = vpop.f32.mrb[0].mxu0
        %v2537 = vadd.f32 0.0, %v2536
        %v2538 = vpop.f32.mrb[0].mxu0
        %2539 = vdwg.mxu0
        %v2540 = vpack.c.bf16 %v2537, %v2534
        %s2541 = scalar_lea.vmem [#allocation7], 24
        %v2542 = vld [vmem:[%s2541] sm:$0xf]
        %v2543 = vld [vmem:[%s2541 + $0x4] sm:$0xf]
        %v2546 = vunpack.c.l.b16 %v2542
        %v2547 = vunpack.c.l.b16 %v2543
        %v2548 = vpack.c.b16 %v2547, %v2546
        %v2550 = vsel %vm2389, %v2548, 0
        %2552 = vmatprep.subr.bf16.mxu0 0
        %2553 = vmatpush1.bf16.msra.mxu0 %v2378
        %2554 = vmatprep.subr.bf16.mxu0 0
        %2555 = vmatpush1.bf16.msra.mxu0 %v2379
        %2556 = vmatprep.subr.bf16.mxu0 0
        %2557 = vmatpush1.bf16.msra.mxu0 %v2380
        %2558 = vmatprep.subr.bf16.mxu0 0
        %2559 = vmatpush1.bf16.msra.mxu0 %v2381
        %2560 = vmatprep.subr.bf16.mxu0 0
        %2561 = vmatpush1.bf16.msra.mxu0 0
        %2562 = vmatprep.subr.bf16.mxu0 0
        %2563 = vmatpush1.bf16.msra.mxu0 0
        %2564 = vmatprep.subr.bf16.mxu0 0
        %2565 = vmatpush1.bf16.msra.mxu0 0
        %2566 = vmatprep.subr.bf16.mxu0 0
        %2567 = vmatpush1.bf16.msra.mxu0 0
        %2568 = vmatprep.subr.bf16.mxu0 0
        %2569 = vmatpush1.bf16.msra.mxu0 0
        %2570 = vmatprep.subr.bf16.mxu0 0
        %2571 = vmatpush1.bf16.msra.mxu0 0
        %2572 = vmatprep.subr.bf16.mxu0 0
        %2573 = vmatpush1.bf16.msra.mxu0 0
        %2574 = vmatprep.subr.bf16.mxu0 0
        %2575 = vmatpush1.bf16.msra.mxu0 0
        %2576 = vmatprep.subr.bf16.mxu0 0
        %2577 = vmatpush1.bf16.msra.mxu0 0
        %2578 = vmatprep.subr.bf16.mxu0 0
        %2579 = vmatpush1.bf16.msra.mxu0 0
        %2580 = vmatprep.subr.bf16.mxu0 0
        %2581 = vmatpush1.bf16.msra.mxu0 0
        %2582 = vmatprep.subr.bf16.mxu0 0
        %2583 = vmatpush1.bf16.msra.mxu0 0
        %2584 = vmatprep.mubr.bf16.mxu0 0
        %2585 = vmatmul.mubr.bf16.gmra.mrb[0].mxu0 %v2550
        %v2586 = vpop.f32.mrb[0].mxu0
        %v2587 = vadd.f32 0.0, %v2586
        %v2588 = vpop.f32.mrb[0].mxu0
        %v2589 = vpop.f32.mrb[0].mxu0
        %v2590 = vadd.f32 0.0, %v2589
        %v2591 = vpop.f32.mrb[0].mxu0
        %2592 = vdwg.mxu0
        %v2593 = vpack.c.bf16 %v2590, %v2587
        %s2594 = scalar_lea.vmem [#allocation7], 32
        %v2595 = vld [vmem:[%s2594] sm:$0xf]
        %v2596 = vld [vmem:[%s2594 + $0x4] sm:$0xf]
        %v2599 = vunpack.c.l.b16 %v2595
        %v2600 = vunpack.c.l.b16 %v2596
        %v2601 = vpack.c.b16 %v2600, %v2599
        %v2603 = vsel %vm2389, %v2601, 0
        %2605 = vmatprep.subr.bf16.mxu0 0
        %2606 = vmatpush1.bf16.msra.mxu0 %v2378
        %2607 = vmatprep.subr.bf16.mxu0 0
        %2608 = vmatpush1.bf16.msra.mxu0 %v2379
        %2609 = vmatprep.subr.bf16.mxu0 0
        %2610 = vmatpush1.bf16.msra.mxu0 %v2380
        %2611 = vmatprep.subr.bf16.mxu0 0
        %2612 = vmatpush1.bf16.msra.mxu0 %v2381
        %2613 = vmatprep.subr.bf16.mxu0 0
        %2614 = vmatpush1.bf16.msra.mxu0 0
        %2615 = vmatprep.subr.bf16.mxu0 0
        %2616 = vmatpush1.bf16.msra.mxu0 0
        %2617 = vmatprep.subr.bf16.mxu0 0
        %2618 = vmatpush1.bf16.msra.mxu0 0
        %2619 = vmatprep.subr.bf16.mxu0 0
        %2620 = vmatpush1.bf16.msra.mxu0 0
        %2621 = vmatprep.subr.bf16.mxu0 0
        %2622 = vmatpush1.bf16.msra.mxu0 0
        %2623 = vmatprep.subr.bf16.mxu0 0
        %2624 = vmatpush1.bf16.msra.mxu0 0
        %2625 = vmatprep.subr.bf16.mxu0 0
        %2626 = vmatpush1.bf16.msra.mxu0 0
        %2627 = vmatprep.subr.bf16.mxu0 0
        %2628 = vmatpush1.bf16.msra.mxu0 0
        %2629 = vmatprep.subr.bf16.mxu0 0
        %2630 = vmatpush1.bf16.msra.mxu0 0
        %2631 = vmatprep.subr.bf16.mxu0 0
        %2632 = vmatpush1.bf16.msra.mxu0 0
        %2633 = vmatprep.subr.bf16.mxu0 0
        %2634 = vmatpush1.bf16.msra.mxu0 0
        %2635 = vmatprep.subr.bf16.mxu0 0
        %2636 = vmatpush1.bf16.msra.mxu0 0
        %2637 = vmatprep.mubr.bf16.mxu0 0
        %2638 = vmatmul.mubr.bf16.gmra.mrb[0].mxu0 %v2603
        %v2639 = vpop.f32.mrb[0].mxu0
        %v2640 = vadd.f32 0.0, %v2639
        %v2641 = vpop.f32.mrb[0].mxu0
        %v2642 = vpop.f32.mrb[0].mxu0
        %v2643 = vadd.f32 0.0, %v2642
        %v2644 = vpop.f32.mrb[0].mxu0
        %2645 = vdwg.mxu0
        %v2646 = vpack.c.bf16 %v2643, %v2640
        %s2647 = scalar_lea.vmem [#allocation7], 40
        %v2648 = vld [vmem:[%s2647] sm:$0xf]
        %v2649 = vld [vmem:[%s2647 + $0x4] sm:$0xf]
        %v2652 = vunpack.c.l.b16 %v2648
        %v2653 = vunpack.c.l.b16 %v2649
        %v2654 = vpack.c.b16 %v2653, %v2652
        %v2656 = vsel %vm2389, %v2654, 0
        %2658 = vmatprep.subr.bf16.mxu0 0
        %2659 = vmatpush1.bf16.msra.mxu0 %v2378
        %2660 = vmatprep.subr.bf16.mxu0 0
        %2661 = vmatpush1.bf16.msra.mxu0 %v2379
        %2662 = vmatprep.subr.bf16.mxu0 0
        %2663 = vmatpush1.bf16.msra.mxu0 %v2380
        %2664 = vmatprep.subr.bf16.mxu0 0
        %2665 = vmatpush1.bf16.msra.mxu0 %v2381
        %2666 = vmatprep.subr.bf16.mxu0 0
        %2667 = vmatpush1.bf16.msra.mxu0 0
        %2668 = vmatprep.subr.bf16.mxu0 0
        %2669 = vmatpush1.bf16.msra.mxu0 0
        %2670 = vmatprep.subr.bf16.mxu0 0
        %2671 = vmatpush1.bf16.msra.mxu0 0
        %2672 = vmatprep.subr.bf16.mxu0 0
        %2673 = vmatpush1.bf16.msra.mxu0 0
        %2674 = vmatprep.subr.bf16.mxu0 0
        %2675 = vmatpush1.bf16.msra.mxu0 0
        %2676 = vmatprep.subr.bf16.mxu0 0
        %2677 = vmatpush1.bf16.msra.mxu0 0
        %2678 = vmatprep.subr.bf16.mxu0 0
        %2679 = vmatpush1.bf16.msra.mxu0 0
        %2680 = vmatprep.subr.bf16.mxu0 0
        %2681 = vmatpush1.bf16.msra.mxu0 0
        %2682 = vmatprep.subr.bf16.mxu0 0
        %2683 = vmatpush1.bf16.msra.mxu0 0
        %2684 = vmatprep.subr.bf16.mxu0 0
        %2685 = vmatpush1.bf16.msra.mxu0 0
        %2686 = vmatprep.subr.bf16.mxu0 0
        %2687 = vmatpush1.bf16.msra.mxu0 0
        %2688 = vmatprep.subr.bf16.mxu0 0
        %2689 = vmatpush1.bf16.msra.mxu0 0
        %2690 = vmatprep.mubr.bf16.mxu0 0
        %2691 = vmatmul.mubr.bf16.gmra.mrb[0].mxu0 %v2656
        %v2692 = vpop.f32.mrb[0].mxu0
        %v2693 = vadd.f32 0.0, %v2692
        %v2694 = vpop.f32.mrb[0].mxu0
        %v2695 = vpop.f32.mrb[0].mxu0
        %v2696 = vadd.f32 0.0, %v2695
        %v2697 = vpop.f32.mrb[0].mxu0
        %2698 = vdwg.mxu0
        %v2699 = vpack.c.bf16 %v2696, %v2693
        %s2700 = scalar_lea.vmem [#allocation7], 48
        %v2701 = vld [vmem:[%s2700] sm:$0xf]
        %v2702 = vld [vmem:[%s2700 + $0x4] sm:$0xf]
        %v2705 = vunpack.c.l.b16 %v2701
        %v2706 = vunpack.c.l.b16 %v2702
        %v2707 = vpack.c.b16 %v2706, %v2705
        %v2709 = vsel %vm2389, %v2707, 0
        %2711 = vmatprep.subr.bf16.mxu0 0
        %2712 = vmatpush1.bf16.msra.mxu0 %v2378
        %2713 = vmatprep.subr.bf16.mxu0 0
        %2714 = vmatpush1.bf16.msra.mxu0 %v2379
        %2715 = vmatprep.subr.bf16.mxu0 0
        %2716 = vmatpush1.bf16.msra.mxu0 %v2380
        %2717 = vmatprep.subr.bf16.mxu0 0
        %2718 = vmatpush1.bf16.msra.mxu0 %v2381
        %2719 = vmatprep.subr.bf16.mxu0 0
        %2720 = vmatpush1.bf16.msra.mxu0 0
        %2721 = vmatprep.subr.bf16.mxu0 0
        %2722 = vmatpush1.bf16.msra.mxu0 0
        %2723 = vmatprep.subr.bf16.mxu0 0
        %2724 = vmatpush1.bf16.msra.mxu0 0
        %2725 = vmatprep.subr.bf16.mxu0 0
        %2726 = vmatpush1.bf16.msra.mxu0 0
        %2727 = vmatprep.subr.bf16.mxu0 0
        %2728 = vmatpush1.bf16.msra.mxu0 0
        %2729 = vmatprep.subr.bf16.mxu0 0
        %2730 = vmatpush1.bf16.msra.mxu0 0
        %2731 = vmatprep.subr.bf16.mxu0 0
        %2732 = vmatpush1.bf16.msra.mxu0 0
        %2733 = vmatprep.subr.bf16.mxu0 0
        %2734 = vmatpush1.bf16.msra.mxu0 0
        %2735 = vmatprep.subr.bf16.mxu0 0
        %2736 = vmatpush1.bf16.msra.mxu0 0
        %2737 = vmatprep.subr.bf16.mxu0 0
        %2738 = vmatpush1.bf16.msra.mxu0 0
        %2739 = vmatprep.subr.bf16.mxu0 0
        %2740 = vmatpush1.bf16.msra.mxu0 0
        %2741 = vmatprep.subr.bf16.mxu0 0
        %2742 = vmatpush1.bf16.msra.mxu0 0
        %2743 = vmatprep.mubr.bf16.mxu0 0
        %2744 = vmatmul.mubr.bf16.gmra.mrb[0].mxu0 %v2709
        %v2745 = vpop.f32.mrb[0].mxu0
        %v2746 = vadd.f32 0.0, %v2745
        %v2747 = vpop.f32.mrb[0].mxu0
        %v2748 = vpop.f32.mrb[0].mxu0
        %v2749 = vadd.f32 0.0, %v2748
        %v2750 = vpop.f32.mrb[0].mxu0
        %2751 = vdwg.mxu0
        %v2752 = vpack.c.bf16 %v2749, %v2746
        %s2753 = scalar_lea.vmem [#allocation7], 56
        %v2754 = vld [vmem:[%s2753] sm:$0xf]
        %v2755 = vld [vmem:[%s2753 + $0x4] sm:$0xf]
        %v2758 = vunpack.c.l.b16 %v2754
        %v2759 = vunpack.c.l.b16 %v2755
        %v2760 = vpack.c.b16 %v2759, %v2758
        %v2762 = vsel %vm2389, %v2760, 0
        %2764 = vmatprep.subr.bf16.mxu0 0
        %2765 = vmatpush1.bf16.msra.mxu0 %v2378
        %2766 = vmatprep.subr.bf16.mxu0 0
        %2767 = vmatpush1.bf16.msra.mxu0 %v2379
        %2768 = vmatprep.subr.bf16.mxu0 0
        %2769 = vmatpush1.bf16.msra.mxu0 %v2380
        %2770 = vmatprep.subr.bf16.mxu0 0
        %2771 = vmatpush1.bf16.msra.mxu0 %v2381
        %2772 = vmatprep.subr.bf16.mxu0 0
        %2773 = vmatpush1.bf16.msra.mxu0 0
        %2774 = vmatprep.subr.bf16.mxu0 0
        %2775 = vmatpush1.bf16.msra.mxu0 0
        %2776 = vmatprep.subr.bf16.mxu0 0
        %2777 = vmatpush1.bf16.msra.mxu0 0
        %2778 = vmatprep.subr.bf16.mxu0 0
        %2779 = vmatpush1.bf16.msra.mxu0 0
        %2780 = vmatprep.subr.bf16.mxu0 0
        %2781 = vmatpush1.bf16.msra.mxu0 0
        %2782 = vmatprep.subr.bf16.mxu0 0
        %2783 = vmatpush1.bf16.msra.mxu0 0
        %2784 = vmatprep.subr.bf16.mxu0 0
        %2785 = vmatpush1.bf16.msra.mxu0 0
        %2786 = vmatprep.subr.bf16.mxu0 0
        %2787 = vmatpush1.bf16.msra.mxu0 0
        %2788 = vmatprep.subr.bf16.mxu0 0
        %2789 = vmatpush1.bf16.msra.mxu0 0
        %2790 = vmatprep.subr.bf16.mxu0 0
        %2791 = vmatpush1.bf16.msra.mxu0 0
        %2792 = vmatprep.subr.bf16.mxu0 0
        %2793 = vmatpush1.bf16.msra.mxu0 0
        %2794 = vmatprep.subr.bf16.mxu0 0
        %2795 = vmatpush1.bf16.msra.mxu0 0
        %2796 = vmatprep.mubr.bf16.mxu0 0
        %2797 = vmatmul.mubr.bf16.gmra.mrb[0].mxu0 %v2762
        %v2798 = vpop.f32.mrb[0].mxu0
        %v2799 = vadd.f32 0.0, %v2798
        %v2800 = vpop.f32.mrb[0].mxu0
        %v2801 = vpop.f32.mrb[0].mxu0
        %v2802 = vadd.f32 0.0, %v2801
        %v2803 = vpop.f32.mrb[0].mxu0
        %2804 = vdwg.mxu0
        %v2805 = vpack.c.bf16 %v2802, %v2799
        %s2806 = scalar_lea.vmem [#allocation7], 64
        %v2807 = vld [vmem:[%s2806] sm:$0xf]
        %v2808 = vld [vmem:[%s2806 + $0x4] sm:$0xf]
        %v2811 = vunpack.c.l.b16 %v2807
        %v2812 = vunpack.c.l.b16 %v2808
        %v2813 = vpack.c.b16 %v2812, %v2811
        %v2815 = vsel %vm2389, %v2813, 0
        %2817 = vmatprep.subr.bf16.mxu0 0
        %2818 = vmatpush1.bf16.msra.mxu0 %v2378
        %2819 = vmatprep.subr.bf16.mxu0 0
        %2820 = vmatpush1.bf16.msra.mxu0 %v2379
        %2821 = vmatprep.subr.bf16.mxu0 0
        %2822 = vmatpush1.bf16.msra.mxu0 %v2380
        %2823 = vmatprep.subr.bf16.mxu0 0
        %2824 = vmatpush1.bf16.msra.mxu0 %v2381
        %2825 = vmatprep.subr.bf16.mxu0 0
        %2826 = vmatpush1.bf16.msra.mxu0 0
        %2827 = vmatprep.subr.bf16.mxu0 0
        %2828 = vmatpush1.bf16.msra.mxu0 0
        %2829 = vmatprep.subr.bf16.mxu0 0
        %2830 = vmatpush1.bf16.msra.mxu0 0
        %2831 = vmatprep.subr.bf16.mxu0 0
        %2832 = vmatpush1.bf16.msra.mxu0 0
        %2833 = vmatprep.subr.bf16.mxu0 0
        %2834 = vmatpush1.bf16.msra.mxu0 0
        %2835 = vmatprep.subr.bf16.mxu0 0
        %2836 = vmatpush1.bf16.msra.mxu0 0
        %2837 = vmatprep.subr.bf16.mxu0 0
        %2838 = vmatpush1.bf16.msra.mxu0 0
        %2839 = vmatprep.subr.bf16.mxu0 0
        %2840 = vmatpush1.bf16.msra.mxu0 0
        %2841 = vmatprep.subr.bf16.mxu0 0
        %2842 = vmatpush1.bf16.msra.mxu0 0
        %2843 = vmatprep.subr.bf16.mxu0 0
        %2844 = vmatpush1.bf16.msra.mxu0 0
        %2845 = vmatprep.subr.bf16.mxu0 0
        %2846 = vmatpush1.bf16.msra.mxu0 0
        %2847 = vmatprep.subr.bf16.mxu0 0
        %2848 = vmatpush1.bf16.msra.mxu0 0
        %2849 = vmatprep.mubr.bf16.mxu0 0
        %2850 = vmatmul.mubr.bf16.gmra.mrb[0].mxu0 %v2815
        %v2851 = vpop.f32.mrb[0].mxu0
        %v2852 = vadd.f32 0.0, %v2851
        %v2853 = vpop.f32.mrb[0].mxu0
        %v2854 = vpop.f32.mrb[0].mxu0
        %v2855 = vadd.f32 0.0, %v2854
        %v2856 = vpop.f32.mrb[0].mxu0
        %2857 = vdwg.mxu0
        %v2858 = vpack.c.bf16 %v2855, %v2852
        %2860 = vrot.lane.b32.xlu0 %v2487, 64
        %v2861 = vpop.permute.xlu0 %2860
        %2863 = vrot.lane.b32.xlu0 %v2593, 64
        %v2864 = vpop.permute.xlu0 %2863
        %2866 = vrot.lane.b32.xlu0 %v2699, 64
        %v2867 = vpop.permute.xlu0 %2866
        %2869 = vrot.lane.b32.xlu0 %v2805, 64
        %v2870 = vpop.permute.xlu0 %2869
        %v2873 = vsel %vm2389, %v2434, %v2861
        %v2877 = vsel %vm2389, %v2540, %v2864
        %v2881 = vsel %vm2389, %v2646, %v2867
        %v2885 = vsel %vm2389, %v2752, %v2870
        %v2887 = vld [vmem:[#allocation9] sm:$0xf]
        %v2888 = vld [vmem:[#allocation9 + $0x4] sm:$0xf]
        %v2889 = vld [vmem:[#allocation9 + $0x8] sm:$0xf]
        %v2890 = vld [vmem:[#allocation9 + $0xc] sm:$0xf]
        %v2891 = vld [vmem:[#allocation9 + $0x10] sm:$0xf]
        %v2892 = vld [vmem:[#allocation9 + $0x14] sm:$0xf]
        %v2893 = vld [vmem:[#allocation9 + $0x18] sm:$0xf]
        %v2894 = vld [vmem:[#allocation9 + $0x1c] sm:$0xf]
        %v2895 = vld [vmem:[#allocation9 + $0x20] sm:$0xf]
        %v2896 = vld [vmem:[#allocation9 + $0x24] sm:$0xf]
        %v2897 = vld [vmem:[#allocation9 + $0x28] sm:$0xf]
        %v2898 = vld [vmem:[#allocation9 + $0x2c] sm:$0xf]
        %v2899 = vld [vmem:[#allocation9 + $0x30] sm:$0xf]
        %v2900 = vld [vmem:[#allocation9 + $0x34] sm:$0xf]
        %v2901 = vld [vmem:[#allocation9 + $0x38] sm:$0xf]
        %v2902 = vld [vmem:[#allocation9 + $0x3c] sm:$0xf]
        %v2903 = vld [vmem:[#allocation9 + $0x40] sm:$0xf]
        %v2904 = vld [vmem:[#allocation9 + $0x44] sm:$0xf]
        %v2905 = vld [vmem:[#allocation9 + $0x48] sm:$0xf]
        %v2906 = vld [vmem:[#allocation9 + $0x4c] sm:$0xf]
        %v2907 = vld [vmem:[#allocation9 + $0x50] sm:$0xf]
        %v2908 = vld [vmem:[#allocation9 + $0x54] sm:$0xf]
        %v2909 = vld [vmem:[#allocation9 + $0x58] sm:$0xf]
        %v2910 = vld [vmem:[#allocation9 + $0x5c] sm:$0xf]
        %v2911 = vld [vmem:[#allocation9 + $0x60] sm:$0xf]
        %v2912 = vld [vmem:[#allocation9 + $0x64] sm:$0xf]
        %v2913 = vld [vmem:[#allocation9 + $0x68] sm:$0xf]
        %v2914 = vld [vmem:[#allocation9 + $0x6c] sm:$0xf]
        %v2915 = vld [vmem:[#allocation9 + $0x70] sm:$0xf]
        %v2916 = vld [vmem:[#allocation9 + $0x74] sm:$0xf]
        %v2917 = vld [vmem:[#allocation9 + $0x78] sm:$0xf]
        %v2918 = vld [vmem:[#allocation9 + $0x7c] sm:$0xf]
        %v2919 = vld [vmem:[#allocation9 + $0x80] sm:$0xf]
        %v2920 = vld [vmem:[#allocation9 + $0x84] sm:$0xf]
        %v2921 = vld [vmem:[#allocation9 + $0x88] sm:$0xf]
        %v2922 = vld [vmem:[#allocation9 + $0x8c] sm:$0xf]
        %v2923 = vld [vmem:[#allocation9 + $0x90] sm:$0xf]
        %v2924 = vld [vmem:[#allocation9 + $0x94] sm:$0xf]
        %v2925 = vld [vmem:[#allocation9 + $0x98] sm:$0xf]
        %v2926 = vld [vmem:[#allocation9 + $0x9c] sm:$0xf]
        %v2927 = vld [vmem:[#allocation9 + $0xa0] sm:$0xf]
        %v2928 = vld [vmem:[#allocation9 + $0xa4] sm:$0xf]
        %v2929 = vld [vmem:[#allocation9 + $0xa8] sm:$0xf]
        %v2930 = vld [vmem:[#allocation9 + $0xac] sm:$0xf]
        %v2931 = vld [vmem:[#allocation9 + $0xb0] sm:$0xf]
        %v2932 = vld [vmem:[#allocation9 + $0xb4] sm:$0xf]
        %v2933 = vld [vmem:[#allocation9 + $0xb8] sm:$0xf]
        %v2934 = vld [vmem:[#allocation9 + $0xbc] sm:$0xf]
        %v2935 = vld [vmem:[#allocation9 + $0xc0] sm:$0xf]
        %v2936 = vld [vmem:[#allocation9 + $0xc4] sm:$0xf]
        %v2937 = vld [vmem:[#allocation9 + $0xc8] sm:$0xf]
        %v2938 = vld [vmem:[#allocation9 + $0xcc] sm:$0xf]
        %v2939 = vld [vmem:[#allocation9 + $0xd0] sm:$0xf]
        %v2940 = vld [vmem:[#allocation9 + $0xd4] sm:$0xf]
        %v2941 = vld [vmem:[#allocation9 + $0xd8] sm:$0xf]
        %v2942 = vld [vmem:[#allocation9 + $0xdc] sm:$0xf]
        %v2943 = vld [vmem:[#allocation9 + $0xe0] sm:$0xf]
        %v2944 = vld [vmem:[#allocation9 + $0xe4] sm:$0xf]
        %v2945 = vld [vmem:[#allocation9 + $0xe8] sm:$0xf]
        %v2946 = vld [vmem:[#allocation9 + $0xec] sm:$0xf]
        %v2947 = vld [vmem:[#allocation9 + $0xf0] sm:$0xf]
        %v2948 = vld [vmem:[#allocation9 + $0xf4] sm:$0xf]
        %v2949 = vld [vmem:[#allocation9 + $0xf8] sm:$0xf]
        %v2950 = vld [vmem:[#allocation9 + $0xfc] sm:$0xf]
        %v2951 = vld [vmem:[#allocation9 + $0x100] sm:$0xf]
        %v2952 = vld [vmem:[#allocation9 + $0x104] sm:$0xf]
        %v2953 = vld [vmem:[#allocation9 + $0x108] sm:$0xf]
        %v2954 = vld [vmem:[#allocation9 + $0x10c] sm:$0xf]
        %v2955 = vld [vmem:[#allocation9 + $0x110] sm:$0xf]
        %v2956 = vld [vmem:[#allocation9 + $0x114] sm:$0xf]
        %v2957 = vld [vmem:[#allocation9 + $0x118] sm:$0xf]
        %v2958 = vld [vmem:[#allocation9 + $0x11c] sm:$0xf]
        %v2959 = vld [vmem:[#allocation10] sm:$0x1]
        %v2961 = vlaneseq
        %v2962 = vshrl.u32 %v2961, 7
        %v2963 = vsub.s32 0, %v2962
        %v2964 = vrot.slane %v2959, %v2963
        %v3038 = vunpack.c.l.b16 %v2887
        %v3039 = vunpack.c.l.b16 %v2888
        %v3040 = vunpack.c.l.b16 %v2889
        %v3041 = vunpack.c.l.b16 %v2890
        %v3042 = vunpack.c.l.b16 %v2891
        %v3043 = vunpack.c.l.b16 %v2892
        %v3044 = vunpack.c.l.b16 %v2893
        %v3045 = vunpack.c.l.b16 %v2894
        %v3046 = vunpack.c.l.b16 %v2895
        %v3047 = vunpack.c.l.b16 %v2896
        %v3048 = vunpack.c.l.b16 %v2897
        %v3049 = vunpack.c.l.b16 %v2898
        %v3050 = vunpack.c.l.b16 %v2899
        %v3051 = vunpack.c.l.b16 %v2900
        %v3052 = vunpack.c.l.b16 %v2901
        %v3053 = vunpack.c.l.b16 %v2902
        %v3054 = vunpack.c.l.b16 %v2903
        %v3055 = vunpack.c.l.b16 %v2904
        %v3056 = vunpack.c.l.b16 %v2905
        %v3057 = vunpack.c.l.b16 %v2906
        %v3058 = vunpack.c.l.b16 %v2907
        %v3059 = vunpack.c.l.b16 %v2908
        %v3060 = vunpack.c.l.b16 %v2909
        %v3061 = vunpack.c.l.b16 %v2910
        %v3062 = vunpack.c.l.b16 %v2911
        %v3063 = vunpack.c.l.b16 %v2912
        %v3064 = vunpack.c.l.b16 %v2913
        %v3065 = vunpack.c.l.b16 %v2914
        %v3066 = vunpack.c.l.b16 %v2915
        %v3067 = vunpack.c.l.b16 %v2916
        %v3068 = vunpack.c.l.b16 %v2917
        %v3069 = vunpack.c.l.b16 %v2918
        %v3070 = vunpack.c.l.b16 %v2919
        %v3071 = vunpack.c.l.b16 %v2920
        %v3072 = vunpack.c.l.b16 %v2921
        %v3073 = vunpack.c.l.b16 %v2922
        %v3074 = vunpack.c.l.b16 %v2923
        %v3075 = vunpack.c.l.b16 %v2924
        %v3076 = vunpack.c.l.b16 %v2925
        %v3077 = vunpack.c.l.b16 %v2926
        %v3078 = vunpack.c.l.b16 %v2927
        %v3079 = vunpack.c.l.b16 %v2928
        %v3080 = vunpack.c.l.b16 %v2929
        %v3081 = vunpack.c.l.b16 %v2930
        %v3082 = vunpack.c.l.b16 %v2931
        %v3083 = vunpack.c.l.b16 %v2932
        %v3084 = vunpack.c.l.b16 %v2933
        %v3085 = vunpack.c.l.b16 %v2934
        %v3086 = vunpack.c.l.b16 %v2935
        %v3087 = vunpack.c.l.b16 %v2936
        %v3088 = vunpack.c.l.b16 %v2937
        %v3089 = vunpack.c.l.b16 %v2938
        %v3090 = vunpack.c.l.b16 %v2939
        %v3091 = vunpack.c.l.b16 %v2940
        %v3092 = vunpack.c.l.b16 %v2941
        %v3093 = vunpack.c.l.b16 %v2942
        %v3094 = vunpack.c.l.b16 %v2943
        %v3095 = vunpack.c.l.b16 %v2944
        %v3096 = vunpack.c.l.b16 %v2945
        %v3097 = vunpack.c.l.b16 %v2946
        %v3098 = vunpack.c.l.b16 %v2947
        %v3099 = vunpack.c.l.b16 %v2948
        %v3100 = vunpack.c.l.b16 %v2949
        %v3101 = vunpack.c.l.b16 %v2950
        %v3102 = vunpack.c.l.b16 %v2951
        %v3103 = vunpack.c.l.b16 %v2952
        %v3104 = vunpack.c.l.b16 %v2953
        %v3105 = vunpack.c.l.b16 %v2954
        %v3106 = vunpack.c.l.b16 %v2955
        %v3107 = vunpack.c.l.b16 %v2956
        %v3108 = vunpack.c.l.b16 %v2957
        %v3109 = vunpack.c.l.b16 %v2958
        %v3110 = vpack.c.b16 %v3039, %v3038
        %v3111 = vpack.c.b16 %v3041, %v3040
        %v3112 = vpack.c.b16 %v3043, %v3042
        %v3113 = vpack.c.b16 %v3045, %v3044
        %v3114 = vpack.c.b16 %v3047, %v3046
        %v3115 = vpack.c.b16 %v3049, %v3048
        %v3116 = vpack.c.b16 %v3051, %v3050
        %v3117 = vpack.c.b16 %v3053, %v3052
        %v3118 = vpack.c.b16 %v3055, %v3054
        %v3119 = vpack.c.b16 %v3057, %v3056
        %v3120 = vpack.c.b16 %v3059, %v3058
        %v3121 = vpack.c.b16 %v3061, %v3060
        %v3122 = vpack.c.b16 %v3063, %v3062
        %v3123 = vpack.c.b16 %v3065, %v3064
        %v3124 = vpack.c.b16 %v3067, %v3066
        %v3125 = vpack.c.b16 %v3069, %v3068
        %v3126 = vpack.c.b16 %v3071, %v3070
        %v3127 = vpack.c.b16 %v3073, %v3072
        %v3128 = vpack.c.b16 %v3075, %v3074
        %v3129 = vpack.c.b16 %v3077, %v3076
        %v3130 = vpack.c.b16 %v3079, %v3078
        %v3131 = vpack.c.b16 %v3081, %v3080
        %v3132 = vpack.c.b16 %v3083, %v3082
        %v3133 = vpack.c.b16 %v3085, %v3084
        %v3134 = vpack.c.b16 %v3087, %v3086
        %v3135 = vpack.c.b16 %v3089, %v3088
        %v3136 = vpack.c.b16 %v3091, %v3090
        %v3137 = vpack.c.b16 %v3093, %v3092
        %v3138 = vpack.c.b16 %v3095, %v3094
        %v3139 = vpack.c.b16 %v3097, %v3096
        %v3140 = vpack.c.b16 %v3099, %v3098
        %v3141 = vpack.c.b16 %v3101, %v3100
        %v3142 = vpack.c.b16 %v3103, %v3102
        %v3143 = vpack.c.b16 %v3105, %v3104
        %v3144 = vpack.c.b16 %v3107, %v3106
        %v3145 = vpack.c.b16 %v3109, %v3108
        %v3183 = vsel %vm2389, %v2858, 0
        %3185 = vmatprep.subr.bf16.mxu0 0
        %3186 = vmatpush1.bf16.msra.mxu0 %v3110
        %3187 = vmatprep.subr.bf16.mxu0 0
        %3188 = vmatpush1.bf16.msra.mxu0 %v3111
        %3189 = vmatprep.subr.bf16.mxu0 0
        %3190 = vmatpush1.bf16.msra.mxu0 %v3112
        %3191 = vmatprep.subr.bf16.mxu0 0
        %3192 = vmatpush1.bf16.msra.mxu0 %v3113
        %3193 = vmatprep.subr.bf16.mxu0 0
        %3194 = vmatpush1.bf16.msra.mxu0 %v3114
        %3195 = vmatprep.subr.bf16.mxu0 0
        %3196 = vmatpush1.bf16.msra.mxu0 %v3115
        %3197 = vmatprep.subr.bf16.mxu0 0
        %3198 = vmatpush1.bf16.msra.mxu0 %v3116
        %3199 = vmatprep.subr.bf16.mxu0 0
        %3200 = vmatpush1.bf16.msra.mxu0 %v3117
        %3201 = vmatprep.subr.bf16.mxu0 0
        %3202 = vmatpush1.bf16.msra.mxu0 %v3118
        %3203 = vmatprep.subr.bf16.mxu0 0
        %3204 = vmatpush1.bf16.msra.mxu0 %v3119
        %3205 = vmatprep.subr.bf16.mxu0 0
        %3206 = vmatpush1.bf16.msra.mxu0 %v3120
        %3207 = vmatprep.subr.bf16.mxu0 0
        %3208 = vmatpush1.bf16.msra.mxu0 %v3121
        %3209 = vmatprep.subr.bf16.mxu0 0
        %3210 = vmatpush1.bf16.msra.mxu0 %v3122
        %3211 = vmatprep.subr.bf16.mxu0 0
        %3212 = vmatpush1.bf16.msra.mxu0 %v3123
        %3213 = vmatprep.subr.bf16.mxu0 0
        %3214 = vmatpush1.bf16.msra.mxu0 %v3124
        %3215 = vmatprep.subr.bf16.mxu0 0
        %3216 = vmatpush1.bf16.msra.mxu0 %v3125
        %3217 = vmatprep.mubr.bf16.mxu0 %v2877
        %3218 = vmatmul.mubr.bf16.gmra.mrb[0].mxu0 %v2873
        %v3219 = vpop.f32.mrb[0].mxu0
        %v3220 = vadd.f32 %v2964, %v3219
        %v3221 = vpop.f32.mrb[0].mxu0
        %v3222 = vpop.f32.mrb[0].mxu0
        %v3223 = vadd.f32 %v2964, %v3222
        %v3224 = vpop.f32.mrb[0].mxu0
        %3225 = vdwg.mxu0
        %3226 = vmatprep.subr.bf16.mxu0 0
        %3227 = vmatpush1.bf16.msra.mxu0 %v3126
        %3228 = vmatprep.subr.bf16.mxu0 0
        %3229 = vmatpush1.bf16.msra.mxu0 %v3127
        %3230 = vmatprep.subr.bf16.mxu0 0
        %3231 = vmatpush1.bf16.msra.mxu0 %v3128
        %3232 = vmatprep.subr.bf16.mxu0 0
        %3233 = vmatpush1.bf16.msra.mxu0 %v3129
        %3234 = vmatprep.subr.bf16.mxu0 0
        %3235 = vmatpush1.bf16.msra.mxu0 %v3130
        %3236 = vmatprep.subr.bf16.mxu0 0
        %3237 = vmatpush1.bf16.msra.mxu0 %v3131
        %3238 = vmatprep.subr.bf16.mxu0 0
        %3239 = vmatpush1.bf16.msra.mxu0 %v3132
        %3240 = vmatprep.subr.bf16.mxu0 0
        %3241 = vmatpush1.bf16.msra.mxu0 %v3133
        %3242 = vmatprep.subr.bf16.mxu0 0
        %3243 = vmatpush1.bf16.msra.mxu0 %v3134
        %3244 = vmatprep.subr.bf16.mxu0 0
        %3245 = vmatpush1.bf16.msra.mxu0 %v3135
        %3246 = vmatprep.subr.bf16.mxu0 0
        %3247 = vmatpush1.bf16.msra.mxu0 %v3136
        %3248 = vmatprep.subr.bf16.mxu0 0
        %3249 = vmatpush1.bf16.msra.mxu0 %v3137
        %3250 = vmatprep.subr.bf16.mxu0 0
        %3251 = vmatpush1.bf16.msra.mxu0 %v3138
        %3252 = vmatprep.subr.bf16.mxu0 0
        %3253 = vmatpush1.bf16.msra.mxu0 %v3139
        %3254 = vmatprep.subr.bf16.mxu0 0
        %3255 = vmatpush1.bf16.msra.mxu0 %v3140
        %3256 = vmatprep.subr.bf16.mxu0 0
        %3257 = vmatpush1.bf16.msra.mxu0 %v3141
        %3258 = vmatprep.mubr.bf16.mxu0 %v2885
        %3259 = vmatmul.mubr.bf16.gmra.mrb[0].mxu0 %v2881
        %v3260 = vpop.f32.mrb[0].mxu0
        %v3261 = vadd.f32 %v3220, %v3260
        %v3262 = vpop.f32.mrb[0].mxu0
        %v3263 = vpop.f32.mrb[0].mxu0
        %v3264 = vadd.f32 %v3223, %v3263
        %v3265 = vpop.f32.mrb[0].mxu0
        %3266 = vdwg.mxu0
        %3267 = vmatprep.subr.bf16.mxu0 0
        %3268 = vmatpush1.bf16.msra.mxu0 %v3142
        %3269 = vmatprep.subr.bf16.mxu0 0
        %3270 = vmatpush1.bf16.msra.mxu0 %v3143
        %3271 = vmatprep.subr.bf16.mxu0 0
        %3272 = vmatpush1.bf16.msra.mxu0 %v3144
        %3273 = vmatprep.subr.bf16.mxu0 0
        %3274 = vmatpush1.bf16.msra.mxu0 %v3145
        %3275 = vmatprep.subr.bf16.mxu0 0
        %3276 = vmatpush1.bf16.msra.mxu0 0
        %3277 = vmatprep.subr.bf16.mxu0 0
        %3278 = vmatpush1.bf16.msra.mxu0 0
        %3279 = vmatprep.subr.bf16.mxu0 0
        %3280 = vmatpush1.bf16.msra.mxu0 0
        %3281 = vmatprep.subr.bf16.mxu0 0
        %3282 = vmatpush1.bf16.msra.mxu0 0
        %3283 = vmatprep.subr.bf16.mxu0 0
        %3284 = vmatpush1.bf16.msra.mxu0 0
        %3285 = vmatprep.subr.bf16.mxu0 0
        %3286 = vmatpush1.bf16.msra.mxu0 0
        %3287 = vmatprep.subr.bf16.mxu0 0
        %3288 = vmatpush1.bf16.msra.mxu0 0
        %3289 = vmatprep.subr.bf16.mxu0 0
        %3290 = vmatpush1.bf16.msra.mxu0 0
        %3291 = vmatprep.subr.bf16.mxu0 0
        %3292 = vmatpush1.bf16.msra.mxu0 0
        %3293 = vmatprep.subr.bf16.mxu0 0
        %3294 = vmatpush1.bf16.msra.mxu0 0
        %3295 = vmatprep.subr.bf16.mxu0 0
        %3296 = vmatpush1.bf16.msra.mxu0 0
        %3297 = vmatprep.subr.bf16.mxu0 0
        %3298 = vmatpush1.bf16.msra.mxu0 0
        %3299 = vmatprep.mubr.bf16.mxu0 0
        %3300 = vmatmul.mubr.bf16.gmra.mrb[0].mxu0 %v3183
        %v3301 = vpop.f32.mrb[0].mxu0
        %v3302 = vadd.f32 %v3261, %v3301
        %v3303 = vpop.f32.mrb[0].mxu0
        %v3304 = vpop.f32.mrb[0].mxu0
        %v3305 = vadd.f32 %v3264, %v3304
        %v3306 = vpop.f32.mrb[0].mxu0
        %3307 = vdwg.mxu0
        %v3308 = vmax.f32 %v3302, 0.0
        %v3309 = vmax.f32 %v3305, 0.0
        %v3310 = vpack.c.bf16 %v3309, %v3308
        %v3311 = vld [vmem:[#allocation12] sm:$0x3]
        %vm3312 = vcmask 130048
        %v3314 = vsel %vm3312, %v3311, 0
        %3316 = vmatprep.subr.bf16.mxu0 0
        %3317 = vmatpush1.bf16.msra.mxu0 %v3310
        %3318 = vmatprep.subr.bf16.mxu0 0
        %3319 = vmatpush1.bf16.msra.mxu0 0
        %3320 = vmatprep.subr.bf16.mxu0 0
        %3321 = vmatpush1.bf16.msra.mxu0 0
        %3322 = vmatprep.subr.bf16.mxu0 0
        %3323 = vmatpush1.bf16.msra.mxu0 0
        %3324 = vmatprep.subr.bf16.mxu0 0
        %3325 = vmatpush1.bf16.msra.mxu0 0
        %3326 = vmatprep.subr.bf16.mxu0 0
        %3327 = vmatpush1.bf16.msra.mxu0 0
        %3328 = vmatprep.subr.bf16.mxu0 0
        %3329 = vmatpush1.bf16.msra.mxu0 0
        %3330 = vmatprep.subr.bf16.mxu0 0
        %3331 = vmatpush1.bf16.msra.mxu0 0
        %3332 = vmatprep.subr.bf16.mxu0 0
        %3333 = vmatpush1.bf16.msra.mxu0 0
        %3334 = vmatprep.subr.bf16.mxu0 0
        %3335 = vmatpush1.bf16.msra.mxu0 0
        %3336 = vmatprep.subr.bf16.mxu0 0
        %3337 = vmatpush1.bf16.msra.mxu0 0
        %3338 = vmatprep.subr.bf16.mxu0 0
        %3339 = vmatpush1.bf16.msra.mxu0 0
        %3340 = vmatprep.subr.bf16.mxu0 0
        %3341 = vmatpush1.bf16.msra.mxu0 0
        %3342 = vmatprep.subr.bf16.mxu0 0
        %3343 = vmatpush1.bf16.msra.mxu0 0
        %3344 = vmatprep.subr.bf16.mxu0 0
        %3345 = vmatpush1.bf16.msra.mxu0 0
        %3346 = vmatprep.subr.bf16.mxu0 0
        %3347 = vmatpush1.bf16.msra.mxu0 0
        %3348 = vmatprep.mubr.bf16.mxu0 0
        %3349 = vmatmul.mubr.bf16.gmra.mrb[0].mxu0 %v3314
        %v3350 = vpop.f32.mrb[0].mxu0
        %v3351 = vadd.f32 0.0, %v3350
        %v3352 = vpop.f32.mrb[0].mxu0
        %v3353 = vpop.f32.mrb[0].mxu0
        %v3354 = vpop.f32.mrb[0].mxu0
        %3355 = vdwg.mxu0
        %v3356 = vpack.c.bf16 %v3351, %v3351
        %s3357 = scalar_lea.vmem [#allocation12], 2
        %v3358 = vld [vmem:[%s3357] sm:$0x3]
        %v3360 = vsel %vm3312, %v3358, 0
        %3362 = vmatprep.subr.bf16.mxu0 0
        %3363 = vmatpush1.bf16.msra.mxu0 %v3310
        %3364 = vmatprep.subr.bf16.mxu0 0
        %3365 = vmatpush1.bf16.msra.mxu0 0
        %3366 = vmatprep.subr.bf16.mxu0 0
        %3367 = vmatpush1.bf16.msra.mxu0 0
        %3368 = vmatprep.subr.bf16.mxu0 0
        %3369 = vmatpush1.bf16.msra.mxu0 0
        %3370 = vmatprep.subr.bf16.mxu0 0
        %3371 = vmatpush1.bf16.msra.mxu0 0
        %3372 = vmatprep.subr.bf16.mxu0 0
        %3373 = vmatpush1.bf16.msra.mxu0 0
        %3374 = vmatprep.subr.bf16.mxu0 0
        %3375 = vmatpush1.bf16.msra.mxu0 0
        %3376 = vmatprep.subr.bf16.mxu0 0
        %3377 = vmatpush1.bf16.msra.mxu0 0
        %3378 = vmatprep.subr.bf16.mxu0 0
        %3379 = vmatpush1.bf16.msra.mxu0 0
        %3380 = vmatprep.subr.bf16.mxu0 0
        %3381 = vmatpush1.bf16.msra.mxu0 0
        %3382 = vmatprep.subr.bf16.mxu0 0
        %3383 = vmatpush1.bf16.msra.mxu0 0
        %3384 = vmatprep.subr.bf16.mxu0 0
        %3385 = vmatpush1.bf16.msra.mxu0 0
        %3386 = vmatprep.subr.bf16.mxu0 0
        %3387 = vmatpush1.bf16.msra.mxu0 0
        %3388 = vmatprep.subr.bf16.mxu0 0
        %3389 = vmatpush1.bf16.msra.mxu0 0
        %3390 = vmatprep.subr.bf16.mxu0 0
        %3391 = vmatpush1.bf16.msra.mxu0 0
        %3392 = vmatprep.subr.bf16.mxu0 0
        %3393 = vmatpush1.bf16.msra.mxu0 0
        %3394 = vmatprep.mubr.bf16.mxu0 0
        %3395 = vmatmul.mubr.bf16.gmra.mrb[0].mxu0 %v3360
        %v3396 = vpop.f32.mrb[0].mxu0
        %v3397 = vadd.f32 0.0, %v3396
        %v3398 = vpop.f32.mrb[0].mxu0
        %v3399 = vpop.f32.mrb[0].mxu0
        %v3400 = vpop.f32.mrb[0].mxu0
        %3401 = vdwg.mxu0
        %v3402 = vpack.c.bf16 %v3397, %v3397
        %s3403 = scalar_lea.vmem [#allocation12], 4
        %v3404 = vld [vmem:[%s3403] sm:$0x3]
        %v3406 = vsel %vm3312, %v3404, 0
        %3408 = vmatprep.subr.bf16.mxu0 0
        %3409 = vmatpush1.bf16.msra.mxu0 %v3310
        %3410 = vmatprep.subr.bf16.mxu0 0
        %3411 = vmatpush1.bf16.msra.mxu0 0
        %3412 = vmatprep.subr.bf16.mxu0 0
        %3413 = vmatpush1.bf16.msra.mxu0 0
        %3414 = vmatprep.subr.bf16.mxu0 0
        %3415 = vmatpush1.bf16.msra.mxu0 0
        %3416 = vmatprep.subr.bf16.mxu0 0
        %3417 = vmatpush1.bf16.msra.mxu0 0
        %3418 = vmatprep.subr.bf16.mxu0 0
        %3419 = vmatpush1.bf16.msra.mxu0 0
        %3420 = vmatprep.subr.bf16.mxu0 0
        %3421 = vmatpush1.bf16.msra.mxu0 0
        %3422 = vmatprep.subr.bf16.mxu0 0
        %3423 = vmatpush1.bf16.msra.mxu0 0
        %3424 = vmatprep.subr.bf16.mxu0 0
        %3425 = vmatpush1.bf16.msra.mxu0 0
        %3426 = vmatprep.subr.bf16.mxu0 0
        %3427 = vmatpush1.bf16.msra.mxu0 0
        %3428 = vmatprep.subr.bf16.mxu0 0
        %3429 = vmatpush1.bf16.msra.mxu0 0
        %3430 = vmatprep.subr.bf16.mxu0 0
        %3431 = vmatpush1.bf16.msra.mxu0 0
        %3432 = vmatprep.subr.bf16.mxu0 0
        %3433 = vmatpush1.bf16.msra.mxu0 0
        %3434 = vmatprep.subr.bf16.mxu0 0
        %3435 = vmatpush1.bf16.msra.mxu0 0
        %3436 = vmatprep.subr.bf16.mxu0 0
        %3437 = vmatpush1.bf16.msra.mxu0 0
        %3438 = vmatprep.subr.bf16.mxu0 0
        %3439 = vmatpush1.bf16.msra.mxu0 0
        %3440 = vmatprep.mubr.bf16.mxu0 0
        %3441 = vmatmul.mubr.bf16.gmra.mrb[0].mxu0 %v3406
        %v3442 = vpop.f32.mrb[0].mxu0
        %v3443 = vadd.f32 0.0, %v3442
        %v3444 = vpop.f32.mrb[0].mxu0
        %v3445 = vpop.f32.mrb[0].mxu0
        %v3446 = vpop.f32.mrb[0].mxu0
        %3447 = vdwg.mxu0
        %v3448 = vpack.c.bf16 %v3443, %v3443
        %s3449 = scalar_lea.vmem [#allocation12], 6
        %v3450 = vld [vmem:[%s3449] sm:$0x3]
        %v3452 = vsel %vm3312, %v3450, 0
        %3454 = vmatprep.subr.bf16.mxu0 0
        %3455 = vmatpush1.bf16.msra.mxu0 %v3310
        %3456 = vmatprep.subr.bf16.mxu0 0
        %3457 = vmatpush1.bf16.msra.mxu0 0
        %3458 = vmatprep.subr.bf16.mxu0 0
        %3459 = vmatpush1.bf16.msra.mxu0 0
        %3460 = vmatprep.subr.bf16.mxu0 0
        %3461 = vmatpush1.bf16.msra.mxu0 0
        %3462 = vmatprep.subr.bf16.mxu0 0
        %3463 = vmatpush1.bf16.msra.mxu0 0
        %3464 = vmatprep.subr.bf16.mxu0 0
        %3465 = vmatpush1.bf16.msra.mxu0 0
        %3466 = vmatprep.subr.bf16.mxu0 0
        %3467 = vmatpush1.bf16.msra.mxu0 0
        %3468 = vmatprep.subr.bf16.mxu0 0
        %3469 = vmatpush1.bf16.msra.mxu0 0
        %3470 = vmatprep.subr.bf16.mxu0 0
        %3471 = vmatpush1.bf16.msra.mxu0 0
        %3472 = vmatprep.subr.bf16.mxu0 0
        %3473 = vmatpush1.bf16.msra.mxu0 0
        %3474 = vmatprep.subr.bf16.mxu0 0
        %3475 = vmatpush1.bf16.msra.mxu0 0
        %3476 = vmatprep.subr.bf16.mxu0 0
        %3477 = vmatpush1.bf16.msra.mxu0 0
        %3478 = vmatprep.subr.bf16.mxu0 0
        %3479 = vmatpush1.bf16.msra.mxu0 0
        %3480 = vmatprep.subr.bf16.mxu0 0
        %3481 = vmatpush1.bf16.msra.mxu0 0
        %3482 = vmatprep.subr.bf16.mxu0 0
        %3483 = vmatpush1.bf16.msra.mxu0 0
        %3484 = vmatprep.subr.bf16.mxu0 0
        %3485 = vmatpush1.bf16.msra.mxu0 0
        %3486 = vmatprep.mubr.bf16.mxu0 0
        %3487 = vmatmul.mubr.bf16.gmra.mrb[0].mxu0 %v3452
        %v3488 = vpop.f32.mrb[0].mxu0
        %v3489 = vadd.f32 0.0, %v3488
        %v3490 = vpop.f32.mrb[0].mxu0
        %v3491 = vpop.f32.mrb[0].mxu0
        %v3492 = vpop.f32.mrb[0].mxu0
        %3493 = vdwg.mxu0
        %v3494 = vpack.c.bf16 %v3489, %v3489
        %s3495 = scalar_lea.vmem [#allocation12], 8
        %v3496 = vld [vmem:[%s3495] sm:$0x3]
        %v3498 = vsel %vm3312, %v3496, 0
        %3500 = vmatprep.subr.bf16.mxu0 0
        %3501 = vmatpush1.bf16.msra.mxu0 %v3310
        %3502 = vmatprep.subr.bf16.mxu0 0
        %3503 = vmatpush1.bf16.msra.mxu0 0
        %3504 = vmatprep.subr.bf16.mxu0 0
        %3505 = vmatpush1.bf16.msra.mxu0 0
        %3506 = vmatprep.subr.bf16.mxu0 0
        %3507 = vmatpush1.bf16.msra.mxu0 0
        %3508 = vmatprep.subr.bf16.mxu0 0
        %3509 = vmatpush1.bf16.msra.mxu0 0
        %3510 = vmatprep.subr.bf16.mxu0 0
        %3511 = vmatpush1.bf16.msra.mxu0 0
        %3512 = vmatprep.subr.bf16.mxu0 0
        %3513 = vmatpush1.bf16.msra.mxu0 0
        %3514 = vmatprep.subr.bf16.mxu0 0
        %3515 = vmatpush1.bf16.msra.mxu0 0
        %3516 = vmatprep.subr.bf16.mxu0 0
        %3517 = vmatpush1.bf16.msra.mxu0 0
        %3518 = vmatprep.subr.bf16.mxu0 0
        %3519 = vmatpush1.bf16.msra.mxu0 0
        %3520 = vmatprep.subr.bf16.mxu0 0
        %3521 = vmatpush1.bf16.msra.mxu0 0
        %3522 = vmatprep.subr.bf16.mxu0 0
        %3523 = vmatpush1.bf16.msra.mxu0 0
        %3524 = vmatprep.subr.bf16.mxu0 0
        %3525 = vmatpush1.bf16.msra.mxu0 0
        %3526 = vmatprep.subr.bf16.mxu0 0
        %3527 = vmatpush1.bf16.msra.mxu0 0
        %3528 = vmatprep.subr.bf16.mxu0 0
        %3529 = vmatpush1.bf16.msra.mxu0 0
        %3530 = vmatprep.subr.bf16.mxu0 0
        %3531 = vmatpush1.bf16.msra.mxu0 0
        %3532 = vmatprep.mubr.bf16.mxu0 0
        %3533 = vmatmul.mubr.bf16.gmra.mrb[0].mxu0 %v3498
        %v3534 = vpop.f32.mrb[0].mxu0
        %v3535 = vadd.f32 0.0, %v3534
        %v3536 = vpop.f32.mrb[0].mxu0
        %v3537 = vpop.f32.mrb[0].mxu0
        %v3538 = vpop.f32.mrb[0].mxu0
        %3539 = vdwg.mxu0
        %v3540 = vpack.c.bf16 %v3535, %v3535
        %s3541 = scalar_lea.vmem [#allocation12], 10
        %v3542 = vld [vmem:[%s3541] sm:$0x3]
        %v3544 = vsel %vm3312, %v3542, 0
        %3546 = vmatprep.subr.bf16.mxu0 0
        %3547 = vmatpush1.bf16.msra.mxu0 %v3310
        %3548 = vmatprep.subr.bf16.mxu0 0
        %3549 = vmatpush1.bf16.msra.mxu0 0
        %3550 = vmatprep.subr.bf16.mxu0 0
        %3551 = vmatpush1.bf16.msra.mxu0 0
        %3552 = vmatprep.subr.bf16.mxu0 0
        %3553 = vmatpush1.bf16.msra.mxu0 0
        %3554 = vmatprep.subr.bf16.mxu0 0
        %3555 = vmatpush1.bf16.msra.mxu0 0
        %3556 = vmatprep.subr.bf16.mxu0 0
        %3557 = vmatpush1.bf16.msra.mxu0 0
        %3558 = vmatprep.subr.bf16.mxu0 0
        %3559 = vmatpush1.bf16.msra.mxu0 0
        %3560 = vmatprep.subr.bf16.mxu0 0
        %3561 = vmatpush1.bf16.msra.mxu0 0
        %3562 = vmatprep.subr.bf16.mxu0 0
        %3563 = vmatpush1.bf16.msra.mxu0 0
        %3564 = vmatprep.subr.bf16.mxu0 0
        %3565 = vmatpush1.bf16.msra.mxu0 0
        %3566 = vmatprep.subr.bf16.mxu0 0
        %3567 = vmatpush1.bf16.msra.mxu0 0
        %3568 = vmatprep.subr.bf16.mxu0 0
        %3569 = vmatpush1.bf16.msra.mxu0 0
        %3570 = vmatprep.subr.bf16.mxu0 0
        %3571 = vmatpush1.bf16.msra.mxu0 0
        %3572 = vmatprep.subr.bf16.mxu0 0
        %3573 = vmatpush1.bf16.msra.mxu0 0
        %3574 = vmatprep.subr.bf16.mxu0 0
        %3575 = vmatpush1.bf16.msra.mxu0 0
        %3576 = vmatprep.subr.bf16.mxu0 0
        %3577 = vmatpush1.bf16.msra.mxu0 0
        %3578 = vmatprep.mubr.bf16.mxu0 0
        %3579 = vmatmul.mubr.bf16.gmra.mrb[0].mxu0 %v3544
        %v3580 = vpop.f32.mrb[0].mxu0
        %v3581 = vadd.f32 0.0, %v3580
        %v3582 = vpop.f32.mrb[0].mxu0
        %v3583 = vpop.f32.mrb[0].mxu0
        %v3584 = vpop.f32.mrb[0].mxu0
        %3585 = vdwg.mxu0
        %v3586 = vpack.c.bf16 %v3581, %v3581
        %s3587 = scalar_lea.vmem [#allocation12], 12
        %v3588 = vld [vmem:[%s3587] sm:$0x3]
        %v3590 = vsel %vm3312, %v3588, 0
        %3592 = vmatprep.subr.bf16.mxu0 0
        %3593 = vmatpush1.bf16.msra.mxu0 %v3310
        %3594 = vmatprep.subr.bf16.mxu0 0
        %3595 = vmatpush1.bf16.msra.mxu0 0
        %3596 = vmatprep.subr.bf16.mxu0 0
        %3597 = vmatpush1.bf16.msra.mxu0 0
        %3598 = vmatprep.subr.bf16.mxu0 0
        %3599 = vmatpush1.bf16.msra.mxu0 0
        %3600 = vmatprep.subr.bf16.mxu0 0
        %3601 = vmatpush1.bf16.msra.mxu0 0
        %3602 = vmatprep.subr.bf16.mxu0 0
        %3603 = vmatpush1.bf16.msra.mxu0 0
        %3604 = vmatprep.subr.bf16.mxu0 0
        %3605 = vmatpush1.bf16.msra.mxu0 0
        %3606 = vmatprep.subr.bf16.mxu0 0
        %3607 = vmatpush1.bf16.msra.mxu0 0
        %3608 = vmatprep.subr.bf16.mxu0 0
        %3609 = vmatpush1.bf16.msra.mxu0 0
        %3610 = vmatprep.subr.bf16.mxu0 0
        %3611 = vmatpush1.bf16.msra.mxu0 0
        %3612 = vmatprep.subr.bf16.mxu0 0
        %3613 = vmatpush1.bf16.msra.mxu0 0
        %3614 = vmatprep.subr.bf16.mxu0 0
        %3615 = vmatpush1.bf16.msra.mxu0 0
        %3616 = vmatprep.subr.bf16.mxu0 0
        %3617 = vmatpush1.bf16.msra.mxu0 0
        %3618 = vmatprep.subr.bf16.mxu0 0
        %3619 = vmatpush1.bf16.msra.mxu0 0
        %3620 = vmatprep.subr.bf16.mxu0 0
        %3621 = vmatpush1.bf16.msra.mxu0 0
        %3622 = vmatprep.subr.bf16.mxu0 0
        %3623 = vmatpush1.bf16.msra.mxu0 0
        %3624 = vmatprep.mubr.bf16.mxu0 0
        %3625 = vmatmul.mubr.bf16.gmra.mrb[0].mxu0 %v3590
        %v3626 = vpop.f32.mrb[0].mxu0
        %v3627 = vadd.f32 0.0, %v3626
        %v3628 = vpop.f32.mrb[0].mxu0
        %v3629 = vpop.f32.mrb[0].mxu0
        %v3630 = vpop.f32.mrb[0].mxu0
        %3631 = vdwg.mxu0
        %v3632 = vpack.c.bf16 %v3627, %v3627
        %s3633 = scalar_lea.vmem [#allocation12], 14
        %v3634 = vld [vmem:[%s3633] sm:$0x3]
        %v3636 = vsel %vm3312, %v3634, 0
        %3638 = vmatprep.subr.bf16.mxu0 0
        %3639 = vmatpush1.bf16.msra.mxu0 %v3310
        %3640 = vmatprep.subr.bf16.mxu0 0
        %3641 = vmatpush1.bf16.msra.mxu0 0
        %3642 = vmatprep.subr.bf16.mxu0 0
        %3643 = vmatpush1.bf16.msra.mxu0 0
        %3644 = vmatprep.subr.bf16.mxu0 0
        %3645 = vmatpush1.bf16.msra.mxu0 0
        %3646 = vmatprep.subr.bf16.mxu0 0
        %3647 = vmatpush1.bf16.msra.mxu0 0
        %3648 = vmatprep.subr.bf16.mxu0 0
        %3649 = vmatpush1.bf16.msra.mxu0 0
        %3650 = vmatprep.subr.bf16.mxu0 0
        %3651 = vmatpush1.bf16.msra.mxu0 0
        %3652 = vmatprep.subr.bf16.mxu0 0
        %3653 = vmatpush1.bf16.msra.mxu0 0
        %3654 = vmatprep.subr.bf16.mxu0 0
        %3655 = vmatpush1.bf16.msra.mxu0 0
        %3656 = vmatprep.subr.bf16.mxu0 0
        %3657 = vmatpush1.bf16.msra.mxu0 0
        %3658 = vmatprep.subr.bf16.mxu0 0
        %3659 = vmatpush1.bf16.msra.mxu0 0
        %3660 = vmatprep.subr.bf16.mxu0 0
        %3661 = vmatpush1.bf16.msra.mxu0 0
        %3662 = vmatprep.subr.bf16.mxu0 0
        %3663 = vmatpush1.bf16.msra.mxu0 0
        %3664 = vmatprep.subr.bf16.mxu0 0
        %3665 = vmatpush1.bf16.msra.mxu0 0
        %3666 = vmatprep.subr.bf16.mxu0 0
        %3667 = vmatpush1.bf16.msra.mxu0 0
        %3668 = vmatprep.subr.bf16.mxu0 0
        %3669 = vmatpush1.bf16.msra.mxu0 0
        %3670 = vmatprep.mubr.bf16.mxu0 0
        %3671 = vmatmul.mubr.bf16.gmra.mrb[0].mxu0 %v3636
        %v3672 = vpop.f32.mrb[0].mxu0
        %v3673 = vadd.f32 0.0, %v3672
        %v3674 = vpop.f32.mrb[0].mxu0
        %v3675 = vpop.f32.mrb[0].mxu0
        %v3676 = vpop.f32.mrb[0].mxu0
        %3677 = vdwg.mxu0
        %v3678 = vpack.c.bf16 %v3673, %v3673
        %s3679 = scalar_lea.vmem [#allocation12], 16
        %v3680 = vld [vmem:[%s3679] sm:$0x3]
        %v3682 = vsel %vm3312, %v3680, 0
        %3684 = vmatprep.subr.bf16.mxu0 0
        %3685 = vmatpush1.bf16.msra.mxu0 %v3310
        %3686 = vmatprep.subr.bf16.mxu0 0
        %3687 = vmatpush1.bf16.msra.mxu0 0
        %3688 = vmatprep.subr.bf16.mxu0 0
        %3689 = vmatpush1.bf16.msra.mxu0 0
        %3690 = vmatprep.subr.bf16.mxu0 0
        %3691 = vmatpush1.bf16.msra.mxu0 0
        %3692 = vmatprep.subr.bf16.mxu0 0
        %3693 = vmatpush1.bf16.msra.mxu0 0
        %3694 = vmatprep.subr.bf16.mxu0 0
        %3695 = vmatpush1.bf16.msra.mxu0 0
        %3696 = vmatprep.subr.bf16.mxu0 0
        %3697 = vmatpush1.bf16.msra.mxu0 0
        %3698 = vmatprep.subr.bf16.mxu0 0
        %3699 = vmatpush1.bf16.msra.mxu0 0
        %3700 = vmatprep.subr.bf16.mxu0 0
        %3701 = vmatpush1.bf16.msra.mxu0 0
        %3702 = vmatprep.subr.bf16.mxu0 0
        %3703 = vmatpush1.bf16.msra.mxu0 0
        %3704 = vmatprep.subr.bf16.mxu0 0
        %3705 = vmatpush1.bf16.msra.mxu0 0
        %3706 = vmatprep.subr.bf16.mxu0 0
        %3707 = vmatpush1.bf16.msra.mxu0 0
        %3708 = vmatprep.subr.bf16.mxu0 0
        %3709 = vmatpush1.bf16.msra.mxu0 0
        %3710 = vmatprep.subr.bf16.mxu0 0
        %3711 = vmatpush1.bf16.msra.mxu0 0
        %3712 = vmatprep.subr.bf16.mxu0 0
        %3713 = vmatpush1.bf16.msra.mxu0 0
        %3714 = vmatprep.subr.bf16.mxu0 0
        %3715 = vmatpush1.bf16.msra.mxu0 0
        %3716 = vmatprep.mubr.bf16.mxu0 0
        %3717 = vmatmul.mubr.bf16.gmra.mrb[0].mxu0 %v3682
        %v3718 = vpop.f32.mrb[0].mxu0
        %v3719 = vadd.f32 0.0, %v3718
        %v3720 = vpop.f32.mrb[0].mxu0
        %v3721 = vpop.f32.mrb[0].mxu0
        %v3722 = vpop.f32.mrb[0].mxu0
        %3723 = vdwg.mxu0
        %v3724 = vpack.c.bf16 %v3719, %v3719
        %v3725 = vld [vmem:[#allocation13] sm:$0xff]
        %v3726 = vld [vmem:[#allocation13 + $0x8] sm:$0xff]
        %v3727 = vld [vmem:[#allocation13 + $0x10] sm:$0xff]
        %v3728 = vld [vmem:[#allocation13 + $0x18] sm:$0xff]
        %v3729 = vld [vmem:[#allocation13 + $0x20] sm:$0xff]
        %v3730 = vld [vmem:[#allocation13 + $0x28] sm:$0xff]
        %v3731 = vld [vmem:[#allocation13 + $0x30] sm:$0xff]
        %v3732 = vld [vmem:[#allocation13 + $0x38] sm:$0xff]
        %v3733 = vld [vmem:[#allocation13 + $0x40] sm:$0xff]
        %v3734 = vld [vmem:[#allocation13 + $0x48] sm:$0xff]
        %v3735 = vld [vmem:[#allocation13 + $0x50] sm:$0xff]
        %v3736 = vld [vmem:[#allocation13 + $0x58] sm:$0xff]
        %v3737 = vld [vmem:[#allocation13 + $0x60] sm:$0xff]
        %v3738 = vld [vmem:[#allocation13 + $0x68] sm:$0xff]
        %v3739 = vld [vmem:[#allocation13 + $0x70] sm:$0xff]
        %v3740 = vld [vmem:[#allocation13 + $0x78] sm:$0xff]
        %v3741 = vld [vmem:[#allocation13 + $0x80] sm:$0xff]
        %v3742 = vld [vmem:[#allocation13 + $0x88] sm:$0xff]
        %v3743 = vld [vmem:[#allocation13 + $0x90] sm:$0xff]
        %v3744 = vld [vmem:[#allocation13 + $0x98] sm:$0xff]
        %v3745 = vld [vmem:[#allocation13 + $0xa0] sm:$0xff]
        %v3746 = vld [vmem:[#allocation13 + $0xa8] sm:$0xff]
        %v3747 = vld [vmem:[#allocation13 + $0xb0] sm:$0xff]
        %v3748 = vld [vmem:[#allocation13 + $0xb8] sm:$0xff]
        %v3749 = vld [vmem:[#allocation13 + $0xc0] sm:$0xff]
        %v3750 = vld [vmem:[#allocation13 + $0xc8] sm:$0xff]
        %v3751 = vld [vmem:[#allocation13 + $0xd0] sm:$0xff]
        %v3752 = vld [vmem:[#allocation13 + $0xd8] sm:$0xff]
        %v3753 = vld [vmem:[#allocation13 + $0xe0] sm:$0xff]
        %v3754 = vld [vmem:[#allocation13 + $0xe8] sm:$0xff]
        %v3755 = vld [vmem:[#allocation13 + $0xf0] sm:$0xff]
        %v3756 = vld [vmem:[#allocation13 + $0xf8] sm:$0xff]
        %v3757 = vld [vmem:[#allocation13 + $0x100] sm:$0xff]
        %v3758 = vld [vmem:[#allocation13 + $0x108] sm:$0xff]
        %v3759 = vld [vmem:[#allocation13 + $0x110] sm:$0xff]
        %v3760 = vld [vmem:[#allocation13 + $0x118] sm:$0xff]
        %v3761 = vld [vmem:[#allocation13 + $0x120] sm:$0xff]
        %v3762 = vld [vmem:[#allocation13 + $0x128] sm:$0xff]
        %v3763 = vld [vmem:[#allocation13 + $0x130] sm:$0xff]
        %v3764 = vld [vmem:[#allocation13 + $0x138] sm:$0xff]
        %v3765 = vld [vmem:[#allocation13 + $0x140] sm:$0xff]
        %v3766 = vld [vmem:[#allocation13 + $0x148] sm:$0xff]
        %v3767 = vld [vmem:[#allocation13 + $0x150] sm:$0xff]
        %v3768 = vld [vmem:[#allocation13 + $0x158] sm:$0xff]
        %v3769 = vld [vmem:[#allocation13 + $0x160] sm:$0xff]
        %v3770 = vld [vmem:[#allocation13 + $0x168] sm:$0xff]
        %v3771 = vld [vmem:[#allocation13 + $0x170] sm:$0xff]
        %v3772 = vld [vmem:[#allocation13 + $0x178] sm:$0xff]
        %v3773 = vld [vmem:[#allocation13 + $0x180] sm:$0xff]
        %v3774 = vld [vmem:[#allocation13 + $0x188] sm:$0xff]
        %v3775 = vld [vmem:[#allocation13 + $0x190] sm:$0xff]
        %v3776 = vld [vmem:[#allocation13 + $0x198] sm:$0xff]
        %v3777 = vld [vmem:[#allocation13 + $0x1a0] sm:$0xff]
        %v3778 = vld [vmem:[#allocation13 + $0x1a8] sm:$0xff]
        %v3779 = vld [vmem:[#allocation13 + $0x1b0] sm:$0xff]
        %v3780 = vld [vmem:[#allocation13 + $0x1b8] sm:$0xff]
        %v3781 = vld [vmem:[#allocation13 + $0x1c0] sm:$0xff]
        %v3782 = vld [vmem:[#allocation13 + $0x1c8] sm:$0xff]
        %v3783 = vld [vmem:[#allocation13 + $0x1d0] sm:$0xff]
        %v3784 = vld [vmem:[#allocation13 + $0x1d8] sm:$0xff]
        %v3785 = vld [vmem:[#allocation13 + $0x1e0] sm:$0xff]
        %v3786 = vld [vmem:[#allocation13 + $0x1e8] sm:$0xff]
        %v3787 = vld [vmem:[#allocation13 + $0x1f0] sm:$0xff]
        %v3788 = vld [vmem:[#allocation13 + $0x1f8] sm:$0xff]
        %v3789 = vld [vmem:[#allocation13 + $0x200] sm:$0xff]
        %v3790 = vld [vmem:[#allocation13 + $0x208] sm:$0xff]
        %v3791 = vld [vmem:[#allocation13 + $0x210] sm:$0xff]
        %v3792 = vld [vmem:[#allocation13 + $0x218] sm:$0xff]
        %v3793 = vld [vmem:[#allocation13 + $0x220] sm:$0xff]
        %v3794 = vld [vmem:[#allocation13 + $0x228] sm:$0xff]
        %v3795 = vld [vmem:[#allocation13 + $0x230] sm:$0xff]
        %v3796 = vld [vmem:[#allocation13 + $0x238] sm:$0xff]
        %v3797 = vld [vmem:[#allocation13 + $0x240] sm:$0xff]
        %v3798 = vld [vmem:[#allocation13 + $0x248] sm:$0xff]
        %v3799 = vld [vmem:[#allocation13 + $0x250] sm:$0xff]
        %v3800 = vld [vmem:[#allocation13 + $0x258] sm:$0xff]
        %v3801 = vld [vmem:[#allocation13 + $0x260] sm:$0xff]
        %v3802 = vld [vmem:[#allocation13 + $0x268] sm:$0xff]
        %v3803 = vld [vmem:[#allocation13 + $0x270] sm:$0xff]
        %v3804 = vld [vmem:[#allocation13 + $0x278] sm:$0xff]
        %v3805 = vld [vmem:[#allocation13 + $0x280] sm:$0xff]
        %v3806 = vld [vmem:[#allocation13 + $0x288] sm:$0xff]
        %v3807 = vld [vmem:[#allocation13 + $0x290] sm:$0xff]
        %v3808 = vld [vmem:[#allocation13 + $0x298] sm:$0xff]
        %v3809 = vld [vmem:[#allocation13 + $0x2a0] sm:$0xff]
        %v3810 = vld [vmem:[#allocation13 + $0x2a8] sm:$0xff]
        %v3811 = vld [vmem:[#allocation13 + $0x2b0] sm:$0xff]
        %v3812 = vld [vmem:[#allocation13 + $0x2b8] sm:$0xff]
        %v3813 = vld [vmem:[#allocation13 + $0x2c0] sm:$0xff]
        %v3814 = vld [vmem:[#allocation13 + $0x2c8] sm:$0xff]
        %v3815 = vld [vmem:[#allocation13 + $0x2d0] sm:$0xff]
        %v3816 = vld [vmem:[#allocation13 + $0x2d8] sm:$0xff]
        %v3817 = vld [vmem:[#allocation13 + $0x2e0] sm:$0xff]
        %v3818 = vld [vmem:[#allocation13 + $0x2e8] sm:$0xff]
        %v3819 = vld [vmem:[#allocation13 + $0x2f0] sm:$0xff]
        %v3820 = vld [vmem:[#allocation13 + $0x2f8] sm:$0xff]
        %v3821 = vld [vmem:[#allocation13 + $0x300] sm:$0xff]
        %v3822 = vld [vmem:[#allocation13 + $0x308] sm:$0xff]
        %v3823 = vld [vmem:[#allocation13 + $0x310] sm:$0xff]
        %v3824 = vld [vmem:[#allocation13 + $0x318] sm:$0xff]
        %v3825 = vld [vmem:[#allocation13 + $0x320] sm:$0xff]
        %v3826 = vld [vmem:[#allocation13 + $0x328] sm:$0xff]
        %v3827 = vld [vmem:[#allocation13 + $0x330] sm:$0xff]
        %v3828 = vld [vmem:[#allocation13 + $0x338] sm:$0xff]
        %v3829 = vld [vmem:[#allocation13 + $0x340] sm:$0xff]
        %v3830 = vld [vmem:[#allocation13 + $0x348] sm:$0xff]
        %v3831 = vld [vmem:[#allocation13 + $0x350] sm:$0xff]
        %v3832 = vld [vmem:[#allocation13 + $0x358] sm:$0xff]
        %v3833 = vld [vmem:[#allocation13 + $0x360] sm:$0xff]
        %v3834 = vld [vmem:[#allocation13 + $0x368] sm:$0xff]
        %v3835 = vld [vmem:[#allocation13 + $0x370] sm:$0xff]
        %v3836 = vld [vmem:[#allocation13 + $0x378] sm:$0xff]
        %v3837 = vld [vmem:[#allocation13 + $0x380] sm:$0xff]
        %v3838 = vld [vmem:[#allocation13 + $0x388] sm:$0xff]
        %v3839 = vld [vmem:[#allocation13 + $0x390] sm:$0xff]
        %v3840 = vld [vmem:[#allocation13 + $0x398] sm:$0xff]
        %v3841 = vld [vmem:[#allocation13 + $0x3a0] sm:$0xff]
        %v3842 = vld [vmem:[#allocation13 + $0x3a8] sm:$0xff]
        %v3843 = vld [vmem:[#allocation13 + $0x3b0] sm:$0xff]
        %v3844 = vld [vmem:[#allocation13 + $0x3b8] sm:$0xff]
        %v3845 = vld [vmem:[#allocation13 + $0x3c0] sm:$0xff]
        %v3846 = vld [vmem:[#allocation13 + $0x3c8] sm:$0xff]
        %v3847 = vld [vmem:[#allocation13 + $0x3d0] sm:$0xff]
        %v3848 = vld [vmem:[#allocation13 + $0x3d8] sm:$0xff]
        %v3849 = vld [vmem:[#allocation13 + $0x3e0] sm:$0xff]
        %v3850 = vld [vmem:[#allocation13 + $0x3e8] sm:$0xff]
        %v3851 = vld [vmem:[#allocation13 + $0x3f0] sm:$0xff]
        %v3852 = vld [vmem:[#allocation13 + $0x3f8] sm:$0xff]
        %v3853 = vld [vmem:[#allocation13 + $0x400] sm:$0xff]
        %v3854 = vld [vmem:[#allocation13 + $0x408] sm:$0xff]
        %v3855 = vld [vmem:[#allocation13 + $0x410] sm:$0xff]
        %v3856 = vld [vmem:[#allocation13 + $0x418] sm:$0xff]
        %v3857 = vld [vmem:[#allocation13 + $0x420] sm:$0xff]
        %v3858 = vld [vmem:[#allocation13 + $0x428] sm:$0xff]
        %v3859 = vld [vmem:[#allocation13 + $0x430] sm:$0xff]
        %v3860 = vld [vmem:[#allocation13 + $0x438] sm:$0xff]
        %v3861 = vld [vmem:[#allocation13 + $0x440] sm:$0xff]
        %v3862 = vld [vmem:[#allocation13 + $0x448] sm:$0xff]
        %v3863 = vld [vmem:[#allocation13 + $0x450] sm:$0xff]
        %v3864 = vld [vmem:[#allocation13 + $0x458] sm:$0xff]
        %v3865 = vld [vmem:[#allocation13 + $0x460] sm:$0xff]
        %v3866 = vld [vmem:[#allocation13 + $0x468] sm:$0xff]
        %v3867 = vld [vmem:[#allocation13 + $0x470] sm:$0xff]
        %v3868 = vld [vmem:[#allocation13 + $0x478] sm:$0xff]
        %v3869 = vld [vmem:[#allocation15] sm:$0x3]
        %v3871 = vlaneseq
        %v3872 = vshrl.u32 %v3871, 7
        %v3873 = vsub.s32 0, %v3872
        %v3874 = vrot.slane %v3869, %v3873
        %v3875 = vlaneseq
        %v3876 = vshrl.u32 %v3875, 7
        %v3877 = vsub.s32 1, %v3876
        %v3878 = vrot.slane %v3869, %v3877
        %v4025 = vunpack.c.l.b16 %v3725
        %v4026 = vunpack.c.h.b16 %v3725
        %v4027 = vunpack.c.l.b16 %v3726
        %v4028 = vunpack.c.h.b16 %v3726
        %v4029 = vunpack.c.l.b16 %v3727
        %v4030 = vunpack.c.h.b16 %v3727
        %v4031 = vunpack.c.l.b16 %v3728
        %v4032 = vunpack.c.h.b16 %v3728
        %v4033 = vunpack.c.l.b16 %v3729
        %v4034 = vunpack.c.h.b16 %v3729
        %v4035 = vunpack.c.l.b16 %v3730
        %v4036 = vunpack.c.h.b16 %v3730
        %v4037 = vunpack.c.l.b16 %v3731
        %v4038 = vunpack.c.h.b16 %v3731
        %v4039 = vunpack.c.l.b16 %v3732
        %v4040 = vunpack.c.h.b16 %v3732
        %v4041 = vunpack.c.l.b16 %v3733
        %v4042 = vunpack.c.h.b16 %v3733
        %v4043 = vunpack.c.l.b16 %v3734
        %v4044 = vunpack.c.h.b16 %v3734
        %v4045 = vunpack.c.l.b16 %v3735
        %v4046 = vunpack.c.h.b16 %v3735
        %v4047 = vunpack.c.l.b16 %v3736
        %v4048 = vunpack.c.h.b16 %v3736
        %v4049 = vunpack.c.l.b16 %v3737
        %v4050 = vunpack.c.h.b16 %v3737
        %v4051 = vunpack.c.l.b16 %v3738
        %v4052 = vunpack.c.h.b16 %v3738
        %v4053 = vunpack.c.l.b16 %v3739
        %v4054 = vunpack.c.h.b16 %v3739
        %v4055 = vunpack.c.l.b16 %v3740
        %v4056 = vunpack.c.h.b16 %v3740
        %v4057 = vunpack.c.l.b16 %v3741
        %v4058 = vunpack.c.h.b16 %v3741
        %v4059 = vunpack.c.l.b16 %v3742
        %v4060 = vunpack.c.h.b16 %v3742
        %v4061 = vunpack.c.l.b16 %v3743
        %v4062 = vunpack.c.h.b16 %v3743
        %v4063 = vunpack.c.l.b16 %v3744
        %v4064 = vunpack.c.h.b16 %v3744
        %v4065 = vunpack.c.l.b16 %v3745
        %v4066 = vunpack.c.h.b16 %v3745
        %v4067 = vunpack.c.l.b16 %v3746
        %v4068 = vunpack.c.h.b16 %v3746
        %v4069 = vunpack.c.l.b16 %v3747
        %v4070 = vunpack.c.h.b16 %v3747
        %v4071 = vunpack.c.l.b16 %v3748
        %v4072 = vunpack.c.h.b16 %v3748
        %v4073 = vunpack.c.l.b16 %v3749
        %v4074 = vunpack.c.h.b16 %v3749
        %v4075 = vunpack.c.l.b16 %v3750
        %v4076 = vunpack.c.h.b16 %v3750
        %v4077 = vunpack.c.l.b16 %v3751
        %v4078 = vunpack.c.h.b16 %v3751
        %v4079 = vunpack.c.l.b16 %v3752
        %v4080 = vunpack.c.h.b16 %v3752
        %v4081 = vunpack.c.l.b16 %v3753
        %v4082 = vunpack.c.h.b16 %v3753
        %v4083 = vunpack.c.l.b16 %v3754
        %v4084 = vunpack.c.h.b16 %v3754
        %v4085 = vunpack.c.l.b16 %v3755
        %v4086 = vunpack.c.h.b16 %v3755
        %v4087 = vunpack.c.l.b16 %v3756
        %v4088 = vunpack.c.h.b16 %v3756
        %v4089 = vunpack.c.l.b16 %v3757
        %v4090 = vunpack.c.h.b16 %v3757
        %v4091 = vunpack.c.l.b16 %v3758
        %v4092 = vunpack.c.h.b16 %v3758
        %v4093 = vunpack.c.l.b16 %v3759
        %v4094 = vunpack.c.h.b16 %v3759
        %v4095 = vunpack.c.l.b16 %v3760
        %v4096 = vunpack.c.h.b16 %v3760
        %v4097 = vunpack.c.l.b16 %v3761
        %v4098 = vunpack.c.h.b16 %v3761
        %v4099 = vunpack.c.l.b16 %v3762
        %v4100 = vunpack.c.h.b16 %v3762
        %v4101 = vunpack.c.l.b16 %v3763
        %v4102 = vunpack.c.h.b16 %v3763
        %v4103 = vunpack.c.l.b16 %v3764
        %v4104 = vunpack.c.h.b16 %v3764
        %v4105 = vunpack.c.l.b16 %v3765
        %v4106 = vunpack.c.h.b16 %v3765
        %v4107 = vunpack.c.l.b16 %v3766
        %v4108 = vunpack.c.h.b16 %v3766
        %v4109 = vunpack.c.l.b16 %v3767
        %v4110 = vunpack.c.h.b16 %v3767
        %v4111 = vunpack.c.l.b16 %v3768
        %v4112 = vunpack.c.h.b16 %v3768
        %v4113 = vunpack.c.l.b16 %v3769
        %v4114 = vunpack.c.h.b16 %v3769
        %v4115 = vunpack.c.l.b16 %v3770
        %v4116 = vunpack.c.h.b16 %v3770
        %v4117 = vunpack.c.l.b16 %v3771
        %v4118 = vunpack.c.h.b16 %v3771
        %v4119 = vunpack.c.l.b16 %v3772
        %v4120 = vunpack.c.h.b16 %v3772
        %v4121 = vunpack.c.l.b16 %v3773
        %v4122 = vunpack.c.h.b16 %v3773
        %v4123 = vunpack.c.l.b16 %v3774
        %v4124 = vunpack.c.h.b16 %v3774
        %v4125 = vunpack.c.l.b16 %v3775
        %v4126 = vunpack.c.h.b16 %v3775
        %v4127 = vunpack.c.l.b16 %v3776
        %v4128 = vunpack.c.h.b16 %v3776
        %v4129 = vunpack.c.l.b16 %v3777
        %v4130 = vunpack.c.h.b16 %v3777
        %v4131 = vunpack.c.l.b16 %v3778
        %v4132 = vunpack.c.h.b16 %v3778
        %v4133 = vunpack.c.l.b16 %v3779
        %v4134 = vunpack.c.h.b16 %v3779
        %v4135 = vunpack.c.l.b16 %v3780
        %v4136 = vunpack.c.h.b16 %v3780
        %v4137 = vunpack.c.l.b16 %v3781
        %v4138 = vunpack.c.h.b16 %v3781
        %v4139 = vunpack.c.l.b16 %v3782
        %v4140 = vunpack.c.h.b16 %v3782
        %v4141 = vunpack.c.l.b16 %v3783
        %v4142 = vunpack.c.h.b16 %v3783
        %v4143 = vunpack.c.l.b16 %v3784
        %v4144 = vunpack.c.h.b16 %v3784
        %v4145 = vunpack.c.l.b16 %v3785
        %v4146 = vunpack.c.h.b16 %v3785
        %v4147 = vunpack.c.l.b16 %v3786
        %v4148 = vunpack.c.h.b16 %v3786
        %v4149 = vunpack.c.l.b16 %v3787
        %v4150 = vunpack.c.h.b16 %v3787
        %v4151 = vunpack.c.l.b16 %v3788
        %v4152 = vunpack.c.h.b16 %v3788
        %v4153 = vunpack.c.l.b16 %v3789
        %v4154 = vunpack.c.h.b16 %v3789
        %v4155 = vunpack.c.l.b16 %v3790
        %v4156 = vunpack.c.h.b16 %v3790
        %v4157 = vunpack.c.l.b16 %v3791
        %v4158 = vunpack.c.h.b16 %v3791
        %v4159 = vunpack.c.l.b16 %v3792
        %v4160 = vunpack.c.h.b16 %v3792
        %v4161 = vunpack.c.l.b16 %v3793
        %v4162 = vunpack.c.h.b16 %v3793
        %v4163 = vunpack.c.l.b16 %v3794
        %v4164 = vunpack.c.h.b16 %v3794
        %v4165 = vunpack.c.l.b16 %v3795
        %v4166 = vunpack.c.h.b16 %v3795
        %v4167 = vunpack.c.l.b16 %v3796
        %v4168 = vunpack.c.h.b16 %v3796
        %v4169 = vunpack.c.l.b16 %v3797
        %v4170 = vunpack.c.h.b16 %v3797
        %v4171 = vunpack.c.l.b16 %v3798
        %v4172 = vunpack.c.h.b16 %v3798
        %v4173 = vunpack.c.l.b16 %v3799
        %v4174 = vunpack.c.h.b16 %v3799
        %v4175 = vunpack.c.l.b16 %v3800
        %v4176 = vunpack.c.h.b16 %v3800
        %v4177 = vunpack.c.l.b16 %v3801
        %v4178 = vunpack.c.h.b16 %v3801
        %v4179 = vunpack.c.l.b16 %v3802
        %v4180 = vunpack.c.h.b16 %v3802
        %v4181 = vunpack.c.l.b16 %v3803
        %v4182 = vunpack.c.h.b16 %v3803
        %v4183 = vunpack.c.l.b16 %v3804
        %v4184 = vunpack.c.h.b16 %v3804
        %v4185 = vunpack.c.l.b16 %v3805
        %v4186 = vunpack.c.h.b16 %v3805
        %v4187 = vunpack.c.l.b16 %v3806
        %v4188 = vunpack.c.h.b16 %v3806
        %v4189 = vunpack.c.l.b16 %v3807
        %v4190 = vunpack.c.h.b16 %v3807
        %v4191 = vunpack.c.l.b16 %v3808
        %v4192 = vunpack.c.h.b16 %v3808
        %v4193 = vunpack.c.l.b16 %v3809
        %v4194 = vunpack.c.h.b16 %v3809
        %v4195 = vunpack.c.l.b16 %v3810
        %v4196 = vunpack.c.h.b16 %v3810
        %v4197 = vunpack.c.l.b16 %v3811
        %v4198 = vunpack.c.h.b16 %v3811
        %v4199 = vunpack.c.l.b16 %v3812
        %v4200 = vunpack.c.h.b16 %v3812
        %v4201 = vunpack.c.l.b16 %v3813
        %v4202 = vunpack.c.h.b16 %v3813
        %v4203 = vunpack.c.l.b16 %v3814
        %v4204 = vunpack.c.h.b16 %v3814
        %v4205 = vunpack.c.l.b16 %v3815
        %v4206 = vunpack.c.h.b16 %v3815
        %v4207 = vunpack.c.l.b16 %v3816
        %v4208 = vunpack.c.h.b16 %v3816
        %v4209 = vunpack.c.l.b16 %v3817
        %v4210 = vunpack.c.h.b16 %v3817
        %v4211 = vunpack.c.l.b16 %v3818
        %v4212 = vunpack.c.h.b16 %v3818
        %v4213 = vunpack.c.l.b16 %v3819
        %v4214 = vunpack.c.h.b16 %v3819
        %v4215 = vunpack.c.l.b16 %v3820
        %v4216 = vunpack.c.h.b16 %v3820
        %v4217 = vunpack.c.l.b16 %v3821
        %v4218 = vunpack.c.h.b16 %v3821
        %v4219 = vunpack.c.l.b16 %v3822
        %v4220 = vunpack.c.h.b16 %v3822
        %v4221 = vunpack.c.l.b16 %v3823
        %v4222 = vunpack.c.h.b16 %v3823
        %v4223 = vunpack.c.l.b16 %v3824
        %v4224 = vunpack.c.h.b16 %v3824
        %v4225 = vunpack.c.l.b16 %v3825
        %v4226 = vunpack.c.h.b16 %v3825
        %v4227 = vunpack.c.l.b16 %v3826
        %v4228 = vunpack.c.h.b16 %v3826
        %v4229 = vunpack.c.l.b16 %v3827
        %v4230 = vunpack.c.h.b16 %v3827
        %v4231 = vunpack.c.l.b16 %v3828
        %v4232 = vunpack.c.h.b16 %v3828
        %v4233 = vunpack.c.l.b16 %v3829
        %v4234 = vunpack.c.h.b16 %v3829
        %v4235 = vunpack.c.l.b16 %v3830
        %v4236 = vunpack.c.h.b16 %v3830
        %v4237 = vunpack.c.l.b16 %v3831
        %v4238 = vunpack.c.h.b16 %v3831
        %v4239 = vunpack.c.l.b16 %v3832
        %v4240 = vunpack.c.h.b16 %v3832
        %v4241 = vunpack.c.l.b16 %v3833
        %v4242 = vunpack.c.h.b16 %v3833
        %v4243 = vunpack.c.l.b16 %v3834
        %v4244 = vunpack.c.h.b16 %v3834
        %v4245 = vunpack.c.l.b16 %v3835
        %v4246 = vunpack.c.h.b16 %v3835
        %v4247 = vunpack.c.l.b16 %v3836
        %v4248 = vunpack.c.h.b16 %v3836
        %v4249 = vunpack.c.l.b16 %v3837
        %v4250 = vunpack.c.h.b16 %v3837
        %v4251 = vunpack.c.l.b16 %v3838
        %v4252 = vunpack.c.h.b16 %v3838
        %v4253 = vunpack.c.l.b16 %v3839
        %v4254 = vunpack.c.h.b16 %v3839
        %v4255 = vunpack.c.l.b16 %v3840
        %v4256 = vunpack.c.h.b16 %v3840
        %v4257 = vunpack.c.l.b16 %v3841
        %v4258 = vunpack.c.h.b16 %v3841
        %v4259 = vunpack.c.l.b16 %v3842
        %v4260 = vunpack.c.h.b16 %v3842
        %v4261 = vunpack.c.l.b16 %v3843
        %v4262 = vunpack.c.h.b16 %v3843
        %v4263 = vunpack.c.l.b16 %v3844
        %v4264 = vunpack.c.h.b16 %v3844
        %v4265 = vunpack.c.l.b16 %v3845
        %v4266 = vunpack.c.h.b16 %v3845
        %v4267 = vunpack.c.l.b16 %v3846
        %v4268 = vunpack.c.h.b16 %v3846
        %v4269 = vunpack.c.l.b16 %v3847
        %v4270 = vunpack.c.h.b16 %v3847
        %v4271 = vunpack.c.l.b16 %v3848
        %v4272 = vunpack.c.h.b16 %v3848
        %v4273 = vunpack.c.l.b16 %v3849
        %v4274 = vunpack.c.h.b16 %v3849
        %v4275 = vunpack.c.l.b16 %v3850
        %v4276 = vunpack.c.h.b16 %v3850
        %v4277 = vunpack.c.l.b16 %v3851
        %v4278 = vunpack.c.h.b16 %v3851
        %v4279 = vunpack.c.l.b16 %v3852
        %v4280 = vunpack.c.h.b16 %v3852
        %v4281 = vunpack.c.l.b16 %v3853
        %v4282 = vunpack.c.h.b16 %v3853
        %v4283 = vunpack.c.l.b16 %v3854
        %v4284 = vunpack.c.h.b16 %v3854
        %v4285 = vunpack.c.l.b16 %v3855
        %v4286 = vunpack.c.h.b16 %v3855
        %v4287 = vunpack.c.l.b16 %v3856
        %v4288 = vunpack.c.h.b16 %v3856
        %v4289 = vunpack.c.l.b16 %v3857
        %v4290 = vunpack.c.h.b16 %v3857
        %v4291 = vunpack.c.l.b16 %v3858
        %v4292 = vunpack.c.h.b16 %v3858
        %v4293 = vunpack.c.l.b16 %v3859
        %v4294 = vunpack.c.h.b16 %v3859
        %v4295 = vunpack.c.l.b16 %v3860
        %v4296 = vunpack.c.h.b16 %v3860
        %v4297 = vunpack.c.l.b16 %v3861
        %v4298 = vunpack.c.h.b16 %v3861
        %v4299 = vunpack.c.l.b16 %v3862
        %v4300 = vunpack.c.h.b16 %v3862
        %v4301 = vunpack.c.l.b16 %v3863
        %v4302 = vunpack.c.h.b16 %v3863
        %v4303 = vunpack.c.l.b16 %v3864
        %v4304 = vunpack.c.h.b16 %v3864
        %v4305 = vunpack.c.l.b16 %v3865
        %v4306 = vunpack.c.h.b16 %v3865
        %v4307 = vunpack.c.l.b16 %v3866
        %v4308 = vunpack.c.h.b16 %v3866
        %v4309 = vunpack.c.l.b16 %v3867
        %v4310 = vunpack.c.h.b16 %v3867
        %v4311 = vunpack.c.l.b16 %v3868
        %v4312 = vunpack.c.h.b16 %v3868
        %v4313 = vpack.c.b16 %v4027, %v4025
        %v4314 = vpack.c.b16 %v4028, %v4026
        %v4315 = vpack.c.b16 %v4031, %v4029
        %v4316 = vpack.c.b16 %v4032, %v4030
        %v4317 = vpack.c.b16 %v4035, %v4033
        %v4318 = vpack.c.b16 %v4036, %v4034
        %v4319 = vpack.c.b16 %v4039, %v4037
        %v4320 = vpack.c.b16 %v4040, %v4038
        %v4321 = vpack.c.b16 %v4043, %v4041
        %v4322 = vpack.c.b16 %v4044, %v4042
        %v4323 = vpack.c.b16 %v4047, %v4045
        %v4324 = vpack.c.b16 %v4048, %v4046
        %v4325 = vpack.c.b16 %v4051, %v4049
        %v4326 = vpack.c.b16 %v4052, %v4050
        %v4327 = vpack.c.b16 %v4055, %v4053
        %v4328 = vpack.c.b16 %v4056, %v4054
        %v4329 = vpack.c.b16 %v4059, %v4057
        %v4330 = vpack.c.b16 %v4060, %v4058
        %v4331 = vpack.c.b16 %v4063, %v4061
        %v4332 = vpack.c.b16 %v4064, %v4062
        %v4333 = vpack.c.b16 %v4067, %v4065
        %v4334 = vpack.c.b16 %v4068, %v4066
        %v4335 = vpack.c.b16 %v4071, %v4069
        %v4336 = vpack.c.b16 %v4072, %v4070
        %v4337 = vpack.c.b16 %v4075, %v4073
        %v4338 = vpack.c.b16 %v4076, %v4074
        %v4339 = vpack.c.b16 %v4079, %v4077
        %v4340 = vpack.c.b16 %v4080, %v4078
        %v4341 = vpack.c.b16 %v4083, %v4081
        %v4342 = vpack.c.b16 %v4084, %v4082
        %v4343 = vpack.c.b16 %v4087, %v4085
        %v4344 = vpack.c.b16 %v4088, %v4086
        %v4345 = vpack.c.b16 %v4091, %v4089
        %v4346 = vpack.c.b16 %v4092, %v4090
        %v4347 = vpack.c.b16 %v4095, %v4093
        %v4348 = vpack.c.b16 %v4096, %v4094
        %v4349 = vpack.c.b16 %v4099, %v4097
        %v4350 = vpack.c.b16 %v4100, %v4098
        %v4351 = vpack.c.b16 %v4103, %v4101
        %v4352 = vpack.c.b16 %v4104, %v4102
        %v4353 = vpack.c.b16 %v4107, %v4105
        %v4354 = vpack.c.b16 %v4108, %v4106
        %v4355 = vpack.c.b16 %v4111, %v4109
        %v4356 = vpack.c.b16 %v4112, %v4110
        %v4357 = vpack.c.b16 %v4115, %v4113
        %v4358 = vpack.c.b16 %v4116, %v4114
        %v4359 = vpack.c.b16 %v4119, %v4117
        %v4360 = vpack.c.b16 %v4120, %v4118
        %v4361 = vpack.c.b16 %v4123, %v4121
        %v4362 = vpack.c.b16 %v4124, %v4122
        %v4363 = vpack.c.b16 %v4127, %v4125
        %v4364 = vpack.c.b16 %v4128, %v4126
        %v4365 = vpack.c.b16 %v4131, %v4129
        %v4366 = vpack.c.b16 %v4132, %v4130
        %v4367 = vpack.c.b16 %v4135, %v4133
        %v4368 = vpack.c.b16 %v4136, %v4134
        %v4369 = vpack.c.b16 %v4139, %v4137
        %v4370 = vpack.c.b16 %v4140, %v4138
        %v4371 = vpack.c.b16 %v4143, %v4141
        %v4372 = vpack.c.b16 %v4144, %v4142
        %v4373 = vpack.c.b16 %v4147, %v4145
        %v4374 = vpack.c.b16 %v4148, %v4146
        %v4375 = vpack.c.b16 %v4151, %v4149
        %v4376 = vpack.c.b16 %v4152, %v4150
        %v4377 = vpack.c.b16 %v4155, %v4153
        %v4378 = vpack.c.b16 %v4156, %v4154
        %v4379 = vpack.c.b16 %v4159, %v4157
        %v4380 = vpack.c.b16 %v4160, %v4158
        %v4381 = vpack.c.b16 %v4163, %v4161
        %v4382 = vpack.c.b16 %v4164, %v4162
        %v4383 = vpack.c.b16 %v4167, %v4165
        %v4384 = vpack.c.b16 %v4168, %v4166
        %v4385 = vpack.c.b16 %v4171, %v4169
        %v4386 = vpack.c.b16 %v4172, %v4170
        %v4387 = vpack.c.b16 %v4175, %v4173
        %v4388 = vpack.c.b16 %v4176, %v4174
        %v4389 = vpack.c.b16 %v4179, %v4177
        %v4390 = vpack.c.b16 %v4180, %v4178
        %v4391 = vpack.c.b16 %v4183, %v4181
        %v4392 = vpack.c.b16 %v4184, %v4182
        %v4393 = vpack.c.b16 %v4187, %v4185
        %v4394 = vpack.c.b16 %v4188, %v4186
        %v4395 = vpack.c.b16 %v4191, %v4189
        %v4396 = vpack.c.b16 %v4192, %v4190
        %v4397 = vpack.c.b16 %v4195, %v4193
        %v4398 = vpack.c.b16 %v4196, %v4194
        %v4399 = vpack.c.b16 %v4199, %v4197
        %v4400 = vpack.c.b16 %v4200, %v4198
        %v4401 = vpack.c.b16 %v4203, %v4201
        %v4402 = vpack.c.b16 %v4204, %v4202
        %v4403 = vpack.c.b16 %v4207, %v4205
        %v4404 = vpack.c.b16 %v4208, %v4206
        %v4405 = vpack.c.b16 %v4211, %v4209
        %v4406 = vpack.c.b16 %v4212, %v4210
        %v4407 = vpack.c.b16 %v4215, %v4213
        %v4408 = vpack.c.b16 %v4216, %v4214
        %v4409 = vpack.c.b16 %v4219, %v4217
        %v4410 = vpack.c.b16 %v4220, %v4218
        %v4411 = vpack.c.b16 %v4223, %v4221
        %v4412 = vpack.c.b16 %v4224, %v4222
        %v4413 = vpack.c.b16 %v4227, %v4225
        %v4414 = vpack.c.b16 %v4228, %v4226
        %v4415 = vpack.c.b16 %v4231, %v4229
        %v4416 = vpack.c.b16 %v4232, %v4230
        %v4417 = vpack.c.b16 %v4235, %v4233
        %v4418 = vpack.c.b16 %v4236, %v4234
        %v4419 = vpack.c.b16 %v4239, %v4237
        %v4420 = vpack.c.b16 %v4240, %v4238
        %v4421 = vpack.c.b16 %v4243, %v4241
        %v4422 = vpack.c.b16 %v4244, %v4242
        %v4423 = vpack.c.b16 %v4247, %v4245
        %v4424 = vpack.c.b16 %v4248, %v4246
        %v4425 = vpack.c.b16 %v4251, %v4249
        %v4426 = vpack.c.b16 %v4252, %v4250
        %v4427 = vpack.c.b16 %v4255, %v4253
        %v4428 = vpack.c.b16 %v4256, %v4254
        %v4429 = vpack.c.b16 %v4259, %v4257
        %v4430 = vpack.c.b16 %v4260, %v4258
        %v4431 = vpack.c.b16 %v4263, %v4261
        %v4432 = vpack.c.b16 %v4264, %v4262
        %v4433 = vpack.c.b16 %v4267, %v4265
        %v4434 = vpack.c.b16 %v4268, %v4266
        %v4435 = vpack.c.b16 %v4271, %v4269
        %v4436 = vpack.c.b16 %v4272, %v4270
        %v4437 = vpack.c.b16 %v4275, %v4273
        %v4438 = vpack.c.b16 %v4276, %v4274
        %v4439 = vpack.c.b16 %v4279, %v4277
        %v4440 = vpack.c.b16 %v4280, %v4278
        %v4441 = vpack.c.b16 %v4283, %v4281
        %v4442 = vpack.c.b16 %v4284, %v4282
        %v4443 = vpack.c.b16 %v4287, %v4285
        %v4444 = vpack.c.b16 %v4288, %v4286
        %v4445 = vpack.c.b16 %v4291, %v4289
        %v4446 = vpack.c.b16 %v4292, %v4290
        %v4447 = vpack.c.b16 %v4295, %v4293
        %v4448 = vpack.c.b16 %v4296, %v4294
        %v4449 = vpack.c.b16 %v4299, %v4297
        %v4450 = vpack.c.b16 %v4300, %v4298
        %v4451 = vpack.c.b16 %v4303, %v4301
        %v4452 = vpack.c.b16 %v4304, %v4302
        %v4453 = vpack.c.b16 %v4307, %v4305
        %v4454 = vpack.c.b16 %v4308, %v4306
        %v4455 = vpack.c.b16 %v4311, %v4309
        %v4456 = vpack.c.b16 %v4312, %v4310
        %4601 = vmatprep.subr.bf16.mxu0 %v4314
        %4602 = vmatpush1.bf16.msra.mxu0 %v4313
        %4603 = vmatprep.subr.bf16.mxu0 %v4316
        %4604 = vmatpush1.bf16.msra.mxu0 %v4315
        %4605 = vmatprep.subr.bf16.mxu0 %v4318
        %4606 = vmatpush1.bf16.msra.mxu0 %v4317
        %4607 = vmatprep.subr.bf16.mxu0 %v4320
        %4608 = vmatpush1.bf16.msra.mxu0 %v4319
        %4609 = vmatprep.subr.bf16.mxu0 %v4322
        %4610 = vmatpush1.bf16.msra.mxu0 %v4321
        %4611 = vmatprep.subr.bf16.mxu0 %v4324
        %4612 = vmatpush1.bf16.msra.mxu0 %v4323
        %4613 = vmatprep.subr.bf16.mxu0 %v4326
        %4614 = vmatpush1.bf16.msra.mxu0 %v4325
        %4615 = vmatprep.subr.bf16.mxu0 %v4328
        %4616 = vmatpush1.bf16.msra.mxu0 %v4327
        %4617 = vmatprep.subr.bf16.mxu0 %v4330
        %4618 = vmatpush1.bf16.msra.mxu0 %v4329
        %4619 = vmatprep.subr.bf16.mxu0 %v4332
        %4620 = vmatpush1.bf16.msra.mxu0 %v4331
        %4621 = vmatprep.subr.bf16.mxu0 %v4334
        %4622 = vmatpush1.bf16.msra.mxu0 %v4333
        %4623 = vmatprep.subr.bf16.mxu0 %v4336
        %4624 = vmatpush1.bf16.msra.mxu0 %v4335
        %4625 = vmatprep.subr.bf16.mxu0 %v4338
        %4626 = vmatpush1.bf16.msra.mxu0 %v4337
        %4627 = vmatprep.subr.bf16.mxu0 %v4340
        %4628 = vmatpush1.bf16.msra.mxu0 %v4339
        %4629 = vmatprep.subr.bf16.mxu0 %v4342
        %4630 = vmatpush1.bf16.msra.mxu0 %v4341
        %4631 = vmatprep.subr.bf16.mxu0 %v4344
        %4632 = vmatpush1.bf16.msra.mxu0 %v4343
        %4633 = vmatprep.mubr.bf16.mxu0 %v3402
        %4634 = vmatmul.mubr.bf16.gmra.mrb[0].mxu0 %v3356
        %v4635 = vpop.f32.mrb[0].mxu0
        %v4636 = vadd.f32 %v3874, %v4635
        %v4637 = vpop.f32.mrb[0].mxu0
        %v4638 = vadd.f32 %v3878, %v4637
        %v4639 = vpop.f32.mrb[0].mxu0
        %v4640 = vpop.f32.mrb[0].mxu0
        %4641 = vdwg.mxu0
        %4642 = vmatprep.subr.bf16.mxu0 %v4346
        %4643 = vmatpush1.bf16.msra.mxu0 %v4345
        %4644 = vmatprep.subr.bf16.mxu0 %v4348
        %4645 = vmatpush1.bf16.msra.mxu0 %v4347
        %4646 = vmatprep.subr.bf16.mxu0 %v4350
        %4647 = vmatpush1.bf16.msra.mxu0 %v4349
        %4648 = vmatprep.subr.bf16.mxu0 %v4352
        %4649 = vmatpush1.bf16.msra.mxu0 %v4351
        %4650 = vmatprep.subr.bf16.mxu0 %v4354
        %4651 = vmatpush1.bf16.msra.mxu0 %v4353
        %4652 = vmatprep.subr.bf16.mxu0 %v4356
        %4653 = vmatpush1.bf16.msra.mxu0 %v4355
        %4654 = vmatprep.subr.bf16.mxu0 %v4358
        %4655 = vmatpush1.bf16.msra.mxu0 %v4357
        %4656 = vmatprep.subr.bf16.mxu0 %v4360
        %4657 = vmatpush1.bf16.msra.mxu0 %v4359
        %4658 = vmatprep.subr.bf16.mxu0 %v4362
        %4659 = vmatpush1.bf16.msra.mxu0 %v4361
        %4660 = vmatprep.subr.bf16.mxu0 %v4364
        %4661 = vmatpush1.bf16.msra.mxu0 %v4363
        %4662 = vmatprep.subr.bf16.mxu0 %v4366
        %4663 = vmatpush1.bf16.msra.mxu0 %v4365
        %4664 = vmatprep.subr.bf16.mxu0 %v4368
        %4665 = vmatpush1.bf16.msra.mxu0 %v4367
        %4666 = vmatprep.subr.bf16.mxu0 %v4370
        %4667 = vmatpush1.bf16.msra.mxu0 %v4369
        %4668 = vmatprep.subr.bf16.mxu0 %v4372
        %4669 = vmatpush1.bf16.msra.mxu0 %v4371
        %4670 = vmatprep.subr.bf16.mxu0 %v4374
        %4671 = vmatpush1.bf16.msra.mxu0 %v4373
        %4672 = vmatprep.subr.bf16.mxu0 %v4376
        %4673 = vmatpush1.bf16.msra.mxu0 %v4375
        %4674 = vmatprep.mubr.bf16.mxu0 %v3494
        %4675 = vmatmul.mubr.bf16.gmra.mrb[0].mxu0 %v3448
        %v4676 = vpop.f32.mrb[0].mxu0
        %v4677 = vadd.f32 %v4636, %v4676
        %v4678 = vpop.f32.mrb[0].mxu0
        %v4679 = vadd.f32 %v4638, %v4678
        %v4680 = vpop.f32.mrb[0].mxu0
        %v4681 = vpop.f32.mrb[0].mxu0
        %4682 = vdwg.mxu0
        %4683 = vmatprep.subr.bf16.mxu0 %v4378
        %4684 = vmatpush1.bf16.msra.mxu0 %v4377
        %4685 = vmatprep.subr.bf16.mxu0 %v4380
        %4686 = vmatpush1.bf16.msra.mxu0 %v4379
        %4687 = vmatprep.subr.bf16.mxu0 %v4382
        %4688 = vmatpush1.bf16.msra.mxu0 %v4381
        %4689 = vmatprep.subr.bf16.mxu0 %v4384
        %4690 = vmatpush1.bf16.msra.mxu0 %v4383
        %4691 = vmatprep.subr.bf16.mxu0 %v4386
        %4692 = vmatpush1.bf16.msra.mxu0 %v4385
        %4693 = vmatprep.subr.bf16.mxu0 %v4388
        %4694 = vmatpush1.bf16.msra.mxu0 %v4387
        %4695 = vmatprep.subr.bf16.mxu0 %v4390
        %4696 = vmatpush1.bf16.msra.mxu0 %v4389
        %4697 = vmatprep.subr.bf16.mxu0 %v4392
        %4698 = vmatpush1.bf16.msra.mxu0 %v4391
        %4699 = vmatprep.subr.bf16.mxu0 %v4394
        %4700 = vmatpush1.bf16.msra.mxu0 %v4393
        %4701 = vmatprep.subr.bf16.mxu0 %v4396
        %4702 = vmatpush1.bf16.msra.mxu0 %v4395
        %4703 = vmatprep.subr.bf16.mxu0 %v4398
        %4704 = vmatpush1.bf16.msra.mxu0 %v4397
        %4705 = vmatprep.subr.bf16.mxu0 %v4400
        %4706 = vmatpush1.bf16.msra.mxu0 %v4399
        %4707 = vmatprep.subr.bf16.mxu0 %v4402
        %4708 = vmatpush1.bf16.msra.mxu0 %v4401
        %4709 = vmatprep.subr.bf16.mxu0 %v4404
        %4710 = vmatpush1.bf16.msra.mxu0 %v4403
        %4711 = vmatprep.subr.bf16.mxu0 %v4406
        %4712 = vmatpush1.bf16.msra.mxu0 %v4405
        %4713 = vmatprep.subr.bf16.mxu0 %v4408
        %4714 = vmatpush1.bf16.msra.mxu0 %v4407
        %4715 = vmatprep.mubr.bf16.mxu0 %v3586
        %4716 = vmatmul.mubr.bf16.gmra.mrb[0].mxu0 %v3540
        %v4717 = vpop.f32.mrb[0].mxu0
        %v4718 = vadd.f32 %v4677, %v4717
        %v4719 = vpop.f32.mrb[0].mxu0
        %v4720 = vadd.f32 %v4679, %v4719
        %v4721 = vpop.f32.mrb[0].mxu0
        %v4722 = vpop.f32.mrb[0].mxu0
        %4723 = vdwg.mxu0
        %4724 = vmatprep.subr.bf16.mxu0 %v4410
        %4725 = vmatpush1.bf16.msra.mxu0 %v4409
        %4726 = vmatprep.subr.bf16.mxu0 %v4412
        %4727 = vmatpush1.bf16.msra.mxu0 %v4411
        %4728 = vmatprep.subr.bf16.mxu0 %v4414
        %4729 = vmatpush1.bf16.msra.mxu0 %v4413
        %4730 = vmatprep.subr.bf16.mxu0 %v4416
        %4731 = vmatpush1.bf16.msra.mxu0 %v4415
        %4732 = vmatprep.subr.bf16.mxu0 %v4418
        %4733 = vmatpush1.bf16.msra.mxu0 %v4417
        %4734 = vmatprep.subr.bf16.mxu0 %v4420
        %4735 = vmatpush1.bf16.msra.mxu0 %v4419
        %4736 = vmatprep.subr.bf16.mxu0 %v4422
        %4737 = vmatpush1.bf16.msra.mxu0 %v4421
        %4738 = vmatprep.subr.bf16.mxu0 %v4424
        %4739 = vmatpush1.bf16.msra.mxu0 %v4423
        %4740 = vmatprep.subr.bf16.mxu0 %v4426
        %4741 = vmatpush1.bf16.msra.mxu0 %v4425
        %4742 = vmatprep.subr.bf16.mxu0 %v4428
        %4743 = vmatpush1.bf16.msra.mxu0 %v4427
        %4744 = vmatprep.subr.bf16.mxu0 %v4430
        %4745 = vmatpush1.bf16.msra.mxu0 %v4429
        %4746 = vmatprep.subr.bf16.mxu0 %v4432
        %4747 = vmatpush1.bf16.msra.mxu0 %v4431
        %4748 = vmatprep.subr.bf16.mxu0 %v4434
        %4749 = vmatpush1.bf16.msra.mxu0 %v4433
        %4750 = vmatprep.subr.bf16.mxu0 %v4436
        %4751 = vmatpush1.bf16.msra.mxu0 %v4435
        %4752 = vmatprep.subr.bf16.mxu0 %v4438
        %4753 = vmatpush1.bf16.msra.mxu0 %v4437
        %4754 = vmatprep.subr.bf16.mxu0 %v4440
        %4755 = vmatpush1.bf16.msra.mxu0 %v4439
        %4756 = vmatprep.mubr.bf16.mxu0 %v3678
        %4757 = vmatmul.mubr.bf16.gmra.mrb[0].mxu0 %v3632
        %v4758 = vpop.f32.mrb[0].mxu0
        %v4759 = vadd.f32 %v4718, %v4758
        %v4760 = vpop.f32.mrb[0].mxu0
        %v4761 = vadd.f32 %v4720, %v4760
        %v4762 = vpop.f32.mrb[0].mxu0
        %v4763 = vpop.f32.mrb[0].mxu0
        %4764 = vdwg.mxu0
        %4765 = vmatprep.subr.bf16.mxu0 %v4442
        %4766 = vmatpush1.bf16.msra.mxu0 %v4441
        %4767 = vmatprep.subr.bf16.mxu0 %v4444
        %4768 = vmatpush1.bf16.msra.mxu0 %v4443
        %4769 = vmatprep.subr.bf16.mxu0 %v4446
        %4770 = vmatpush1.bf16.msra.mxu0 %v4445
        %4771 = vmatprep.subr.bf16.mxu0 %v4448
        %4772 = vmatpush1.bf16.msra.mxu0 %v4447
        %4773 = vmatprep.subr.bf16.mxu0 %v4450
        %4774 = vmatpush1.bf16.msra.mxu0 %v4449
        %4775 = vmatprep.subr.bf16.mxu0 %v4452
        %4776 = vmatpush1.bf16.msra.mxu0 %v4451
        %4777 = vmatprep.subr.bf16.mxu0 %v4454
        %4778 = vmatpush1.bf16.msra.mxu0 %v4453
        %4779 = vmatprep.subr.bf16.mxu0 %v4456
        %4780 = vmatpush1.bf16.msra.mxu0 %v4455
        %4781 = vmatprep.subr.bf16.mxu0 0
        %4782 = vmatpush1.bf16.msra.mxu0 0
        %4783 = vmatprep.subr.bf16.mxu0 0
        %4784 = vmatpush1.bf16.msra.mxu0 0
        %4785 = vmatprep.subr.bf16.mxu0 0
        %4786 = vmatpush1.bf16.msra.mxu0 0
        %4787 = vmatprep.subr.bf16.mxu0 0
        %4788 = vmatpush1.bf16.msra.mxu0 0
        %4789 = vmatprep.subr.bf16.mxu0 0
        %4790 = vmatpush1.bf16.msra.mxu0 0
        %4791 = vmatprep.subr.bf16.mxu0 0
        %4792 = vmatpush1.bf16.msra.mxu0 0
        %4793 = vmatprep.subr.bf16.mxu0 0
        %4794 = vmatpush1.bf16.msra.mxu0 0
        %4795 = vmatprep.subr.bf16.mxu0 0
        %4796 = vmatpush1.bf16.msra.mxu0 0
        %4797 = vmatprep.mubr.bf16.mxu0 0
        %4798 = vmatmul.mubr.bf16.gmra.mrb[0].mxu0 %v3724
        %v4799 = vpop.f32.mrb[0].mxu0
        %v4800 = vadd.f32 %v4759, %v4799
        %v4801 = vpop.f32.mrb[0].mxu0
        %v4802 = vadd.f32 %v4761, %v4801
        %v4803 = vpop.f32.mrb[0].mxu0
        %v4804 = vpop.f32.mrb[0].mxu0
        %4805 = vdwg.mxu0
        %v4806 = vmax.f32 %v4800, 0.0
        %v4807 = vmax.f32 %v4802, 0.0
        %v4808 = vpack.c.bf16 %v4806, %v4806
        %v4809 = vpack.c.bf16 %v4807, %v4807
        %v4810 = vld [vmem:[#allocation16] sm:$0x3]
        %vm4811 = vcmask 31744
        %v4813 = vsel %vm4811, %v4810, 0
        %vm4815 = vcmask 1041408
        %v4817 = vsel %vm4815, %v4808, 0
        %v4820 = vsel %vm4815, %v4809, 0
        %4822 = vmatprep.subr.bf16.mxu0 %v4820
        %4823 = vmatpush1.bf16.msra.mxu0 %v4817
        %4824 = vmatprep.subr.bf16.mxu0 0
        %4825 = vmatpush1.bf16.msra.mxu0 0
        %4826 = vmatprep.subr.bf16.mxu0 0
        %4827 = vmatpush1.bf16.msra.mxu0 0
        %4828 = vmatprep.subr.bf16.mxu0 0
        %4829 = vmatpush1.bf16.msra.mxu0 0
        %4830 = vmatprep.subr.bf16.mxu0 0
        %4831 = vmatpush1.bf16.msra.mxu0 0
        %4832 = vmatprep.subr.bf16.mxu0 0
        %4833 = vmatpush1.bf16.msra.mxu0 0
        %4834 = vmatprep.subr.bf16.mxu0 0
        %4835 = vmatpush1.bf16.msra.mxu0 0
        %4836 = vmatprep.subr.bf16.mxu0 0
        %4837 = vmatpush1.bf16.msra.mxu0 0
        %4838 = vmatprep.subr.bf16.mxu0 0
        %4839 = vmatpush1.bf16.msra.mxu0 0
        %4840 = vmatprep.subr.bf16.mxu0 0
        %4841 = vmatpush1.bf16.msra.mxu0 0
        %4842 = vmatprep.subr.bf16.mxu0 0
        %4843 = vmatpush1.bf16.msra.mxu0 0
        %4844 = vmatprep.subr.bf16.mxu0 0
        %4845 = vmatpush1.bf16.msra.mxu0 0
        %4846 = vmatprep.subr.bf16.mxu0 0
        %4847 = vmatpush1.bf16.msra.mxu0 0
        %4848 = vmatprep.subr.bf16.mxu0 0
        %4849 = vmatpush1.bf16.msra.mxu0 0
        %4850 = vmatprep.subr.bf16.mxu0 0
        %4851 = vmatpush1.bf16.msra.mxu0 0
        %4852 = vmatprep.subr.bf16.mxu0 0
        %4853 = vmatpush1.bf16.msra.mxu0 0
        %4854 = vmatprep.mubr.bf16.mxu0 0
        %4855 = vmatmul.mubr.bf16.gmra.mrb[0].mxu0 %v4813
        %v4856 = vpop.f32.mrb[0].mxu0
        %v4857 = vadd.f32 0.0, %v4856
        %v4858 = vpop.f32.mrb[0].mxu0
        %v4859 = vadd.f32 0.0, %v4858
        %v4860 = vpop.f32.mrb[0].mxu0
        %v4861 = vpop.f32.mrb[0].mxu0
        %4862 = vdwg.mxu0
        %v4863 = vpack.c.bf16 %v4857, %v4857
        %v4864 = vpack.c.bf16 %v4859, %v4859
        %s4865 = scalar_lea.vmem [#allocation16], 2
        %v4866 = vld [vmem:[%s4865] sm:$0x3]
        %v4868 = vsel %vm4811, %v4866, 0
        %4870 = vmatprep.subr.bf16.mxu0 %v4820
        %4871 = vmatpush1.bf16.msra.mxu0 %v4817
        %4872 = vmatprep.subr.bf16.mxu0 0
        %4873 = vmatpush1.bf16.msra.mxu0 0
        %4874 = vmatprep.subr.bf16.mxu0 0
        %4875 = vmatpush1.bf16.msra.mxu0 0
        %4876 = vmatprep.subr.bf16.mxu0 0
        %4877 = vmatpush1.bf16.msra.mxu0 0
        %4878 = vmatprep.subr.bf16.mxu0 0
        %4879 = vmatpush1.bf16.msra.mxu0 0
        %4880 = vmatprep.subr.bf16.mxu0 0
        %4881 = vmatpush1.bf16.msra.mxu0 0
        %4882 = vmatprep.subr.bf16.mxu0 0
        %4883 = vmatpush1.bf16.msra.mxu0 0
        %4884 = vmatprep.subr.bf16.mxu0 0
        %4885 = vmatpush1.bf16.msra.mxu0 0
        %4886 = vmatprep.subr.bf16.mxu0 0
        %4887 = vmatpush1.bf16.msra.mxu0 0
        %4888 = vmatprep.subr.bf16.mxu0 0
        %4889 = vmatpush1.bf16.msra.mxu0 0
        %4890 = vmatprep.subr.bf16.mxu0 0
        %4891 = vmatpush1.bf16.msra.mxu0 0
        %4892 = vmatprep.subr.bf16.mxu0 0
        %4893 = vmatpush1.bf16.msra.mxu0 0
        %4894 = vmatprep.subr.bf16.mxu0 0
        %4895 = vmatpush1.bf16.msra.mxu0 0
        %4896 = vmatprep.subr.bf16.mxu0 0
        %4897 = vmatpush1.bf16.msra.mxu0 0
        %4898 = vmatprep.subr.bf16.mxu0 0
        %4899 = vmatpush1.bf16.msra.mxu0 0
        %4900 = vmatprep.subr.bf16.mxu0 0
        %4901 = vmatpush1.bf16.msra.mxu0 0
        %4902 = vmatprep.mubr.bf16.mxu0 0
        %4903 = vmatmul.mubr.bf16.gmra.mrb[0].mxu0 %v4868
        %v4904 = vpop.f32.mrb[0].mxu0
        %v4905 = vadd.f32 0.0, %v4904
        %v4906 = vpop.f32.mrb[0].mxu0
        %v4907 = vadd.f32 0.0, %v4906
        %v4908 = vpop.f32.mrb[0].mxu0
        %v4909 = vpop.f32.mrb[0].mxu0
        %4910 = vdwg.mxu0
        %v4911 = vpack.c.bf16 %v4905, %v4905
        %v4912 = vpack.c.bf16 %v4907, %v4907
        %s4913 = scalar_lea.vmem [#allocation16], 4
        %v4914 = vld [vmem:[%s4913] sm:$0x3]
        %v4916 = vsel %vm4811, %v4914, 0
        %4918 = vmatprep.subr.bf16.mxu0 %v4820
        %4919 = vmatpush1.bf16.msra.mxu0 %v4817
        %4920 = vmatprep.subr.bf16.mxu0 0
        %4921 = vmatpush1.bf16.msra.mxu0 0
        %4922 = vmatprep.subr.bf16.mxu0 0
        %4923 = vmatpush1.bf16.msra.mxu0 0
        %4924 = vmatprep.subr.bf16.mxu0 0
        %4925 = vmatpush1.bf16.msra.mxu0 0
        %4926 = vmatprep.subr.bf16.mxu0 0
        %4927 = vmatpush1.bf16.msra.mxu0 0
        %4928 = vmatprep.subr.bf16.mxu0 0
        %4929 = vmatpush1.bf16.msra.mxu0 0
        %4930 = vmatprep.subr.bf16.mxu0 0
        %4931 = vmatpush1.bf16.msra.mxu0 0
        %4932 = vmatprep.subr.bf16.mxu0 0
        %4933 = vmatpush1.bf16.msra.mxu0 0
        %4934 = vmatprep.subr.bf16.mxu0 0
        %4935 = vmatpush1.bf16.msra.mxu0 0
        %4936 = vmatprep.subr.bf16.mxu0 0
        %4937 = vmatpush1.bf16.msra.mxu0 0
        %4938 = vmatprep.subr.bf16.mxu0 0
        %4939 = vmatpush1.bf16.msra.mxu0 0
        %4940 = vmatprep.subr.bf16.mxu0 0
        %4941 = vmatpush1.bf16.msra.mxu0 0
        %4942 = vmatprep.subr.bf16.mxu0 0
        %4943 = vmatpush1.bf16.msra.mxu0 0
        %4944 = vmatprep.subr.bf16.mxu0 0
        %4945 = vmatpush1.bf16.msra.mxu0 0
        %4946 = vmatprep.subr.bf16.mxu0 0
        %4947 = vmatpush1.bf16.msra.mxu0 0
        %4948 = vmatprep.subr.bf16.mxu0 0
        %4949 = vmatpush1.bf16.msra.mxu0 0
        %4950 = vmatprep.mubr.bf16.mxu0 0
        %4951 = vmatmul.mubr.bf16.gmra.mrb[0].mxu0 %v4916
        %v4952 = vpop.f32.mrb[0].mxu0
        %v4953 = vadd.f32 0.0, %v4952
        %v4954 = vpop.f32.mrb[0].mxu0
        %v4955 = vadd.f32 0.0, %v4954
        %v4956 = vpop.f32.mrb[0].mxu0
        %v4957 = vpop.f32.mrb[0].mxu0
        %4958 = vdwg.mxu0
        %v4959 = vpack.c.bf16 %v4953, %v4953
        %v4960 = vpack.c.bf16 %v4955, %v4955
        %s4961 = scalar_lea.vmem [#allocation16], 6
        %v4962 = vld [vmem:[%s4961] sm:$0x3]
        %v4964 = vsel %vm4811, %v4962, 0
        %4966 = vmatprep.subr.bf16.mxu0 %v4820
        %4967 = vmatpush1.bf16.msra.mxu0 %v4817
        %4968 = vmatprep.subr.bf16.mxu0 0
        %4969 = vmatpush1.bf16.msra.mxu0 0
        %4970 = vmatprep.subr.bf16.mxu0 0
        %4971 = vmatpush1.bf16.msra.mxu0 0
        %4972 = vmatprep.subr.bf16.mxu0 0
        %4973 = vmatpush1.bf16.msra.mxu0 0
        %4974 = vmatprep.subr.bf16.mxu0 0
        %4975 = vmatpush1.bf16.msra.mxu0 0
        %4976 = vmatprep.subr.bf16.mxu0 0
        %4977 = vmatpush1.bf16.msra.mxu0 0
        %4978 = vmatprep.subr.bf16.mxu0 0
        %4979 = vmatpush1.bf16.msra.mxu0 0
        %4980 = vmatprep.subr.bf16.mxu0 0
        %4981 = vmatpush1.bf16.msra.mxu0 0
        %4982 = vmatprep.subr.bf16.mxu0 0
        %4983 = vmatpush1.bf16.msra.mxu0 0
        %4984 = vmatprep.subr.bf16.mxu0 0
        %4985 = vmatpush1.bf16.msra.mxu0 0
        %4986 = vmatprep.subr.bf16.mxu0 0
        %4987 = vmatpush1.bf16.msra.mxu0 0
        %4988 = vmatprep.subr.bf16.mxu0 0
        %4989 = vmatpush1.bf16.msra.mxu0 0
        %4990 = vmatprep.subr.bf16.mxu0 0
        %4991 = vmatpush1.bf16.msra.mxu0 0
        %4992 = vmatprep.subr.bf16.mxu0 0
        %4993 = vmatpush1.bf16.msra.mxu0 0
        %4994 = vmatprep.subr.bf16.mxu0 0
        %4995 = vmatpush1.bf16.msra.mxu0 0
        %4996 = vmatprep.subr.bf16.mxu0 0
        %4997 = vmatpush1.bf16.msra.mxu0 0
        %4998 = vmatprep.mubr.bf16.mxu0 0
        %4999 = vmatmul.mubr.bf16.gmra.mrb[0].mxu0 %v4964
        %v5000 = vpop.f32.mrb[0].mxu0
        %v5001 = vadd.f32 0.0, %v5000
        %v5002 = vpop.f32.mrb[0].mxu0
        %v5003 = vadd.f32 0.0, %v5002
        %v5004 = vpop.f32.mrb[0].mxu0
        %v5005 = vpop.f32.mrb[0].mxu0
        %5006 = vdwg.mxu0
        %v5007 = vpack.c.bf16 %v5001, %v5001
        %v5008 = vpack.c.bf16 %v5003, %v5003
        %v5009 = vld [vmem:[%s11] sm:$0xff]
        %v5010 = vld [vmem:[%s11 + $0x8] sm:$0xff]
        %v5011 = vld [vmem:[%s11 + $0x10] sm:$0xff]
        %v5012 = vld [vmem:[%s11 + $0x18] sm:$0xff]
        %v5013 = vld [vmem:[%s11 + $0x20] sm:$0xff]
        %v5014 = vld [vmem:[%s11 + $0x28] sm:$0xff]
        %v5015 = vld [vmem:[%s11 + $0x30] sm:$0xff]
        %v5016 = vld [vmem:[%s11 + $0x38] sm:$0xff]
        %v5017 = vld [vmem:[%s11 + $0x40] sm:$0xff]
        %v5018 = vld [vmem:[%s11 + $0x48] sm:$0xff]
        %v5019 = vld [vmem:[%s11 + $0x50] sm:$0xff]
        %v5020 = vld [vmem:[%s11 + $0x58] sm:$0xff]
        %v5021 = vld [vmem:[%s11 + $0x60] sm:$0xff]
        %v5022 = vld [vmem:[%s11 + $0x68] sm:$0xff]
        %v5023 = vld [vmem:[%s11 + $0x70] sm:$0xff]
        %v5024 = vld [vmem:[%s11 + $0x78] sm:$0xff]
        %v5025 = vld [vmem:[%s11 + $0x80] sm:$0xff]
        %v5026 = vld [vmem:[%s11 + $0x88] sm:$0xff]
        %v5027 = vld [vmem:[%s11 + $0x90] sm:$0xff]
        %v5028 = vld [vmem:[%s11 + $0x98] sm:$0xff]
        %v5029 = vld [vmem:[%s11 + $0xa0] sm:$0xff]
        %v5030 = vld [vmem:[%s11 + $0xa8] sm:$0xff]
        %v5031 = vld [vmem:[%s11 + $0xb0] sm:$0xff]
        %v5032 = vld [vmem:[%s11 + $0xb8] sm:$0xff]
        %v5033 = vld [vmem:[%s11 + $0xc0] sm:$0xff]
        %v5034 = vld [vmem:[%s11 + $0xc8] sm:$0xff]
        %v5035 = vld [vmem:[%s11 + $0xd0] sm:$0xff]
        %v5036 = vld [vmem:[%s11 + $0xd8] sm:$0xff]
        %v5037 = vld [vmem:[%s11 + $0xe0] sm:$0xff]
        %v5038 = vld [vmem:[%s11 + $0xe8] sm:$0xff]
        %v5039 = vld [vmem:[%s11 + $0xf0] sm:$0xff]
        %v5040 = vld [vmem:[%s11 + $0xf8] sm:$0xff]
        %v5041 = vld [vmem:[%s11 + $0x100] sm:$0xff]
        %v5042 = vld [vmem:[%s11 + $0x108] sm:$0xff]
        %v5043 = vld [vmem:[%s11 + $0x110] sm:$0xff]
        %v5044 = vld [vmem:[%s11 + $0x118] sm:$0xff]
        %v5045 = vld [vmem:[%s11 + $0x120] sm:$0xff]
        %v5046 = vld [vmem:[%s11 + $0x128] sm:$0xff]
        %v5047 = vld [vmem:[%s11 + $0x130] sm:$0xff]
        %v5048 = vld [vmem:[%s11 + $0x138] sm:$0xff]
        %v5049 = vld [vmem:[%s11 + $0x140] sm:$0xff]
        %v5050 = vld [vmem:[%s11 + $0x148] sm:$0xff]
        %v5051 = vld [vmem:[%s11 + $0x150] sm:$0xff]
        %v5052 = vld [vmem:[%s11 + $0x158] sm:$0xff]
        %v5053 = vld [vmem:[%s11 + $0x160] sm:$0xff]
        %v5054 = vld [vmem:[%s11 + $0x168] sm:$0xff]
        %v5055 = vld [vmem:[%s11 + $0x170] sm:$0xff]
        %v5056 = vld [vmem:[%s11 + $0x178] sm:$0xff]
        %v5057 = vld [vmem:[%s11 + $0x180] sm:$0xff]
        %v5058 = vld [vmem:[%s11 + $0x188] sm:$0xff]
        %v5059 = vld [vmem:[%s11 + $0x190] sm:$0xff]
        %v5060 = vld [vmem:[%s11 + $0x198] sm:$0xff]
        %v5061 = vld [vmem:[%s11 + $0x1a0] sm:$0xff]
        %v5062 = vld [vmem:[%s11 + $0x1a8] sm:$0xff]
        %v5063 = vld [vmem:[%s11 + $0x1b0] sm:$0xff]
        %v5064 = vld [vmem:[%s11 + $0x1b8] sm:$0xff]
        %v5065 = vld [vmem:[%s11 + $0x1c0] sm:$0xff]
        %v5066 = vld [vmem:[%s11 + $0x1c8] sm:$0xff]
        %v5067 = vld [vmem:[%s11 + $0x1d0] sm:$0xff]
        %v5068 = vld [vmem:[%s11 + $0x1d8] sm:$0xff]
        %v5069 = vld [vmem:[%s11 + $0x1e0] sm:$0xff]
        %v5070 = vld [vmem:[%s11 + $0x1e8] sm:$0xff]
        %v5071 = vld [vmem:[%s11 + $0x1f0] sm:$0xff]
        %v5072 = vld [vmem:[%s11 + $0x1f8] sm:$0xff]
        %v5073 = vld [vmem:[%s11 + $0x200] sm:$0xff]
        %v5074 = vld [vmem:[%s11 + $0x208] sm:$0xff]
        %v5075 = vld [vmem:[%s11 + $0x210] sm:$0xff]
        %v5076 = vld [vmem:[%s11 + $0x218] sm:$0xff]
        %v5077 = vld [vmem:[%s11 + $0x220] sm:$0xff]
        %v5078 = vld [vmem:[%s11 + $0x228] sm:$0xff]
        %v5079 = vld [vmem:[%s11 + $0x230] sm:$0xff]
        %v5080 = vld [vmem:[%s11 + $0x238] sm:$0xff]
        %v5081 = vld [vmem:[%s11 + $0x240] sm:$0xff]
        %v5082 = vld [vmem:[%s11 + $0x248] sm:$0xff]
        %v5083 = vld [vmem:[%s11 + $0x250] sm:$0xff]
        %v5084 = vld [vmem:[%s11 + $0x258] sm:$0xff]
        %v5085 = vld [vmem:[%s11 + $0x260] sm:$0xff]
        %v5086 = vld [vmem:[%s11 + $0x268] sm:$0xff]
        %v5087 = vld [vmem:[%s11 + $0x270] sm:$0xff]
        %v5088 = vld [vmem:[%s11 + $0x278] sm:$0xff]
        %v5089 = vld [vmem:[%s11 + $0x280] sm:$0xff]
        %v5090 = vld [vmem:[%s11 + $0x288] sm:$0xff]
        %v5091 = vld [vmem:[%s11 + $0x290] sm:$0xff]
        %v5092 = vld [vmem:[%s11 + $0x298] sm:$0xff]
        %v5093 = vld [vmem:[%s11 + $0x2a0] sm:$0xff]
        %v5094 = vld [vmem:[%s11 + $0x2a8] sm:$0xff]
        %v5095 = vld [vmem:[%s11 + $0x2b0] sm:$0xff]
        %v5096 = vld [vmem:[%s11 + $0x2b8] sm:$0xff]
        %v5097 = vld [vmem:[%s11 + $0x2c0] sm:$0xff]
        %v5098 = vld [vmem:[%s11 + $0x2c8] sm:$0xff]
        %v5099 = vld [vmem:[%s11 + $0x2d0] sm:$0xff]
        %v5100 = vld [vmem:[%s11 + $0x2d8] sm:$0xff]
        %v5101 = vld [vmem:[%s11 + $0x2e0] sm:$0xff]
        %v5102 = vld [vmem:[%s11 + $0x2e8] sm:$0xff]
        %v5103 = vld [vmem:[%s11 + $0x2f0] sm:$0xff]
        %v5104 = vld [vmem:[%s11 + $0x2f8] sm:$0xff]
        %v5105 = vld [vmem:[%s11 + $0x300] sm:$0xff]
        %v5106 = vld [vmem:[%s11 + $0x308] sm:$0xff]
        %v5107 = vld [vmem:[%s11 + $0x310] sm:$0xff]
        %v5108 = vld [vmem:[%s11 + $0x318] sm:$0xff]
        %v5109 = vld [vmem:[%s11 + $0x320] sm:$0xff]
        %v5110 = vld [vmem:[%s11 + $0x328] sm:$0xff]
        %v5111 = vld [vmem:[%s11 + $0x330] sm:$0xff]
        %v5112 = vld [vmem:[%s11 + $0x338] sm:$0xff]
        %v5113 = vld [vmem:[%s11 + $0x340] sm:$0xff]
        %v5114 = vld [vmem:[%s11 + $0x348] sm:$0xff]
        %v5115 = vld [vmem:[%s11 + $0x350] sm:$0xff]
        %v5116 = vld [vmem:[%s11 + $0x358] sm:$0xff]
        %v5117 = vld [vmem:[%s11 + $0x360] sm:$0xff]
        %v5118 = vld [vmem:[%s11 + $0x368] sm:$0xff]
        %v5119 = vld [vmem:[%s11 + $0x370] sm:$0xff]
        %v5120 = vld [vmem:[%s11 + $0x378] sm:$0xff]
        %v5121 = vld [vmem:[%s11 + $0x380] sm:$0xff]
        %v5122 = vld [vmem:[%s11 + $0x388] sm:$0xff]
        %v5123 = vld [vmem:[%s11 + $0x390] sm:$0xff]
        %v5124 = vld [vmem:[%s11 + $0x398] sm:$0xff]
        %v5125 = vld [vmem:[%s11 + $0x3a0] sm:$0xff]
        %v5126 = vld [vmem:[%s11 + $0x3a8] sm:$0xff]
        %v5127 = vld [vmem:[%s11 + $0x3b0] sm:$0xff]
        %v5128 = vld [vmem:[%s11 + $0x3b8] sm:$0xff]
        %v5129 = vld [vmem:[%s11 + $0x3c0] sm:$0xff]
        %v5130 = vld [vmem:[%s11 + $0x3c8] sm:$0xff]
        %v5131 = vld [vmem:[%s11 + $0x3d0] sm:$0xff]
        %v5132 = vld [vmem:[%s11 + $0x3d8] sm:$0xff]
        %v5133 = vld [vmem:[%s11 + $0x3e0] sm:$0xff]
        %v5134 = vld [vmem:[%s11 + $0x3e8] sm:$0xff]
        %v5135 = vld [vmem:[%s11 + $0x3f0] sm:$0xff]
        %v5136 = vld [vmem:[%s11 + $0x3f8] sm:$0xff]
        %v5137 = vld [vmem:[%s11 + $0x400] sm:$0xff]
        %v5138 = vld [vmem:[%s11 + $0x408] sm:$0xff]
        %v5139 = vld [vmem:[%s11 + $0x410] sm:$0xff]
        %v5140 = vld [vmem:[%s11 + $0x418] sm:$0xff]
        %v5141 = vld [vmem:[%s11 + $0x420] sm:$0xff]
        %v5142 = vld [vmem:[%s11 + $0x428] sm:$0xff]
        %v5143 = vld [vmem:[%s11 + $0x430] sm:$0xff]
        %v5144 = vld [vmem:[%s11 + $0x438] sm:$0xff]
        %v5145 = vld [vmem:[%s11 + $0x440] sm:$0xff]
        %v5146 = vld [vmem:[%s11 + $0x448] sm:$0xff]
        %v5147 = vld [vmem:[%s11 + $0x450] sm:$0xff]
        %v5148 = vld [vmem:[%s11 + $0x458] sm:$0xff]
        %v5149 = vld [vmem:[%s11 + $0x460] sm:$0xff]
        %v5150 = vld [vmem:[%s11 + $0x468] sm:$0xff]
        %v5151 = vld [vmem:[%s11 + $0x470] sm:$0xff]
        %v5152 = vld [vmem:[%s11 + $0x478] sm:$0xff]
        %v5153 = vld [vmem:[%s11 + $0x480] sm:$0xff]
        %v5154 = vld [vmem:[%s11 + $0x488] sm:$0xff]
        %v5155 = vld [vmem:[%s11 + $0x490] sm:$0xff]
        %v5156 = vld [vmem:[%s11 + $0x498] sm:$0xff]
        %v5157 = vld [vmem:[%s11 + $0x4a0] sm:$0xff]
        %v5158 = vld [vmem:[%s11 + $0x4a8] sm:$0xff]
        %v5159 = vld [vmem:[%s11 + $0x4b0] sm:$0xff]
        %v5160 = vld [vmem:[%s11 + $0x4b8] sm:$0xff]
        %v5161 = vld [vmem:[%s11 + $0x4c0] sm:$0xff]
        %v5162 = vld [vmem:[%s11 + $0x4c8] sm:$0xff]
        %v5163 = vld [vmem:[%s11 + $0x4d0] sm:$0xff]
        %v5164 = vld [vmem:[%s11 + $0x4d8] sm:$0xff]
        %v5165 = vld [vmem:[%s11 + $0x4e0] sm:$0xff]
        %v5166 = vld [vmem:[%s11 + $0x4e8] sm:$0xff]
        %v5167 = vld [vmem:[%s11 + $0x4f0] sm:$0xff]
        %v5168 = vld [vmem:[%s11 + $0x4f8] sm:$0xff]
        %v5169 = vld [vmem:[%s11 + $0x500] sm:$0xff]
        %v5170 = vld [vmem:[%s11 + $0x508] sm:$0xff]
        %v5171 = vld [vmem:[%s11 + $0x510] sm:$0xff]
        %v5172 = vld [vmem:[%s11 + $0x518] sm:$0xff]
        %v5173 = vld [vmem:[%s11 + $0x520] sm:$0xff]
        %v5174 = vld [vmem:[%s11 + $0x528] sm:$0xff]
        %v5175 = vld [vmem:[%s11 + $0x530] sm:$0xff]
        %v5176 = vld [vmem:[%s11 + $0x538] sm:$0xff]
        %v5177 = vld [vmem:[%s11 + $0x540] sm:$0xff]
        %v5178 = vld [vmem:[%s11 + $0x548] sm:$0xff]
        %v5179 = vld [vmem:[%s11 + $0x550] sm:$0xff]
        %v5180 = vld [vmem:[%s11 + $0x558] sm:$0xff]
        %v5181 = vld [vmem:[%s11 + $0x560] sm:$0xff]
        %v5182 = vld [vmem:[%s11 + $0x568] sm:$0xff]
        %v5183 = vld [vmem:[%s11 + $0x570] sm:$0xff]
        %v5184 = vld [vmem:[%s11 + $0x578] sm:$0xff]
        %v5185 = vld [vmem:[%s11 + $0x580] sm:$0xff]
        %v5186 = vld [vmem:[%s11 + $0x588] sm:$0xff]
        %v5187 = vld [vmem:[%s11 + $0x590] sm:$0xff]
        %v5188 = vld [vmem:[%s11 + $0x598] sm:$0xff]
        %v5189 = vld [vmem:[%s11 + $0x5a0] sm:$0xff]
        %v5190 = vld [vmem:[%s11 + $0x5a8] sm:$0xff]
        %v5191 = vld [vmem:[%s11 + $0x5b0] sm:$0xff]
        %v5192 = vld [vmem:[%s11 + $0x5b8] sm:$0xff]
        %v5193 = vld [vmem:[%s11 + $0x5c0] sm:$0xff]
        %v5194 = vld [vmem:[%s11 + $0x5c8] sm:$0xff]
        %v5195 = vld [vmem:[%s11 + $0x5d0] sm:$0xff]
        %v5196 = vld [vmem:[%s11 + $0x5d8] sm:$0xff]
        %v5197 = vld [vmem:[%s11 + $0x5e0] sm:$0xff]
        %v5198 = vld [vmem:[%s11 + $0x5e8] sm:$0xff]
        %v5199 = vld [vmem:[%s11 + $0x5f0] sm:$0xff]
        %v5200 = vld [vmem:[%s11 + $0x5f8] sm:$0xff]
        %v5201 = vld [vmem:[%s11 + $0x600] sm:$0xff]
        %v5202 = vld [vmem:[%s11 + $0x608] sm:$0xff]
        %v5203 = vld [vmem:[%s11 + $0x610] sm:$0xff]
        %v5204 = vld [vmem:[%s11 + $0x618] sm:$0xff]
        %v5205 = vld [vmem:[%s11 + $0x620] sm:$0xff]
        %v5206 = vld [vmem:[%s11 + $0x628] sm:$0xff]
        %v5207 = vld [vmem:[%s11 + $0x630] sm:$0xff]
        %v5208 = vld [vmem:[%s11 + $0x638] sm:$0xff]
        %v5209 = vld [vmem:[%s11 + $0x640] sm:$0xff]
        %v5210 = vld [vmem:[%s11 + $0x648] sm:$0xff]
        %v5211 = vld [vmem:[%s11 + $0x650] sm:$0xff]
        %v5212 = vld [vmem:[%s11 + $0x658] sm:$0xff]
        %v5213 = vld [vmem:[%s11 + $0x660] sm:$0xff]
        %v5214 = vld [vmem:[%s11 + $0x668] sm:$0xff]
        %v5215 = vld [vmem:[%s11 + $0x670] sm:$0xff]
        %v5216 = vld [vmem:[%s11 + $0x678] sm:$0xff]
        %v5217 = vld [vmem:[%s11 + $0x680] sm:$0xff]
        %v5218 = vld [vmem:[%s11 + $0x688] sm:$0xff]
        %v5219 = vld [vmem:[%s11 + $0x690] sm:$0xff]
        %v5220 = vld [vmem:[%s11 + $0x698] sm:$0xff]
        %v5221 = vld [vmem:[%s11 + $0x6a0] sm:$0xff]
        %v5222 = vld [vmem:[%s11 + $0x6a8] sm:$0xff]
        %v5223 = vld [vmem:[%s11 + $0x6b0] sm:$0xff]
        %v5224 = vld [vmem:[%s11 + $0x6b8] sm:$0xff]
        %v5225 = vld [vmem:[%s11 + $0x6c0] sm:$0xff]
        %v5226 = vld [vmem:[%s11 + $0x6c8] sm:$0xff]
        %v5227 = vld [vmem:[%s11 + $0x6d0] sm:$0xff]
        %v5228 = vld [vmem:[%s11 + $0x6d8] sm:$0xff]
        %v5229 = vld [vmem:[%s11 + $0x6e0] sm:$0xff]
        %v5230 = vld [vmem:[%s11 + $0x6e8] sm:$0xff]
        %v5231 = vld [vmem:[%s11 + $0x6f0] sm:$0xff]
        %v5232 = vld [vmem:[%s11 + $0x6f8] sm:$0xff]
        %v5233 = vld [vmem:[%s11 + $0x700] sm:$0xff]
        %v5234 = vld [vmem:[%s11 + $0x708] sm:$0xff]
        %v5235 = vld [vmem:[%s11 + $0x710] sm:$0xff]
        %v5236 = vld [vmem:[%s11 + $0x718] sm:$0xff]
        %v5237 = vld [vmem:[%s11 + $0x720] sm:$0xff]
        %v5238 = vld [vmem:[%s11 + $0x728] sm:$0xff]
        %v5239 = vld [vmem:[%s11 + $0x730] sm:$0xff]
        %v5240 = vld [vmem:[%s11 + $0x738] sm:$0xff]
        %v5241 = vld [vmem:[%s11 + $0x740] sm:$0xff]
        %v5242 = vld [vmem:[%s11 + $0x748] sm:$0xff]
        %v5243 = vld [vmem:[%s11 + $0x750] sm:$0xff]
        %v5244 = vld [vmem:[%s11 + $0x758] sm:$0xff]
        %v5245 = vld [vmem:[%s11 + $0x760] sm:$0xff]
        %v5246 = vld [vmem:[%s11 + $0x768] sm:$0xff]
        %v5247 = vld [vmem:[%s11 + $0x770] sm:$0xff]
        %v5248 = vld [vmem:[%s11 + $0x778] sm:$0xff]
        %v5249 = vld [vmem:[%s11 + $0x780] sm:$0xff]
        %v5250 = vld [vmem:[%s11 + $0x788] sm:$0xff]
        %v5251 = vld [vmem:[%s11 + $0x790] sm:$0xff]
        %v5252 = vld [vmem:[%s11 + $0x798] sm:$0xff]
        %v5253 = vld [vmem:[%s11 + $0x7a0] sm:$0xff]
        %v5254 = vld [vmem:[%s11 + $0x7a8] sm:$0xff]
        %v5255 = vld [vmem:[%s11 + $0x7b0] sm:$0xff]
        %v5256 = vld [vmem:[%s11 + $0x7b8] sm:$0xff]
        %v5257 = vld [vmem:[%s11 + $0x7c0] sm:$0xff]
        %v5258 = vld [vmem:[%s11 + $0x7c8] sm:$0xff]
        %v5259 = vld [vmem:[%s11 + $0x7d0] sm:$0xff]
        %v5260 = vld [vmem:[%s11 + $0x7d8] sm:$0xff]
        %v5261 = vld [vmem:[%s11 + $0x7e0] sm:$0xff]
        %v5262 = vld [vmem:[%s11 + $0x7e8] sm:$0xff]
        %v5263 = vld [vmem:[%s11 + $0x7f0] sm:$0xff]
        %v5264 = vld [vmem:[%s11 + $0x7f8] sm:$0xff]
        %v5265 = vld [vmem:[#allocation18] sm:$0xf]
        %v5267 = vlaneseq
        %v5268 = vshrl.u32 %v5267, 7
        %v5269 = vsub.s32 0, %v5268
        %v5270 = vrot.slane %v5265, %v5269
        %v5271 = vlaneseq
        %v5272 = vshrl.u32 %v5271, 7
        %v5273 = vsub.s32 1, %v5272
        %v5274 = vrot.slane %v5265, %v5273
        %v5275 = vlaneseq
        %v5276 = vshrl.u32 %v5275, 7
        %v5277 = vsub.s32 2, %v5276
        %v5278 = vrot.slane %v5265, %v5277
        %v5279 = vlaneseq
        %v5280 = vshrl.u32 %v5279, 7
        %v5281 = vsub.s32 3, %v5280
        %v5282 = vrot.slane %v5265, %v5281
        %v5543 = vunpack.c.l.b16 %v5009
        %v5544 = vunpack.c.h.b16 %v5009
        %v5545 = vunpack.c.l.b16 %v5010
        %v5546 = vunpack.c.h.b16 %v5010
        %v5547 = vunpack.c.l.b16 %v5011
        %v5548 = vunpack.c.h.b16 %v5011
        %v5549 = vunpack.c.l.b16 %v5012
        %v5550 = vunpack.c.h.b16 %v5012
        %v5551 = vunpack.c.l.b16 %v5013
        %v5552 = vunpack.c.h.b16 %v5013
        %v5553 = vunpack.c.l.b16 %v5014
        %v5554 = vunpack.c.h.b16 %v5014
        %v5555 = vunpack.c.l.b16 %v5015
        %v5556 = vunpack.c.h.b16 %v5015
        %v5557 = vunpack.c.l.b16 %v5016
        %v5558 = vunpack.c.h.b16 %v5016
        %v5559 = vunpack.c.l.b16 %v5017
        %v5560 = vunpack.c.h.b16 %v5017
        %v5561 = vunpack.c.l.b16 %v5018
        %v5562 = vunpack.c.h.b16 %v5018
        %v5563 = vunpack.c.l.b16 %v5019
        %v5564 = vunpack.c.h.b16 %v5019
        %v5565 = vunpack.c.l.b16 %v5020
        %v5566 = vunpack.c.h.b16 %v5020
        %v5567 = vunpack.c.l.b16 %v5021
        %v5568 = vunpack.c.h.b16 %v5021
        %v5569 = vunpack.c.l.b16 %v5022
        %v5570 = vunpack.c.h.b16 %v5022
        %v5571 = vunpack.c.l.b16 %v5023
        %v5572 = vunpack.c.h.b16 %v5023
        %v5573 = vunpack.c.l.b16 %v5024
        %v5574 = vunpack.c.h.b16 %v5024
        %v5575 = vunpack.c.l.b16 %v5025
        %v5576 = vunpack.c.h.b16 %v5025
        %v5577 = vunpack.c.l.b16 %v5026
        %v5578 = vunpack.c.h.b16 %v5026
        %v5579 = vunpack.c.l.b16 %v5027
        %v5580 = vunpack.c.h.b16 %v5027
        %v5581 = vunpack.c.l.b16 %v5028
        %v5582 = vunpack.c.h.b16 %v5028
        %v5583 = vunpack.c.l.b16 %v5029
        %v5584 = vunpack.c.h.b16 %v5029
        %v5585 = vunpack.c.l.b16 %v5030
        %v5586 = vunpack.c.h.b16 %v5030
        %v5587 = vunpack.c.l.b16 %v5031
        %v5588 = vunpack.c.h.b16 %v5031
        %v5589 = vunpack.c.l.b16 %v5032
        %v5590 = vunpack.c.h.b16 %v5032
        %v5591 = vunpack.c.l.b16 %v5033
        %v5592 = vunpack.c.h.b16 %v5033
        %v5593 = vunpack.c.l.b16 %v5034
        %v5594 = vunpack.c.h.b16 %v5034
        %v5595 = vunpack.c.l.b16 %v5035
        %v5596 = vunpack.c.h.b16 %v5035
        %v5597 = vunpack.c.l.b16 %v5036
        %v5598 = vunpack.c.h.b16 %v5036
        %v5599 = vunpack.c.l.b16 %v5037
        %v5600 = vunpack.c.h.b16 %v5037
        %v5601 = vunpack.c.l.b16 %v5038
        %v5602 = vunpack.c.h.b16 %v5038
        %v5603 = vunpack.c.l.b16 %v5039
        %v5604 = vunpack.c.h.b16 %v5039
        %v5605 = vunpack.c.l.b16 %v5040
        %v5606 = vunpack.c.h.b16 %v5040
        %v5607 = vunpack.c.l.b16 %v5041
        %v5608 = vunpack.c.h.b16 %v5041
        %v5609 = vunpack.c.l.b16 %v5042
        %v5610 = vunpack.c.h.b16 %v5042
        %v5611 = vunpack.c.l.b16 %v5043
        %v5612 = vunpack.c.h.b16 %v5043
        %v5613 = vunpack.c.l.b16 %v5044
        %v5614 = vunpack.c.h.b16 %v5044
        %v5615 = vunpack.c.l.b16 %v5045
        %v5616 = vunpack.c.h.b16 %v5045
        %v5617 = vunpack.c.l.b16 %v5046
        %v5618 = vunpack.c.h.b16 %v5046
        %v5619 = vunpack.c.l.b16 %v5047
        %v5620 = vunpack.c.h.b16 %v5047
        %v5621 = vunpack.c.l.b16 %v5048
        %v5622 = vunpack.c.h.b16 %v5048
        %v5623 = vunpack.c.l.b16 %v5049
        %v5624 = vunpack.c.h.b16 %v5049
        %v5625 = vunpack.c.l.b16 %v5050
        %v5626 = vunpack.c.h.b16 %v5050
        %v5627 = vunpack.c.l.b16 %v5051
        %v5628 = vunpack.c.h.b16 %v5051
        %v5629 = vunpack.c.l.b16 %v5052
        %v5630 = vunpack.c.h.b16 %v5052
        %v5631 = vunpack.c.l.b16 %v5053
        %v5632 = vunpack.c.h.b16 %v5053
        %v5633 = vunpack.c.l.b16 %v5054
        %v5634 = vunpack.c.h.b16 %v5054
        %v5635 = vunpack.c.l.b16 %v5055
        %v5636 = vunpack.c.h.b16 %v5055
        %v5637 = vunpack.c.l.b16 %v5056
        %v5638 = vunpack.c.h.b16 %v5056
        %v5639 = vunpack.c.l.b16 %v5057
        %v5640 = vunpack.c.h.b16 %v5057
        %v5641 = vunpack.c.l.b16 %v5058
        %v5642 = vunpack.c.h.b16 %v5058
        %v5643 = vunpack.c.l.b16 %v5059
        %v5644 = vunpack.c.h.b16 %v5059
        %v5645 = vunpack.c.l.b16 %v5060
        %v5646 = vunpack.c.h.b16 %v5060
        %v5647 = vunpack.c.l.b16 %v5061
        %v5648 = vunpack.c.h.b16 %v5061
        %v5649 = vunpack.c.l.b16 %v5062
        %v5650 = vunpack.c.h.b16 %v5062
        %v5651 = vunpack.c.l.b16 %v5063
        %v5652 = vunpack.c.h.b16 %v5063
        %v5653 = vunpack.c.l.b16 %v5064
        %v5654 = vunpack.c.h.b16 %v5064
        %v5655 = vunpack.c.l.b16 %v5065
        %v5656 = vunpack.c.h.b16 %v5065
        %v5657 = vunpack.c.l.b16 %v5066
        %v5658 = vunpack.c.h.b16 %v5066
        %v5659 = vunpack.c.l.b16 %v5067
        %v5660 = vunpack.c.h.b16 %v5067
        %v5661 = vunpack.c.l.b16 %v5068
        %v5662 = vunpack.c.h.b16 %v5068
        %v5663 = vunpack.c.l.b16 %v5069
        %v5664 = vunpack.c.h.b16 %v5069
        %v5665 = vunpack.c.l.b16 %v5070
        %v5666 = vunpack.c.h.b16 %v5070
        %v5667 = vunpack.c.l.b16 %v5071
        %v5668 = vunpack.c.h.b16 %v5071
        %v5669 = vunpack.c.l.b16 %v5072
        %v5670 = vunpack.c.h.b16 %v5072
        %v5671 = vunpack.c.l.b16 %v5073
        %v5672 = vunpack.c.h.b16 %v5073
        %v5673 = vunpack.c.l.b16 %v5074
        %v5674 = vunpack.c.h.b16 %v5074
        %v5675 = vunpack.c.l.b16 %v5075
        %v5676 = vunpack.c.h.b16 %v5075
        %v5677 = vunpack.c.l.b16 %v5076
        %v5678 = vunpack.c.h.b16 %v5076
        %v5679 = vunpack.c.l.b16 %v5077
        %v5680 = vunpack.c.h.b16 %v5077
        %v5681 = vunpack.c.l.b16 %v5078
        %v5682 = vunpack.c.h.b16 %v5078
        %v5683 = vunpack.c.l.b16 %v5079
        %v5684 = vunpack.c.h.b16 %v5079
        %v5685 = vunpack.c.l.b16 %v5080
        %v5686 = vunpack.c.h.b16 %v5080
        %v5687 = vunpack.c.l.b16 %v5081
        %v5688 = vunpack.c.h.b16 %v5081
        %v5689 = vunpack.c.l.b16 %v5082
        %v5690 = vunpack.c.h.b16 %v5082
        %v5691 = vunpack.c.l.b16 %v5083
        %v5692 = vunpack.c.h.b16 %v5083
        %v5693 = vunpack.c.l.b16 %v5084
        %v5694 = vunpack.c.h.b16 %v5084
        %v5695 = vunpack.c.l.b16 %v5085
        %v5696 = vunpack.c.h.b16 %v5085
        %v5697 = vunpack.c.l.b16 %v5086
        %v5698 = vunpack.c.h.b16 %v5086
        %v5699 = vunpack.c.l.b16 %v5087
        %v5700 = vunpack.c.h.b16 %v5087
        %v5701 = vunpack.c.l.b16 %v5088
        %v5702 = vunpack.c.h.b16 %v5088
        %v5703 = vunpack.c.l.b16 %v5089
        %v5704 = vunpack.c.h.b16 %v5089
        %v5705 = vunpack.c.l.b16 %v5090
        %v5706 = vunpack.c.h.b16 %v5090
        %v5707 = vunpack.c.l.b16 %v5091
        %v5708 = vunpack.c.h.b16 %v5091
        %v5709 = vunpack.c.l.b16 %v5092
        %v5710 = vunpack.c.h.b16 %v5092
        %v5711 = vunpack.c.l.b16 %v5093
        %v5712 = vunpack.c.h.b16 %v5093
        %v5713 = vunpack.c.l.b16 %v5094
        %v5714 = vunpack.c.h.b16 %v5094
        %v5715 = vunpack.c.l.b16 %v5095
        %v5716 = vunpack.c.h.b16 %v5095
        %v5717 = vunpack.c.l.b16 %v5096
        %v5718 = vunpack.c.h.b16 %v5096
        %v5719 = vunpack.c.l.b16 %v5097
        %v5720 = vunpack.c.h.b16 %v5097
        %v5721 = vunpack.c.l.b16 %v5098
        %v5722 = vunpack.c.h.b16 %v5098
        %v5723 = vunpack.c.l.b16 %v5099
        %v5724 = vunpack.c.h.b16 %v5099
        %v5725 = vunpack.c.l.b16 %v5100
        %v5726 = vunpack.c.h.b16 %v5100
        %v5727 = vunpack.c.l.b16 %v5101
        %v5728 = vunpack.c.h.b16 %v5101
        %v5729 = vunpack.c.l.b16 %v5102
        %v5730 = vunpack.c.h.b16 %v5102
        %v5731 = vunpack.c.l.b16 %v5103
        %v5732 = vunpack.c.h.b16 %v5103
        %v5733 = vunpack.c.l.b16 %v5104
        %v5734 = vunpack.c.h.b16 %v5104
        %v5735 = vunpack.c.l.b16 %v5105
        %v5736 = vunpack.c.h.b16 %v5105
        %v5737 = vunpack.c.l.b16 %v5106
        %v5738 = vunpack.c.h.b16 %v5106
        %v5739 = vunpack.c.l.b16 %v5107
        %v5740 = vunpack.c.h.b16 %v5107
        %v5741 = vunpack.c.l.b16 %v5108
        %v5742 = vunpack.c.h.b16 %v5108
        %v5743 = vunpack.c.l.b16 %v5109
        %v5744 = vunpack.c.h.b16 %v5109
        %v5745 = vunpack.c.l.b16 %v5110
        %v5746 = vunpack.c.h.b16 %v5110
        %v5747 = vunpack.c.l.b16 %v5111
        %v5748 = vunpack.c.h.b16 %v5111
        %v5749 = vunpack.c.l.b16 %v5112
        %v5750 = vunpack.c.h.b16 %v5112
        %v5751 = vunpack.c.l.b16 %v5113
        %v5752 = vunpack.c.h.b16 %v5113
        %v5753 = vunpack.c.l.b16 %v5114
        %v5754 = vunpack.c.h.b16 %v5114
        %v5755 = vunpack.c.l.b16 %v5115
        %v5756 = vunpack.c.h.b16 %v5115
        %v5757 = vunpack.c.l.b16 %v5116
        %v5758 = vunpack.c.h.b16 %v5116
        %v5759 = vunpack.c.l.b16 %v5117
        %v5760 = vunpack.c.h.b16 %v5117
        %v5761 = vunpack.c.l.b16 %v5118
        %v5762 = vunpack.c.h.b16 %v5118
        %v5763 = vunpack.c.l.b16 %v5119
        %v5764 = vunpack.c.h.b16 %v5119
        %v5765 = vunpack.c.l.b16 %v5120
        %v5766 = vunpack.c.h.b16 %v5120
        %v5767 = vunpack.c.l.b16 %v5121
        %v5768 = vunpack.c.h.b16 %v5121
        %v5769 = vunpack.c.l.b16 %v5122
        %v5770 = vunpack.c.h.b16 %v5122
        %v5771 = vunpack.c.l.b16 %v5123
        %v5772 = vunpack.c.h.b16 %v5123
        %v5773 = vunpack.c.l.b16 %v5124
        %v5774 = vunpack.c.h.b16 %v5124
        %v5775 = vunpack.c.l.b16 %v5125
        %v5776 = vunpack.c.h.b16 %v5125
        %v5777 = vunpack.c.l.b16 %v5126
        %v5778 = vunpack.c.h.b16 %v5126
        %v5779 = vunpack.c.l.b16 %v5127
        %v5780 = vunpack.c.h.b16 %v5127
        %v5781 = vunpack.c.l.b16 %v5128
        %v5782 = vunpack.c.h.b16 %v5128
        %v5783 = vunpack.c.l.b16 %v5129
        %v5784 = vunpack.c.h.b16 %v5129
        %v5785 = vunpack.c.l.b16 %v5130
        %v5786 = vunpack.c.h.b16 %v5130
        %v5787 = vunpack.c.l.b16 %v5131
        %v5788 = vunpack.c.h.b16 %v5131
        %v5789 = vunpack.c.l.b16 %v5132
        %v5790 = vunpack.c.h.b16 %v5132
        %v5791 = vunpack.c.l.b16 %v5133
        %v5792 = vunpack.c.h.b16 %v5133
        %v5793 = vunpack.c.l.b16 %v5134
        %v5794 = vunpack.c.h.b16 %v5134
        %v5795 = vunpack.c.l.b16 %v5135
        %v5796 = vunpack.c.h.b16 %v5135
        %v5797 = vunpack.c.l.b16 %v5136
        %v5798 = vunpack.c.h.b16 %v5136
        %v5799 = vunpack.c.l.b16 %v5137
        %v5800 = vunpack.c.h.b16 %v5137
        %v5801 = vunpack.c.l.b16 %v5138
        %v5802 = vunpack.c.h.b16 %v5138
        %v5803 = vunpack.c.l.b16 %v5139
        %v5804 = vunpack.c.h.b16 %v5139
        %v5805 = vunpack.c.l.b16 %v5140
        %v5806 = vunpack.c.h.b16 %v5140
        %v5807 = vunpack.c.l.b16 %v5141
        %v5808 = vunpack.c.h.b16 %v5141
        %v5809 = vunpack.c.l.b16 %v5142
        %v5810 = vunpack.c.h.b16 %v5142
        %v5811 = vunpack.c.l.b16 %v5143
        %v5812 = vunpack.c.h.b16 %v5143
        %v5813 = vunpack.c.l.b16 %v5144
        %v5814 = vunpack.c.h.b16 %v5144
        %v5815 = vunpack.c.l.b16 %v5145
        %v5816 = vunpack.c.h.b16 %v5145
        %v5817 = vunpack.c.l.b16 %v5146
        %v5818 = vunpack.c.h.b16 %v5146
        %v5819 = vunpack.c.l.b16 %v5147
        %v5820 = vunpack.c.h.b16 %v5147
        %v5821 = vunpack.c.l.b16 %v5148
        %v5822 = vunpack.c.h.b16 %v5148
        %v5823 = vunpack.c.l.b16 %v5149
        %v5824 = vunpack.c.h.b16 %v5149
        %v5825 = vunpack.c.l.b16 %v5150
        %v5826 = vunpack.c.h.b16 %v5150
        %v5827 = vunpack.c.l.b16 %v5151
        %v5828 = vunpack.c.h.b16 %v5151
        %v5829 = vunpack.c.l.b16 %v5152
        %v5830 = vunpack.c.h.b16 %v5152
        %v5831 = vunpack.c.l.b16 %v5153
        %v5832 = vunpack.c.h.b16 %v5153
        %v5833 = vunpack.c.l.b16 %v5154
        %v5834 = vunpack.c.h.b16 %v5154
        %v5835 = vunpack.c.l.b16 %v5155
        %v5836 = vunpack.c.h.b16 %v5155
        %v5837 = vunpack.c.l.b16 %v5156
        %v5838 = vunpack.c.h.b16 %v5156
        %v5839 = vunpack.c.l.b16 %v5157
        %v5840 = vunpack.c.h.b16 %v5157
        %v5841 = vunpack.c.l.b16 %v5158
        %v5842 = vunpack.c.h.b16 %v5158
        %v5843 = vunpack.c.l.b16 %v5159
        %v5844 = vunpack.c.h.b16 %v5159
        %v5845 = vunpack.c.l.b16 %v5160
        %v5846 = vunpack.c.h.b16 %v5160
        %v5847 = vunpack.c.l.b16 %v5161
        %v5848 = vunpack.c.h.b16 %v5161
        %v5849 = vunpack.c.l.b16 %v5162
        %v5850 = vunpack.c.h.b16 %v5162
        %v5851 = vunpack.c.l.b16 %v5163
        %v5852 = vunpack.c.h.b16 %v5163
        %v5853 = vunpack.c.l.b16 %v5164
        %v5854 = vunpack.c.h.b16 %v5164
        %v5855 = vunpack.c.l.b16 %v5165
        %v5856 = vunpack.c.h.b16 %v5165
        %v5857 = vunpack.c.l.b16 %v5166
        %v5858 = vunpack.c.h.b16 %v5166
        %v5859 = vunpack.c.l.b16 %v5167
        %v5860 = vunpack.c.h.b16 %v5167
        %v5861 = vunpack.c.l.b16 %v5168
        %v5862 = vunpack.c.h.b16 %v5168
        %v5863 = vunpack.c.l.b16 %v5169
        %v5864 = vunpack.c.h.b16 %v5169
        %v5865 = vunpack.c.l.b16 %v5170
        %v5866 = vunpack.c.h.b16 %v5170
        %v5867 = vunpack.c.l.b16 %v5171
        %v5868 = vunpack.c.h.b16 %v5171
        %v5869 = vunpack.c.l.b16 %v5172
        %v5870 = vunpack.c.h.b16 %v5172
        %v5871 = vunpack.c.l.b16 %v5173
        %v5872 = vunpack.c.h.b16 %v5173
        %v5873 = vunpack.c.l.b16 %v5174
        %v5874 = vunpack.c.h.b16 %v5174
        %v5875 = vunpack.c.l.b16 %v5175
        %v5876 = vunpack.c.h.b16 %v5175
        %v5877 = vunpack.c.l.b16 %v5176
        %v5878 = vunpack.c.h.b16 %v5176
        %v5879 = vunpack.c.l.b16 %v5177
        %v5880 = vunpack.c.h.b16 %v5177
        %v5881 = vunpack.c.l.b16 %v5178
        %v5882 = vunpack.c.h.b16 %v5178
        %v5883 = vunpack.c.l.b16 %v5179
        %v5884 = vunpack.c.h.b16 %v5179
        %v5885 = vunpack.c.l.b16 %v5180
        %v5886 = vunpack.c.h.b16 %v5180
        %v5887 = vunpack.c.l.b16 %v5181
        %v5888 = vunpack.c.h.b16 %v5181
        %v5889 = vunpack.c.l.b16 %v5182
        %v5890 = vunpack.c.h.b16 %v5182
        %v5891 = vunpack.c.l.b16 %v5183
        %v5892 = vunpack.c.h.b16 %v5183
        %v5893 = vunpack.c.l.b16 %v5184
        %v5894 = vunpack.c.h.b16 %v5184
        %v5895 = vunpack.c.l.b16 %v5185
        %v5896 = vunpack.c.h.b16 %v5185
        %v5897 = vunpack.c.l.b16 %v5186
        %v5898 = vunpack.c.h.b16 %v5186
        %v5899 = vunpack.c.l.b16 %v5187
        %v5900 = vunpack.c.h.b16 %v5187
        %v5901 = vunpack.c.l.b16 %v5188
        %v5902 = vunpack.c.h.b16 %v5188
        %v5903 = vunpack.c.l.b16 %v5189
        %v5904 = vunpack.c.h.b16 %v5189
        %v5905 = vunpack.c.l.b16 %v5190
        %v5906 = vunpack.c.h.b16 %v5190
        %v5907 = vunpack.c.l.b16 %v5191
        %v5908 = vunpack.c.h.b16 %v5191
        %v5909 = vunpack.c.l.b16 %v5192
        %v5910 = vunpack.c.h.b16 %v5192
        %v5911 = vunpack.c.l.b16 %v5193
        %v5912 = vunpack.c.h.b16 %v5193
        %v5913 = vunpack.c.l.b16 %v5194
        %v5914 = vunpack.c.h.b16 %v5194
        %v5915 = vunpack.c.l.b16 %v5195
        %v5916 = vunpack.c.h.b16 %v5195
        %v5917 = vunpack.c.l.b16 %v5196
        %v5918 = vunpack.c.h.b16 %v5196
        %v5919 = vunpack.c.l.b16 %v5197
        %v5920 = vunpack.c.h.b16 %v5197
        %v5921 = vunpack.c.l.b16 %v5198
        %v5922 = vunpack.c.h.b16 %v5198
        %v5923 = vunpack.c.l.b16 %v5199
        %v5924 = vunpack.c.h.b16 %v5199
        %v5925 = vunpack.c.l.b16 %v5200
        %v5926 = vunpack.c.h.b16 %v5200
        %v5927 = vunpack.c.l.b16 %v5201
        %v5928 = vunpack.c.h.b16 %v5201
        %v5929 = vunpack.c.l.b16 %v5202
        %v5930 = vunpack.c.h.b16 %v5202
        %v5931 = vunpack.c.l.b16 %v5203
        %v5932 = vunpack.c.h.b16 %v5203
        %v5933 = vunpack.c.l.b16 %v5204
        %v5934 = vunpack.c.h.b16 %v5204
        %v5935 = vunpack.c.l.b16 %v5205
        %v5936 = vunpack.c.h.b16 %v5205
        %v5937 = vunpack.c.l.b16 %v5206
        %v5938 = vunpack.c.h.b16 %v5206
        %v5939 = vunpack.c.l.b16 %v5207
        %v5940 = vunpack.c.h.b16 %v5207
        %v5941 = vunpack.c.l.b16 %v5208
        %v5942 = vunpack.c.h.b16 %v5208
        %v5943 = vunpack.c.l.b16 %v5209
        %v5944 = vunpack.c.h.b16 %v5209
        %v5945 = vunpack.c.l.b16 %v5210
        %v5946 = vunpack.c.h.b16 %v5210
        %v5947 = vunpack.c.l.b16 %v5211
        %v5948 = vunpack.c.h.b16 %v5211
        %v5949 = vunpack.c.l.b16 %v5212
        %v5950 = vunpack.c.h.b16 %v5212
        %v5951 = vunpack.c.l.b16 %v5213
        %v5952 = vunpack.c.h.b16 %v5213
        %v5953 = vunpack.c.l.b16 %v5214
        %v5954 = vunpack.c.h.b16 %v5214
        %v5955 = vunpack.c.l.b16 %v5215
        %v5956 = vunpack.c.h.b16 %v5215
        %v5957 = vunpack.c.l.b16 %v5216
        %v5958 = vunpack.c.h.b16 %v5216
        %v5959 = vunpack.c.l.b16 %v5217
        %v5960 = vunpack.c.h.b16 %v5217
        %v5961 = vunpack.c.l.b16 %v5218
        %v5962 = vunpack.c.h.b16 %v5218
        %v5963 = vunpack.c.l.b16 %v5219
        %v5964 = vunpack.c.h.b16 %v5219
        %v5965 = vunpack.c.l.b16 %v5220
        %v5966 = vunpack.c.h.b16 %v5220
        %v5967 = vunpack.c.l.b16 %v5221
        %v5968 = vunpack.c.h.b16 %v5221
        %v5969 = vunpack.c.l.b16 %v5222
        %v5970 = vunpack.c.h.b16 %v5222
        %v5971 = vunpack.c.l.b16 %v5223
        %v5972 = vunpack.c.h.b16 %v5223
        %v5973 = vunpack.c.l.b16 %v5224
        %v5974 = vunpack.c.h.b16 %v5224
        %v5975 = vunpack.c.l.b16 %v5225
        %v5976 = vunpack.c.h.b16 %v5225
        %v5977 = vunpack.c.l.b16 %v5226
        %v5978 = vunpack.c.h.b16 %v5226
        %v5979 = vunpack.c.l.b16 %v5227
        %v5980 = vunpack.c.h.b16 %v5227
        %v5981 = vunpack.c.l.b16 %v5228
        %v5982 = vunpack.c.h.b16 %v5228
        %v5983 = vunpack.c.l.b16 %v5229
        %v5984 = vunpack.c.h.b16 %v5229
        %v5985 = vunpack.c.l.b16 %v5230
        %v5986 = vunpack.c.h.b16 %v5230
        %v5987 = vunpack.c.l.b16 %v5231
        %v5988 = vunpack.c.h.b16 %v5231
        %v5989 = vunpack.c.l.b16 %v5232
        %v5990 = vunpack.c.h.b16 %v5232
        %v5991 = vunpack.c.l.b16 %v5233
        %v5992 = vunpack.c.h.b16 %v5233
        %v5993 = vunpack.c.l.b16 %v5234
        %v5994 = vunpack.c.h.b16 %v5234
        %v5995 = vunpack.c.l.b16 %v5235
        %v5996 = vunpack.c.h.b16 %v5235
        %v5997 = vunpack.c.l.b16 %v5236
        %v5998 = vunpack.c.h.b16 %v5236
        %v5999 = vunpack.c.l.b16 %v5237
        %v6000 = vunpack.c.h.b16 %v5237
        %v6001 = vunpack.c.l.b16 %v5238
        %v6002 = vunpack.c.h.b16 %v5238
        %v6003 = vunpack.c.l.b16 %v5239
        %v6004 = vunpack.c.h.b16 %v5239
        %v6005 = vunpack.c.l.b16 %v5240
        %v6006 = vunpack.c.h.b16 %v5240
        %v6007 = vunpack.c.l.b16 %v5241
        %v6008 = vunpack.c.h.b16 %v5241
        %v6009 = vunpack.c.l.b16 %v5242
        %v6010 = vunpack.c.h.b16 %v5242
        %v6011 = vunpack.c.l.b16 %v5243
        %v6012 = vunpack.c.h.b16 %v5243
        %v6013 = vunpack.c.l.b16 %v5244
        %v6014 = vunpack.c.h.b16 %v5244
        %v6015 = vunpack.c.l.b16 %v5245
        %v6016 = vunpack.c.h.b16 %v5245
        %v6017 = vunpack.c.l.b16 %v5246
        %v6018 = vunpack.c.h.b16 %v5246
        %v6019 = vunpack.c.l.b16 %v5247
        %v6020 = vunpack.c.h.b16 %v5247
        %v6021 = vunpack.c.l.b16 %v5248
        %v6022 = vunpack.c.h.b16 %v5248
        %v6023 = vunpack.c.l.b16 %v5249
        %v6024 = vunpack.c.h.b16 %v5249
        %v6025 = vunpack.c.l.b16 %v5250
        %v6026 = vunpack.c.h.b16 %v5250
        %v6027 = vunpack.c.l.b16 %v5251
        %v6028 = vunpack.c.h.b16 %v5251
        %v6029 = vunpack.c.l.b16 %v5252
        %v6030 = vunpack.c.h.b16 %v5252
        %v6031 = vunpack.c.l.b16 %v5253
        %v6032 = vunpack.c.h.b16 %v5253
        %v6033 = vunpack.c.l.b16 %v5254
        %v6034 = vunpack.c.h.b16 %v5254
        %v6035 = vunpack.c.l.b16 %v5255
        %v6036 = vunpack.c.h.b16 %v5255
        %v6037 = vunpack.c.l.b16 %v5256
        %v6038 = vunpack.c.h.b16 %v5256
        %v6039 = vunpack.c.l.b16 %v5257
        %v6040 = vunpack.c.h.b16 %v5257
        %v6041 = vunpack.c.l.b16 %v5258
        %v6042 = vunpack.c.h.b16 %v5258
        %v6043 = vunpack.c.l.b16 %v5259
        %v6044 = vunpack.c.h.b16 %v5259
        %v6045 = vunpack.c.l.b16 %v5260
        %v6046 = vunpack.c.h.b16 %v5260
        %v6047 = vunpack.c.l.b16 %v5261
        %v6048 = vunpack.c.h.b16 %v5261
        %v6049 = vunpack.c.l.b16 %v5262
        %v6050 = vunpack.c.h.b16 %v5262
        %v6051 = vunpack.c.l.b16 %v5263
        %v6052 = vunpack.c.h.b16 %v5263
        %v6053 = vunpack.c.l.b16 %v5264
        %v6054 = vunpack.c.h.b16 %v5264
        %v6055 = vpack.c.b16 %v5547, %v5543
        %v6056 = vpack.c.b16 %v5548, %v5544
        %v6057 = vpack.c.b16 %v5549, %v5545
        %v6058 = vpack.c.b16 %v5550, %v5546
        %v6059 = vpack.c.b16 %v5555, %v5551
        %v6060 = vpack.c.b16 %v5556, %v5552
        %v6061 = vpack.c.b16 %v5557, %v5553
        %v6062 = vpack.c.b16 %v5558, %v5554
        %v6063 = vpack.c.b16 %v5563, %v5559
        %v6064 = vpack.c.b16 %v5564, %v5560
        %v6065 = vpack.c.b16 %v5565, %v5561
        %v6066 = vpack.c.b16 %v5566, %v5562
        %v6067 = vpack.c.b16 %v5571, %v5567
        %v6068 = vpack.c.b16 %v5572, %v5568
        %v6069 = vpack.c.b16 %v5573, %v5569
        %v6070 = vpack.c.b16 %v5574, %v5570
        %v6071 = vpack.c.b16 %v5579, %v5575
        %v6072 = vpack.c.b16 %v5580, %v5576
        %v6073 = vpack.c.b16 %v5581, %v5577
        %v6074 = vpack.c.b16 %v5582, %v5578
        %v6075 = vpack.c.b16 %v5587, %v5583
        %v6076 = vpack.c.b16 %v5588, %v5584
        %v6077 = vpack.c.b16 %v5589, %v5585
        %v6078 = vpack.c.b16 %v5590, %v5586
        %v6079 = vpack.c.b16 %v5595, %v5591
        %v6080 = vpack.c.b16 %v5596, %v5592
        %v6081 = vpack.c.b16 %v5597, %v5593
        %v6082 = vpack.c.b16 %v5598, %v5594
        %v6083 = vpack.c.b16 %v5603, %v5599
        %v6084 = vpack.c.b16 %v5604, %v5600
        %v6085 = vpack.c.b16 %v5605, %v5601
        %v6086 = vpack.c.b16 %v5606, %v5602
        %v6087 = vpack.c.b16 %v5611, %v5607
        %v6088 = vpack.c.b16 %v5612, %v5608
        %v6089 = vpack.c.b16 %v5613, %v5609
        %v6090 = vpack.c.b16 %v5614, %v5610
        %v6091 = vpack.c.b16 %v5619, %v5615
        %v6092 = vpack.c.b16 %v5620, %v5616
        %v6093 = vpack.c.b16 %v5621, %v5617
        %v6094 = vpack.c.b16 %v5622, %v5618
        %v6095 = vpack.c.b16 %v5627, %v5623
        %v6096 = vpack.c.b16 %v5628, %v5624
        %v6097 = vpack.c.b16 %v5629, %v5625
        %v6098 = vpack.c.b16 %v5630, %v5626
        %v6099 = vpack.c.b16 %v5635, %v5631
        %v6100 = vpack.c.b16 %v5636, %v5632
        %v6101 = vpack.c.b16 %v5637, %v5633
        %v6102 = vpack.c.b16 %v5638, %v5634
        %v6103 = vpack.c.b16 %v5643, %v5639
        %v6104 = vpack.c.b16 %v5644, %v5640
        %v6105 = vpack.c.b16 %v5645, %v5641
        %v6106 = vpack.c.b16 %v5646, %v5642
        %v6107 = vpack.c.b16 %v5651, %v5647
        %v6108 = vpack.c.b16 %v5652, %v5648
        %v6109 = vpack.c.b16 %v5653, %v5649
        %v6110 = vpack.c.b16 %v5654, %v5650
        %v6111 = vpack.c.b16 %v5659, %v5655
        %v6112 = vpack.c.b16 %v5660, %v5656
        %v6113 = vpack.c.b16 %v5661, %v5657
        %v6114 = vpack.c.b16 %v5662, %v5658
        %v6115 = vpack.c.b16 %v5667, %v5663
        %v6116 = vpack.c.b16 %v5668, %v5664
        %v6117 = vpack.c.b16 %v5669, %v5665
        %v6118 = vpack.c.b16 %v5670, %v5666
        %v6119 = vpack.c.b16 %v5675, %v5671
        %v6120 = vpack.c.b16 %v5676, %v5672
        %v6121 = vpack.c.b16 %v5677, %v5673
        %v6122 = vpack.c.b16 %v5678, %v5674
        %v6123 = vpack.c.b16 %v5683, %v5679
        %v6124 = vpack.c.b16 %v5684, %v5680
        %v6125 = vpack.c.b16 %v5685, %v5681
        %v6126 = vpack.c.b16 %v5686, %v5682
        %v6127 = vpack.c.b16 %v5691, %v5687
        %v6128 = vpack.c.b16 %v5692, %v5688
        %v6129 = vpack.c.b16 %v5693, %v5689
        %v6130 = vpack.c.b16 %v5694, %v5690
        %v6131 = vpack.c.b16 %v5699, %v5695
        %v6132 = vpack.c.b16 %v5700, %v5696
        %v6133 = vpack.c.b16 %v5701, %v5697
        %v6134 = vpack.c.b16 %v5702, %v5698
        %v6135 = vpack.c.b16 %v5707, %v5703
        %v6136 = vpack.c.b16 %v5708, %v5704
        %v6137 = vpack.c.b16 %v5709, %v5705
        %v6138 = vpack.c.b16 %v5710, %v5706
        %v6139 = vpack.c.b16 %v5715, %v5711
        %v6140 = vpack.c.b16 %v5716, %v5712
        %v6141 = vpack.c.b16 %v5717, %v5713
        %v6142 = vpack.c.b16 %v5718, %v5714
        %v6143 = vpack.c.b16 %v5723, %v5719
        %v6144 = vpack.c.b16 %v5724, %v5720
        %v6145 = vpack.c.b16 %v5725, %v5721
        %v6146 = vpack.c.b16 %v5726, %v5722
        %v6147 = vpack.c.b16 %v5731, %v5727
        %v6148 = vpack.c.b16 %v5732, %v5728
        %v6149 = vpack.c.b16 %v5733, %v5729
        %v6150 = vpack.c.b16 %v5734, %v5730
        %v6151 = vpack.c.b16 %v5739, %v5735
        %v6152 = vpack.c.b16 %v5740, %v5736
        %v6153 = vpack.c.b16 %v5741, %v5737
        %v6154 = vpack.c.b16 %v5742, %v5738
        %v6155 = vpack.c.b16 %v5747, %v5743
        %v6156 = vpack.c.b16 %v5748, %v5744
        %v6157 = vpack.c.b16 %v5749, %v5745
        %v6158 = vpack.c.b16 %v5750, %v5746
        %v6159 = vpack.c.b16 %v5755, %v5751
        %v6160 = vpack.c.b16 %v5756, %v5752
        %v6161 = vpack.c.b16 %v5757, %v5753
        %v6162 = vpack.c.b16 %v5758, %v5754
        %v6163 = vpack.c.b16 %v5763, %v5759
        %v6164 = vpack.c.b16 %v5764, %v5760
        %v6165 = vpack.c.b16 %v5765, %v5761
        %v6166 = vpack.c.b16 %v5766, %v5762
        %v6167 = vpack.c.b16 %v5771, %v5767
        %v6168 = vpack.c.b16 %v5772, %v5768
        %v6169 = vpack.c.b16 %v5773, %v5769
        %v6170 = vpack.c.b16 %v5774, %v5770
        %v6171 = vpack.c.b16 %v5779, %v5775
        %v6172 = vpack.c.b16 %v5780, %v5776
        %v6173 = vpack.c.b16 %v5781, %v5777
        %v6174 = vpack.c.b16 %v5782, %v5778
        %v6175 = vpack.c.b16 %v5787, %v5783
        %v6176 = vpack.c.b16 %v5788, %v5784
        %v6177 = vpack.c.b16 %v5789, %v5785
        %v6178 = vpack.c.b16 %v5790, %v5786
        %v6179 = vpack.c.b16 %v5795, %v5791
        %v6180 = vpack.c.b16 %v5796, %v5792
        %v6181 = vpack.c.b16 %v5797, %v5793
        %v6182 = vpack.c.b16 %v5798, %v5794
        %v6183 = vpack.c.b16 %v5803, %v5799
        %v6184 = vpack.c.b16 %v5804, %v5800
        %v6185 = vpack.c.b16 %v5805, %v5801
        %v6186 = vpack.c.b16 %v5806, %v5802
        %v6187 = vpack.c.b16 %v5811, %v5807
        %v6188 = vpack.c.b16 %v5812, %v5808
        %v6189 = vpack.c.b16 %v5813, %v5809
        %v6190 = vpack.c.b16 %v5814, %v5810
        %v6191 = vpack.c.b16 %v5819, %v5815
        %v6192 = vpack.c.b16 %v5820, %v5816
        %v6193 = vpack.c.b16 %v5821, %v5817
        %v6194 = vpack.c.b16 %v5822, %v5818
        %v6195 = vpack.c.b16 %v5827, %v5823
        %v6196 = vpack.c.b16 %v5828, %v5824
        %v6197 = vpack.c.b16 %v5829, %v5825
        %v6198 = vpack.c.b16 %v5830, %v5826
        %v6199 = vpack.c.b16 %v5835, %v5831
        %v6200 = vpack.c.b16 %v5836, %v5832
        %v6201 = vpack.c.b16 %v5837, %v5833
        %v6202 = vpack.c.b16 %v5838, %v5834
        %v6203 = vpack.c.b16 %v5843, %v5839
        %v6204 = vpack.c.b16 %v5844, %v5840
        %v6205 = vpack.c.b16 %v5845, %v5841
        %v6206 = vpack.c.b16 %v5846, %v5842
        %v6207 = vpack.c.b16 %v5851, %v5847
        %v6208 = vpack.c.b16 %v5852, %v5848
        %v6209 = vpack.c.b16 %v5853, %v5849
        %v6210 = vpack.c.b16 %v5854, %v5850
        %v6211 = vpack.c.b16 %v5859, %v5855
        %v6212 = vpack.c.b16 %v5860, %v5856
        %v6213 = vpack.c.b16 %v5861, %v5857
        %v6214 = vpack.c.b16 %v5862, %v5858
        %v6215 = vpack.c.b16 %v5867, %v5863
        %v6216 = vpack.c.b16 %v5868, %v5864
        %v6217 = vpack.c.b16 %v5869, %v5865
        %v6218 = vpack.c.b16 %v5870, %v5866
        %v6219 = vpack.c.b16 %v5875, %v5871
        %v6220 = vpack.c.b16 %v5876, %v5872
        %v6221 = vpack.c.b16 %v5877, %v5873
        %v6222 = vpack.c.b16 %v5878, %v5874
        %v6223 = vpack.c.b16 %v5883, %v5879
        %v6224 = vpack.c.b16 %v5884, %v5880
        %v6225 = vpack.c.b16 %v5885, %v5881
        %v6226 = vpack.c.b16 %v5886, %v5882
        %v6227 = vpack.c.b16 %v5891, %v5887
        %v6228 = vpack.c.b16 %v5892, %v5888
        %v6229 = vpack.c.b16 %v5893, %v5889
        %v6230 = vpack.c.b16 %v5894, %v5890
        %v6231 = vpack.c.b16 %v5899, %v5895
        %v6232 = vpack.c.b16 %v5900, %v5896
        %v6233 = vpack.c.b16 %v5901, %v5897
        %v6234 = vpack.c.b16 %v5902, %v5898
        %v6235 = vpack.c.b16 %v5907, %v5903
        %v6236 = vpack.c.b16 %v5908, %v5904
        %v6237 = vpack.c.b16 %v5909, %v5905
        %v6238 = vpack.c.b16 %v5910, %v5906
        %v6239 = vpack.c.b16 %v5915, %v5911
        %v6240 = vpack.c.b16 %v5916, %v5912
        %v6241 = vpack.c.b16 %v5917, %v5913
        %v6242 = vpack.c.b16 %v5918, %v5914
        %v6243 = vpack.c.b16 %v5923, %v5919
        %v6244 = vpack.c.b16 %v5924, %v5920
        %v6245 = vpack.c.b16 %v5925, %v5921
        %v6246 = vpack.c.b16 %v5926, %v5922
        %v6247 = vpack.c.b16 %v5931, %v5927
        %v6248 = vpack.c.b16 %v5932, %v5928
        %v6249 = vpack.c.b16 %v5933, %v5929
        %v6250 = vpack.c.b16 %v5934, %v5930
        %v6251 = vpack.c.b16 %v5939, %v5935
        %v6252 = vpack.c.b16 %v5940, %v5936
        %v6253 = vpack.c.b16 %v5941, %v5937
        %v6254 = vpack.c.b16 %v5942, %v5938
        %v6255 = vpack.c.b16 %v5947, %v5943
        %v6256 = vpack.c.b16 %v5948, %v5944
        %v6257 = vpack.c.b16 %v5949, %v5945
        %v6258 = vpack.c.b16 %v5950, %v5946
        %v6259 = vpack.c.b16 %v5955, %v5951
        %v6260 = vpack.c.b16 %v5956, %v5952
        %v6261 = vpack.c.b16 %v5957, %v5953
        %v6262 = vpack.c.b16 %v5958, %v5954
        %v6263 = vpack.c.b16 %v5963, %v5959
        %v6264 = vpack.c.b16 %v5964, %v5960
        %v6265 = vpack.c.b16 %v5965, %v5961
        %v6266 = vpack.c.b16 %v5966, %v5962
        %v6267 = vpack.c.b16 %v5971, %v5967
        %v6268 = vpack.c.b16 %v5972, %v5968
        %v6269 = vpack.c.b16 %v5973, %v5969
        %v6270 = vpack.c.b16 %v5974, %v5970
        %v6271 = vpack.c.b16 %v5979, %v5975
        %v6272 = vpack.c.b16 %v5980, %v5976
        %v6273 = vpack.c.b16 %v5981, %v5977
        %v6274 = vpack.c.b16 %v5982, %v5978
        %v6275 = vpack.c.b16 %v5987, %v5983
        %v6276 = vpack.c.b16 %v5988, %v5984
        %v6277 = vpack.c.b16 %v5989, %v5985
        %v6278 = vpack.c.b16 %v5990, %v5986
        %v6279 = vpack.c.b16 %v5995, %v5991
        %v6280 = vpack.c.b16 %v5996, %v5992
        %v6281 = vpack.c.b16 %v5997, %v5993
        %v6282 = vpack.c.b16 %v5998, %v5994
        %v6283 = vpack.c.b16 %v6003, %v5999
        %v6284 = vpack.c.b16 %v6004, %v6000
        %v6285 = vpack.c.b16 %v6005, %v6001
        %v6286 = vpack.c.b16 %v6006, %v6002
        %v6287 = vpack.c.b16 %v6011, %v6007
        %v6288 = vpack.c.b16 %v6012, %v6008
        %v6289 = vpack.c.b16 %v6013, %v6009
        %v6290 = vpack.c.b16 %v6014, %v6010
        %v6291 = vpack.c.b16 %v6019, %v6015
        %v6292 = vpack.c.b16 %v6020, %v6016
        %v6293 = vpack.c.b16 %v6021, %v6017
        %v6294 = vpack.c.b16 %v6022, %v6018
        %v6295 = vpack.c.b16 %v6027, %v6023
        %v6296 = vpack.c.b16 %v6028, %v6024
        %v6297 = vpack.c.b16 %v6029, %v6025
        %v6298 = vpack.c.b16 %v6030, %v6026
        %v6299 = vpack.c.b16 %v6035, %v6031
        %v6300 = vpack.c.b16 %v6036, %v6032
        %v6301 = vpack.c.b16 %v6037, %v6033
        %v6302 = vpack.c.b16 %v6038, %v6034
        %v6303 = vpack.c.b16 %v6043, %v6039
        %v6304 = vpack.c.b16 %v6044, %v6040
        %v6305 = vpack.c.b16 %v6045, %v6041
        %v6306 = vpack.c.b16 %v6046, %v6042
        %v6307 = vpack.c.b16 %v6051, %v6047
        %v6308 = vpack.c.b16 %v6052, %v6048
        %v6309 = vpack.c.b16 %v6053, %v6049
        %v6310 = vpack.c.b16 %v6054, %v6050
        %6567 = vmatprep.subr.bf16.mxu0 %v6056
        %6568 = vmatpush1.bf16.msra.mxu0 %v6055
        %6569 = vmatprep.subr.bf16.mxu0 %v6060
        %6570 = vmatpush1.bf16.msra.mxu0 %v6059
        %6571 = vmatprep.subr.bf16.mxu0 %v6064
        %6572 = vmatpush1.bf16.msra.mxu0 %v6063
        %6573 = vmatprep.subr.bf16.mxu0 %v6068
        %6574 = vmatpush1.bf16.msra.mxu0 %v6067
        %6575 = vmatprep.subr.bf16.mxu0 %v6072
        %6576 = vmatpush1.bf16.msra.mxu0 %v6071
        %6577 = vmatprep.subr.bf16.mxu0 %v6076
        %6578 = vmatpush1.bf16.msra.mxu0 %v6075
        %6579 = vmatprep.subr.bf16.mxu0 %v6080
        %6580 = vmatpush1.bf16.msra.mxu0 %v6079
        %6581 = vmatprep.subr.bf16.mxu0 %v6084
        %6582 = vmatpush1.bf16.msra.mxu0 %v6083
        %6583 = vmatprep.subr.bf16.mxu0 %v6088
        %6584 = vmatpush1.bf16.msra.mxu0 %v6087
        %6585 = vmatprep.subr.bf16.mxu0 %v6092
        %6586 = vmatpush1.bf16.msra.mxu0 %v6091
        %6587 = vmatprep.subr.bf16.mxu0 %v6096
        %6588 = vmatpush1.bf16.msra.mxu0 %v6095
        %6589 = vmatprep.subr.bf16.mxu0 %v6100
        %6590 = vmatpush1.bf16.msra.mxu0 %v6099
        %6591 = vmatprep.subr.bf16.mxu0 %v6104
        %6592 = vmatpush1.bf16.msra.mxu0 %v6103
        %6593 = vmatprep.subr.bf16.mxu0 %v6108
        %6594 = vmatpush1.bf16.msra.mxu0 %v6107
        %6595 = vmatprep.subr.bf16.mxu0 %v6112
        %6596 = vmatpush1.bf16.msra.mxu0 %v6111
        %6597 = vmatprep.subr.bf16.mxu0 %v6116
        %6598 = vmatpush1.bf16.msra.mxu0 %v6115
        %6599 = vmatprep.mubr.bf16.mxu0 %v4864
        %6600 = vmatmul.mubr.bf16.gmra.mrb[0].mxu0 %v4863
        %v6601 = vpop.f32.mrb[0].mxu0
        %v6602 = vadd.f32 %v5270, %v6601
        %v6603 = vpop.f32.mrb[0].mxu0
        %v6604 = vadd.f32 %v5274, %v6603
        %v6605 = vpop.f32.mrb[0].mxu0
        %v6606 = vpop.f32.mrb[0].mxu0
        %6607 = vdwg.mxu0
        %6608 = vmatprep.subr.bf16.mxu0 %v6120
        %6609 = vmatpush1.bf16.msra.mxu0 %v6119
        %6610 = vmatprep.subr.bf16.mxu0 %v6124
        %6611 = vmatpush1.bf16.msra.mxu0 %v6123
        %6612 = vmatprep.subr.bf16.mxu0 %v6128
        %6613 = vmatpush1.bf16.msra.mxu0 %v6127
        %6614 = vmatprep.subr.bf16.mxu0 %v6132
        %6615 = vmatpush1.bf16.msra.mxu0 %v6131
        %6616 = vmatprep.subr.bf16.mxu0 %v6136
        %6617 = vmatpush1.bf16.msra.mxu0 %v6135
        %6618 = vmatprep.subr.bf16.mxu0 %v6140
        %6619 = vmatpush1.bf16.msra.mxu0 %v6139
        %6620 = vmatprep.subr.bf16.mxu0 %v6144
        %6621 = vmatpush1.bf16.msra.mxu0 %v6143
        %6622 = vmatprep.subr.bf16.mxu0 %v6148
        %6623 = vmatpush1.bf16.msra.mxu0 %v6147
        %6624 = vmatprep.subr.bf16.mxu0 %v6152
        %6625 = vmatpush1.bf16.msra.mxu0 %v6151
        %6626 = vmatprep.subr.bf16.mxu0 %v6156
        %6627 = vmatpush1.bf16.msra.mxu0 %v6155
        %6628 = vmatprep.subr.bf16.mxu0 %v6160
        %6629 = vmatpush1.bf16.msra.mxu0 %v6159
        %6630 = vmatprep.subr.bf16.mxu0 %v6164
        %6631 = vmatpush1.bf16.msra.mxu0 %v6163
        %6632 = vmatprep.subr.bf16.mxu0 %v6168
        %6633 = vmatpush1.bf16.msra.mxu0 %v6167
        %6634 = vmatprep.subr.bf16.mxu0 %v6172
        %6635 = vmatpush1.bf16.msra.mxu0 %v6171
        %6636 = vmatprep.subr.bf16.mxu0 %v6176
        %6637 = vmatpush1.bf16.msra.mxu0 %v6175
        %6638 = vmatprep.subr.bf16.mxu0 %v6180
        %6639 = vmatpush1.bf16.msra.mxu0 %v6179
        %6640 = vmatprep.mubr.bf16.mxu0 %v4912
        %6641 = vmatmul.mubr.bf16.gmra.mrb[0].mxu0 %v4911
        %v6642 = vpop.f32.mrb[0].mxu0
        %v6643 = vadd.f32 %v6602, %v6642
        %v6644 = vpop.f32.mrb[0].mxu0
        %v6645 = vadd.f32 %v6604, %v6644
        %v6646 = vpop.f32.mrb[0].mxu0
        %v6647 = vpop.f32.mrb[0].mxu0
        %6648 = vdwg.mxu0
        %6649 = vmatprep.subr.bf16.mxu0 %v6184
        %6650 = vmatpush1.bf16.msra.mxu0 %v6183
        %6651 = vmatprep.subr.bf16.mxu0 %v6188
        %6652 = vmatpush1.bf16.msra.mxu0 %v6187
        %6653 = vmatprep.subr.bf16.mxu0 %v6192
        %6654 = vmatpush1.bf16.msra.mxu0 %v6191
        %6655 = vmatprep.subr.bf16.mxu0 %v6196
        %6656 = vmatpush1.bf16.msra.mxu0 %v6195
        %6657 = vmatprep.subr.bf16.mxu0 %v6200
        %6658 = vmatpush1.bf16.msra.mxu0 %v6199
        %6659 = vmatprep.subr.bf16.mxu0 %v6204
        %6660 = vmatpush1.bf16.msra.mxu0 %v6203
        %6661 = vmatprep.subr.bf16.mxu0 %v6208
        %6662 = vmatpush1.bf16.msra.mxu0 %v6207
        %6663 = vmatprep.subr.bf16.mxu0 %v6212
        %6664 = vmatpush1.bf16.msra.mxu0 %v6211
        %6665 = vmatprep.subr.bf16.mxu0 %v6216
        %6666 = vmatpush1.bf16.msra.mxu0 %v6215
        %6667 = vmatprep.subr.bf16.mxu0 %v6220
        %6668 = vmatpush1.bf16.msra.mxu0 %v6219
        %6669 = vmatprep.subr.bf16.mxu0 %v6224
        %6670 = vmatpush1.bf16.msra.mxu0 %v6223
        %6671 = vmatprep.subr.bf16.mxu0 %v6228
        %6672 = vmatpush1.bf16.msra.mxu0 %v6227
        %6673 = vmatprep.subr.bf16.mxu0 %v6232
        %6674 = vmatpush1.bf16.msra.mxu0 %v6231
        %6675 = vmatprep.subr.bf16.mxu0 %v6236
        %6676 = vmatpush1.bf16.msra.mxu0 %v6235
        %6677 = vmatprep.subr.bf16.mxu0 %v6240
        %6678 = vmatpush1.bf16.msra.mxu0 %v6239
        %6679 = vmatprep.subr.bf16.mxu0 %v6244
        %6680 = vmatpush1.bf16.msra.mxu0 %v6243
        %6681 = vmatprep.mubr.bf16.mxu0 %v4960
        %6682 = vmatmul.mubr.bf16.gmra.mrb[0].mxu0 %v4959
        %v6683 = vpop.f32.mrb[0].mxu0
        %v6684 = vadd.f32 %v6643, %v6683
        %v6685 = vpop.f32.mrb[0].mxu0
        %v6686 = vadd.f32 %v6645, %v6685
        %v6687 = vpop.f32.mrb[0].mxu0
        %v6688 = vpop.f32.mrb[0].mxu0
        %6689 = vdwg.mxu0
        %6690 = vmatprep.subr.bf16.mxu0 %v6248
        %6691 = vmatpush1.bf16.msra.mxu0 %v6247
        %6692 = vmatprep.subr.bf16.mxu0 %v6252
        %6693 = vmatpush1.bf16.msra.mxu0 %v6251
        %6694 = vmatprep.subr.bf16.mxu0 %v6256
        %6695 = vmatpush1.bf16.msra.mxu0 %v6255
        %6696 = vmatprep.subr.bf16.mxu0 %v6260
        %6697 = vmatpush1.bf16.msra.mxu0 %v6259
        %6698 = vmatprep.subr.bf16.mxu0 %v6264
        %6699 = vmatpush1.bf16.msra.mxu0 %v6263
        %6700 = vmatprep.subr.bf16.mxu0 %v6268
        %6701 = vmatpush1.bf16.msra.mxu0 %v6267
        %6702 = vmatprep.subr.bf16.mxu0 %v6272
        %6703 = vmatpush1.bf16.msra.mxu0 %v6271
        %6704 = vmatprep.subr.bf16.mxu0 %v6276
        %6705 = vmatpush1.bf16.msra.mxu0 %v6275
        %6706 = vmatprep.subr.bf16.mxu0 %v6280
        %6707 = vmatpush1.bf16.msra.mxu0 %v6279
        %6708 = vmatprep.subr.bf16.mxu0 %v6284
        %6709 = vmatpush1.bf16.msra.mxu0 %v6283
        %6710 = vmatprep.subr.bf16.mxu0 %v6288
        %6711 = vmatpush1.bf16.msra.mxu0 %v6287
        %6712 = vmatprep.subr.bf16.mxu0 %v6292
        %6713 = vmatpush1.bf16.msra.mxu0 %v6291
        %6714 = vmatprep.subr.bf16.mxu0 %v6296
        %6715 = vmatpush1.bf16.msra.mxu0 %v6295
        %6716 = vmatprep.subr.bf16.mxu0 %v6300
        %6717 = vmatpush1.bf16.msra.mxu0 %v6299
        %6718 = vmatprep.subr.bf16.mxu0 %v6304
        %6719 = vmatpush1.bf16.msra.mxu0 %v6303
        %6720 = vmatprep.subr.bf16.mxu0 %v6308
        %6721 = vmatpush1.bf16.msra.mxu0 %v6307
        %6722 = vmatprep.mubr.bf16.mxu0 %v5008
        %6723 = vmatmul.mubr.bf16.gmra.mrb[0].mxu0 %v5007
        %v6724 = vpop.f32.mrb[0].mxu0
        %v6725 = vadd.f32 %v6684, %v6724
        %v6726 = vpop.f32.mrb[0].mxu0
        %v6727 = vadd.f32 %v6686, %v6726
        %v6728 = vpop.f32.mrb[0].mxu0
        %v6729 = vpop.f32.mrb[0].mxu0
        %6730 = vdwg.mxu0
        %6731 = vmatprep.subr.bf16.mxu0 %v6058
        %6732 = vmatpush1.bf16.msra.mxu0 %v6057
        %6733 = vmatprep.subr.bf16.mxu0 %v6062
        %6734 = vmatpush1.bf16.msra.mxu0 %v6061
        %6735 = vmatprep.subr.bf16.mxu0 %v6066
        %6736 = vmatpush1.bf16.msra.mxu0 %v6065
        %6737 = vmatprep.subr.bf16.mxu0 %v6070
        %6738 = vmatpush1.bf16.msra.mxu0 %v6069
        %6739 = vmatprep.subr.bf16.mxu0 %v6074
        %6740 = vmatpush1.bf16.msra.mxu0 %v6073
        %6741 = vmatprep.subr.bf16.mxu0 %v6078
        %6742 = vmatpush1.bf16.msra.mxu0 %v6077
        %6743 = vmatprep.subr.bf16.mxu0 %v6082
        %6744 = vmatpush1.bf16.msra.mxu0 %v6081
        %6745 = vmatprep.subr.bf16.mxu0 %v6086
        %6746 = vmatpush1.bf16.msra.mxu0 %v6085
        %6747 = vmatprep.subr.bf16.mxu0 %v6090
        %6748 = vmatpush1.bf16.msra.mxu0 %v6089
        %6749 = vmatprep.subr.bf16.mxu0 %v6094
        %6750 = vmatpush1.bf16.msra.mxu0 %v6093
        %6751 = vmatprep.subr.bf16.mxu0 %v6098
        %6752 = vmatpush1.bf16.msra.mxu0 %v6097
        %6753 = vmatprep.subr.bf16.mxu0 %v6102
        %6754 = vmatpush1.bf16.msra.mxu0 %v6101
        %6755 = vmatprep.subr.bf16.mxu0 %v6106
        %6756 = vmatpush1.bf16.msra.mxu0 %v6105
        %6757 = vmatprep.subr.bf16.mxu0 %v6110
        %6758 = vmatpush1.bf16.msra.mxu0 %v6109
        %6759 = vmatprep.subr.bf16.mxu0 %v6114
        %6760 = vmatpush1.bf16.msra.mxu0 %v6113
        %6761 = vmatprep.subr.bf16.mxu0 %v6118
        %6762 = vmatpush1.bf16.msra.mxu0 %v6117
        %6763 = vmatprep.mubr.bf16.mxu0 %v4864
        %6764 = vmatmul.mubr.bf16.gmra.mrb[0].mxu0 %v4863
        %v6765 = vpop.f32.mrb[0].mxu0
        %v6766 = vadd.f32 %v5278, %v6765
        %v6767 = vpop.f32.mrb[0].mxu0
        %v6768 = vadd.f32 %v5282, %v6767
        %v6769 = vpop.f32.mrb[0].mxu0
        %v6770 = vpop.f32.mrb[0].mxu0
        %6771 = vdwg.mxu0
        %6772 = vmatprep.subr.bf16.mxu0 %v6122
        %6773 = vmatpush1.bf16.msra.mxu0 %v6121
        %6774 = vmatprep.subr.bf16.mxu0 %v6126
        %6775 = vmatpush1.bf16.msra.mxu0 %v6125
        %6776 = vmatprep.subr.bf16.mxu0 %v6130
        %6777 = vmatpush1.bf16.msra.mxu0 %v6129
        %6778 = vmatprep.subr.bf16.mxu0 %v6134
        %6779 = vmatpush1.bf16.msra.mxu0 %v6133
        %6780 = vmatprep.subr.bf16.mxu0 %v6138
        %6781 = vmatpush1.bf16.msra.mxu0 %v6137
        %6782 = vmatprep.subr.bf16.mxu0 %v6142
        %6783 = vmatpush1.bf16.msra.mxu0 %v6141
        %6784 = vmatprep.subr.bf16.mxu0 %v6146
        %6785 = vmatpush1.bf16.msra.mxu0 %v6145
        %6786 = vmatprep.subr.bf16.mxu0 %v6150
        %6787 = vmatpush1.bf16.msra.mxu0 %v6149
        %6788 = vmatprep.subr.bf16.mxu0 %v6154
        %6789 = vmatpush1.bf16.msra.mxu0 %v6153
        %6790 = vmatprep.subr.bf16.mxu0 %v6158
        %6791 = vmatpush1.bf16.msra.mxu0 %v6157
        %6792 = vmatprep.subr.bf16.mxu0 %v6162
        %6793 = vmatpush1.bf16.msra.mxu0 %v6161
        %6794 = vmatprep.subr.bf16.mxu0 %v6166
        %6795 = vmatpush1.bf16.msra.mxu0 %v6165
        %6796 = vmatprep.subr.bf16.mxu0 %v6170
        %6797 = vmatpush1.bf16.msra.mxu0 %v6169
        %6798 = vmatprep.subr.bf16.mxu0 %v6174
        %6799 = vmatpush1.bf16.msra.mxu0 %v6173
        %6800 = vmatprep.subr.bf16.mxu0 %v6178
        %6801 = vmatpush1.bf16.msra.mxu0 %v6177
        %6802 = vmatprep.subr.bf16.mxu0 %v6182
        %6803 = vmatpush1.bf16.msra.mxu0 %v6181
        %6804 = vmatprep.mubr.bf16.mxu0 %v4912
        %6805 = vmatmul.mubr.bf16.gmra.mrb[0].mxu0 %v4911
        %v6806 = vpop.f32.mrb[0].mxu0
        %v6807 = vadd.f32 %v6766, %v6806
        %v6808 = vpop.f32.mrb[0].mxu0
        %v6809 = vadd.f32 %v6768, %v6808
        %v6810 = vpop.f32.mrb[0].mxu0
        %v6811 = vpop.f32.mrb[0].mxu0
        %6812 = vdwg.mxu0
        %6813 = vmatprep.subr.bf16.mxu0 %v6186
        %6814 = vmatpush1.bf16.msra.mxu0 %v6185
        %6815 = vmatprep.subr.bf16.mxu0 %v6190
        %6816 = vmatpush1.bf16.msra.mxu0 %v6189
        %6817 = vmatprep.subr.bf16.mxu0 %v6194
        %6818 = vmatpush1.bf16.msra.mxu0 %v6193
        %6819 = vmatprep.subr.bf16.mxu0 %v6198
        %6820 = vmatpush1.bf16.msra.mxu0 %v6197
        %6821 = vmatprep.subr.bf16.mxu0 %v6202
        %6822 = vmatpush1.bf16.msra.mxu0 %v6201
        %6823 = vmatprep.subr.bf16.mxu0 %v6206
        %6824 = vmatpush1.bf16.msra.mxu0 %v6205
        %6825 = vmatprep.subr.bf16.mxu0 %v6210
        %6826 = vmatpush1.bf16.msra.mxu0 %v6209
        %6827 = vmatprep.subr.bf16.mxu0 %v6214
        %6828 = vmatpush1.bf16.msra.mxu0 %v6213
        %6829 = vmatprep.subr.bf16.mxu0 %v6218
        %6830 = vmatpush1.bf16.msra.mxu0 %v6217
        %6831 = vmatprep.subr.bf16.mxu0 %v6222
        %6832 = vmatpush1.bf16.msra.mxu0 %v6221
        %6833 = vmatprep.subr.bf16.mxu0 %v6226
        %6834 = vmatpush1.bf16.msra.mxu0 %v6225
        %6835 = vmatprep.subr.bf16.mxu0 %v6230
        %6836 = vmatpush1.bf16.msra.mxu0 %v6229
        %6837 = vmatprep.subr.bf16.mxu0 %v6234
        %6838 = vmatpush1.bf16.msra.mxu0 %v6233
        %6839 = vmatprep.subr.bf16.mxu0 %v6238
        %6840 = vmatpush1.bf16.msra.mxu0 %v6237
        %6841 = vmatprep.subr.bf16.mxu0 %v6242
        %6842 = vmatpush1.bf16.msra.mxu0 %v6241
        %6843 = vmatprep.subr.bf16.mxu0 %v6246
        %6844 = vmatpush1.bf16.msra.mxu0 %v6245
        %6845 = vmatprep.mubr.bf16.mxu0 %v4960
        %6846 = vmatmul.mubr.bf16.gmra.mrb[0].mxu0 %v4959
        %v6847 = vpop.f32.mrb[0].mxu0
        %v6848 = vadd.f32 %v6807, %v6847
        %v6849 = vpop.f32.mrb[0].mxu0
        %v6850 = vadd.f32 %v6809, %v6849
        %v6851 = vpop.f32.mrb[0].mxu0
        %v6852 = vpop.f32.mrb[0].mxu0
        %6853 = vdwg.mxu0
        %6854 = vmatprep.subr.bf16.mxu0 %v6250
        %6855 = vmatpush1.bf16.msra.mxu0 %v6249
        %6856 = vmatprep.subr.bf16.mxu0 %v6254
        %6857 = vmatpush1.bf16.msra.mxu0 %v6253
        %6858 = vmatprep.subr.bf16.mxu0 %v6258
        %6859 = vmatpush1.bf16.msra.mxu0 %v6257
        %6860 = vmatprep.subr.bf16.mxu0 %v6262
        %6861 = vmatpush1.bf16.msra.mxu0 %v6261
        %6862 = vmatprep.subr.bf16.mxu0 %v6266
        %6863 = vmatpush1.bf16.msra.mxu0 %v6265
        %6864 = vmatprep.subr.bf16.mxu0 %v6270
        %6865 = vmatpush1.bf16.msra.mxu0 %v6269
        %6866 = vmatprep.subr.bf16.mxu0 %v6274
        %6867 = vmatpush1.bf16.msra.mxu0 %v6273
        %6868 = vmatprep.subr.bf16.mxu0 %v6278
        %6869 = vmatpush1.bf16.msra.mxu0 %v6277
        %6870 = vmatprep.subr.bf16.mxu0 %v6282
        %6871 = vmatpush1.bf16.msra.mxu0 %v6281
        %6872 = vmatprep.subr.bf16.mxu0 %v6286
        %6873 = vmatpush1.bf16.msra.mxu0 %v6285
        %6874 = vmatprep.subr.bf16.mxu0 %v6290
        %6875 = vmatpush1.bf16.msra.mxu0 %v6289
        %6876 = vmatprep.subr.bf16.mxu0 %v6294
        %6877 = vmatpush1.bf16.msra.mxu0 %v6293
        %6878 = vmatprep.subr.bf16.mxu0 %v6298
        %6879 = vmatpush1.bf16.msra.mxu0 %v6297
        %6880 = vmatprep.subr.bf16.mxu0 %v6302
        %6881 = vmatpush1.bf16.msra.mxu0 %v6301
        %6882 = vmatprep.subr.bf16.mxu0 %v6306
        %6883 = vmatpush1.bf16.msra.mxu0 %v6305
        %6884 = vmatprep.subr.bf16.mxu0 %v6310
        %6885 = vmatpush1.bf16.msra.mxu0 %v6309
        %6886 = vmatprep.mubr.bf16.mxu0 %v5008
        %6887 = vmatmul.mubr.bf16.gmra.mrb[0].mxu0 %v5007
        %v6888 = vpop.f32.mrb[0].mxu0
        %v6889 = vadd.f32 %v6848, %v6888
        %v6890 = vpop.f32.mrb[0].mxu0
        %v6891 = vadd.f32 %v6850, %v6890
        %v6892 = vpop.f32.mrb[0].mxu0
        %v6893 = vpop.f32.mrb[0].mxu0
        %6894 = vdwg.mxu0
        %v6895 = vmax.f32 %v6725, 0.0
        %v6896 = vmax.f32 %v6727, 0.0
        %v6897 = vmax.f32 %v6889, 0.0
        %v6898 = vmax.f32 %v6891, 0.0
        %v6899 = vld [vmem:[%s13] sm:$0xff]
        %v6900 = vld [vmem:[%s13 + $0x8] sm:$0xff]
        %s6901 = scalar_lea.vmem %s13, 16
        %v6902 = vld [vmem:[%s6901] sm:$0xff]
        %v6903 = vld [vmem:[%s6901 + $0x8] sm:$0xff]
        %v6905 = vsel %vm4811, %v6902, 0
        %v6908 = vsel %vm4811, %v6903, 0
        %vm6910 = vcmask 1043456
        %v6912 = vsel %vm6910, %v6896, 0
        %6914 = vmatprep.subr.mxu0 0.0
        %6915 = vmatpush1.msra.mxu0 %v6912
        %6916 = vmatprep.subr.mxu0 0.0
        %6917 = vmatpush1.msra.mxu0 0.0
        %6918 = vmatprep.subr.mxu0 0.0
        %6919 = vmatpush1.msra.mxu0 0.0
        %6920 = vmatprep.subr.mxu0 0.0
        %6921 = vmatpush1.msra.mxu0 0.0
        %6922 = vmatprep.subr.mxu0 0.0
        %6923 = vmatpush1.msra.mxu0 0.0
        %6924 = vmatprep.subr.mxu0 0.0
        %6925 = vmatpush1.msra.mxu0 0.0
        %6926 = vmatprep.subr.mxu0 0.0
        %6927 = vmatpush1.msra.mxu0 0.0
        %6928 = vmatprep.subr.mxu0 0.0
        %6929 = vmatpush1.msra.mxu0 0.0
        %6930 = vmatprep.subr.mxu0 0.0
        %6931 = vmatpush1.msra.mxu0 0.0
        %6932 = vmatprep.subr.mxu0 0.0
        %6933 = vmatpush1.msra.mxu0 0.0
        %6934 = vmatprep.subr.mxu0 0.0
        %6935 = vmatpush1.msra.mxu0 0.0
        %6936 = vmatprep.subr.mxu0 0.0
        %6937 = vmatpush1.msra.mxu0 0.0
        %6938 = vmatprep.subr.mxu0 0.0
        %6939 = vmatpush1.msra.mxu0 0.0
        %6940 = vmatprep.subr.mxu0 0.0
        %6941 = vmatpush1.msra.mxu0 0.0
        %6942 = vmatprep.subr.mxu0 0.0
        %6943 = vmatpush1.msra.mxu0 0.0
        %6944 = vmatprep.subr.mxu0 0.0
        %6945 = vmatpush1.msra.mxu0 0.0
        %6946 = vmatprep.subr.mxu0 0.0
        %6947 = vmatpush1.msra.mxu0 0.0
        %6948 = vmatprep.subr.mxu0 0.0
        %6949 = vmatpush1.msra.mxu0 0.0
        %6950 = vmatprep.subr.mxu0 0.0
        %6951 = vmatpush1.msra.mxu0 0.0
        %6952 = vmatprep.subr.mxu0 0.0
        %6953 = vmatpush1.msra.mxu0 0.0
        %6954 = vmatprep.subr.mxu0 0.0
        %6955 = vmatpush1.msra.mxu0 0.0
        %6956 = vmatprep.subr.mxu0 0.0
        %6957 = vmatpush1.msra.mxu0 0.0
        %6958 = vmatprep.subr.mxu0 0.0
        %6959 = vmatpush1.msra.mxu0 0.0
        %6960 = vmatprep.subr.mxu0 0.0
        %6961 = vmatpush1.msra.mxu0 0.0
        %6962 = vmatprep.subr.mxu0 0.0
        %6963 = vmatpush1.msra.mxu0 0.0
        %6964 = vmatprep.subr.mxu0 0.0
        %6965 = vmatpush1.msra.mxu0 0.0
        %6966 = vmatprep.subr.mxu0 0.0
        %6967 = vmatpush1.msra.mxu0 0.0
        %6968 = vmatprep.subr.mxu0 0.0
        %6969 = vmatpush1.msra.mxu0 0.0
        %6970 = vmatprep.subr.mxu0 0.0
        %6971 = vmatpush1.msra.mxu0 0.0
        %6972 = vmatprep.subr.mxu0 0.0
        %6973 = vmatpush1.msra.mxu0 0.0
        %6974 = vmatprep.subr.mxu0 0.0
        %6975 = vmatpush1.msra.mxu0 0.0
        %6976 = vmatprep.subr.mxu0 0.0
        %6977 = vmatpush1.msra.mxu0 0.0
        %6978 = vmatprep.mubr.f32.mxu0 0.0
        %6979 = vmatmul.mubr.f32.gmra.mrb[0].mxu0 %v6905
        %v6980 = vpop.f32.mrb[0].mxu0
        %v6981 = vadd.f32 0.0, %v6980
        %v6982 = vpop.f32.mrb[0].mxu0
        %6983 = vmatprep.mubr.f32.mxu0 0.0
        %6984 = vmatmul.mubr.f32.gmra.mrb[0].mxu0 %v6908
        %v6985 = vpop.f32.mrb[0].mxu0
        %v6986 = vadd.f32 0.0, %v6985
        %v6987 = vpop.f32.mrb[0].mxu0
        %6988 = vdwg.mxu0
        %v6990 = vsel %vm4811, %v6899, 0
        %v6993 = vsel %vm4811, %v6900, 0
        %v6996 = vsel %vm6910, %v6895, 0
        %6998 = vmatprep.subr.mxu0 0.0
        %6999 = vmatpush1.msra.mxu0 %v6996
        %7000 = vmatprep.subr.mxu0 0.0
        %7001 = vmatpush1.msra.mxu0 0.0
        %7002 = vmatprep.subr.mxu0 0.0
        %7003 = vmatpush1.msra.mxu0 0.0
        %7004 = vmatprep.subr.mxu0 0.0
        %7005 = vmatpush1.msra.mxu0 0.0
        %7006 = vmatprep.subr.mxu0 0.0
        %7007 = vmatpush1.msra.mxu0 0.0
        %7008 = vmatprep.subr.mxu0 0.0
        %7009 = vmatpush1.msra.mxu0 0.0
        %7010 = vmatprep.subr.mxu0 0.0
        %7011 = vmatpush1.msra.mxu0 0.0
        %7012 = vmatprep.subr.mxu0 0.0
        %7013 = vmatpush1.msra.mxu0 0.0
        %7014 = vmatprep.subr.mxu0 0.0
        %7015 = vmatpush1.msra.mxu0 0.0
        %7016 = vmatprep.subr.mxu0 0.0
        %7017 = vmatpush1.msra.mxu0 0.0
        %7018 = vmatprep.subr.mxu0 0.0
        %7019 = vmatpush1.msra.mxu0 0.0
        %7020 = vmatprep.subr.mxu0 0.0
        %7021 = vmatpush1.msra.mxu0 0.0
        %7022 = vmatprep.subr.mxu0 0.0
        %7023 = vmatpush1.msra.mxu0 0.0
        %7024 = vmatprep.subr.mxu0 0.0
        %7025 = vmatpush1.msra.mxu0 0.0
        %7026 = vmatprep.subr.mxu0 0.0
        %7027 = vmatpush1.msra.mxu0 0.0
        %7028 = vmatprep.subr.mxu0 0.0
        %7029 = vmatpush1.msra.mxu0 0.0
        %7030 = vmatprep.subr.mxu0 0.0
        %7031 = vmatpush1.msra.mxu0 0.0
        %7032 = vmatprep.subr.mxu0 0.0
        %7033 = vmatpush1.msra.mxu0 0.0
        %7034 = vmatprep.subr.mxu0 0.0
        %7035 = vmatpush1.msra.mxu0 0.0
        %7036 = vmatprep.subr.mxu0 0.0
        %7037 = vmatpush1.msra.mxu0 0.0
        %7038 = vmatprep.subr.mxu0 0.0
        %7039 = vmatpush1.msra.mxu0 0.0
        %7040 = vmatprep.subr.mxu0 0.0
        %7041 = vmatpush1.msra.mxu0 0.0
        %7042 = vmatprep.subr.mxu0 0.0
        %7043 = vmatpush1.msra.mxu0 0.0
        %7044 = vmatprep.subr.mxu0 0.0
        %7045 = vmatpush1.msra.mxu0 0.0
        %7046 = vmatprep.subr.mxu0 0.0
        %7047 = vmatpush1.msra.mxu0 0.0
        %7048 = vmatprep.subr.mxu0 0.0
        %7049 = vmatpush1.msra.mxu0 0.0
        %7050 = vmatprep.subr.mxu0 0.0
        %7051 = vmatpush1.msra.mxu0 0.0
        %7052 = vmatprep.subr.mxu0 0.0
        %7053 = vmatpush1.msra.mxu0 0.0
        %7054 = vmatprep.subr.mxu0 0.0
        %7055 = vmatpush1.msra.mxu0 0.0
        %7056 = vmatprep.subr.mxu0 0.0
        %7057 = vmatpush1.msra.mxu0 0.0
        %7058 = vmatprep.subr.mxu0 0.0
        %7059 = vmatpush1.msra.mxu0 0.0
        %7060 = vmatprep.subr.mxu0 0.0
        %7061 = vmatpush1.msra.mxu0 0.0
        %7062 = vmatprep.mubr.f32.mxu0 0.0
        %7063 = vmatmul.mubr.f32.gmra.mrb[0].mxu0 %v6990
        %v7064 = vpop.f32.mrb[0].mxu0
        %v7065 = vadd.f32 %v6981, %v7064
        %v7066 = vpop.f32.mrb[0].mxu0
        %7067 = vmatprep.mubr.f32.mxu0 0.0
        %7068 = vmatmul.mubr.f32.gmra.mrb[0].mxu0 %v6993
        %v7069 = vpop.f32.mrb[0].mxu0
        %v7070 = vadd.f32 %v6986, %v7069
        %v7071 = vpop.f32.mrb[0].mxu0
        %7072 = vdwg.mxu0
        %s7073 = scalar_lea.vmem %s13, 32
        %v7074 = vld [vmem:[%s7073] sm:$0xff]
        %v7075 = vld [vmem:[%s7073 + $0x8] sm:$0xff]
        %v7077 = vsel %vm4811, %v7074, 0
        %v7080 = vsel %vm4811, %v7075, 0
        %v7083 = vsel %vm6910, %v6897, 0
        %7085 = vmatprep.subr.mxu0 0.0
        %7086 = vmatpush1.msra.mxu0 %v7083
        %7087 = vmatprep.subr.mxu0 0.0
        %7088 = vmatpush1.msra.mxu0 0.0
        %7089 = vmatprep.subr.mxu0 0.0
        %7090 = vmatpush1.msra.mxu0 0.0
        %7091 = vmatprep.subr.mxu0 0.0
        %7092 = vmatpush1.msra.mxu0 0.0
        %7093 = vmatprep.subr.mxu0 0.0
        %7094 = vmatpush1.msra.mxu0 0.0
        %7095 = vmatprep.subr.mxu0 0.0
        %7096 = vmatpush1.msra.mxu0 0.0
        %7097 = vmatprep.subr.mxu0 0.0
        %7098 = vmatpush1.msra.mxu0 0.0
        %7099 = vmatprep.subr.mxu0 0.0
        %7100 = vmatpush1.msra.mxu0 0.0
        %7101 = vmatprep.subr.mxu0 0.0
        %7102 = vmatpush1.msra.mxu0 0.0
        %7103 = vmatprep.subr.mxu0 0.0
        %7104 = vmatpush1.msra.mxu0 0.0
        %7105 = vmatprep.subr.mxu0 0.0
        %7106 = vmatpush1.msra.mxu0 0.0
        %7107 = vmatprep.subr.mxu0 0.0
        %7108 = vmatpush1.msra.mxu0 0.0
        %7109 = vmatprep.subr.mxu0 0.0
        %7110 = vmatpush1.msra.mxu0 0.0
        %7111 = vmatprep.subr.mxu0 0.0
        %7112 = vmatpush1.msra.mxu0 0.0
        %7113 = vmatprep.subr.mxu0 0.0
        %7114 = vmatpush1.msra.mxu0 0.0
        %7115 = vmatprep.subr.mxu0 0.0
        %7116 = vmatpush1.msra.mxu0 0.0
        %7117 = vmatprep.subr.mxu0 0.0
        %7118 = vmatpush1.msra.mxu0 0.0
        %7119 = vmatprep.subr.mxu0 0.0
        %7120 = vmatpush1.msra.mxu0 0.0
        %7121 = vmatprep.subr.mxu0 0.0
        %7122 = vmatpush1.msra.mxu0 0.0
        %7123 = vmatprep.subr.mxu0 0.0
        %7124 = vmatpush1.msra.mxu0 0.0
        %7125 = vmatprep.subr.mxu0 0.0
        %7126 = vmatpush1.msra.mxu0 0.0
        %7127 = vmatprep.subr.mxu0 0.0
        %7128 = vmatpush1.msra.mxu0 0.0
        %7129 = vmatprep.subr.mxu0 0.0
        %7130 = vmatpush1.msra.mxu0 0.0
        %7131 = vmatprep.subr.mxu0 0.0
        %7132 = vmatpush1.msra.mxu0 0.0
        %7133 = vmatprep.subr.mxu0 0.0
        %7134 = vmatpush1.msra.mxu0 0.0
        %7135 = vmatprep.subr.mxu0 0.0
        %7136 = vmatpush1.msra.mxu0 0.0
        %7137 = vmatprep.subr.mxu0 0.0
        %7138 = vmatpush1.msra.mxu0 0.0
        %7139 = vmatprep.subr.mxu0 0.0
        %7140 = vmatpush1.msra.mxu0 0.0
        %7141 = vmatprep.subr.mxu0 0.0
        %7142 = vmatpush1.msra.mxu0 0.0
        %7143 = vmatprep.subr.mxu0 0.0
        %7144 = vmatpush1.msra.mxu0 0.0
        %7145 = vmatprep.subr.mxu0 0.0
        %7146 = vmatpush1.msra.mxu0 0.0
        %7147 = vmatprep.subr.mxu0 0.0
        %7148 = vmatpush1.msra.mxu0 0.0
        %7149 = vmatprep.mubr.f32.mxu0 0.0
        %7150 = vmatmul.mubr.f32.gmra.mrb[0].mxu0 %v7077
        %v7151 = vpop.f32.mrb[0].mxu0
        %v7152 = vadd.f32 0.0, %v7151
        %v7153 = vpop.f32.mrb[0].mxu0
        %7154 = vmatprep.mubr.f32.mxu0 0.0
        %7155 = vmatmul.mubr.f32.gmra.mrb[0].mxu0 %v7080
        %v7156 = vpop.f32.mrb[0].mxu0
        %v7157 = vadd.f32 0.0, %v7156
        %v7158 = vpop.f32.mrb[0].mxu0
        %7159 = vdwg.mxu0
        %v7160 = vadd.f32 %v7065, %v7152
        %v7161 = vadd.f32 %v7070, %v7157
        %s7162 = scalar_lea.vmem %s13, 48
        %v7163 = vld [vmem:[%s7162] sm:$0xff]
        %v7164 = vld [vmem:[%s7162 + $0x8] sm:$0xff]
        %v7166 = vsel %vm4811, %v7163, 0
        %v7169 = vsel %vm4811, %v7164, 0
        %v7172 = vsel %vm6910, %v6898, 0
        %7174 = vmatprep.subr.mxu0 0.0
        %7175 = vmatpush1.msra.mxu0 %v7172
        %7176 = vmatprep.subr.mxu0 0.0
        %7177 = vmatpush1.msra.mxu0 0.0
        %7178 = vmatprep.subr.mxu0 0.0
        %7179 = vmatpush1.msra.mxu0 0.0
        %7180 = vmatprep.subr.mxu0 0.0
        %7181 = vmatpush1.msra.mxu0 0.0
        %7182 = vmatprep.subr.mxu0 0.0
        %7183 = vmatpush1.msra.mxu0 0.0
        %7184 = vmatprep.subr.mxu0 0.0
        %7185 = vmatpush1.msra.mxu0 0.0
        %7186 = vmatprep.subr.mxu0 0.0
        %7187 = vmatpush1.msra.mxu0 0.0
        %7188 = vmatprep.subr.mxu0 0.0
        %7189 = vmatpush1.msra.mxu0 0.0
        %7190 = vmatprep.subr.mxu0 0.0
        %7191 = vmatpush1.msra.mxu0 0.0
        %7192 = vmatprep.subr.mxu0 0.0
        %7193 = vmatpush1.msra.mxu0 0.0
        %7194 = vmatprep.subr.mxu0 0.0
        %7195 = vmatpush1.msra.mxu0 0.0
        %7196 = vmatprep.subr.mxu0 0.0
        %7197 = vmatpush1.msra.mxu0 0.0
        %7198 = vmatprep.subr.mxu0 0.0
        %7199 = vmatpush1.msra.mxu0 0.0
        %7200 = vmatprep.subr.mxu0 0.0
        %7201 = vmatpush1.msra.mxu0 0.0
        %7202 = vmatprep.subr.mxu0 0.0
        %7203 = vmatpush1.msra.mxu0 0.0
        %7204 = vmatprep.subr.mxu0 0.0
        %7205 = vmatpush1.msra.mxu0 0.0
        %7206 = vmatprep.subr.mxu0 0.0
        %7207 = vmatpush1.msra.mxu0 0.0
        %7208 = vmatprep.subr.mxu0 0.0
        %7209 = vmatpush1.msra.mxu0 0.0
        %7210 = vmatprep.subr.mxu0 0.0
        %7211 = vmatpush1.msra.mxu0 0.0
        %7212 = vmatprep.subr.mxu0 0.0
        %7213 = vmatpush1.msra.mxu0 0.0
        %7214 = vmatprep.subr.mxu0 0.0
        %7215 = vmatpush1.msra.mxu0 0.0
        %7216 = vmatprep.subr.mxu0 0.0
        %7217 = vmatpush1.msra.mxu0 0.0
        %7218 = vmatprep.subr.mxu0 0.0
        %7219 = vmatpush1.msra.mxu0 0.0
        %7220 = vmatprep.subr.mxu0 0.0
        %7221 = vmatpush1.msra.mxu0 0.0
        %7222 = vmatprep.subr.mxu0 0.0
        %7223 = vmatpush1.msra.mxu0 0.0
        %7224 = vmatprep.subr.mxu0 0.0
        %7225 = vmatpush1.msra.mxu0 0.0
        %7226 = vmatprep.subr.mxu0 0.0
        %7227 = vmatpush1.msra.mxu0 0.0
        %7228 = vmatprep.subr.mxu0 0.0
        %7229 = vmatpush1.msra.mxu0 0.0
        %7230 = vmatprep.subr.mxu0 0.0
        %7231 = vmatpush1.msra.mxu0 0.0
        %7232 = vmatprep.subr.mxu0 0.0
        %7233 = vmatpush1.msra.mxu0 0.0
        %7234 = vmatprep.subr.mxu0 0.0
        %7235 = vmatpush1.msra.mxu0 0.0
        %7236 = vmatprep.subr.mxu0 0.0
        %7237 = vmatpush1.msra.mxu0 0.0
        %7238 = vmatprep.mubr.f32.mxu0 0.0
        %7239 = vmatmul.mubr.f32.gmra.mrb[0].mxu0 %v7166
        %v7240 = vpop.f32.mrb[0].mxu0
        %v7241 = vadd.f32 0.0, %v7240
        %v7242 = vpop.f32.mrb[0].mxu0
        %7243 = vmatprep.mubr.f32.mxu0 0.0
        %7244 = vmatmul.mubr.f32.gmra.mrb[0].mxu0 %v7169
        %v7245 = vpop.f32.mrb[0].mxu0
        %v7246 = vadd.f32 0.0, %v7245
        %v7247 = vpop.f32.mrb[0].mxu0
        %7248 = vdwg.mxu0
        %v7249 = vadd.f32 %v7160, %v7241
        %v7250 = vadd.f32 %v7161, %v7246
        %v7251 = vpack.c.bf16 %v7250, %v7249
        %v7252 = vld [vmem:[#allocation19] sm:$0xf]
        %v7253 = vld [vmem:[#allocation19 + $0x4] sm:$0xf]
        %v7256 = vunpack.c.l.b16 %v7252
        %v7257 = vunpack.c.l.b16 %v7253
        %v7258 = vpack.c.b16 %v7257, %v7256
        %v7260 = vsel %vm3312, %v7258, 0
        %7262 = vmatprep.subr.bf16.mxu0 0
        %7263 = vmatpush1.bf16.msra.mxu0 %v7251
        %7264 = vmatprep.subr.bf16.mxu0 0
        %7265 = vmatpush1.bf16.msra.mxu0 0
        %7266 = vmatprep.subr.bf16.mxu0 0
        %7267 = vmatpush1.bf16.msra.mxu0 0
        %7268 = vmatprep.subr.bf16.mxu0 0
        %7269 = vmatpush1.bf16.msra.mxu0 0
        %7270 = vmatprep.subr.bf16.mxu0 0
        %7271 = vmatpush1.bf16.msra.mxu0 0
        %7272 = vmatprep.subr.bf16.mxu0 0
        %7273 = vmatpush1.bf16.msra.mxu0 0
        %7274 = vmatprep.subr.bf16.mxu0 0
        %7275 = vmatpush1.bf16.msra.mxu0 0
        %7276 = vmatprep.subr.bf16.mxu0 0
        %7277 = vmatpush1.bf16.msra.mxu0 0
        %7278 = vmatprep.subr.bf16.mxu0 0
        %7279 = vmatpush1.bf16.msra.mxu0 0
        %7280 = vmatprep.subr.bf16.mxu0 0
        %7281 = vmatpush1.bf16.msra.mxu0 0
        %7282 = vmatprep.subr.bf16.mxu0 0
        %7283 = vmatpush1.bf16.msra.mxu0 0
        %7284 = vmatprep.subr.bf16.mxu0 0
        %7285 = vmatpush1.bf16.msra.mxu0 0
        %7286 = vmatprep.subr.bf16.mxu0 0
        %7287 = vmatpush1.bf16.msra.mxu0 0
        %7288 = vmatprep.subr.bf16.mxu0 0
        %7289 = vmatpush1.bf16.msra.mxu0 0
        %7290 = vmatprep.subr.bf16.mxu0 0
        %7291 = vmatpush1.bf16.msra.mxu0 0
        %7292 = vmatprep.subr.bf16.mxu0 0
        %7293 = vmatpush1.bf16.msra.mxu0 0
        %7294 = vmatprep.mubr.bf16.mxu0 0
        %7295 = vmatmul.mubr.bf16.gmra.mrb[0].mxu0 %v7260
        %v7296 = vpop.f32.mrb[0].mxu0
        %v7297 = vadd.f32 0.0, %v7296
        %v7298 = vpop.f32.mrb[0].mxu0
        %v7299 = vpop.f32.mrb[0].mxu0
        %v7300 = vadd.f32 0.0, %v7299
        %v7301 = vpop.f32.mrb[0].mxu0
        %7302 = vdwg.mxu0
        %v7303 = vpack.c.bf16 %v7300, %v7297
        %s7304 = scalar_lea.vmem [#allocation19], 8
        %v7305 = vld [vmem:[%s7304] sm:$0xf]
        %v7306 = vld [vmem:[%s7304 + $0x4] sm:$0xf]
        %v7309 = vunpack.c.l.b16 %v7305
        %v7310 = vunpack.c.l.b16 %v7306
        %v7311 = vpack.c.b16 %v7310, %v7309
        %v7313 = vsel %vm3312, %v7311, 0
        %7315 = vmatprep.subr.bf16.mxu0 0
        %7316 = vmatpush1.bf16.msra.mxu0 %v7251
        %7317 = vmatprep.subr.bf16.mxu0 0
        %7318 = vmatpush1.bf16.msra.mxu0 0
        %7319 = vmatprep.subr.bf16.mxu0 0
        %7320 = vmatpush1.bf16.msra.mxu0 0
        %7321 = vmatprep.subr.bf16.mxu0 0
        %7322 = vmatpush1.bf16.msra.mxu0 0
        %7323 = vmatprep.subr.bf16.mxu0 0
        %7324 = vmatpush1.bf16.msra.mxu0 0
        %7325 = vmatprep.subr.bf16.mxu0 0
        %7326 = vmatpush1.bf16.msra.mxu0 0
        %7327 = vmatprep.subr.bf16.mxu0 0
        %7328 = vmatpush1.bf16.msra.mxu0 0
        %7329 = vmatprep.subr.bf16.mxu0 0
        %7330 = vmatpush1.bf16.msra.mxu0 0
        %7331 = vmatprep.subr.bf16.mxu0 0
        %7332 = vmatpush1.bf16.msra.mxu0 0
        %7333 = vmatprep.subr.bf16.mxu0 0
        %7334 = vmatpush1.bf16.msra.mxu0 0
        %7335 = vmatprep.subr.bf16.mxu0 0
        %7336 = vmatpush1.bf16.msra.mxu0 0
        %7337 = vmatprep.subr.bf16.mxu0 0
        %7338 = vmatpush1.bf16.msra.mxu0 0
        %7339 = vmatprep.subr.bf16.mxu0 0
        %7340 = vmatpush1.bf16.msra.mxu0 0
        %7341 = vmatprep.subr.bf16.mxu0 0
        %7342 = vmatpush1.bf16.msra.mxu0 0
        %7343 = vmatprep.subr.bf16.mxu0 0
        %7344 = vmatpush1.bf16.msra.mxu0 0
        %7345 = vmatprep.subr.bf16.mxu0 0
        %7346 = vmatpush1.bf16.msra.mxu0 0
        %7347 = vmatprep.mubr.bf16.mxu0 0
        %7348 = vmatmul.mubr.bf16.gmra.mrb[0].mxu0 %v7313
        %v7349 = vpop.f32.mrb[0].mxu0
        %v7350 = vadd.f32 0.0, %v7349
        %v7351 = vpop.f32.mrb[0].mxu0
        %v7352 = vpop.f32.mrb[0].mxu0
        %v7353 = vadd.f32 0.0, %v7352
        %v7354 = vpop.f32.mrb[0].mxu0
        %7355 = vdwg.mxu0
        %v7356 = vpack.c.bf16 %v7353, %v7350
        %s7357 = scalar_lea.vmem [#allocation19], 16
        %v7358 = vld [vmem:[%s7357] sm:$0xf]
        %v7359 = vld [vmem:[%s7357 + $0x4] sm:$0xf]
        %v7362 = vunpack.c.l.b16 %v7358
        %v7363 = vunpack.c.l.b16 %v7359
        %v7364 = vpack.c.b16 %v7363, %v7362
        %v7366 = vsel %vm3312, %v7364, 0
        %7368 = vmatprep.subr.bf16.mxu0 0
        %7369 = vmatpush1.bf16.msra.mxu0 %v7251
        %7370 = vmatprep.subr.bf16.mxu0 0
        %7371 = vmatpush1.bf16.msra.mxu0 0
        %7372 = vmatprep.subr.bf16.mxu0 0
        %7373 = vmatpush1.bf16.msra.mxu0 0
        %7374 = vmatprep.subr.bf16.mxu0 0
        %7375 = vmatpush1.bf16.msra.mxu0 0
        %7376 = vmatprep.subr.bf16.mxu0 0
        %7377 = vmatpush1.bf16.msra.mxu0 0
        %7378 = vmatprep.subr.bf16.mxu0 0
        %7379 = vmatpush1.bf16.msra.mxu0 0
        %7380 = vmatprep.subr.bf16.mxu0 0
        %7381 = vmatpush1.bf16.msra.mxu0 0
        %7382 = vmatprep.subr.bf16.mxu0 0
        %7383 = vmatpush1.bf16.msra.mxu0 0
        %7384 = vmatprep.subr.bf16.mxu0 0
        %7385 = vmatpush1.bf16.msra.mxu0 0
        %7386 = vmatprep.subr.bf16.mxu0 0
        %7387 = vmatpush1.bf16.msra.mxu0 0
        %7388 = vmatprep.subr.bf16.mxu0 0
        %7389 = vmatpush1.bf16.msra.mxu0 0
        %7390 = vmatprep.subr.bf16.mxu0 0
        %7391 = vmatpush1.bf16.msra.mxu0 0
        %7392 = vmatprep.subr.bf16.mxu0 0
        %7393 = vmatpush1.bf16.msra.mxu0 0
        %7394 = vmatprep.subr.bf16.mxu0 0
        %7395 = vmatpush1.bf16.msra.mxu0 0
        %7396 = vmatprep.subr.bf16.mxu0 0
        %7397 = vmatpush1.bf16.msra.mxu0 0
        %7398 = vmatprep.subr.bf16.mxu0 0
        %7399 = vmatpush1.bf16.msra.mxu0 0
        %7400 = vmatprep.mubr.bf16.mxu0 0
        %7401 = vmatmul.mubr.bf16.gmra.mrb[0].mxu0 %v7366
        %v7402 = vpop.f32.mrb[0].mxu0
        %v7403 = vadd.f32 0.0, %v7402
        %v7404 = vpop.f32.mrb[0].mxu0
        %v7405 = vpop.f32.mrb[0].mxu0
        %v7406 = vadd.f32 0.0, %v7405
        %v7407 = vpop.f32.mrb[0].mxu0
        %7408 = vdwg.mxu0
        %v7409 = vpack.c.bf16 %v7406, %v7403
        %s7410 = scalar_lea.vmem [#allocation19], 24
        %v7411 = vld [vmem:[%s7410] sm:$0xf]
        %v7412 = vld [vmem:[%s7410 + $0x4] sm:$0xf]
        %v7415 = vunpack.c.l.b16 %v7411
        %v7416 = vunpack.c.l.b16 %v7412
        %v7417 = vpack.c.b16 %v7416, %v7415
        %v7419 = vsel %vm3312, %v7417, 0
        %7421 = vmatprep.subr.bf16.mxu0 0
        %7422 = vmatpush1.bf16.msra.mxu0 %v7251
        %7423 = vmatprep.subr.bf16.mxu0 0
        %7424 = vmatpush1.bf16.msra.mxu0 0
        %7425 = vmatprep.subr.bf16.mxu0 0
        %7426 = vmatpush1.bf16.msra.mxu0 0
        %7427 = vmatprep.subr.bf16.mxu0 0
        %7428 = vmatpush1.bf16.msra.mxu0 0
        %7429 = vmatprep.subr.bf16.mxu0 0
        %7430 = vmatpush1.bf16.msra.mxu0 0
        %7431 = vmatprep.subr.bf16.mxu0 0
        %7432 = vmatpush1.bf16.msra.mxu0 0
        %7433 = vmatprep.subr.bf16.mxu0 0
        %7434 = vmatpush1.bf16.msra.mxu0 0
        %7435 = vmatprep.subr.bf16.mxu0 0
        %7436 = vmatpush1.bf16.msra.mxu0 0
        %7437 = vmatprep.subr.bf16.mxu0 0
        %7438 = vmatpush1.bf16.msra.mxu0 0
        %7439 = vmatprep.subr.bf16.mxu0 0
        %7440 = vmatpush1.bf16.msra.mxu0 0
        %7441 = vmatprep.subr.bf16.mxu0 0
        %7442 = vmatpush1.bf16.msra.mxu0 0
        %7443 = vmatprep.subr.bf16.mxu0 0
        %7444 = vmatpush1.bf16.msra.mxu0 0
        %7445 = vmatprep.subr.bf16.mxu0 0
        %7446 = vmatpush1.bf16.msra.mxu0 0
        %7447 = vmatprep.subr.bf16.mxu0 0
        %7448 = vmatpush1.bf16.msra.mxu0 0
        %7449 = vmatprep.subr.bf16.mxu0 0
        %7450 = vmatpush1.bf16.msra.mxu0 0
        %7451 = vmatprep.subr.bf16.mxu0 0
        %7452 = vmatpush1.bf16.msra.mxu0 0
        %7453 = vmatprep.mubr.bf16.mxu0 0
        %7454 = vmatmul.mubr.bf16.gmra.mrb[0].mxu0 %v7419
        %v7455 = vpop.f32.mrb[0].mxu0
        %v7456 = vadd.f32 0.0, %v7455
        %v7457 = vpop.f32.mrb[0].mxu0
        %v7458 = vpop.f32.mrb[0].mxu0
        %v7459 = vadd.f32 0.0, %v7458
        %v7460 = vpop.f32.mrb[0].mxu0
        %7461 = vdwg.mxu0
        %v7462 = vpack.c.bf16 %v7459, %v7456
        %v7463 = vld [vmem:[#allocation21] sm:$0xff]
        %v7464 = vld [vmem:[#allocation21 + $0x8] sm:$0xff]
        %v7465 = vld [vmem:[#allocation21 + $0x10] sm:$0xff]
        %v7466 = vld [vmem:[#allocation21 + $0x18] sm:$0xff]
        %v7467 = vld [vmem:[#allocation21 + $0x20] sm:$0xff]
        %v7468 = vld [vmem:[#allocation21 + $0x28] sm:$0xff]
        %v7469 = vld [vmem:[#allocation21 + $0x30] sm:$0xff]
        %v7470 = vld [vmem:[#allocation21 + $0x38] sm:$0xff]
        %v7471 = vld [vmem:[#allocation21 + $0x40] sm:$0xff]
        %v7472 = vld [vmem:[#allocation21 + $0x48] sm:$0xff]
        %v7473 = vld [vmem:[#allocation21 + $0x50] sm:$0xff]
        %v7474 = vld [vmem:[#allocation21 + $0x58] sm:$0xff]
        %v7475 = vld [vmem:[#allocation21 + $0x60] sm:$0xff]
        %v7476 = vld [vmem:[#allocation21 + $0x68] sm:$0xff]
        %v7477 = vld [vmem:[#allocation21 + $0x70] sm:$0xff]
        %v7478 = vld [vmem:[#allocation21 + $0x78] sm:$0xff]
        %v7479 = vld [vmem:[#allocation21 + $0x80] sm:$0xff]
        %v7480 = vld [vmem:[#allocation21 + $0x88] sm:$0xff]
        %v7481 = vld [vmem:[#allocation21 + $0x90] sm:$0xff]
        %v7482 = vld [vmem:[#allocation21 + $0x98] sm:$0xff]
        %v7483 = vld [vmem:[#allocation21 + $0xa0] sm:$0xff]
        %v7484 = vld [vmem:[#allocation21 + $0xa8] sm:$0xff]
        %v7485 = vld [vmem:[#allocation21 + $0xb0] sm:$0xff]
        %v7486 = vld [vmem:[#allocation21 + $0xb8] sm:$0xff]
        %v7487 = vld [vmem:[#allocation21 + $0xc0] sm:$0xff]
        %v7488 = vld [vmem:[#allocation21 + $0xc8] sm:$0xff]
        %v7489 = vld [vmem:[#allocation21 + $0xd0] sm:$0xff]
        %v7490 = vld [vmem:[#allocation21 + $0xd8] sm:$0xff]
        %v7491 = vld [vmem:[#allocation21 + $0xe0] sm:$0xff]
        %v7492 = vld [vmem:[#allocation21 + $0xe8] sm:$0xff]
        %v7493 = vld [vmem:[#allocation21 + $0xf0] sm:$0xff]
        %v7494 = vld [vmem:[#allocation21 + $0xf8] sm:$0xff]
        %v7495 = vld [vmem:[#allocation21 + $0x100] sm:$0xff]
        %v7496 = vld [vmem:[#allocation21 + $0x108] sm:$0xff]
        %v7497 = vld [vmem:[#allocation21 + $0x110] sm:$0xff]
        %v7498 = vld [vmem:[#allocation21 + $0x118] sm:$0xff]
        %v7499 = vld [vmem:[#allocation21 + $0x120] sm:$0xff]
        %v7500 = vld [vmem:[#allocation21 + $0x128] sm:$0xff]
        %v7501 = vld [vmem:[#allocation21 + $0x130] sm:$0xff]
        %v7502 = vld [vmem:[#allocation21 + $0x138] sm:$0xff]
        %v7503 = vld [vmem:[#allocation21 + $0x140] sm:$0xff]
        %v7504 = vld [vmem:[#allocation21 + $0x148] sm:$0xff]
        %v7505 = vld [vmem:[#allocation21 + $0x150] sm:$0xff]
        %v7506 = vld [vmem:[#allocation21 + $0x158] sm:$0xff]
        %v7507 = vld [vmem:[#allocation21 + $0x160] sm:$0xff]
        %v7508 = vld [vmem:[#allocation21 + $0x168] sm:$0xff]
        %v7509 = vld [vmem:[#allocation21 + $0x170] sm:$0xff]
        %v7510 = vld [vmem:[#allocation21 + $0x178] sm:$0xff]
        %v7511 = vld [vmem:[#allocation21 + $0x180] sm:$0xff]
        %v7512 = vld [vmem:[#allocation21 + $0x188] sm:$0xff]
        %v7513 = vld [vmem:[#allocation21 + $0x190] sm:$0xff]
        %v7514 = vld [vmem:[#allocation21 + $0x198] sm:$0xff]
        %v7515 = vld [vmem:[#allocation21 + $0x1a0] sm:$0xff]
        %v7516 = vld [vmem:[#allocation21 + $0x1a8] sm:$0xff]
        %v7517 = vld [vmem:[#allocation21 + $0x1b0] sm:$0xff]
        %v7518 = vld [vmem:[#allocation21 + $0x1b8] sm:$0xff]
        %v7519 = vld [vmem:[#allocation21 + $0x1c0] sm:$0xff]
        %v7520 = vld [vmem:[#allocation21 + $0x1c8] sm:$0xff]
        %v7521 = vld [vmem:[#allocation21 + $0x1d0] sm:$0xff]
        %v7522 = vld [vmem:[#allocation21 + $0x1d8] sm:$0xff]
        %v7523 = vld [vmem:[#allocation21 + $0x1e0] sm:$0xff]
        %v7524 = vld [vmem:[#allocation21 + $0x1e8] sm:$0xff]
        %v7525 = vld [vmem:[#allocation21 + $0x1f0] sm:$0xff]
        %v7526 = vld [vmem:[#allocation21 + $0x1f8] sm:$0xff]
        %v7527 = vld [vmem:[#allocation22] sm:$0x3]
        %v7529 = vlaneseq
        %v7530 = vshrl.u32 %v7529, 7
        %v7531 = vsub.s32 0, %v7530
        %v7532 = vrot.slane %v7527, %v7531
        %v7533 = vlaneseq
        %v7534 = vshrl.u32 %v7533, 7
        %v7535 = vsub.s32 1, %v7534
        %v7536 = vrot.slane %v7527, %v7535
        %v7603 = vunpack.c.l.b16 %v7463
        %v7604 = vunpack.c.h.b16 %v7463
        %v7605 = vunpack.c.l.b16 %v7464
        %v7606 = vunpack.c.h.b16 %v7464
        %v7607 = vunpack.c.l.b16 %v7465
        %v7608 = vunpack.c.h.b16 %v7465
        %v7609 = vunpack.c.l.b16 %v7466
        %v7610 = vunpack.c.h.b16 %v7466
        %v7611 = vunpack.c.l.b16 %v7467
        %v7612 = vunpack.c.h.b16 %v7467
        %v7613 = vunpack.c.l.b16 %v7468
        %v7614 = vunpack.c.h.b16 %v7468
        %v7615 = vunpack.c.l.b16 %v7469
        %v7616 = vunpack.c.h.b16 %v7469
        %v7617 = vunpack.c.l.b16 %v7470
        %v7618 = vunpack.c.h.b16 %v7470
        %v7619 = vunpack.c.l.b16 %v7471
        %v7620 = vunpack.c.h.b16 %v7471
        %v7621 = vunpack.c.l.b16 %v7472
        %v7622 = vunpack.c.h.b16 %v7472
        %v7623 = vunpack.c.l.b16 %v7473
        %v7624 = vunpack.c.h.b16 %v7473
        %v7625 = vunpack.c.l.b16 %v7474
        %v7626 = vunpack.c.h.b16 %v7474
        %v7627 = vunpack.c.l.b16 %v7475
        %v7628 = vunpack.c.h.b16 %v7475
        %v7629 = vunpack.c.l.b16 %v7476
        %v7630 = vunpack.c.h.b16 %v7476
        %v7631 = vunpack.c.l.b16 %v7477
        %v7632 = vunpack.c.h.b16 %v7477
        %v7633 = vunpack.c.l.b16 %v7478
        %v7634 = vunpack.c.h.b16 %v7478
        %v7635 = vunpack.c.l.b16 %v7479
        %v7636 = vunpack.c.h.b16 %v7479
        %v7637 = vunpack.c.l.b16 %v7480
        %v7638 = vunpack.c.h.b16 %v7480
        %v7639 = vunpack.c.l.b16 %v7481
        %v7640 = vunpack.c.h.b16 %v7481
        %v7641 = vunpack.c.l.b16 %v7482
        %v7642 = vunpack.c.h.b16 %v7482
        %v7643 = vunpack.c.l.b16 %v7483
        %v7644 = vunpack.c.h.b16 %v7483
        %v7645 = vunpack.c.l.b16 %v7484
        %v7646 = vunpack.c.h.b16 %v7484
        %v7647 = vunpack.c.l.b16 %v7485
        %v7648 = vunpack.c.h.b16 %v7485
        %v7649 = vunpack.c.l.b16 %v7486
        %v7650 = vunpack.c.h.b16 %v7486
        %v7651 = vunpack.c.l.b16 %v7487
        %v7652 = vunpack.c.h.b16 %v7487
        %v7653 = vunpack.c.l.b16 %v7488
        %v7654 = vunpack.c.h.b16 %v7488
        %v7655 = vunpack.c.l.b16 %v7489
        %v7656 = vunpack.c.h.b16 %v7489
        %v7657 = vunpack.c.l.b16 %v7490
        %v7658 = vunpack.c.h.b16 %v7490
        %v7659 = vunpack.c.l.b16 %v7491
        %v7660 = vunpack.c.h.b16 %v7491
        %v7661 = vunpack.c.l.b16 %v7492
        %v7662 = vunpack.c.h.b16 %v7492
        %v7663 = vunpack.c.l.b16 %v7493
        %v7664 = vunpack.c.h.b16 %v7493
        %v7665 = vunpack.c.l.b16 %v7494
        %v7666 = vunpack.c.h.b16 %v7494
        %v7667 = vunpack.c.l.b16 %v7495
        %v7668 = vunpack.c.h.b16 %v7495
        %v7669 = vunpack.c.l.b16 %v7496
        %v7670 = vunpack.c.h.b16 %v7496
        %v7671 = vunpack.c.l.b16 %v7497
        %v7672 = vunpack.c.h.b16 %v7497
        %v7673 = vunpack.c.l.b16 %v7498
        %v7674 = vunpack.c.h.b16 %v7498
        %v7675 = vunpack.c.l.b16 %v7499
        %v7676 = vunpack.c.h.b16 %v7499
        %v7677 = vunpack.c.l.b16 %v7500
        %v7678 = vunpack.c.h.b16 %v7500
        %v7679 = vunpack.c.l.b16 %v7501
        %v7680 = vunpack.c.h.b16 %v7501
        %v7681 = vunpack.c.l.b16 %v7502
        %v7682 = vunpack.c.h.b16 %v7502
        %v7683 = vunpack.c.l.b16 %v7503
        %v7684 = vunpack.c.h.b16 %v7503
        %v7685 = vunpack.c.l.b16 %v7504
        %v7686 = vunpack.c.h.b16 %v7504
        %v7687 = vunpack.c.l.b16 %v7505
        %v7688 = vunpack.c.h.b16 %v7505
        %v7689 = vunpack.c.l.b16 %v7506
        %v7690 = vunpack.c.h.b16 %v7506
        %v7691 = vunpack.c.l.b16 %v7507
        %v7692 = vunpack.c.h.b16 %v7507
        %v7693 = vunpack.c.l.b16 %v7508
        %v7694 = vunpack.c.h.b16 %v7508
        %v7695 = vunpack.c.l.b16 %v7509
        %v7696 = vunpack.c.h.b16 %v7509
        %v7697 = vunpack.c.l.b16 %v7510
        %v7698 = vunpack.c.h.b16 %v7510
        %v7699 = vunpack.c.l.b16 %v7511
        %v7700 = vunpack.c.h.b16 %v7511
        %v7701 = vunpack.c.l.b16 %v7512
        %v7702 = vunpack.c.h.b16 %v7512
        %v7703 = vunpack.c.l.b16 %v7513
        %v7704 = vunpack.c.h.b16 %v7513
        %v7705 = vunpack.c.l.b16 %v7514
        %v7706 = vunpack.c.h.b16 %v7514
        %v7707 = vunpack.c.l.b16 %v7515
        %v7708 = vunpack.c.h.b16 %v7515
        %v7709 = vunpack.c.l.b16 %v7516
        %v7710 = vunpack.c.h.b16 %v7516
        %v7711 = vunpack.c.l.b16 %v7517
        %v7712 = vunpack.c.h.b16 %v7517
        %v7713 = vunpack.c.l.b16 %v7518
        %v7714 = vunpack.c.h.b16 %v7518
        %v7715 = vunpack.c.l.b16 %v7519
        %v7716 = vunpack.c.h.b16 %v7519
        %v7717 = vunpack.c.l.b16 %v7520
        %v7718 = vunpack.c.h.b16 %v7520
        %v7719 = vunpack.c.l.b16 %v7521
        %v7720 = vunpack.c.h.b16 %v7521
        %v7721 = vunpack.c.l.b16 %v7522
        %v7722 = vunpack.c.h.b16 %v7522
        %v7723 = vunpack.c.l.b16 %v7523
        %v7724 = vunpack.c.h.b16 %v7523
        %v7725 = vunpack.c.l.b16 %v7524
        %v7726 = vunpack.c.h.b16 %v7524
        %v7727 = vunpack.c.l.b16 %v7525
        %v7728 = vunpack.c.h.b16 %v7525
        %v7729 = vunpack.c.l.b16 %v7526
        %v7730 = vunpack.c.h.b16 %v7526
        %v7731 = vpack.c.b16 %v7605, %v7603
        %v7732 = vpack.c.b16 %v7606, %v7604
        %v7733 = vpack.c.b16 %v7609, %v7607
        %v7734 = vpack.c.b16 %v7610, %v7608
        %v7735 = vpack.c.b16 %v7613, %v7611
        %v7736 = vpack.c.b16 %v7614, %v7612
        %v7737 = vpack.c.b16 %v7617, %v7615
        %v7738 = vpack.c.b16 %v7618, %v7616
        %v7739 = vpack.c.b16 %v7621, %v7619
        %v7740 = vpack.c.b16 %v7622, %v7620
        %v7741 = vpack.c.b16 %v7625, %v7623
        %v7742 = vpack.c.b16 %v7626, %v7624
        %v7743 = vpack.c.b16 %v7629, %v7627
        %v7744 = vpack.c.b16 %v7630, %v7628
        %v7745 = vpack.c.b16 %v7633, %v7631
        %v7746 = vpack.c.b16 %v7634, %v7632
        %v7747 = vpack.c.b16 %v7637, %v7635
        %v7748 = vpack.c.b16 %v7638, %v7636
        %v7749 = vpack.c.b16 %v7641, %v7639
        %v7750 = vpack.c.b16 %v7642, %v7640
        %v7751 = vpack.c.b16 %v7645, %v7643
        %v7752 = vpack.c.b16 %v7646, %v7644
        %v7753 = vpack.c.b16 %v7649, %v7647
        %v7754 = vpack.c.b16 %v7650, %v7648
        %v7755 = vpack.c.b16 %v7653, %v7651
        %v7756 = vpack.c.b16 %v7654, %v7652
        %v7757 = vpack.c.b16 %v7657, %v7655
        %v7758 = vpack.c.b16 %v7658, %v7656
        %v7759 = vpack.c.b16 %v7661, %v7659
        %v7760 = vpack.c.b16 %v7662, %v7660
        %v7761 = vpack.c.b16 %v7665, %v7663
        %v7762 = vpack.c.b16 %v7666, %v7664
        %v7763 = vpack.c.b16 %v7669, %v7667
        %v7764 = vpack.c.b16 %v7670, %v7668
        %v7765 = vpack.c.b16 %v7673, %v7671
        %v7766 = vpack.c.b16 %v7674, %v7672
        %v7767 = vpack.c.b16 %v7677, %v7675
        %v7768 = vpack.c.b16 %v7678, %v7676
        %v7769 = vpack.c.b16 %v7681, %v7679
        %v7770 = vpack.c.b16 %v7682, %v7680
        %v7771 = vpack.c.b16 %v7685, %v7683
        %v7772 = vpack.c.b16 %v7686, %v7684
        %v7773 = vpack.c.b16 %v7689, %v7687
        %v7774 = vpack.c.b16 %v7690, %v7688
        %v7775 = vpack.c.b16 %v7693, %v7691
        %v7776 = vpack.c.b16 %v7694, %v7692
        %v7777 = vpack.c.b16 %v7697, %v7695
        %v7778 = vpack.c.b16 %v7698, %v7696
        %v7779 = vpack.c.b16 %v7701, %v7699
        %v7780 = vpack.c.b16 %v7702, %v7700
        %v7781 = vpack.c.b16 %v7705, %v7703
        %v7782 = vpack.c.b16 %v7706, %v7704
        %v7783 = vpack.c.b16 %v7709, %v7707
        %v7784 = vpack.c.b16 %v7710, %v7708
        %v7785 = vpack.c.b16 %v7713, %v7711
        %v7786 = vpack.c.b16 %v7714, %v7712
        %v7787 = vpack.c.b16 %v7717, %v7715
        %v7788 = vpack.c.b16 %v7718, %v7716
        %v7789 = vpack.c.b16 %v7721, %v7719
        %v7790 = vpack.c.b16 %v7722, %v7720
        %v7791 = vpack.c.b16 %v7725, %v7723
        %v7792 = vpack.c.b16 %v7726, %v7724
        %v7793 = vpack.c.b16 %v7729, %v7727
        %v7794 = vpack.c.b16 %v7730, %v7728
        %7859 = vmatprep.subr.bf16.mxu0 %v7732
        %7860 = vmatpush1.bf16.msra.mxu0 %v7731
        %7861 = vmatprep.subr.bf16.mxu0 %v7734
        %7862 = vmatpush1.bf16.msra.mxu0 %v7733
        %7863 = vmatprep.subr.bf16.mxu0 %v7736
        %7864 = vmatpush1.bf16.msra.mxu0 %v7735
        %7865 = vmatprep.subr.bf16.mxu0 %v7738
        %7866 = vmatpush1.bf16.msra.mxu0 %v7737
        %7867 = vmatprep.subr.bf16.mxu0 %v7740
        %7868 = vmatpush1.bf16.msra.mxu0 %v7739
        %7869 = vmatprep.subr.bf16.mxu0 %v7742
        %7870 = vmatpush1.bf16.msra.mxu0 %v7741
        %7871 = vmatprep.subr.bf16.mxu0 %v7744
        %7872 = vmatpush1.bf16.msra.mxu0 %v7743
        %7873 = vmatprep.subr.bf16.mxu0 %v7746
        %7874 = vmatpush1.bf16.msra.mxu0 %v7745
        %7875 = vmatprep.subr.bf16.mxu0 %v7748
        %7876 = vmatpush1.bf16.msra.mxu0 %v7747
        %7877 = vmatprep.subr.bf16.mxu0 %v7750
        %7878 = vmatpush1.bf16.msra.mxu0 %v7749
        %7879 = vmatprep.subr.bf16.mxu0 %v7752
        %7880 = vmatpush1.bf16.msra.mxu0 %v7751
        %7881 = vmatprep.subr.bf16.mxu0 %v7754
        %7882 = vmatpush1.bf16.msra.mxu0 %v7753
        %7883 = vmatprep.subr.bf16.mxu0 %v7756
        %7884 = vmatpush1.bf16.msra.mxu0 %v7755
        %7885 = vmatprep.subr.bf16.mxu0 %v7758
        %7886 = vmatpush1.bf16.msra.mxu0 %v7757
        %7887 = vmatprep.subr.bf16.mxu0 %v7760
        %7888 = vmatpush1.bf16.msra.mxu0 %v7759
        %7889 = vmatprep.subr.bf16.mxu0 %v7762
        %7890 = vmatpush1.bf16.msra.mxu0 %v7761
        %7891 = vmatprep.mubr.bf16.mxu0 %v7356
        %7892 = vmatmul.mubr.bf16.gmra.mrb[0].mxu0 %v7303
        %v7893 = vpop.f32.mrb[0].mxu0
        %v7894 = vadd.f32 %v7532, %v7893
        %v7895 = vpop.f32.mrb[0].mxu0
        %v7896 = vadd.f32 %v7536, %v7895
        %v7897 = vpop.f32.mrb[0].mxu0
        %v7898 = vadd.f32 %v7532, %v7897
        %v7899 = vpop.f32.mrb[0].mxu0
        %v7900 = vadd.f32 %v7536, %v7899
        %7901 = vdwg.mxu0
        %7902 = vmatprep.subr.bf16.mxu0 %v7764
        %7903 = vmatpush1.bf16.msra.mxu0 %v7763
        %7904 = vmatprep.subr.bf16.mxu0 %v7766
        %7905 = vmatpush1.bf16.msra.mxu0 %v7765
        %7906 = vmatprep.subr.bf16.mxu0 %v7768
        %7907 = vmatpush1.bf16.msra.mxu0 %v7767
        %7908 = vmatprep.subr.bf16.mxu0 %v7770
        %7909 = vmatpush1.bf16.msra.mxu0 %v7769
        %7910 = vmatprep.subr.bf16.mxu0 %v7772
        %7911 = vmatpush1.bf16.msra.mxu0 %v7771
        %7912 = vmatprep.subr.bf16.mxu0 %v7774
        %7913 = vmatpush1.bf16.msra.mxu0 %v7773
        %7914 = vmatprep.subr.bf16.mxu0 %v7776
        %7915 = vmatpush1.bf16.msra.mxu0 %v7775
        %7916 = vmatprep.subr.bf16.mxu0 %v7778
        %7917 = vmatpush1.bf16.msra.mxu0 %v7777
        %7918 = vmatprep.subr.bf16.mxu0 %v7780
        %7919 = vmatpush1.bf16.msra.mxu0 %v7779
        %7920 = vmatprep.subr.bf16.mxu0 %v7782
        %7921 = vmatpush1.bf16.msra.mxu0 %v7781
        %7922 = vmatprep.subr.bf16.mxu0 %v7784
        %7923 = vmatpush1.bf16.msra.mxu0 %v7783
        %7924 = vmatprep.subr.bf16.mxu0 %v7786
        %7925 = vmatpush1.bf16.msra.mxu0 %v7785
        %7926 = vmatprep.subr.bf16.mxu0 %v7788
        %7927 = vmatpush1.bf16.msra.mxu0 %v7787
        %7928 = vmatprep.subr.bf16.mxu0 %v7790
        %7929 = vmatpush1.bf16.msra.mxu0 %v7789
        %7930 = vmatprep.subr.bf16.mxu0 %v7792
        %7931 = vmatpush1.bf16.msra.mxu0 %v7791
        %7932 = vmatprep.subr.bf16.mxu0 %v7794
        %7933 = vmatpush1.bf16.msra.mxu0 %v7793
        %7934 = vmatprep.mubr.bf16.mxu0 %v7462
        %7935 = vmatmul.mubr.bf16.gmra.mrb[0].mxu0 %v7409
        %v7936 = vpop.f32.mrb[0].mxu0
        %v7937 = vadd.f32 %v7894, %v7936
        %v7938 = vpop.f32.mrb[0].mxu0
        %v7939 = vadd.f32 %v7896, %v7938
        %v7940 = vpop.f32.mrb[0].mxu0
        %v7941 = vadd.f32 %v7898, %v7940
        %v7942 = vpop.f32.mrb[0].mxu0
        %v7943 = vadd.f32 %v7900, %v7942
        %7944 = vdwg.mxu0
        %v7945 = vmax.f32 %v7937, 0.0
        %v7946 = vmax.f32 %v7939, 0.0
        %v7947 = vmax.f32 %v7941, 0.0
        %v7948 = vmax.f32 %v7943, 0.0
        %v7949 = vld [vmem:[%s17] sm:$0xff]
        %v7950 = vld [vmem:[%s17 + $0x8] sm:$0xff]
        %v7951 = vld [vmem:[%s17 + $0x10] sm:$0xff]
        %v7952 = vld [vmem:[%s17 + $0x18] sm:$0xff]
        %v7953 = vld [vmem:[%s17 + $0x20] sm:$0xff]
        %v7954 = vld [vmem:[%s17 + $0x28] sm:$0xff]
        %v7955 = vld [vmem:[%s17 + $0x30] sm:$0xff]
        %v7956 = vld [vmem:[%s17 + $0x38] sm:$0xff]
        %s7957 = scalar_lea.vmem %s17, 64
        %v7958 = vld [vmem:[%s7957] sm:$0xff]
        %v7959 = vld [vmem:[%s7957 + $0x8] sm:$0xff]
        %v7960 = vld [vmem:[%s7957 + $0x10] sm:$0xff]
        %v7961 = vld [vmem:[%s7957 + $0x18] sm:$0xff]
        %v7962 = vld [vmem:[%s7957 + $0x20] sm:$0xff]
        %v7963 = vld [vmem:[%s7957 + $0x28] sm:$0xff]
        %v7964 = vld [vmem:[%s7957 + $0x30] sm:$0xff]
        %v7965 = vld [vmem:[%s7957 + $0x38] sm:$0xff]
        %7968 = vrot.lane.b32.xlu0 %v7945, 64
        %v7969 = vpop.permute.xlu0 %7968
        %7970 = vrot.lane.b32.xlu0 %v7947, 64
        %v7971 = vpop.permute.xlu0 %7970
        %v7975 = vsel %vm3312, %v7958, 0
        %v7978 = vsel %vm3312, %v7959, 0
        %v7981 = vsel %vm3312, %v7960, 0
        %v7984 = vsel %vm3312, %v7961, 0
        %v7987 = vsel %vm3312, %v7962, 0
        %v7990 = vsel %vm3312, %v7963, 0
        %v7993 = vsel %vm3312, %v7964, 0
        %v7996 = vsel %vm3312, %v7965, 0
        %7998 = vmatprep.subr.mxu0 0.0
        %7999 = vmatpush1.msra.mxu0 %v7969
        %8000 = vmatprep.subr.mxu0 0.0
        %8001 = vmatpush1.msra.mxu0 %v7971
        %8002 = vmatprep.subr.mxu0 0.0
        %8003 = vmatpush1.msra.mxu0 0.0
        %8004 = vmatprep.subr.mxu0 0.0
        %8005 = vmatpush1.msra.mxu0 0.0
        %8006 = vmatprep.subr.mxu0 0.0
        %8007 = vmatpush1.msra.mxu0 0.0
        %8008 = vmatprep.subr.mxu0 0.0
        %8009 = vmatpush1.msra.mxu0 0.0
        %8010 = vmatprep.subr.mxu0 0.0
        %8011 = vmatpush1.msra.mxu0 0.0
        %8012 = vmatprep.subr.mxu0 0.0
        %8013 = vmatpush1.msra.mxu0 0.0
        %8014 = vmatprep.subr.mxu0 0.0
        %8015 = vmatpush1.msra.mxu0 0.0
        %8016 = vmatprep.subr.mxu0 0.0
        %8017 = vmatpush1.msra.mxu0 0.0
        %8018 = vmatprep.subr.mxu0 0.0
        %8019 = vmatpush1.msra.mxu0 0.0
        %8020 = vmatprep.subr.mxu0 0.0
        %8021 = vmatpush1.msra.mxu0 0.0
        %8022 = vmatprep.subr.mxu0 0.0
        %8023 = vmatpush1.msra.mxu0 0.0
        %8024 = vmatprep.subr.mxu0 0.0
        %8025 = vmatpush1.msra.mxu0 0.0
        %8026 = vmatprep.subr.mxu0 0.0
        %8027 = vmatpush1.msra.mxu0 0.0
        %8028 = vmatprep.subr.mxu0 0.0
        %8029 = vmatpush1.msra.mxu0 0.0
        %8030 = vmatprep.subr.mxu0 0.0
        %8031 = vmatpush1.msra.mxu0 0.0
        %8032 = vmatprep.subr.mxu0 0.0
        %8033 = vmatpush1.msra.mxu0 0.0
        %8034 = vmatprep.subr.mxu0 0.0
        %8035 = vmatpush1.msra.mxu0 0.0
        %8036 = vmatprep.subr.mxu0 0.0
        %8037 = vmatpush1.msra.mxu0 0.0
        %8038 = vmatprep.subr.mxu0 0.0
        %8039 = vmatpush1.msra.mxu0 0.0
        %8040 = vmatprep.subr.mxu0 0.0
        %8041 = vmatpush1.msra.mxu0 0.0
        %8042 = vmatprep.subr.mxu0 0.0
        %8043 = vmatpush1.msra.mxu0 0.0
        %8044 = vmatprep.subr.mxu0 0.0
        %8045 = vmatpush1.msra.mxu0 0.0
        %8046 = vmatprep.subr.mxu0 0.0
        %8047 = vmatpush1.msra.mxu0 0.0
        %8048 = vmatprep.subr.mxu0 0.0
        %8049 = vmatpush1.msra.mxu0 0.0
        %8050 = vmatprep.subr.mxu0 0.0
        %8051 = vmatpush1.msra.mxu0 0.0
        %8052 = vmatprep.subr.mxu0 0.0
        %8053 = vmatpush1.msra.mxu0 0.0
        %8054 = vmatprep.subr.mxu0 0.0
        %8055 = vmatpush1.msra.mxu0 0.0
        %8056 = vmatprep.subr.mxu0 0.0
        %8057 = vmatpush1.msra.mxu0 0.0
        %8058 = vmatprep.subr.mxu0 0.0
        %8059 = vmatpush1.msra.mxu0 0.0
        %8060 = vmatprep.subr.mxu0 0.0
        %8061 = vmatpush1.msra.mxu0 0.0
        %8062 = vmatprep.mubr.f32.mxu0 0.0
        %8063 = vmatmul.mubr.f32.gmra.mrb[0].mxu0 %v7975
        %v8064 = vpop.f32.mrb[0].mxu0
        %v8065 = vadd.f32 0.0, %v8064
        %v8066 = vpop.f32.mrb[0].mxu0
        %8067 = vmatprep.mubr.f32.mxu0 0.0
        %8068 = vmatmul.mubr.f32.gmra.mrb[0].mxu0 %v7978
        %v8069 = vpop.f32.mrb[0].mxu0
        %v8070 = vadd.f32 0.0, %v8069
        %v8071 = vpop.f32.mrb[0].mxu0
        %8072 = vmatprep.mubr.f32.mxu0 0.0
        %8073 = vmatmul.mubr.f32.gmra.mrb[0].mxu0 %v7981
        %v8074 = vpop.f32.mrb[0].mxu0
        %v8075 = vadd.f32 0.0, %v8074
        %v8076 = vpop.f32.mrb[0].mxu0
        %8077 = vmatprep.mubr.f32.mxu0 0.0
        %8078 = vmatmul.mubr.f32.gmra.mrb[0].mxu0 %v7984
        %v8079 = vpop.f32.mrb[0].mxu0
        %v8080 = vadd.f32 0.0, %v8079
        %v8081 = vpop.f32.mrb[0].mxu0
        %8082 = vmatprep.mubr.f32.mxu0 0.0
        %8083 = vmatmul.mubr.f32.gmra.mrb[0].mxu0 %v7987
        %v8084 = vpop.f32.mrb[0].mxu0
        %v8085 = vadd.f32 0.0, %v8084
        %v8086 = vpop.f32.mrb[0].mxu0
        %8087 = vmatprep.mubr.f32.mxu0 0.0
        %8088 = vmatmul.mubr.f32.gmra.mrb[0].mxu0 %v7990
        %v8089 = vpop.f32.mrb[0].mxu0
        %v8090 = vadd.f32 0.0, %v8089
        %v8091 = vpop.f32.mrb[0].mxu0
        %8092 = vmatprep.mubr.f32.mxu0 0.0
        %8093 = vmatmul.mubr.f32.gmra.mrb[0].mxu0 %v7993
        %v8094 = vpop.f32.mrb[0].mxu0
        %v8095 = vadd.f32 0.0, %v8094
        %v8096 = vpop.f32.mrb[0].mxu0
        %8097 = vmatprep.mubr.f32.mxu0 0.0
        %8098 = vmatmul.mubr.f32.gmra.mrb[0].mxu0 %v7996
        %v8099 = vpop.f32.mrb[0].mxu0
        %v8100 = vadd.f32 0.0, %v8099
        %v8101 = vpop.f32.mrb[0].mxu0
        %8102 = vdwg.mxu0
        %v8104 = vsel %vm3312, %v7949, 0
        %v8107 = vsel %vm3312, %v7950, 0
        %v8110 = vsel %vm3312, %v7951, 0
        %v8113 = vsel %vm3312, %v7952, 0
        %v8116 = vsel %vm3312, %v7953, 0
        %v8119 = vsel %vm3312, %v7954, 0
        %v8122 = vsel %vm3312, %v7955, 0
        %v8125 = vsel %vm3312, %v7956, 0
        %8127 = vmatprep.subr.mxu0 0.0
        %8128 = vmatpush1.msra.mxu0 %v7945
        %8129 = vmatprep.subr.mxu0 0.0
        %8130 = vmatpush1.msra.mxu0 %v7947
        %8131 = vmatprep.subr.mxu0 0.0
        %8132 = vmatpush1.msra.mxu0 0.0
        %8133 = vmatprep.subr.mxu0 0.0
        %8134 = vmatpush1.msra.mxu0 0.0
        %8135 = vmatprep.subr.mxu0 0.0
        %8136 = vmatpush1.msra.mxu0 0.0
        %8137 = vmatprep.subr.mxu0 0.0
        %8138 = vmatpush1.msra.mxu0 0.0
        %8139 = vmatprep.subr.mxu0 0.0
        %8140 = vmatpush1.msra.mxu0 0.0
        %8141 = vmatprep.subr.mxu0 0.0
        %8142 = vmatpush1.msra.mxu0 0.0
        %8143 = vmatprep.subr.mxu0 0.0
        %8144 = vmatpush1.msra.mxu0 0.0
        %8145 = vmatprep.subr.mxu0 0.0
        %8146 = vmatpush1.msra.mxu0 0.0
        %8147 = vmatprep.subr.mxu0 0.0
        %8148 = vmatpush1.msra.mxu0 0.0
        %8149 = vmatprep.subr.mxu0 0.0
        %8150 = vmatpush1.msra.mxu0 0.0
        %8151 = vmatprep.subr.mxu0 0.0
        %8152 = vmatpush1.msra.mxu0 0.0
        %8153 = vmatprep.subr.mxu0 0.0
        %8154 = vmatpush1.msra.mxu0 0.0
        %8155 = vmatprep.subr.mxu0 0.0
        %8156 = vmatpush1.msra.mxu0 0.0
        %8157 = vmatprep.subr.mxu0 0.0
        %8158 = vmatpush1.msra.mxu0 0.0
        %8159 = vmatprep.subr.mxu0 0.0
        %8160 = vmatpush1.msra.mxu0 0.0
        %8161 = vmatprep.subr.mxu0 0.0
        %8162 = vmatpush1.msra.mxu0 0.0
        %8163 = vmatprep.subr.mxu0 0.0
        %8164 = vmatpush1.msra.mxu0 0.0
        %8165 = vmatprep.subr.mxu0 0.0
        %8166 = vmatpush1.msra.mxu0 0.0
        %8167 = vmatprep.subr.mxu0 0.0
        %8168 = vmatpush1.msra.mxu0 0.0
        %8169 = vmatprep.subr.mxu0 0.0
        %8170 = vmatpush1.msra.mxu0 0.0
        %8171 = vmatprep.subr.mxu0 0.0
        %8172 = vmatpush1.msra.mxu0 0.0
        %8173 = vmatprep.subr.mxu0 0.0
        %8174 = vmatpush1.msra.mxu0 0.0
        %8175 = vmatprep.subr.mxu0 0.0
        %8176 = vmatpush1.msra.mxu0 0.0
        %8177 = vmatprep.subr.mxu0 0.0
        %8178 = vmatpush1.msra.mxu0 0.0
        %8179 = vmatprep.subr.mxu0 0.0
        %8180 = vmatpush1.msra.mxu0 0.0
        %8181 = vmatprep.subr.mxu0 0.0
        %8182 = vmatpush1.msra.mxu0 0.0
        %8183 = vmatprep.subr.mxu0 0.0
        %8184 = vmatpush1.msra.mxu0 0.0
        %8185 = vmatprep.subr.mxu0 0.0
        %8186 = vmatpush1.msra.mxu0 0.0
        %8187 = vmatprep.subr.mxu0 0.0
        %8188 = vmatpush1.msra.mxu0 0.0
        %8189 = vmatprep.subr.mxu0 0.0
        %8190 = vmatpush1.msra.mxu0 0.0
        %8191 = vmatprep.mubr.f32.mxu0 0.0
        %8192 = vmatmul.mubr.f32.gmra.mrb[0].mxu0 %v8104
        %v8193 = vpop.f32.mrb[0].mxu0
        %v8194 = vadd.f32 %v8065, %v8193
        %v8195 = vpop.f32.mrb[0].mxu0
        %8196 = vmatprep.mubr.f32.mxu0 0.0
        %8197 = vmatmul.mubr.f32.gmra.mrb[0].mxu0 %v8107
        %v8198 = vpop.f32.mrb[0].mxu0
        %v8199 = vadd.f32 %v8070, %v8198
        %v8200 = vpop.f32.mrb[0].mxu0
        %8201 = vmatprep.mubr.f32.mxu0 0.0
        %8202 = vmatmul.mubr.f32.gmra.mrb[0].mxu0 %v8110
        %v8203 = vpop.f32.mrb[0].mxu0
        %v8204 = vadd.f32 %v8075, %v8203
        %v8205 = vpop.f32.mrb[0].mxu0
        %8206 = vmatprep.mubr.f32.mxu0 0.0
        %8207 = vmatmul.mubr.f32.gmra.mrb[0].mxu0 %v8113
        %v8208 = vpop.f32.mrb[0].mxu0
        %v8209 = vadd.f32 %v8080, %v8208
        %v8210 = vpop.f32.mrb[0].mxu0
        %8211 = vmatprep.mubr.f32.mxu0 0.0
        %8212 = vmatmul.mubr.f32.gmra.mrb[0].mxu0 %v8116
        %v8213 = vpop.f32.mrb[0].mxu0
        %v8214 = vadd.f32 %v8085, %v8213
        %v8215 = vpop.f32.mrb[0].mxu0
        %8216 = vmatprep.mubr.f32.mxu0 0.0
        %8217 = vmatmul.mubr.f32.gmra.mrb[0].mxu0 %v8119
        %v8218 = vpop.f32.mrb[0].mxu0
        %v8219 = vadd.f32 %v8090, %v8218
        %v8220 = vpop.f32.mrb[0].mxu0
        %8221 = vmatprep.mubr.f32.mxu0 0.0
        %8222 = vmatmul.mubr.f32.gmra.mrb[0].mxu0 %v8122
        %v8223 = vpop.f32.mrb[0].mxu0
        %v8224 = vadd.f32 %v8095, %v8223
        %v8225 = vpop.f32.mrb[0].mxu0
        %8226 = vmatprep.mubr.f32.mxu0 0.0
        %8227 = vmatmul.mubr.f32.gmra.mrb[0].mxu0 %v8125
        %v8228 = vpop.f32.mrb[0].mxu0
        %v8229 = vadd.f32 %v8100, %v8228
        %v8230 = vpop.f32.mrb[0].mxu0
        %8231 = vdwg.mxu0
        %s8232 = scalar_lea.vmem %s17, 128
        %v8233 = vld [vmem:[%s8232] sm:$0xff]
        %v8234 = vld [vmem:[%s8232 + $0x8] sm:$0xff]
        %v8235 = vld [vmem:[%s8232 + $0x10] sm:$0xff]
        %v8236 = vld [vmem:[%s8232 + $0x18] sm:$0xff]
        %v8237 = vld [vmem:[%s8232 + $0x20] sm:$0xff]
        %v8238 = vld [vmem:[%s8232 + $0x28] sm:$0xff]
        %v8239 = vld [vmem:[%s8232 + $0x30] sm:$0xff]
        %v8240 = vld [vmem:[%s8232 + $0x38] sm:$0xff]
        %v8242 = vsel %vm3312, %v8233, 0
        %v8245 = vsel %vm3312, %v8234, 0
        %v8248 = vsel %vm3312, %v8235, 0
        %v8251 = vsel %vm3312, %v8236, 0
        %v8254 = vsel %vm3312, %v8237, 0
        %v8257 = vsel %vm3312, %v8238, 0
        %v8260 = vsel %vm3312, %v8239, 0
        %v8263 = vsel %vm3312, %v8240, 0
        %8265 = vmatprep.subr.mxu0 0.0
        %8266 = vmatpush1.msra.mxu0 %v7946
        %8267 = vmatprep.subr.mxu0 0.0
        %8268 = vmatpush1.msra.mxu0 %v7948
        %8269 = vmatprep.subr.mxu0 0.0
        %8270 = vmatpush1.msra.mxu0 0.0
        %8271 = vmatprep.subr.mxu0 0.0
        %8272 = vmatpush1.msra.mxu0 0.0
        %8273 = vmatprep.subr.mxu0 0.0
        %8274 = vmatpush1.msra.mxu0 0.0
        %8275 = vmatprep.subr.mxu0 0.0
        %8276 = vmatpush1.msra.mxu0 0.0
        %8277 = vmatprep.subr.mxu0 0.0
        %8278 = vmatpush1.msra.mxu0 0.0
        %8279 = vmatprep.subr.mxu0 0.0
        %8280 = vmatpush1.msra.mxu0 0.0
        %8281 = vmatprep.subr.mxu0 0.0
        %8282 = vmatpush1.msra.mxu0 0.0
        %8283 = vmatprep.subr.mxu0 0.0
        %8284 = vmatpush1.msra.mxu0 0.0
        %8285 = vmatprep.subr.mxu0 0.0
        %8286 = vmatpush1.msra.mxu0 0.0
        %8287 = vmatprep.subr.mxu0 0.0
        %8288 = vmatpush1.msra.mxu0 0.0
        %8289 = vmatprep.subr.mxu0 0.0
        %8290 = vmatpush1.msra.mxu0 0.0
        %8291 = vmatprep.subr.mxu0 0.0
        %8292 = vmatpush1.msra.mxu0 0.0
        %8293 = vmatprep.subr.mxu0 0.0
        %8294 = vmatpush1.msra.mxu0 0.0
        %8295 = vmatprep.subr.mxu0 0.0
        %8296 = vmatpush1.msra.mxu0 0.0
        %8297 = vmatprep.subr.mxu0 0.0
        %8298 = vmatpush1.msra.mxu0 0.0
        %8299 = vmatprep.subr.mxu0 0.0
        %8300 = vmatpush1.msra.mxu0 0.0
        %8301 = vmatprep.subr.mxu0 0.0
        %8302 = vmatpush1.msra.mxu0 0.0
        %8303 = vmatprep.subr.mxu0 0.0
        %8304 = vmatpush1.msra.mxu0 0.0
        %8305 = vmatprep.subr.mxu0 0.0
        %8306 = vmatpush1.msra.mxu0 0.0
        %8307 = vmatprep.subr.mxu0 0.0
        %8308 = vmatpush1.msra.mxu0 0.0
        %8309 = vmatprep.subr.mxu0 0.0
        %8310 = vmatpush1.msra.mxu0 0.0
        %8311 = vmatprep.subr.mxu0 0.0
        %8312 = vmatpush1.msra.mxu0 0.0
        %8313 = vmatprep.subr.mxu0 0.0
        %8314 = vmatpush1.msra.mxu0 0.0
        %8315 = vmatprep.subr.mxu0 0.0
        %8316 = vmatpush1.msra.mxu0 0.0
        %8317 = vmatprep.subr.mxu0 0.0
        %8318 = vmatpush1.msra.mxu0 0.0
        %8319 = vmatprep.subr.mxu0 0.0
        %8320 = vmatpush1.msra.mxu0 0.0
        %8321 = vmatprep.subr.mxu0 0.0
        %8322 = vmatpush1.msra.mxu0 0.0
        %8323 = vmatprep.subr.mxu0 0.0
        %8324 = vmatpush1.msra.mxu0 0.0
        %8325 = vmatprep.subr.mxu0 0.0
        %8326 = vmatpush1.msra.mxu0 0.0
        %8327 = vmatprep.subr.mxu0 0.0
        %8328 = vmatpush1.msra.mxu0 0.0
        %8329 = vmatprep.mubr.f32.mxu0 0.0
        %8330 = vmatmul.mubr.f32.gmra.mrb[0].mxu0 %v8242
        %v8331 = vpop.f32.mrb[0].mxu0
        %v8332 = vadd.f32 0.0, %v8331
        %v8333 = vpop.f32.mrb[0].mxu0
        %8334 = vmatprep.mubr.f32.mxu0 0.0
        %8335 = vmatmul.mubr.f32.gmra.mrb[0].mxu0 %v8245
        %v8336 = vpop.f32.mrb[0].mxu0
        %v8337 = vadd.f32 0.0, %v8336
        %v8338 = vpop.f32.mrb[0].mxu0
        %8339 = vmatprep.mubr.f32.mxu0 0.0
        %8340 = vmatmul.mubr.f32.gmra.mrb[0].mxu0 %v8248
        %v8341 = vpop.f32.mrb[0].mxu0
        %v8342 = vadd.f32 0.0, %v8341
        %v8343 = vpop.f32.mrb[0].mxu0
        %8344 = vmatprep.mubr.f32.mxu0 0.0
        %8345 = vmatmul.mubr.f32.gmra.mrb[0].mxu0 %v8251
        %v8346 = vpop.f32.mrb[0].mxu0
        %v8347 = vadd.f32 0.0, %v8346
        %v8348 = vpop.f32.mrb[0].mxu0
        %8349 = vmatprep.mubr.f32.mxu0 0.0
        %8350 = vmatmul.mubr.f32.gmra.mrb[0].mxu0 %v8254
        %v8351 = vpop.f32.mrb[0].mxu0
        %v8352 = vadd.f32 0.0, %v8351
        %v8353 = vpop.f32.mrb[0].mxu0
        %8354 = vmatprep.mubr.f32.mxu0 0.0
        %8355 = vmatmul.mubr.f32.gmra.mrb[0].mxu0 %v8257
        %v8356 = vpop.f32.mrb[0].mxu0
        %v8357 = vadd.f32 0.0, %v8356
        %v8358 = vpop.f32.mrb[0].mxu0
        %8359 = vmatprep.mubr.f32.mxu0 0.0
        %8360 = vmatmul.mubr.f32.gmra.mrb[0].mxu0 %v8260
        %v8361 = vpop.f32.mrb[0].mxu0
        %v8362 = vadd.f32 0.0, %v8361
        %v8363 = vpop.f32.mrb[0].mxu0
        %8364 = vmatprep.mubr.f32.mxu0 0.0
        %8365 = vmatmul.mubr.f32.gmra.mrb[0].mxu0 %v8263
        %v8366 = vpop.f32.mrb[0].mxu0
        %v8367 = vadd.f32 0.0, %v8366
        %v8368 = vpop.f32.mrb[0].mxu0
        %8369 = vdwg.mxu0
        %v8370 = vadd.f32 %v8194, %v8332
        %v8371 = vadd.f32 %v8199, %v8337
        %v8372 = vadd.f32 %v8204, %v8342
        %v8373 = vadd.f32 %v8209, %v8347
        %v8374 = vadd.f32 %v8214, %v8352
        %v8375 = vadd.f32 %v8219, %v8357
        %v8376 = vadd.f32 %v8224, %v8362
        %v8377 = vadd.f32 %v8229, %v8367
        %s8378 = scalar_lea.vmem %s17, 192
        %v8379 = vld [vmem:[%s8378] sm:$0xff]
        %v8380 = vld [vmem:[%s8378 + $0x8] sm:$0xff]
        %v8381 = vld [vmem:[%s8378 + $0x10] sm:$0xff]
        %v8382 = vld [vmem:[%s8378 + $0x18] sm:$0xff]
        %v8383 = vld [vmem:[%s8378 + $0x20] sm:$0xff]
        %v8384 = vld [vmem:[%s8378 + $0x28] sm:$0xff]
        %v8385 = vld [vmem:[%s8378 + $0x30] sm:$0xff]
        %v8386 = vld [vmem:[%s8378 + $0x38] sm:$0xff]
        %8389 = vrot.lane.b32.xlu0 %v7946, 64
        %v8390 = vpop.permute.xlu0 %8389
        %8391 = vrot.lane.b32.xlu0 %v7948, 64
        %v8392 = vpop.permute.xlu0 %8391
        %v8396 = vsel %vm3312, %v8379, 0
        %v8399 = vsel %vm3312, %v8380, 0
        %v8402 = vsel %vm3312, %v8381, 0
        %v8405 = vsel %vm3312, %v8382, 0
        %v8408 = vsel %vm3312, %v8383, 0
        %v8411 = vsel %vm3312, %v8384, 0
        %v8414 = vsel %vm3312, %v8385, 0
        %v8417 = vsel %vm3312, %v8386, 0
        %8419 = vmatprep.subr.mxu0 0.0
        %8420 = vmatpush1.msra.mxu0 %v8390
        %8421 = vmatprep.subr.mxu0 0.0
        %8422 = vmatpush1.msra.mxu0 %v8392
        %8423 = vmatprep.subr.mxu0 0.0
        %8424 = vmatpush1.msra.mxu0 0.0
        %8425 = vmatprep.subr.mxu0 0.0
        %8426 = vmatpush1.msra.mxu0 0.0
        %8427 = vmatprep.subr.mxu0 0.0
        %8428 = vmatpush1.msra.mxu0 0.0
        %8429 = vmatprep.subr.mxu0 0.0
        %8430 = vmatpush1.msra.mxu0 0.0
        %8431 = vmatprep.subr.mxu0 0.0
        %8432 = vmatpush1.msra.mxu0 0.0
        %8433 = vmatprep.subr.mxu0 0.0
        %8434 = vmatpush1.msra.mxu0 0.0
        %8435 = vmatprep.subr.mxu0 0.0
        %8436 = vmatpush1.msra.mxu0 0.0
        %8437 = vmatprep.subr.mxu0 0.0
        %8438 = vmatpush1.msra.mxu0 0.0
        %8439 = vmatprep.subr.mxu0 0.0
        %8440 = vmatpush1.msra.mxu0 0.0
        %8441 = vmatprep.subr.mxu0 0.0
        %8442 = vmatpush1.msra.mxu0 0.0
        %8443 = vmatprep.subr.mxu0 0.0
        %8444 = vmatpush1.msra.mxu0 0.0
        %8445 = vmatprep.subr.mxu0 0.0
        %8446 = vmatpush1.msra.mxu0 0.0
        %8447 = vmatprep.subr.mxu0 0.0
        %8448 = vmatpush1.msra.mxu0 0.0
        %8449 = vmatprep.subr.mxu0 0.0
        %8450 = vmatpush1.msra.mxu0 0.0
        %8451 = vmatprep.subr.mxu0 0.0
        %8452 = vmatpush1.msra.mxu0 0.0
        %8453 = vmatprep.subr.mxu0 0.0
        %8454 = vmatpush1.msra.mxu0 0.0
        %8455 = vmatprep.subr.mxu0 0.0
        %8456 = vmatpush1.msra.mxu0 0.0
        %8457 = vmatprep.subr.mxu0 0.0
        %8458 = vmatpush1.msra.mxu0 0.0
        %8459 = vmatprep.subr.mxu0 0.0
        %8460 = vmatpush1.msra.mxu0 0.0
        %8461 = vmatprep.subr.mxu0 0.0
        %8462 = vmatpush1.msra.mxu0 0.0
        %8463 = vmatprep.subr.mxu0 0.0
        %8464 = vmatpush1.msra.mxu0 0.0
        %8465 = vmatprep.subr.mxu0 0.0
        %8466 = vmatpush1.msra.mxu0 0.0
        %8467 = vmatprep.subr.mxu0 0.0
        %8468 = vmatpush1.msra.mxu0 0.0
        %8469 = vmatprep.subr.mxu0 0.0
        %8470 = vmatpush1.msra.mxu0 0.0
        %8471 = vmatprep.subr.mxu0 0.0
        %8472 = vmatpush1.msra.mxu0 0.0
        %8473 = vmatprep.subr.mxu0 0.0
        %8474 = vmatpush1.msra.mxu0 0.0
        %8475 = vmatprep.subr.mxu0 0.0
        %8476 = vmatpush1.msra.mxu0 0.0
        %8477 = vmatprep.subr.mxu0 0.0
        %8478 = vmatpush1.msra.mxu0 0.0
        %8479 = vmatprep.subr.mxu0 0.0
        %8480 = vmatpush1.msra.mxu0 0.0
        %8481 = vmatprep.subr.mxu0 0.0
        %8482 = vmatpush1.msra.mxu0 0.0
        %8483 = vmatprep.mubr.f32.mxu0 0.0
        %8484 = vmatmul.mubr.f32.gmra.mrb[0].mxu0 %v8396
        %v8485 = vpop.f32.mrb[0].mxu0
        %v8486 = vadd.f32 0.0, %v8485
        %v8487 = vpop.f32.mrb[0].mxu0
        %8488 = vmatprep.mubr.f32.mxu0 0.0
        %8489 = vmatmul.mubr.f32.gmra.mrb[0].mxu0 %v8399
        %v8490 = vpop.f32.mrb[0].mxu0
        %v8491 = vadd.f32 0.0, %v8490
        %v8492 = vpop.f32.mrb[0].mxu0
        %8493 = vmatprep.mubr.f32.mxu0 0.0
        %8494 = vmatmul.mubr.f32.gmra.mrb[0].mxu0 %v8402
        %v8495 = vpop.f32.mrb[0].mxu0
        %v8496 = vadd.f32 0.0, %v8495
        %v8497 = vpop.f32.mrb[0].mxu0
        %8498 = vmatprep.mubr.f32.mxu0 0.0
        %8499 = vmatmul.mubr.f32.gmra.mrb[0].mxu0 %v8405
        %v8500 = vpop.f32.mrb[0].mxu0
        %v8501 = vadd.f32 0.0, %v8500
        %v8502 = vpop.f32.mrb[0].mxu0
        %8503 = vmatprep.mubr.f32.mxu0 0.0
        %8504 = vmatmul.mubr.f32.gmra.mrb[0].mxu0 %v8408
        %v8505 = vpop.f32.mrb[0].mxu0
        %v8506 = vadd.f32 0.0, %v8505
        %v8507 = vpop.f32.mrb[0].mxu0
        %8508 = vmatprep.mubr.f32.mxu0 0.0
        %8509 = vmatmul.mubr.f32.gmra.mrb[0].mxu0 %v8411
        %v8510 = vpop.f32.mrb[0].mxu0
        %v8511 = vadd.f32 0.0, %v8510
        %v8512 = vpop.f32.mrb[0].mxu0
        %8513 = vmatprep.mubr.f32.mxu0 0.0
        %8514 = vmatmul.mubr.f32.gmra.mrb[0].mxu0 %v8414
        %v8515 = vpop.f32.mrb[0].mxu0
        %v8516 = vadd.f32 0.0, %v8515
        %v8517 = vpop.f32.mrb[0].mxu0
        %8518 = vmatprep.mubr.f32.mxu0 0.0
        %8519 = vmatmul.mubr.f32.gmra.mrb[0].mxu0 %v8417
        %v8520 = vpop.f32.mrb[0].mxu0
        %v8521 = vadd.f32 0.0, %v8520
        %v8522 = vpop.f32.mrb[0].mxu0
        %8523 = vdwg.mxu0
        %v8524 = vadd.f32 %v8370, %v8486
        %v8525 = vadd.f32 %v8371, %v8491
        %v8526 = vadd.f32 %v8372, %v8496
        %v8527 = vadd.f32 %v8373, %v8501
        %v8528 = vadd.f32 %v8374, %v8506
        %v8529 = vadd.f32 %v8375, %v8511
        %v8530 = vadd.f32 %v8376, %v8516
        %v8531 = vadd.f32 %v8377, %v8521
        %v8532 = vpack.c.bf16 %v8525, %v8524
        %v8533 = vpack.c.bf16 %v8527, %v8526
        %v8534 = vpack.c.bf16 %v8529, %v8528
        %v8535 = vpack.c.bf16 %v8531, %v8530
        %v8536 = vld [vmem:[#allocation24] sm:$0xf]
        %v8537 = vld [vmem:[#allocation24 + $0x4] sm:$0xf]
        %v8538 = vld [vmem:[#allocation24 + $0x8] sm:$0xf]
        %v8539 = vld [vmem:[#allocation24 + $0xc] sm:$0xf]
        %v8540 = vld [vmem:[#allocation24 + $0x10] sm:$0xf]
        %v8541 = vld [vmem:[#allocation24 + $0x14] sm:$0xf]
        %v8542 = vld [vmem:[#allocation24 + $0x18] sm:$0xf]
        %v8543 = vld [vmem:[#allocation24 + $0x1c] sm:$0xf]
        %v8552 = vunpack.c.l.b16 %v8536
        %v8553 = vunpack.c.l.b16 %v8537
        %v8554 = vunpack.c.l.b16 %v8538
        %v8555 = vunpack.c.l.b16 %v8539
        %v8556 = vunpack.c.l.b16 %v8540
        %v8557 = vunpack.c.l.b16 %v8541
        %v8558 = vunpack.c.l.b16 %v8542
        %v8559 = vunpack.c.l.b16 %v8543
        %v8560 = vpack.c.b16 %v8553, %v8552
        %v8561 = vpack.c.b16 %v8555, %v8554
        %v8562 = vpack.c.b16 %v8557, %v8556
        %v8563 = vpack.c.b16 %v8559, %v8558
        %v8565 = vsel %vm2389, %v8560, 0
        %v8568 = vsel %vm2389, %v8561, 0
        %v8571 = vsel %vm2389, %v8562, 0
        %v8574 = vsel %vm2389, %v8563, 0
        %8576 = vmatprep.subr.bf16.mxu0 0
        %8577 = vmatpush1.bf16.msra.mxu0 %v8532
        %8578 = vmatprep.subr.bf16.mxu0 0
        %8579 = vmatpush1.bf16.msra.mxu0 %v8533
        %8580 = vmatprep.subr.bf16.mxu0 0
        %8581 = vmatpush1.bf16.msra.mxu0 %v8534
        %8582 = vmatprep.subr.bf16.mxu0 0
        %8583 = vmatpush1.bf16.msra.mxu0 %v8535
        %8584 = vmatprep.subr.bf16.mxu0 0
        %8585 = vmatpush1.bf16.msra.mxu0 0
        %8586 = vmatprep.subr.bf16.mxu0 0
        %8587 = vmatpush1.bf16.msra.mxu0 0
        %8588 = vmatprep.subr.bf16.mxu0 0
        %8589 = vmatpush1.bf16.msra.mxu0 0
        %8590 = vmatprep.subr.bf16.mxu0 0
        %8591 = vmatpush1.bf16.msra.mxu0 0
        %8592 = vmatprep.subr.bf16.mxu0 0
        %8593 = vmatpush1.bf16.msra.mxu0 0
        %8594 = vmatprep.subr.bf16.mxu0 0
        %8595 = vmatpush1.bf16.msra.mxu0 0
        %8596 = vmatprep.subr.bf16.mxu0 0
        %8597 = vmatpush1.bf16.msra.mxu0 0
        %8598 = vmatprep.subr.bf16.mxu0 0
        %8599 = vmatpush1.bf16.msra.mxu0 0
        %8600 = vmatprep.subr.bf16.mxu0 0
        %8601 = vmatpush1.bf16.msra.mxu0 0
        %8602 = vmatprep.subr.bf16.mxu0 0
        %8603 = vmatpush1.bf16.msra.mxu0 0
        %8604 = vmatprep.subr.bf16.mxu0 0
        %8605 = vmatpush1.bf16.msra.mxu0 0
        %8606 = vmatprep.subr.bf16.mxu0 0
        %8607 = vmatpush1.bf16.msra.mxu0 0
        %8608 = vmatprep.mubr.bf16.mxu0 0
        %8609 = vmatmul.mubr.bf16.gmra.mrb[0].mxu0 %v8565
        %v8610 = vpop.f32.mrb[0].mxu0
        %v8611 = vadd.f32 0.0, %v8610
        %v8612 = vpop.f32.mrb[0].mxu0
        %v8613 = vpop.f32.mrb[0].mxu0
        %v8614 = vadd.f32 0.0, %v8613
        %v8615 = vpop.f32.mrb[0].mxu0
        %8616 = vmatprep.mubr.bf16.mxu0 0
        %8617 = vmatmul.mubr.bf16.gmra.mrb[0].mxu0 %v8568
        %v8618 = vpop.f32.mrb[0].mxu0
        %v8619 = vadd.f32 0.0, %v8618
        %v8620 = vpop.f32.mrb[0].mxu0
        %v8621 = vpop.f32.mrb[0].mxu0
        %v8622 = vadd.f32 0.0, %v8621
        %v8623 = vpop.f32.mrb[0].mxu0
        %8624 = vmatprep.mubr.bf16.mxu0 0
        %8625 = vmatmul.mubr.bf16.gmra.mrb[0].mxu0 %v8571
        %v8626 = vpop.f32.mrb[0].mxu0
        %v8627 = vadd.f32 0.0, %v8626
        %v8628 = vpop.f32.mrb[0].mxu0
        %v8629 = vpop.f32.mrb[0].mxu0
        %v8630 = vadd.f32 0.0, %v8629
        %v8631 = vpop.f32.mrb[0].mxu0
        %8632 = vmatprep.mubr.bf16.mxu0 0
        %8633 = vmatmul.mubr.bf16.gmra.mrb[0].mxu0 %v8574
        %v8634 = vpop.f32.mrb[0].mxu0
        %v8635 = vadd.f32 0.0, %v8634
        %v8636 = vpop.f32.mrb[0].mxu0
        %v8637 = vpop.f32.mrb[0].mxu0
        %v8638 = vadd.f32 0.0, %v8637
        %v8639 = vpop.f32.mrb[0].mxu0
        %8640 = vdwg.mxu0
        %v8641 = vpack.c.bf16 %v8614, %v8611
        %v8642 = vpack.c.bf16 %v8622, %v8619
        %v8643 = vpack.c.bf16 %v8630, %v8627
        %v8644 = vpack.c.bf16 %v8638, %v8635
        %s8645 = scalar_lea.vmem [#allocation24], 32
        %v8646 = vld [vmem:[%s8645] sm:$0xf]
        %v8647 = vld [vmem:[%s8645 + $0x4] sm:$0xf]
        %v8648 = vld [vmem:[%s8645 + $0x8] sm:$0xf]
        %v8649 = vld [vmem:[%s8645 + $0xc] sm:$0xf]
        %v8650 = vld [vmem:[%s8645 + $0x10] sm:$0xf]
        %v8651 = vld [vmem:[%s8645 + $0x14] sm:$0xf]
        %v8652 = vld [vmem:[%s8645 + $0x18] sm:$0xf]
        %v8653 = vld [vmem:[%s8645 + $0x1c] sm:$0xf]
        %v8662 = vunpack.c.l.b16 %v8646
        %v8663 = vunpack.c.l.b16 %v8647
        %v8664 = vunpack.c.l.b16 %v8648
        %v8665 = vunpack.c.l.b16 %v8649
        %v8666 = vunpack.c.l.b16 %v8650
        %v8667 = vunpack.c.l.b16 %v8651
        %v8668 = vunpack.c.l.b16 %v8652
        %v8669 = vunpack.c.l.b16 %v8653
        %v8670 = vpack.c.b16 %v8663, %v8662
        %v8671 = vpack.c.b16 %v8665, %v8664
        %v8672 = vpack.c.b16 %v8667, %v8666
        %v8673 = vpack.c.b16 %v8669, %v8668
        %v8675 = vsel %vm2389, %v8670, 0
        %v8678 = vsel %vm2389, %v8671, 0
        %v8681 = vsel %vm2389, %v8672, 0
        %v8684 = vsel %vm2389, %v8673, 0
        %8686 = vmatprep.subr.bf16.mxu0 0
        %8687 = vmatpush1.bf16.msra.mxu0 %v8532
        %8688 = vmatprep.subr.bf16.mxu0 0
        %8689 = vmatpush1.bf16.msra.mxu0 %v8533
        %8690 = vmatprep.subr.bf16.mxu0 0
        %8691 = vmatpush1.bf16.msra.mxu0 %v8534
        %8692 = vmatprep.subr.bf16.mxu0 0
        %8693 = vmatpush1.bf16.msra.mxu0 %v8535
        %8694 = vmatprep.subr.bf16.mxu0 0
        %8695 = vmatpush1.bf16.msra.mxu0 0
        %8696 = vmatprep.subr.bf16.mxu0 0
        %8697 = vmatpush1.bf16.msra.mxu0 0
        %8698 = vmatprep.subr.bf16.mxu0 0
        %8699 = vmatpush1.bf16.msra.mxu0 0
        %8700 = vmatprep.subr.bf16.mxu0 0
        %8701 = vmatpush1.bf16.msra.mxu0 0
        %8702 = vmatprep.subr.bf16.mxu0 0
        %8703 = vmatpush1.bf16.msra.mxu0 0
        %8704 = vmatprep.subr.bf16.mxu0 0
        %8705 = vmatpush1.bf16.msra.mxu0 0
        %8706 = vmatprep.subr.bf16.mxu0 0
        %8707 = vmatpush1.bf16.msra.mxu0 0
        %8708 = vmatprep.subr.bf16.mxu0 0
        %8709 = vmatpush1.bf16.msra.mxu0 0
        %8710 = vmatprep.subr.bf16.mxu0 0
        %8711 = vmatpush1.bf16.msra.mxu0 0
        %8712 = vmatprep.subr.bf16.mxu0 0
        %8713 = vmatpush1.bf16.msra.mxu0 0
        %8714 = vmatprep.subr.bf16.mxu0 0
        %8715 = vmatpush1.bf16.msra.mxu0 0
        %8716 = vmatprep.subr.bf16.mxu0 0
        %8717 = vmatpush1.bf16.msra.mxu0 0
        %8718 = vmatprep.mubr.bf16.mxu0 0
        %8719 = vmatmul.mubr.bf16.gmra.mrb[0].mxu0 %v8675
        %v8720 = vpop.f32.mrb[0].mxu0
        %v8721 = vadd.f32 0.0, %v8720
        %v8722 = vpop.f32.mrb[0].mxu0
        %v8723 = vpop.f32.mrb[0].mxu0
        %v8724 = vadd.f32 0.0, %v8723
        %v8725 = vpop.f32.mrb[0].mxu0
        %8726 = vmatprep.mubr.bf16.mxu0 0
        %8727 = vmatmul.mubr.bf16.gmra.mrb[0].mxu0 %v8678
        %v8728 = vpop.f32.mrb[0].mxu0
        %v8729 = vadd.f32 0.0, %v8728
        %v8730 = vpop.f32.mrb[0].mxu0
        %v8731 = vpop.f32.mrb[0].mxu0
        %v8732 = vadd.f32 0.0, %v8731
        %v8733 = vpop.f32.mrb[0].mxu0
        %8734 = vmatprep.mubr.bf16.mxu0 0
        %8735 = vmatmul.mubr.bf16.gmra.mrb[0].mxu0 %v8681
        %v8736 = vpop.f32.mrb[0].mxu0
        %v8737 = vadd.f32 0.0, %v8736
        %v8738 = vpop.f32.mrb[0].mxu0
        %v8739 = vpop.f32.mrb[0].mxu0
        %v8740 = vadd.f32 0.0, %v8739
        %v8741 = vpop.f32.mrb[0].mxu0
        %8742 = vmatprep.mubr.bf16.mxu0 0
        %8743 = vmatmul.mubr.bf16.gmra.mrb[0].mxu0 %v8684
        %v8744 = vpop.f32.mrb[0].mxu0
        %v8745 = vadd.f32 0.0, %v8744
        %v8746 = vpop.f32.mrb[0].mxu0
        %v8747 = vpop.f32.mrb[0].mxu0
        %v8748 = vadd.f32 0.0, %v8747
        %v8749 = vpop.f32.mrb[0].mxu0
        %8750 = vdwg.mxu0
        %v8751 = vpack.c.bf16 %v8724, %v8721
        %v8752 = vpack.c.bf16 %v8732, %v8729
        %v8753 = vpack.c.bf16 %v8740, %v8737
        %v8754 = vpack.c.bf16 %v8748, %v8745
        %s8755 = scalar_lea.vmem [#allocation24], 64
        %v8756 = vld [vmem:[%s8755] sm:$0xf]
        %v8757 = vld [vmem:[%s8755 + $0x4] sm:$0xf]
        %v8758 = vld [vmem:[%s8755 + $0x8] sm:$0xf]
        %v8759 = vld [vmem:[%s8755 + $0xc] sm:$0xf]
        %v8760 = vld [vmem:[%s8755 + $0x10] sm:$0xf]
        %v8761 = vld [vmem:[%s8755 + $0x14] sm:$0xf]
        %v8762 = vld [vmem:[%s8755 + $0x18] sm:$0xf]
        %v8763 = vld [vmem:[%s8755 + $0x1c] sm:$0xf]
        %v8772 = vunpack.c.l.b16 %v8756
        %v8773 = vunpack.c.l.b16 %v8757
        %v8774 = vunpack.c.l.b16 %v8758
        %v8775 = vunpack.c.l.b16 %v8759
        %v8776 = vunpack.c.l.b16 %v8760
        %v8777 = vunpack.c.l.b16 %v8761
        %v8778 = vunpack.c.l.b16 %v8762
        %v8779 = vunpack.c.l.b16 %v8763
        %v8780 = vpack.c.b16 %v8773, %v8772
        %v8781 = vpack.c.b16 %v8775, %v8774
        %v8782 = vpack.c.b16 %v8777, %v8776
        %v8783 = vpack.c.b16 %v8779, %v8778
        %v8785 = vsel %vm2389, %v8780, 0
        %v8788 = vsel %vm2389, %v8781, 0
        %v8791 = vsel %vm2389, %v8782, 0
        %v8794 = vsel %vm2389, %v8783, 0
        %8796 = vmatprep.subr.bf16.mxu0 0
        %8797 = vmatpush1.bf16.msra.mxu0 %v8532
        %8798 = vmatprep.subr.bf16.mxu0 0
        %8799 = vmatpush1.bf16.msra.mxu0 %v8533
        %8800 = vmatprep.subr.bf16.mxu0 0
        %8801 = vmatpush1.bf16.msra.mxu0 %v8534
        %8802 = vmatprep.subr.bf16.mxu0 0
        %8803 = vmatpush1.bf16.msra.mxu0 %v8535
        %8804 = vmatprep.subr.bf16.mxu0 0
        %8805 = vmatpush1.bf16.msra.mxu0 0
        %8806 = vmatprep.subr.bf16.mxu0 0
        %8807 = vmatpush1.bf16.msra.mxu0 0
        %8808 = vmatprep.subr.bf16.mxu0 0
        %8809 = vmatpush1.bf16.msra.mxu0 0
        %8810 = vmatprep.subr.bf16.mxu0 0
        %8811 = vmatpush1.bf16.msra.mxu0 0
        %8812 = vmatprep.subr.bf16.mxu0 0
        %8813 = vmatpush1.bf16.msra.mxu0 0
        %8814 = vmatprep.subr.bf16.mxu0 0
        %8815 = vmatpush1.bf16.msra.mxu0 0
        %8816 = vmatprep.subr.bf16.mxu0 0
        %8817 = vmatpush1.bf16.msra.mxu0 0
        %8818 = vmatprep.subr.bf16.mxu0 0
        %8819 = vmatpush1.bf16.msra.mxu0 0
        %8820 = vmatprep.subr.bf16.mxu0 0
        %8821 = vmatpush1.bf16.msra.mxu0 0
        %8822 = vmatprep.subr.bf16.mxu0 0
        %8823 = vmatpush1.bf16.msra.mxu0 0
        %8824 = vmatprep.subr.bf16.mxu0 0
        %8825 = vmatpush1.bf16.msra.mxu0 0
        %8826 = vmatprep.subr.bf16.mxu0 0
        %8827 = vmatpush1.bf16.msra.mxu0 0
        %8828 = vmatprep.mubr.bf16.mxu0 0
        %8829 = vmatmul.mubr.bf16.gmra.mrb[0].mxu0 %v8785
        %v8830 = vpop.f32.mrb[0].mxu0
        %v8831 = vadd.f32 0.0, %v8830
        %v8832 = vpop.f32.mrb[0].mxu0
        %v8833 = vpop.f32.mrb[0].mxu0
        %v8834 = vadd.f32 0.0, %v8833
        %v8835 = vpop.f32.mrb[0].mxu0
        %8836 = vmatprep.mubr.bf16.mxu0 0
        %8837 = vmatmul.mubr.bf16.gmra.mrb[0].mxu0 %v8788
        %v8838 = vpop.f32.mrb[0].mxu0
        %v8839 = vadd.f32 0.0, %v8838
        %v8840 = vpop.f32.mrb[0].mxu0
        %v8841 = vpop.f32.mrb[0].mxu0
        %v8842 = vadd.f32 0.0, %v8841
        %v8843 = vpop.f32.mrb[0].mxu0
        %8844 = vmatprep.mubr.bf16.mxu0 0
        %8845 = vmatmul.mubr.bf16.gmra.mrb[0].mxu0 %v8791
        %v8846 = vpop.f32.mrb[0].mxu0
        %v8847 = vadd.f32 0.0, %v8846
        %v8848 = vpop.f32.mrb[0].mxu0
        %v8849 = vpop.f32.mrb[0].mxu0
        %v8850 = vadd.f32 0.0, %v8849
        %v8851 = vpop.f32.mrb[0].mxu0
        %8852 = vmatprep.mubr.bf16.mxu0 0
        %8853 = vmatmul.mubr.bf16.gmra.mrb[0].mxu0 %v8794
        %v8854 = vpop.f32.mrb[0].mxu0
        %v8855 = vadd.f32 0.0, %v8854
        %v8856 = vpop.f32.mrb[0].mxu0
        %v8857 = vpop.f32.mrb[0].mxu0
        %v8858 = vadd.f32 0.0, %v8857
        %v8859 = vpop.f32.mrb[0].mxu0
        %8860 = vdwg.mxu0
        %v8861 = vpack.c.bf16 %v8834, %v8831
        %v8862 = vpack.c.bf16 %v8842, %v8839
        %v8863 = vpack.c.bf16 %v8850, %v8847
        %v8864 = vpack.c.bf16 %v8858, %v8855
        %s8865 = scalar_lea.vmem [#allocation24], 96
        %v8866 = vld [vmem:[%s8865] sm:$0xf]
        %v8867 = vld [vmem:[%s8865 + $0x4] sm:$0xf]
        %v8868 = vld [vmem:[%s8865 + $0x8] sm:$0xf]
        %v8869 = vld [vmem:[%s8865 + $0xc] sm:$0xf]
        %v8870 = vld [vmem:[%s8865 + $0x10] sm:$0xf]
        %v8871 = vld [vmem:[%s8865 + $0x14] sm:$0xf]
        %v8872 = vld [vmem:[%s8865 + $0x18] sm:$0xf]
        %v8873 = vld [vmem:[%s8865 + $0x1c] sm:$0xf]
        %v8882 = vunpack.c.l.b16 %v8866
        %v8883 = vunpack.c.l.b16 %v8867
        %v8884 = vunpack.c.l.b16 %v8868
        %v8885 = vunpack.c.l.b16 %v8869
        %v8886 = vunpack.c.l.b16 %v8870
        %v8887 = vunpack.c.l.b16 %v8871
        %v8888 = vunpack.c.l.b16 %v8872
        %v8889 = vunpack.c.l.b16 %v8873
        %v8890 = vpack.c.b16 %v8883, %v8882
        %v8891 = vpack.c.b16 %v8885, %v8884
        %v8892 = vpack.c.b16 %v8887, %v8886
        %v8893 = vpack.c.b16 %v8889, %v8888
        %v8895 = vsel %vm2389, %v8890, 0
        %v8898 = vsel %vm2389, %v8891, 0
        %v8901 = vsel %vm2389, %v8892, 0
        %v8904 = vsel %vm2389, %v8893, 0
        %8906 = vmatprep.subr.bf16.mxu0 0
        %8907 = vmatpush1.bf16.msra.mxu0 %v8532
        %8908 = vmatprep.subr.bf16.mxu0 0
        %8909 = vmatpush1.bf16.msra.mxu0 %v8533
        %8910 = vmatprep.subr.bf16.mxu0 0
        %8911 = vmatpush1.bf16.msra.mxu0 %v8534
        %8912 = vmatprep.subr.bf16.mxu0 0
        %8913 = vmatpush1.bf16.msra.mxu0 %v8535
        %8914 = vmatprep.subr.bf16.mxu0 0
        %8915 = vmatpush1.bf16.msra.mxu0 0
        %8916 = vmatprep.subr.bf16.mxu0 0
        %8917 = vmatpush1.bf16.msra.mxu0 0
        %8918 = vmatprep.subr.bf16.mxu0 0
        %8919 = vmatpush1.bf16.msra.mxu0 0
        %8920 = vmatprep.subr.bf16.mxu0 0
        %8921 = vmatpush1.bf16.msra.mxu0 0
        %8922 = vmatprep.subr.bf16.mxu0 0
        %8923 = vmatpush1.bf16.msra.mxu0 0
        %8924 = vmatprep.subr.bf16.mxu0 0
        %8925 = vmatpush1.bf16.msra.mxu0 0
        %8926 = vmatprep.subr.bf16.mxu0 0
        %8927 = vmatpush1.bf16.msra.mxu0 0
        %8928 = vmatprep.subr.bf16.mxu0 0
        %8929 = vmatpush1.bf16.msra.mxu0 0
        %8930 = vmatprep.subr.bf16.mxu0 0
        %8931 = vmatpush1.bf16.msra.mxu0 0
        %8932 = vmatprep.subr.bf16.mxu0 0
        %8933 = vmatpush1.bf16.msra.mxu0 0
        %8934 = vmatprep.subr.bf16.mxu0 0
        %8935 = vmatpush1.bf16.msra.mxu0 0
        %8936 = vmatprep.subr.bf16.mxu0 0
        %8937 = vmatpush1.bf16.msra.mxu0 0
        %8938 = vmatprep.mubr.bf16.mxu0 0
        %8939 = vmatmul.mubr.bf16.gmra.mrb[0].mxu0 %v8895
        %v8940 = vpop.f32.mrb[0].mxu0
        %v8941 = vadd.f32 0.0, %v8940
        %v8942 = vpop.f32.mrb[0].mxu0
        %v8943 = vpop.f32.mrb[0].mxu0
        %v8944 = vadd.f32 0.0, %v8943
        %v8945 = vpop.f32.mrb[0].mxu0
        %8946 = vmatprep.mubr.bf16.mxu0 0
        %8947 = vmatmul.mubr.bf16.gmra.mrb[0].mxu0 %v8898
        %v8948 = vpop.f32.mrb[0].mxu0
        %v8949 = vadd.f32 0.0, %v8948
        %v8950 = vpop.f32.mrb[0].mxu0
        %v8951 = vpop.f32.mrb[0].mxu0
        %v8952 = vadd.f32 0.0, %v8951
        %v8953 = vpop.f32.mrb[0].mxu0
        %8954 = vmatprep.mubr.bf16.mxu0 0
        %8955 = vmatmul.mubr.bf16.gmra.mrb[0].mxu0 %v8901
        %v8956 = vpop.f32.mrb[0].mxu0
        %v8957 = vadd.f32 0.0, %v8956
        %v8958 = vpop.f32.mrb[0].mxu0
        %v8959 = vpop.f32.mrb[0].mxu0
        %v8960 = vadd.f32 0.0, %v8959
        %v8961 = vpop.f32.mrb[0].mxu0
        %8962 = vmatprep.mubr.bf16.mxu0 0
        %8963 = vmatmul.mubr.bf16.gmra.mrb[0].mxu0 %v8904
        %v8964 = vpop.f32.mrb[0].mxu0
        %v8965 = vadd.f32 0.0, %v8964
        %v8966 = vpop.f32.mrb[0].mxu0
        %v8967 = vpop.f32.mrb[0].mxu0
        %v8968 = vadd.f32 0.0, %v8967
        %v8969 = vpop.f32.mrb[0].mxu0
        %8970 = vdwg.mxu0
        %v8971 = vpack.c.bf16 %v8944, %v8941
        %v8972 = vpack.c.bf16 %v8952, %v8949
        %v8973 = vpack.c.bf16 %v8960, %v8957
        %v8974 = vpack.c.bf16 %v8968, %v8965
        %8979 = vrot.lane.b32.xlu0 %v8751, 64
        %v8980 = vpop.permute.xlu0 %8979
        %8981 = vrot.lane.b32.xlu0 %v8752, 64
        %v8982 = vpop.permute.xlu0 %8981
        %8983 = vrot.lane.b32.xlu0 %v8753, 64
        %v8984 = vpop.permute.xlu0 %8983
        %8985 = vrot.lane.b32.xlu0 %v8754, 64
        %v8986 = vpop.permute.xlu0 %8985
        %8991 = vrot.lane.b32.xlu0 %v8971, 64
        %v8992 = vpop.permute.xlu0 %8991
        %8993 = vrot.lane.b32.xlu0 %v8972, 64
        %v8994 = vpop.permute.xlu0 %8993
        %8995 = vrot.lane.b32.xlu0 %v8973, 64
        %v8996 = vpop.permute.xlu0 %8995
        %8997 = vrot.lane.b32.xlu0 %v8974, 64
        %v8998 = vpop.permute.xlu0 %8997
        %v9001 = vsel %vm2389, %v8641, %v8980
        %v9005 = vsel %vm2389, %v8642, %v8982
        %v9009 = vsel %vm2389, %v8643, %v8984
        %v9013 = vsel %vm2389, %v8644, %v8986
        %v9017 = vsel %vm2389, %v8861, %v8992
        %v9021 = vsel %vm2389, %v8862, %v8994
        %v9025 = vsel %vm2389, %v8863, %v8996
        %v9029 = vsel %vm2389, %v8864, %v8998
        %v9031 = vld [vmem:[%s19] sm:$0xf]
        %v9032 = vld [vmem:[%s19 + $0x4] sm:$0xf]
        %v9033 = vld [vmem:[%s19 + $0x8] sm:$0xf]
        %v9034 = vld [vmem:[%s19 + $0xc] sm:$0xf]
        %v9035 = vld [vmem:[%s19 + $0x10] sm:$0xf]
        %v9036 = vld [vmem:[%s19 + $0x14] sm:$0xf]
        %v9037 = vld [vmem:[%s19 + $0x18] sm:$0xf]
        %v9038 = vld [vmem:[%s19 + $0x1c] sm:$0xf]
        %v9039 = vld [vmem:[%s19 + $0x20] sm:$0xf]
        %v9040 = vld [vmem:[%s19 + $0x24] sm:$0xf]
        %v9041 = vld [vmem:[%s19 + $0x28] sm:$0xf]
        %v9042 = vld [vmem:[%s19 + $0x2c] sm:$0xf]
        %v9043 = vld [vmem:[%s19 + $0x30] sm:$0xf]
        %v9044 = vld [vmem:[%s19 + $0x34] sm:$0xf]
        %v9045 = vld [vmem:[%s19 + $0x38] sm:$0xf]
        %v9046 = vld [vmem:[%s19 + $0x3c] sm:$0xf]
        %v9047 = vld [vmem:[%s19 + $0x40] sm:$0xf]
        %v9048 = vld [vmem:[%s19 + $0x44] sm:$0xf]
        %v9049 = vld [vmem:[%s19 + $0x48] sm:$0xf]
        %v9050 = vld [vmem:[%s19 + $0x4c] sm:$0xf]
        %v9051 = vld [vmem:[%s19 + $0x50] sm:$0xf]
        %v9052 = vld [vmem:[%s19 + $0x54] sm:$0xf]
        %v9053 = vld [vmem:[%s19 + $0x58] sm:$0xf]
        %v9054 = vld [vmem:[%s19 + $0x5c] sm:$0xf]
        %v9055 = vld [vmem:[%s19 + $0x60] sm:$0xf]
        %v9056 = vld [vmem:[%s19 + $0x64] sm:$0xf]
        %v9057 = vld [vmem:[%s19 + $0x68] sm:$0xf]
        %v9058 = vld [vmem:[%s19 + $0x6c] sm:$0xf]
        %v9059 = vld [vmem:[%s19 + $0x70] sm:$0xf]
        %v9060 = vld [vmem:[%s19 + $0x74] sm:$0xf]
        %v9061 = vld [vmem:[%s19 + $0x78] sm:$0xf]
        %v9062 = vld [vmem:[%s19 + $0x7c] sm:$0xf]
        %v9063 = vld [vmem:[#allocation25] sm:$0x1]
        %v9065 = vlaneseq
        %v9066 = vshrl.u32 %v9065, 7
        %v9067 = vsub.s32 0, %v9066
        %v9068 = vrot.slane %v9063, %v9067
        %v9102 = vunpack.c.l.b16 %v9031
        %v9103 = vunpack.c.l.b16 %v9032
        %v9104 = vunpack.c.l.b16 %v9033
        %v9105 = vunpack.c.l.b16 %v9034
        %v9106 = vunpack.c.l.b16 %v9035
        %v9107 = vunpack.c.l.b16 %v9036
        %v9108 = vunpack.c.l.b16 %v9037
        %v9109 = vunpack.c.l.b16 %v9038
        %v9110 = vunpack.c.l.b16 %v9039
        %v9111 = vunpack.c.l.b16 %v9040
        %v9112 = vunpack.c.l.b16 %v9041
        %v9113 = vunpack.c.l.b16 %v9042
        %v9114 = vunpack.c.l.b16 %v9043
        %v9115 = vunpack.c.l.b16 %v9044
        %v9116 = vunpack.c.l.b16 %v9045
        %v9117 = vunpack.c.l.b16 %v9046
        %v9118 = vunpack.c.l.b16 %v9047
        %v9119 = vunpack.c.l.b16 %v9048
        %v9120 = vunpack.c.l.b16 %v9049
        %v9121 = vunpack.c.l.b16 %v9050
        %v9122 = vunpack.c.l.b16 %v9051
        %v9123 = vunpack.c.l.b16 %v9052
        %v9124 = vunpack.c.l.b16 %v9053
        %v9125 = vunpack.c.l.b16 %v9054
        %v9126 = vunpack.c.l.b16 %v9055
        %v9127 = vunpack.c.l.b16 %v9056
        %v9128 = vunpack.c.l.b16 %v9057
        %v9129 = vunpack.c.l.b16 %v9058
        %v9130 = vunpack.c.l.b16 %v9059
        %v9131 = vunpack.c.l.b16 %v9060
        %v9132 = vunpack.c.l.b16 %v9061
        %v9133 = vunpack.c.l.b16 %v9062
        %v9134 = vpack.c.b16 %v9103, %v9102
        %v9135 = vpack.c.b16 %v9105, %v9104
        %v9136 = vpack.c.b16 %v9107, %v9106
        %v9137 = vpack.c.b16 %v9109, %v9108
        %v9138 = vpack.c.b16 %v9111, %v9110
        %v9139 = vpack.c.b16 %v9113, %v9112
        %v9140 = vpack.c.b16 %v9115, %v9114
        %v9141 = vpack.c.b16 %v9117, %v9116
        %v9142 = vpack.c.b16 %v9119, %v9118
        %v9143 = vpack.c.b16 %v9121, %v9120
        %v9144 = vpack.c.b16 %v9123, %v9122
        %v9145 = vpack.c.b16 %v9125, %v9124
        %v9146 = vpack.c.b16 %v9127, %v9126
        %v9147 = vpack.c.b16 %v9129, %v9128
        %v9148 = vpack.c.b16 %v9131, %v9130
        %v9149 = vpack.c.b16 %v9133, %v9132
        %9166 = vmatprep.subr.bf16.mxu0 0
        %9167 = vmatpush1.bf16.msra.mxu0 %v9134
        %9168 = vmatprep.subr.bf16.mxu0 0
        %9169 = vmatpush1.bf16.msra.mxu0 %v9135
        %9170 = vmatprep.subr.bf16.mxu0 0
        %9171 = vmatpush1.bf16.msra.mxu0 %v9136
        %9172 = vmatprep.subr.bf16.mxu0 0
        %9173 = vmatpush1.bf16.msra.mxu0 %v9137
        %9174 = vmatprep.subr.bf16.mxu0 0
        %9175 = vmatpush1.bf16.msra.mxu0 %v9138
        %9176 = vmatprep.subr.bf16.mxu0 0
        %9177 = vmatpush1.bf16.msra.mxu0 %v9139
        %9178 = vmatprep.subr.bf16.mxu0 0
        %9179 = vmatpush1.bf16.msra.mxu0 %v9140
        %9180 = vmatprep.subr.bf16.mxu0 0
        %9181 = vmatpush1.bf16.msra.mxu0 %v9141
        %9182 = vmatprep.subr.bf16.mxu0 0
        %9183 = vmatpush1.bf16.msra.mxu0 %v9142
        %9184 = vmatprep.subr.bf16.mxu0 0
        %9185 = vmatpush1.bf16.msra.mxu0 %v9143
        %9186 = vmatprep.subr.bf16.mxu0 0
        %9187 = vmatpush1.bf16.msra.mxu0 %v9144
        %9188 = vmatprep.subr.bf16.mxu0 0
        %9189 = vmatpush1.bf16.msra.mxu0 %v9145
        %9190 = vmatprep.subr.bf16.mxu0 0
        %9191 = vmatpush1.bf16.msra.mxu0 %v9146
        %9192 = vmatprep.subr.bf16.mxu0 0
        %9193 = vmatpush1.bf16.msra.mxu0 %v9147
        %9194 = vmatprep.subr.bf16.mxu0 0
        %9195 = vmatpush1.bf16.msra.mxu0 %v9148
        %9196 = vmatprep.subr.bf16.mxu0 0
        %9197 = vmatpush1.bf16.msra.mxu0 %v9149
        %9198 = vmatprep.mubr.bf16.mxu0 %v9017
        %9199 = vmatmul.mubr.bf16.gmra.mrb[0].mxu0 %v9001
        %v9200 = vpop.f32.mrb[0].mxu0
        %v9201 = vadd.f32 %v9068, %v9200
        %v9202 = vpop.f32.mrb[0].mxu0
        %v9203 = vpop.f32.mrb[0].mxu0
        %v9204 = vadd.f32 %v9068, %v9203
        %v9205 = vpop.f32.mrb[0].mxu0
        %9206 = vmatprep.mubr.bf16.mxu0 %v9021
        %9207 = vmatmul.mubr.bf16.gmra.mrb[0].mxu0 %v9005
        %v9208 = vpop.f32.mrb[0].mxu0
        %v9209 = vadd.f32 %v9068, %v9208
        %v9210 = vpop.f32.mrb[0].mxu0
        %v9211 = vpop.f32.mrb[0].mxu0
        %v9212 = vadd.f32 %v9068, %v9211
        %v9213 = vpop.f32.mrb[0].mxu0
        %9214 = vmatprep.mubr.bf16.mxu0 %v9025
        %9215 = vmatmul.mubr.bf16.gmra.mrb[0].mxu0 %v9009
        %v9216 = vpop.f32.mrb[0].mxu0
        %v9217 = vadd.f32 %v9068, %v9216
        %v9218 = vpop.f32.mrb[0].mxu0
        %v9219 = vpop.f32.mrb[0].mxu0
        %v9220 = vadd.f32 %v9068, %v9219
        %v9221 = vpop.f32.mrb[0].mxu0
        %9222 = vmatprep.mubr.bf16.mxu0 %v9029
        %9223 = vmatmul.mubr.bf16.gmra.mrb[0].mxu0 %v9013
        %v9224 = vpop.f32.mrb[0].mxu0
        %v9225 = vadd.f32 %v9068, %v9224
        %v9226 = vpop.f32.mrb[0].mxu0
        %v9227 = vpop.f32.mrb[0].mxu0
        %v9228 = vadd.f32 %v9068, %v9227
        %v9229 = vpop.f32.mrb[0].mxu0
        %9230 = vdwg.mxu0
        %v9231 = vand.u32 2147483647, %v9201
        %v9232 = vand.u32 2147483647, %v9204
        %v9233 = vand.u32 2147483647, %v9209
        %v9234 = vand.u32 2147483647, %v9212
        %v9235 = vand.u32 2147483647, %v9217
        %v9236 = vand.u32 2147483647, %v9220
        %v9237 = vand.u32 2147483647, %v9225
        %v9238 = vand.u32 2147483647, %v9228
        %v9239 = vsub.f32 0.0, %v9231
        %v9240 = vsub.f32 0.0, %v9232
        %v9241 = vsub.f32 0.0, %v9233
        %v9242 = vsub.f32 0.0, %v9234
        %v9243 = vsub.f32 0.0, %v9235
        %v9244 = vsub.f32 0.0, %v9236
        %v9245 = vsub.f32 0.0, %v9237
        %v9246 = vsub.f32 0.0, %v9238
        %v9247 = vmul.f32 %v9239, 1.442695
        %v9248 = vpow.pop %v9247
        %v9249 = vmul.f32 %v9240, 1.442695
        %v9250 = vpow.pop %v9249
        %v9251 = vmul.f32 %v9241, 1.442695
        %v9252 = vpow.pop %v9251
        %v9253 = vmul.f32 %v9242, 1.442695
        %v9254 = vpow.pop %v9253
        %v9255 = vmul.f32 %v9243, 1.442695
        %v9256 = vpow.pop %v9255
        %v9257 = vmul.f32 %v9244, 1.442695
        %v9258 = vpow.pop %v9257
        %v9259 = vmul.f32 %v9245, 1.442695
        %v9260 = vpow.pop %v9259
        %v9261 = vmul.f32 %v9246, 1.442695
        %v9262 = vpow.pop %v9261
        %vm9263 = vcmp.ge.f32.partialorder %v9201, 0.0
        %vm9264 = vcmp.ge.f32.partialorder %v9204, 0.0
        %vm9265 = vcmp.ge.f32.partialorder %v9209, 0.0
        %vm9266 = vcmp.ge.f32.partialorder %v9212, 0.0
        %vm9267 = vcmp.ge.f32.partialorder %v9217, 0.0
        %vm9268 = vcmp.ge.f32.partialorder %v9220, 0.0
        %vm9269 = vcmp.ge.f32.partialorder %v9225, 0.0
        %vm9270 = vcmp.ge.f32.partialorder %v9228, 0.0
        %v9271 = vadd.f32 %v9248, 1.0
        %v9272 = vadd.f32 %v9250, 1.0
        %v9273 = vadd.f32 %v9252, 1.0
        %v9274 = vadd.f32 %v9254, 1.0
        %v9275 = vadd.f32 %v9256, 1.0
        %v9276 = vadd.f32 %v9258, 1.0
        %v9277 = vadd.f32 %v9260, 1.0
        %v9278 = vadd.f32 %v9262, 1.0
        %v9279 = vrcp.pop %v9271
        %v9280 = vmul.f32 1.0, %v9279
        %v9281 = vrcp.pop %v9272
        %v9282 = vmul.f32 1.0, %v9281
        %v9283 = vrcp.pop %v9273
        %v9284 = vmul.f32 1.0, %v9283
        %v9285 = vrcp.pop %v9274
        %v9286 = vmul.f32 1.0, %v9285
        %v9287 = vrcp.pop %v9275
        %v9288 = vmul.f32 1.0, %v9287
        %v9289 = vrcp.pop %v9276
        %v9290 = vmul.f32 1.0, %v9289
        %v9291 = vrcp.pop %v9277
        %v9292 = vmul.f32 1.0, %v9291
        %v9293 = vrcp.pop %v9278
        %v9294 = vmul.f32 1.0, %v9293
        %v9295 = vmul.f32 %v9248, %v9279
        %v9296 = vmul.f32 %v9250, %v9281
        %v9297 = vmul.f32 %v9252, %v9283
        %v9298 = vmul.f32 %v9254, %v9285
        %v9299 = vmul.f32 %v9256, %v9287
        %v9300 = vmul.f32 %v9258, %v9289
        %v9301 = vmul.f32 %v9260, %v9291
        %v9302 = vmul.f32 %v9262, %v9293
        %v9303 = vsel %vm9263, %v9280, %v9295
        %v9304 = vsel %vm9264, %v9282, %v9296
        %v9305 = vsel %vm9265, %v9284, %v9297
        %v9306 = vsel %vm9266, %v9286, %v9298
        %v9307 = vsel %vm9267, %v9288, %v9299
        %v9308 = vsel %vm9268, %v9290, %v9300
        %v9309 = vsel %vm9269, %v9292, %v9301
        %v9310 = vsel %vm9270, %v9294, %v9302
        %v9311 = vld [vmem:[%s21] sm:$0xff]
        %v9312 = vld [vmem:[%s21 + $0x8] sm:$0xff]
        %v9313 = vld [vmem:[%s21 + $0x10] sm:$0xff]
        %v9314 = vld [vmem:[%s21 + $0x18] sm:$0xff]
        %v9315 = vld [vmem:[%s21 + $0x20] sm:$0xff]
        %v9316 = vld [vmem:[%s21 + $0x28] sm:$0xff]
        %v9317 = vld [vmem:[%s21 + $0x30] sm:$0xff]
        %v9318 = vld [vmem:[%s21 + $0x38] sm:$0xff]
        %v9319 = vld [vmem:[%s21 + $0x40] sm:$0xff]
        %v9320 = vld [vmem:[%s21 + $0x48] sm:$0xff]
        %v9321 = vld [vmem:[%s21 + $0x50] sm:$0xff]
        %v9322 = vld [vmem:[%s21 + $0x58] sm:$0xff]
        %v9323 = vld [vmem:[%s21 + $0x60] sm:$0xff]
        %v9324 = vld [vmem:[%s21 + $0x68] sm:$0xff]
        %v9325 = vld [vmem:[%s21 + $0x70] sm:$0xff]
        %v9326 = vld [vmem:[%s21 + $0x78] sm:$0xff]
        %v9327 = vld [vmem:[%s21 + $0x80] sm:$0xff]
        %v9328 = vld [vmem:[%s21 + $0x88] sm:$0xff]
        %v9329 = vld [vmem:[%s21 + $0x90] sm:$0xff]
        %v9330 = vld [vmem:[%s21 + $0x98] sm:$0xff]
        %v9331 = vld [vmem:[%s21 + $0xa0] sm:$0xff]
        %v9332 = vld [vmem:[%s21 + $0xa8] sm:$0xff]
        %v9333 = vld [vmem:[%s21 + $0xb0] sm:$0xff]
        %v9334 = vld [vmem:[%s21 + $0xb8] sm:$0xff]
        %v9335 = vld [vmem:[%s21 + $0xc0] sm:$0xff]
        %v9336 = vld [vmem:[%s21 + $0xc8] sm:$0xff]
        %v9337 = vld [vmem:[%s21 + $0xd0] sm:$0xff]
        %v9338 = vld [vmem:[%s21 + $0xd8] sm:$0xff]
        %v9339 = vld [vmem:[%s21 + $0xe0] sm:$0xff]
        %v9340 = vld [vmem:[%s21 + $0xe8] sm:$0xff]
        %v9341 = vld [vmem:[%s21 + $0xf0] sm:$0xff]
        %v9342 = vld [vmem:[%s21 + $0xf8] sm:$0xff]
        %s9343 = scalar_lea.vmem %s21, 256
        %v9344 = vld [vmem:[%s9343] sm:$0xff]
        %v9345 = vld [vmem:[%s9343 + $0x8] sm:$0xff]
        %v9346 = vld [vmem:[%s9343 + $0x10] sm:$0xff]
        %v9347 = vld [vmem:[%s9343 + $0x18] sm:$0xff]
        %v9348 = vld [vmem:[%s9343 + $0x20] sm:$0xff]
        %v9349 = vld [vmem:[%s9343 + $0x28] sm:$0xff]
        %v9350 = vld [vmem:[%s9343 + $0x30] sm:$0xff]
        %v9351 = vld [vmem:[%s9343 + $0x38] sm:$0xff]
        %v9352 = vld [vmem:[%s9343 + $0x40] sm:$0xff]
        %v9353 = vld [vmem:[%s9343 + $0x48] sm:$0xff]
        %v9354 = vld [vmem:[%s9343 + $0x50] sm:$0xff]
        %v9355 = vld [vmem:[%s9343 + $0x58] sm:$0xff]
        %v9356 = vld [vmem:[%s9343 + $0x60] sm:$0xff]
        %v9357 = vld [vmem:[%s9343 + $0x68] sm:$0xff]
        %v9358 = vld [vmem:[%s9343 + $0x70] sm:$0xff]
        %v9359 = vld [vmem:[%s9343 + $0x78] sm:$0xff]
        %v9360 = vld [vmem:[%s9343 + $0x80] sm:$0xff]
        %v9361 = vld [vmem:[%s9343 + $0x88] sm:$0xff]
        %v9362 = vld [vmem:[%s9343 + $0x90] sm:$0xff]
        %v9363 = vld [vmem:[%s9343 + $0x98] sm:$0xff]
        %v9364 = vld [vmem:[%s9343 + $0xa0] sm:$0xff]
        %v9365 = vld [vmem:[%s9343 + $0xa8] sm:$0xff]
        %v9366 = vld [vmem:[%s9343 + $0xb0] sm:$0xff]
        %v9367 = vld [vmem:[%s9343 + $0xb8] sm:$0xff]
        %v9368 = vld [vmem:[%s9343 + $0xc0] sm:$0xff]
        %v9369 = vld [vmem:[%s9343 + $0xc8] sm:$0xff]
        %v9370 = vld [vmem:[%s9343 + $0xd0] sm:$0xff]
        %v9371 = vld [vmem:[%s9343 + $0xd8] sm:$0xff]
        %v9372 = vld [vmem:[%s9343 + $0xe0] sm:$0xff]
        %v9373 = vld [vmem:[%s9343 + $0xe8] sm:$0xff]
        %v9374 = vld [vmem:[%s9343 + $0xf0] sm:$0xff]
        %v9375 = vld [vmem:[%s9343 + $0xf8] sm:$0xff]
        %9384 = vrot.lane.b32.xlu0 %v9303, 125
        %v9385 = vpop.permute.xlu0 %9384
        %9386 = vrot.lane.b32.xlu0 %v9304, 125
        %v9387 = vpop.permute.xlu0 %9386
        %9388 = vrot.lane.b32.xlu0 %v9305, 125
        %v9389 = vpop.permute.xlu0 %9388
        %9390 = vrot.lane.b32.xlu0 %v9306, 125
        %v9391 = vpop.permute.xlu0 %9390
        %9392 = vrot.lane.b32.xlu0 %v9307, 125
        %v9393 = vpop.permute.xlu0 %9392
        %9394 = vrot.lane.b32.xlu0 %v9308, 125
        %v9395 = vpop.permute.xlu0 %9394
        %9396 = vrot.lane.b32.xlu0 %v9309, 125
        %v9397 = vpop.permute.xlu0 %9396
        %9398 = vrot.lane.b32.xlu0 %v9310, 125
        %v9399 = vpop.permute.xlu0 %9398
        %v9409 = vsel %vm2389, %v9344, 0
        %v9412 = vsel %vm2389, %v9345, 0
        %v9415 = vsel %vm2389, %v9346, 0
        %v9418 = vsel %vm2389, %v9347, 0
        %v9421 = vsel %vm2389, %v9348, 0
        %v9424 = vsel %vm2389, %v9349, 0
        %v9427 = vsel %vm2389, %v9350, 0
        %v9430 = vsel %vm2389, %v9351, 0
        %v9433 = vsel %vm2389, %v9352, 0
        %v9436 = vsel %vm2389, %v9353, 0
        %v9439 = vsel %vm2389, %v9354, 0
        %v9442 = vsel %vm2389, %v9355, 0
        %v9445 = vsel %vm2389, %v9356, 0
        %v9448 = vsel %vm2389, %v9357, 0
        %v9451 = vsel %vm2389, %v9358, 0
        %v9454 = vsel %vm2389, %v9359, 0
        %v9457 = vsel %vm2389, %v9360, 0
        %v9460 = vsel %vm2389, %v9361, 0
        %v9463 = vsel %vm2389, %v9362, 0
        %v9466 = vsel %vm2389, %v9363, 0
        %v9469 = vsel %vm2389, %v9364, 0
        %v9472 = vsel %vm2389, %v9365, 0
        %v9475 = vsel %vm2389, %v9366, 0
        %v9478 = vsel %vm2389, %v9367, 0
        %v9481 = vsel %vm2389, %v9368, 0
        %v9484 = vsel %vm2389, %v9369, 0
        %v9487 = vsel %vm2389, %v9370, 0
        %v9490 = vsel %vm2389, %v9371, 0
        %v9493 = vsel %vm2389, %v9372, 0
        %v9496 = vsel %vm2389, %v9373, 0
        %v9499 = vsel %vm2389, %v9374, 0
        %v9502 = vsel %vm2389, %v9375, 0
        %9504 = vmatprep.subr.mxu0 0.0
        %9505 = vmatpush1.msra.mxu0 %v9385
        %9506 = vmatprep.subr.mxu0 0.0
        %9507 = vmatpush1.msra.mxu0 %v9387
        %9508 = vmatprep.subr.mxu0 0.0
        %9509 = vmatpush1.msra.mxu0 %v9389
        %9510 = vmatprep.subr.mxu0 0.0
        %9511 = vmatpush1.msra.mxu0 %v9391
        %9512 = vmatprep.subr.mxu0 0.0
        %9513 = vmatpush1.msra.mxu0 %v9393
        %9514 = vmatprep.subr.mxu0 0.0
        %9515 = vmatpush1.msra.mxu0 %v9395
        %9516 = vmatprep.subr.mxu0 0.0
        %9517 = vmatpush1.msra.mxu0 %v9397
        %9518 = vmatprep.subr.mxu0 0.0
        %9519 = vmatpush1.msra.mxu0 %v9399
        %9520 = vmatprep.subr.mxu0 0.0
        %9521 = vmatpush1.msra.mxu0 0.0
        %9522 = vmatprep.subr.mxu0 0.0
        %9523 = vmatpush1.msra.mxu0 0.0
        %9524 = vmatprep.subr.mxu0 0.0
        %9525 = vmatpush1.msra.mxu0 0.0
        %9526 = vmatprep.subr.mxu0 0.0
        %9527 = vmatpush1.msra.mxu0 0.0
        %9528 = vmatprep.subr.mxu0 0.0
        %9529 = vmatpush1.msra.mxu0 0.0
        %9530 = vmatprep.subr.mxu0 0.0
        %9531 = vmatpush1.msra.mxu0 0.0
        %9532 = vmatprep.subr.mxu0 0.0
        %9533 = vmatpush1.msra.mxu0 0.0
        %9534 = vmatprep.subr.mxu0 0.0
        %9535 = vmatpush1.msra.mxu0 0.0
        %9536 = vmatprep.subr.mxu0 0.0
        %9537 = vmatpush1.msra.mxu0 0.0
        %9538 = vmatprep.subr.mxu0 0.0
        %9539 = vmatpush1.msra.mxu0 0.0
        %9540 = vmatprep.subr.mxu0 0.0
        %9541 = vmatpush1.msra.mxu0 0.0
        %9542 = vmatprep.subr.mxu0 0.0
        %9543 = vmatpush1.msra.mxu0 0.0
        %9544 = vmatprep.subr.mxu0 0.0
        %9545 = vmatpush1.msra.mxu0 0.0
        %9546 = vmatprep.subr.mxu0 0.0
        %9547 = vmatpush1.msra.mxu0 0.0
        %9548 = vmatprep.subr.mxu0 0.0
        %9549 = vmatpush1.msra.mxu0 0.0
        %9550 = vmatprep.subr.mxu0 0.0
        %9551 = vmatpush1.msra.mxu0 0.0
        %9552 = vmatprep.subr.mxu0 0.0
        %9553 = vmatpush1.msra.mxu0 0.0
        %9554 = vmatprep.subr.mxu0 0.0
        %9555 = vmatpush1.msra.mxu0 0.0
        %9556 = vmatprep.subr.mxu0 0.0
        %9557 = vmatpush1.msra.mxu0 0.0
        %9558 = vmatprep.subr.mxu0 0.0
        %9559 = vmatpush1.msra.mxu0 0.0
        %9560 = vmatprep.subr.mxu0 0.0
        %9561 = vmatpush1.msra.mxu0 0.0
        %9562 = vmatprep.subr.mxu0 0.0
        %9563 = vmatpush1.msra.mxu0 0.0
        %9564 = vmatprep.subr.mxu0 0.0
        %9565 = vmatpush1.msra.mxu0 0.0
        %9566 = vmatprep.subr.mxu0 0.0
        %9567 = vmatpush1.msra.mxu0 0.0
        %9568 = vmatprep.mubr.f32.mxu0 0.0
        %9569 = vmatmul.mubr.f32.gmra.mrb[0].mxu0 %v9409
        %v9570 = vpop.f32.mrb[0].mxu0
        %v9571 = vadd.f32 0.0, %v9570
        %v9572 = vpop.f32.mrb[0].mxu0
        %9573 = vmatprep.mubr.f32.mxu0 0.0
        %9574 = vmatmul.mubr.f32.gmra.mrb[0].mxu0 %v9412
        %v9575 = vpop.f32.mrb[0].mxu0
        %v9576 = vadd.f32 0.0, %v9575
        %v9577 = vpop.f32.mrb[0].mxu0
        %9578 = vmatprep.mubr.f32.mxu0 0.0
        %9579 = vmatmul.mubr.f32.gmra.mrb[0].mxu0 %v9415
        %v9580 = vpop.f32.mrb[0].mxu0
        %v9581 = vadd.f32 0.0, %v9580
        %v9582 = vpop.f32.mrb[0].mxu0
        %9583 = vmatprep.mubr.f32.mxu0 0.0
        %9584 = vmatmul.mubr.f32.gmra.mrb[0].mxu0 %v9418
        %v9585 = vpop.f32.mrb[0].mxu0
        %v9586 = vadd.f32 0.0, %v9585
        %v9587 = vpop.f32.mrb[0].mxu0
        %9588 = vmatprep.mubr.f32.mxu0 0.0
        %9589 = vmatmul.mubr.f32.gmra.mrb[0].mxu0 %v9421
        %v9590 = vpop.f32.mrb[0].mxu0
        %v9591 = vadd.f32 0.0, %v9590
        %v9592 = vpop.f32.mrb[0].mxu0
        %9593 = vmatprep.mubr.f32.mxu0 0.0
        %9594 = vmatmul.mubr.f32.gmra.mrb[0].mxu0 %v9424
        %v9595 = vpop.f32.mrb[0].mxu0
        %v9596 = vadd.f32 0.0, %v9595
        %v9597 = vpop.f32.mrb[0].mxu0
        %9598 = vmatprep.mubr.f32.mxu0 0.0
        %9599 = vmatmul.mubr.f32.gmra.mrb[0].mxu0 %v9427
        %v9600 = vpop.f32.mrb[0].mxu0
        %v9601 = vadd.f32 0.0, %v9600
        %v9602 = vpop.f32.mrb[0].mxu0
        %9603 = vmatprep.mubr.f32.mxu0 0.0
        %9604 = vmatmul.mubr.f32.gmra.mrb[0].mxu0 %v9430
        %v9605 = vpop.f32.mrb[0].mxu0
        %v9606 = vadd.f32 0.0, %v9605
        %v9607 = vpop.f32.mrb[0].mxu0
        %9608 = vmatprep.mubr.f32.mxu0 0.0
        %9609 = vmatmul.mubr.f32.gmra.mrb[0].mxu0 %v9433
        %v9610 = vpop.f32.mrb[0].mxu0
        %v9611 = vadd.f32 0.0, %v9610
        %v9612 = vpop.f32.mrb[0].mxu0
        %9613 = vmatprep.mubr.f32.mxu0 0.0
        %9614 = vmatmul.mubr.f32.gmra.mrb[0].mxu0 %v9436
        %v9615 = vpop.f32.mrb[0].mxu0
        %v9616 = vadd.f32 0.0, %v9615
        %v9617 = vpop.f32.mrb[0].mxu0
        %9618 = vmatprep.mubr.f32.mxu0 0.0
        %9619 = vmatmul.mubr.f32.gmra.mrb[0].mxu0 %v9439
        %v9620 = vpop.f32.mrb[0].mxu0
        %v9621 = vadd.f32 0.0, %v9620
        %v9622 = vpop.f32.mrb[0].mxu0
        %9623 = vmatprep.mubr.f32.mxu0 0.0
        %9624 = vmatmul.mubr.f32.gmra.mrb[0].mxu0 %v9442
        %v9625 = vpop.f32.mrb[0].mxu0
        %v9626 = vadd.f32 0.0, %v9625
        %v9627 = vpop.f32.mrb[0].mxu0
        %9628 = vmatprep.mubr.f32.mxu0 0.0
        %9629 = vmatmul.mubr.f32.gmra.mrb[0].mxu0 %v9445
        %v9630 = vpop.f32.mrb[0].mxu0
        %v9631 = vadd.f32 0.0, %v9630
        %v9632 = vpop.f32.mrb[0].mxu0
        %9633 = vmatprep.mubr.f32.mxu0 0.0
        %9634 = vmatmul.mubr.f32.gmra.mrb[0].mxu0 %v9448
        %v9635 = vpop.f32.mrb[0].mxu0
        %v9636 = vadd.f32 0.0, %v9635
        %v9637 = vpop.f32.mrb[0].mxu0
        %9638 = vmatprep.mubr.f32.mxu0 0.0
        %9639 = vmatmul.mubr.f32.gmra.mrb[0].mxu0 %v9451
        %v9640 = vpop.f32.mrb[0].mxu0
        %v9641 = vadd.f32 0.0, %v9640
        %v9642 = vpop.f32.mrb[0].mxu0
        %9643 = vmatprep.mubr.f32.mxu0 0.0
        %9644 = vmatmul.mubr.f32.gmra.mrb[0].mxu0 %v9454
        %v9645 = vpop.f32.mrb[0].mxu0
        %v9646 = vadd.f32 0.0, %v9645
        %v9647 = vpop.f32.mrb[0].mxu0
        %9648 = vmatprep.mubr.f32.mxu0 0.0
        %9649 = vmatmul.mubr.f32.gmra.mrb[0].mxu0 %v9457
        %v9650 = vpop.f32.mrb[0].mxu0
        %v9651 = vadd.f32 0.0, %v9650
        %v9652 = vpop.f32.mrb[0].mxu0
        %9653 = vmatprep.mubr.f32.mxu0 0.0
        %9654 = vmatmul.mubr.f32.gmra.mrb[0].mxu0 %v9460
        %v9655 = vpop.f32.mrb[0].mxu0
        %v9656 = vadd.f32 0.0, %v9655
        %v9657 = vpop.f32.mrb[0].mxu0
        %9658 = vmatprep.mubr.f32.mxu0 0.0
        %9659 = vmatmul.mubr.f32.gmra.mrb[0].mxu0 %v9463
        %v9660 = vpop.f32.mrb[0].mxu0
        %v9661 = vadd.f32 0.0, %v9660
        %v9662 = vpop.f32.mrb[0].mxu0
        %9663 = vmatprep.mubr.f32.mxu0 0.0
        %9664 = vmatmul.mubr.f32.gmra.mrb[0].mxu0 %v9466
        %v9665 = vpop.f32.mrb[0].mxu0
        %v9666 = vadd.f32 0.0, %v9665
        %v9667 = vpop.f32.mrb[0].mxu0
        %9668 = vmatprep.mubr.f32.mxu0 0.0
        %9669 = vmatmul.mubr.f32.gmra.mrb[0].mxu0 %v9469
        %v9670 = vpop.f32.mrb[0].mxu0
        %v9671 = vadd.f32 0.0, %v9670
        %v9672 = vpop.f32.mrb[0].mxu0
        %9673 = vmatprep.mubr.f32.mxu0 0.0
        %9674 = vmatmul.mubr.f32.gmra.mrb[0].mxu0 %v9472
        %v9675 = vpop.f32.mrb[0].mxu0
        %v9676 = vadd.f32 0.0, %v9675
        %v9677 = vpop.f32.mrb[0].mxu0
        %9678 = vmatprep.mubr.f32.mxu0 0.0
        %9679 = vmatmul.mubr.f32.gmra.mrb[0].mxu0 %v9475
        %v9680 = vpop.f32.mrb[0].mxu0
        %v9681 = vadd.f32 0.0, %v9680
        %v9682 = vpop.f32.mrb[0].mxu0
        %9683 = vmatprep.mubr.f32.mxu0 0.0
        %9684 = vmatmul.mubr.f32.gmra.mrb[0].mxu0 %v9478
        %v9685 = vpop.f32.mrb[0].mxu0
        %v9686 = vadd.f32 0.0, %v9685
        %v9687 = vpop.f32.mrb[0].mxu0
        %9688 = vmatprep.mubr.f32.mxu0 0.0
        %9689 = vmatmul.mubr.f32.gmra.mrb[0].mxu0 %v9481
        %v9690 = vpop.f32.mrb[0].mxu0
        %v9691 = vadd.f32 0.0, %v9690
        %v9692 = vpop.f32.mrb[0].mxu0
        %9693 = vmatprep.mubr.f32.mxu0 0.0
        %9694 = vmatmul.mubr.f32.gmra.mrb[0].mxu0 %v9484
        %v9695 = vpop.f32.mrb[0].mxu0
        %v9696 = vadd.f32 0.0, %v9695
        %v9697 = vpop.f32.mrb[0].mxu0
        %9698 = vmatprep.mubr.f32.mxu0 0.0
        %9699 = vmatmul.mubr.f32.gmra.mrb[0].mxu0 %v9487
        %v9700 = vpop.f32.mrb[0].mxu0
        %v9701 = vadd.f32 0.0, %v9700
        %v9702 = vpop.f32.mrb[0].mxu0
        %9703 = vmatprep.mubr.f32.mxu0 0.0
        %9704 = vmatmul.mubr.f32.gmra.mrb[0].mxu0 %v9490
        %v9705 = vpop.f32.mrb[0].mxu0
        %v9706 = vadd.f32 0.0, %v9705
        %v9707 = vpop.f32.mrb[0].mxu0
        %9708 = vmatprep.mubr.f32.mxu0 0.0
        %9709 = vmatmul.mubr.f32.gmra.mrb[0].mxu0 %v9493
        %v9710 = vpop.f32.mrb[0].mxu0
        %v9711 = vadd.f32 0.0, %v9710
        %v9712 = vpop.f32.mrb[0].mxu0
        %9713 = vmatprep.mubr.f32.mxu0 0.0
        %9714 = vmatmul.mubr.f32.gmra.mrb[0].mxu0 %v9496
        %v9715 = vpop.f32.mrb[0].mxu0
        %v9716 = vadd.f32 0.0, %v9715
        %v9717 = vpop.f32.mrb[0].mxu0
        %9718 = vmatprep.mubr.f32.mxu0 0.0
        %9719 = vmatmul.mubr.f32.gmra.mrb[0].mxu0 %v9499
        %v9720 = vpop.f32.mrb[0].mxu0
        %v9721 = vadd.f32 0.0, %v9720
        %v9722 = vpop.f32.mrb[0].mxu0
        %9723 = vmatprep.mubr.f32.mxu0 0.0
        %9724 = vmatmul.mubr.f32.gmra.mrb[0].mxu0 %v9502
        %v9725 = vpop.f32.mrb[0].mxu0
        %v9726 = vadd.f32 0.0, %v9725
        %v9727 = vpop.f32.mrb[0].mxu0
        %9728 = vdwg.mxu0
        %v9730 = vsel %vm2389, %v9311, 0
        %v9733 = vsel %vm2389, %v9312, 0
        %v9736 = vsel %vm2389, %v9313, 0
        %v9739 = vsel %vm2389, %v9314, 0
        %v9742 = vsel %vm2389, %v9315, 0
        %v9745 = vsel %vm2389, %v9316, 0
        %v9748 = vsel %vm2389, %v9317, 0
        %v9751 = vsel %vm2389, %v9318, 0
        %v9754 = vsel %vm2389, %v9319, 0
        %v9757 = vsel %vm2389, %v9320, 0
        %v9760 = vsel %vm2389, %v9321, 0
        %v9763 = vsel %vm2389, %v9322, 0
        %v9766 = vsel %vm2389, %v9323, 0
        %v9769 = vsel %vm2389, %v9324, 0
        %v9772 = vsel %vm2389, %v9325, 0
        %v9775 = vsel %vm2389, %v9326, 0
        %v9778 = vsel %vm2389, %v9327, 0
        %v9781 = vsel %vm2389, %v9328, 0
        %v9784 = vsel %vm2389, %v9329, 0
        %v9787 = vsel %vm2389, %v9330, 0
        %v9790 = vsel %vm2389, %v9331, 0
        %v9793 = vsel %vm2389, %v9332, 0
        %v9796 = vsel %vm2389, %v9333, 0
        %v9799 = vsel %vm2389, %v9334, 0
        %v9802 = vsel %vm2389, %v9335, 0
        %v9805 = vsel %vm2389, %v9336, 0
        %v9808 = vsel %vm2389, %v9337, 0
        %v9811 = vsel %vm2389, %v9338, 0
        %v9814 = vsel %vm2389, %v9339, 0
        %v9817 = vsel %vm2389, %v9340, 0
        %v9820 = vsel %vm2389, %v9341, 0
        %v9823 = vsel %vm2389, %v9342, 0
        %9825 = vmatprep.subr.mxu0 0.0
        %9826 = vmatpush1.msra.mxu0 %v9303
        %9827 = vmatprep.subr.mxu0 0.0
        %9828 = vmatpush1.msra.mxu0 %v9304
        %9829 = vmatprep.subr.mxu0 0.0
        %9830 = vmatpush1.msra.mxu0 %v9305
        %9831 = vmatprep.subr.mxu0 0.0
        %9832 = vmatpush1.msra.mxu0 %v9306
        %9833 = vmatprep.subr.mxu0 0.0
        %9834 = vmatpush1.msra.mxu0 %v9307
        %9835 = vmatprep.subr.mxu0 0.0
        %9836 = vmatpush1.msra.mxu0 %v9308
        %9837 = vmatprep.subr.mxu0 0.0
        %9838 = vmatpush1.msra.mxu0 %v9309
        %9839 = vmatprep.subr.mxu0 0.0
        %9840 = vmatpush1.msra.mxu0 %v9310
        %9841 = vmatprep.subr.mxu0 0.0
        %9842 = vmatpush1.msra.mxu0 0.0
        %9843 = vmatprep.subr.mxu0 0.0
        %9844 = vmatpush1.msra.mxu0 0.0
        %9845 = vmatprep.subr.mxu0 0.0
        %9846 = vmatpush1.msra.mxu0 0.0
        %9847 = vmatprep.subr.mxu0 0.0
        %9848 = vmatpush1.msra.mxu0 0.0
        %9849 = vmatprep.subr.mxu0 0.0
        %9850 = vmatpush1.msra.mxu0 0.0
        %9851 = vmatprep.subr.mxu0 0.0
        %9852 = vmatpush1.msra.mxu0 0.0
        %9853 = vmatprep.subr.mxu0 0.0
        %9854 = vmatpush1.msra.mxu0 0.0
        %9855 = vmatprep.subr.mxu0 0.0
        %9856 = vmatpush1.msra.mxu0 0.0
        %9857 = vmatprep.subr.mxu0 0.0
        %9858 = vmatpush1.msra.mxu0 0.0
        %9859 = vmatprep.subr.mxu0 0.0
        %9860 = vmatpush1.msra.mxu0 0.0
        %9861 = vmatprep.subr.mxu0 0.0
        %9862 = vmatpush1.msra.mxu0 0.0
        %9863 = vmatprep.subr.mxu0 0.0
        %9864 = vmatpush1.msra.mxu0 0.0
        %9865 = vmatprep.subr.mxu0 0.0
        %9866 = vmatpush1.msra.mxu0 0.0
        %9867 = vmatprep.subr.mxu0 0.0
        %9868 = vmatpush1.msra.mxu0 0.0
        %9869 = vmatprep.subr.mxu0 0.0
        %9870 = vmatpush1.msra.mxu0 0.0
        %9871 = vmatprep.subr.mxu0 0.0
        %9872 = vmatpush1.msra.mxu0 0.0
        %9873 = vmatprep.subr.mxu0 0.0
        %9874 = vmatpush1.msra.mxu0 0.0
        %9875 = vmatprep.subr.mxu0 0.0
        %9876 = vmatpush1.msra.mxu0 0.0
        %9877 = vmatprep.subr.mxu0 0.0
        %9878 = vmatpush1.msra.mxu0 0.0
        %9879 = vmatprep.subr.mxu0 0.0
        %9880 = vmatpush1.msra.mxu0 0.0
        %9881 = vmatprep.subr.mxu0 0.0
        %9882 = vmatpush1.msra.mxu0 0.0
        %9883 = vmatprep.subr.mxu0 0.0
        %9884 = vmatpush1.msra.mxu0 0.0
        %9885 = vmatprep.subr.mxu0 0.0
        %9886 = vmatpush1.msra.mxu0 0.0
        %9887 = vmatprep.subr.mxu0 0.0
        %9888 = vmatpush1.msra.mxu0 0.0
        %9889 = vmatprep.mubr.f32.mxu0 0.0
        %9890 = vmatmul.mubr.f32.gmra.mrb[0].mxu0 %v9730
        %v9891 = vpop.f32.mrb[0].mxu0
        %v9892 = vadd.f32 %v9571, %v9891
        %v9893 = vpop.f32.mrb[0].mxu0
        %9894 = vmatprep.mubr.f32.mxu0 0.0
        %9895 = vmatmul.mubr.f32.gmra.mrb[0].mxu0 %v9733
        %v9896 = vpop.f32.mrb[0].mxu0
        %v9897 = vadd.f32 %v9576, %v9896
        %v9898 = vpop.f32.mrb[0].mxu0
        %9899 = vmatprep.mubr.f32.mxu0 0.0
        %9900 = vmatmul.mubr.f32.gmra.mrb[0].mxu0 %v9736
        %v9901 = vpop.f32.mrb[0].mxu0
        %v9902 = vadd.f32 %v9581, %v9901
        %v9903 = vpop.f32.mrb[0].mxu0
        %9904 = vmatprep.mubr.f32.mxu0 0.0
        %9905 = vmatmul.mubr.f32.gmra.mrb[0].mxu0 %v9739
        %v9906 = vpop.f32.mrb[0].mxu0
        %v9907 = vadd.f32 %v9586, %v9906
        %v9908 = vpop.f32.mrb[0].mxu0
        %9909 = vmatprep.mubr.f32.mxu0 0.0
        %9910 = vmatmul.mubr.f32.gmra.mrb[0].mxu0 %v9742
        %v9911 = vpop.f32.mrb[0].mxu0
        %v9912 = vadd.f32 %v9591, %v9911
        %v9913 = vpop.f32.mrb[0].mxu0
        %9914 = vmatprep.mubr.f32.mxu0 0.0
        %9915 = vmatmul.mubr.f32.gmra.mrb[0].mxu0 %v9745
        %v9916 = vpop.f32.mrb[0].mxu0
        %v9917 = vadd.f32 %v9596, %v9916
        %v9918 = vpop.f32.mrb[0].mxu0
        %9919 = vmatprep.mubr.f32.mxu0 0.0
        %9920 = vmatmul.mubr.f32.gmra.mrb[0].mxu0 %v9748
        %v9921 = vpop.f32.mrb[0].mxu0
        %v9922 = vadd.f32 %v9601, %v9921
        %v9923 = vpop.f32.mrb[0].mxu0
        %9924 = vmatprep.mubr.f32.mxu0 0.0
        %9925 = vmatmul.mubr.f32.gmra.mrb[0].mxu0 %v9751
        %v9926 = vpop.f32.mrb[0].mxu0
        %v9927 = vadd.f32 %v9606, %v9926
        %v9928 = vpop.f32.mrb[0].mxu0
        %9929 = vmatprep.mubr.f32.mxu0 0.0
        %9930 = vmatmul.mubr.f32.gmra.mrb[0].mxu0 %v9754
        %v9931 = vpop.f32.mrb[0].mxu0
        %v9932 = vadd.f32 %v9611, %v9931
        %v9933 = vpop.f32.mrb[0].mxu0
        %9934 = vmatprep.mubr.f32.mxu0 0.0
        %9935 = vmatmul.mubr.f32.gmra.mrb[0].mxu0 %v9757
        %v9936 = vpop.f32.mrb[0].mxu0
        %v9937 = vadd.f32 %v9616, %v9936
        %v9938 = vpop.f32.mrb[0].mxu0
        %9939 = vmatprep.mubr.f32.mxu0 0.0
        %9940 = vmatmul.mubr.f32.gmra.mrb[0].mxu0 %v9760
        %v9941 = vpop.f32.mrb[0].mxu0
        %v9942 = vadd.f32 %v9621, %v9941
        %v9943 = vpop.f32.mrb[0].mxu0
        %9944 = vmatprep.mubr.f32.mxu0 0.0
        %9945 = vmatmul.mubr.f32.gmra.mrb[0].mxu0 %v9763
        %v9946 = vpop.f32.mrb[0].mxu0
        %v9947 = vadd.f32 %v9626, %v9946
        %v9948 = vpop.f32.mrb[0].mxu0
        %9949 = vmatprep.mubr.f32.mxu0 0.0
        %9950 = vmatmul.mubr.f32.gmra.mrb[0].mxu0 %v9766
        %v9951 = vpop.f32.mrb[0].mxu0
        %v9952 = vadd.f32 %v9631, %v9951
        %v9953 = vpop.f32.mrb[0].mxu0
        %9954 = vmatprep.mubr.f32.mxu0 0.0
        %9955 = vmatmul.mubr.f32.gmra.mrb[0].mxu0 %v9769
        %v9956 = vpop.f32.mrb[0].mxu0
        %v9957 = vadd.f32 %v9636, %v9956
        %v9958 = vpop.f32.mrb[0].mxu0
        %9959 = vmatprep.mubr.f32.mxu0 0.0
        %9960 = vmatmul.mubr.f32.gmra.mrb[0].mxu0 %v9772
        %v9961 = vpop.f32.mrb[0].mxu0
        %v9962 = vadd.f32 %v9641, %v9961
        %v9963 = vpop.f32.mrb[0].mxu0
        %9964 = vmatprep.mubr.f32.mxu0 0.0
        %9965 = vmatmul.mubr.f32.gmra.mrb[0].mxu0 %v9775
        %v9966 = vpop.f32.mrb[0].mxu0
        %v9967 = vadd.f32 %v9646, %v9966
        %v9968 = vpop.f32.mrb[0].mxu0
        %9969 = vmatprep.mubr.f32.mxu0 0.0
        %9970 = vmatmul.mubr.f32.gmra.mrb[0].mxu0 %v9778
        %v9971 = vpop.f32.mrb[0].mxu0
        %v9972 = vadd.f32 %v9651, %v9971
        %v9973 = vpop.f32.mrb[0].mxu0
        %9974 = vmatprep.mubr.f32.mxu0 0.0
        %9975 = vmatmul.mubr.f32.gmra.mrb[0].mxu0 %v9781
        %v9976 = vpop.f32.mrb[0].mxu0
        %v9977 = vadd.f32 %v9656, %v9976
        %v9978 = vpop.f32.mrb[0].mxu0
        %9979 = vmatprep.mubr.f32.mxu0 0.0
        %9980 = vmatmul.mubr.f32.gmra.mrb[0].mxu0 %v9784
        %v9981 = vpop.f32.mrb[0].mxu0
        %v9982 = vadd.f32 %v9661, %v9981
        %v9983 = vpop.f32.mrb[0].mxu0
        %9984 = vmatprep.mubr.f32.mxu0 0.0
        %9985 = vmatmul.mubr.f32.gmra.mrb[0].mxu0 %v9787
        %v9986 = vpop.f32.mrb[0].mxu0
        %v9987 = vadd.f32 %v9666, %v9986
        %v9988 = vpop.f32.mrb[0].mxu0
        %9989 = vmatprep.mubr.f32.mxu0 0.0
        %9990 = vmatmul.mubr.f32.gmra.mrb[0].mxu0 %v9790
        %v9991 = vpop.f32.mrb[0].mxu0
        %v9992 = vadd.f32 %v9671, %v9991
        %v9993 = vpop.f32.mrb[0].mxu0
        %9994 = vmatprep.mubr.f32.mxu0 0.0
        %9995 = vmatmul.mubr.f32.gmra.mrb[0].mxu0 %v9793
        %v9996 = vpop.f32.mrb[0].mxu0
        %v9997 = vadd.f32 %v9676, %v9996
        %v9998 = vpop.f32.mrb[0].mxu0
        %9999 = vmatprep.mubr.f32.mxu0 0.0
        %10000 = vmatmul.mubr.f32.gmra.mrb[0].mxu0 %v9796
        %v10001 = vpop.f32.mrb[0].mxu0
        %v10002 = vadd.f32 %v9681, %v10001
        %v10003 = vpop.f32.mrb[0].mxu0
        %10004 = vmatprep.mubr.f32.mxu0 0.0
        %10005 = vmatmul.mubr.f32.gmra.mrb[0].mxu0 %v9799
        %v10006 = vpop.f32.mrb[0].mxu0
        %v10007 = vadd.f32 %v9686, %v10006
        %v10008 = vpop.f32.mrb[0].mxu0
        %10009 = vmatprep.mubr.f32.mxu0 0.0
        %10010 = vmatmul.mubr.f32.gmra.mrb[0].mxu0 %v9802
        %v10011 = vpop.f32.mrb[0].mxu0
        %v10012 = vadd.f32 %v9691, %v10011
        %v10013 = vpop.f32.mrb[0].mxu0
        %10014 = vmatprep.mubr.f32.mxu0 0.0
        %10015 = vmatmul.mubr.f32.gmra.mrb[0].mxu0 %v9805
        %v10016 = vpop.f32.mrb[0].mxu0
        %v10017 = vadd.f32 %v9696, %v10016
        %v10018 = vpop.f32.mrb[0].mxu0
        %10019 = vmatprep.mubr.f32.mxu0 0.0
        %10020 = vmatmul.mubr.f32.gmra.mrb[0].mxu0 %v9808
        %v10021 = vpop.f32.mrb[0].mxu0
        %v10022 = vadd.f32 %v9701, %v10021
        %v10023 = vpop.f32.mrb[0].mxu0
        %10024 = vmatprep.mubr.f32.mxu0 0.0
        %10025 = vmatmul.mubr.f32.gmra.mrb[0].mxu0 %v9811
        %v10026 = vpop.f32.mrb[0].mxu0
        %v10027 = vadd.f32 %v9706, %v10026
        %v10028 = vpop.f32.mrb[0].mxu0
        %10029 = vmatprep.mubr.f32.mxu0 0.0
        %10030 = vmatmul.mubr.f32.gmra.mrb[0].mxu0 %v9814
        %v10031 = vpop.f32.mrb[0].mxu0
        %v10032 = vadd.f32 %v9711, %v10031
        %v10033 = vpop.f32.mrb[0].mxu0
        %10034 = vmatprep.mubr.f32.mxu0 0.0
        %10035 = vmatmul.mubr.f32.gmra.mrb[0].mxu0 %v9817
        %v10036 = vpop.f32.mrb[0].mxu0
        %v10037 = vadd.f32 %v9716, %v10036
        %v10038 = vpop.f32.mrb[0].mxu0
        %10039 = vmatprep.mubr.f32.mxu0 0.0
        %10040 = vmatmul.mubr.f32.gmra.mrb[0].mxu0 %v9820
        %v10041 = vpop.f32.mrb[0].mxu0
        %v10042 = vadd.f32 %v9721, %v10041
        %v10043 = vpop.f32.mrb[0].mxu0
        %10044 = vmatprep.mubr.f32.mxu0 0.0
        %10045 = vmatmul.mubr.f32.gmra.mrb[0].mxu0 %v9823
        %v10046 = vpop.f32.mrb[0].mxu0
        %v10047 = vadd.f32 %v9726, %v10046
        %v10048 = vpop.f32.mrb[0].mxu0
        %10049 = vdwg.mxu0
        %s10050 = scalar_lea.vmem %s21, 512
        %v10051 = vld [vmem:[%s10050] sm:$0xff]
        %v10052 = vld [vmem:[%s10050 + $0x8] sm:$0xff]
        %v10053 = vld [vmem:[%s10050 + $0x10] sm:$0xff]
        %v10054 = vld [vmem:[%s10050 + $0x18] sm:$0xff]
        %v10055 = vld [vmem:[%s10050 + $0x20] sm:$0xff]
        %v10056 = vld [vmem:[%s10050 + $0x28] sm:$0xff]
        %v10057 = vld [vmem:[%s10050 + $0x30] sm:$0xff]
        %v10058 = vld [vmem:[%s10050 + $0x38] sm:$0xff]
        %v10059 = vld [vmem:[%s10050 + $0x40] sm:$0xff]
        %v10060 = vld [vmem:[%s10050 + $0x48] sm:$0xff]
        %v10061 = vld [vmem:[%s10050 + $0x50] sm:$0xff]
        %v10062 = vld [vmem:[%s10050 + $0x58] sm:$0xff]
        %v10063 = vld [vmem:[%s10050 + $0x60] sm:$0xff]
        %v10064 = vld [vmem:[%s10050 + $0x68] sm:$0xff]
        %v10065 = vld [vmem:[%s10050 + $0x70] sm:$0xff]
        %v10066 = vld [vmem:[%s10050 + $0x78] sm:$0xff]
        %v10067 = vld [vmem:[%s10050 + $0x80] sm:$0xff]
        %v10068 = vld [vmem:[%s10050 + $0x88] sm:$0xff]
        %v10069 = vld [vmem:[%s10050 + $0x90] sm:$0xff]
        %v10070 = vld [vmem:[%s10050 + $0x98] sm:$0xff]
        %v10071 = vld [vmem:[%s10050 + $0xa0] sm:$0xff]
        %v10072 = vld [vmem:[%s10050 + $0xa8] sm:$0xff]
        %v10073 = vld [vmem:[%s10050 + $0xb0] sm:$0xff]
        %v10074 = vld [vmem:[%s10050 + $0xb8] sm:$0xff]
        %v10075 = vld [vmem:[%s10050 + $0xc0] sm:$0xff]
        %v10076 = vld [vmem:[%s10050 + $0xc8] sm:$0xff]
        %v10077 = vld [vmem:[%s10050 + $0xd0] sm:$0xff]
        %v10078 = vld [vmem:[%s10050 + $0xd8] sm:$0xff]
        %v10079 = vld [vmem:[%s10050 + $0xe0] sm:$0xff]
        %v10080 = vld [vmem:[%s10050 + $0xe8] sm:$0xff]
        %v10081 = vld [vmem:[%s10050 + $0xf0] sm:$0xff]
        %v10082 = vld [vmem:[%s10050 + $0xf8] sm:$0xff]
        %10083 = vrot.lane.b32.xlu0 %v9303, 122
        %v10084 = vpop.permute.xlu0 %10083
        %10085 = vrot.lane.b32.xlu0 %v9304, 122
        %v10086 = vpop.permute.xlu0 %10085
        %10087 = vrot.lane.b32.xlu0 %v9305, 122
        %v10088 = vpop.permute.xlu0 %10087
        %10089 = vrot.lane.b32.xlu0 %v9306, 122
        %v10090 = vpop.permute.xlu0 %10089
        %10091 = vrot.lane.b32.xlu0 %v9307, 122
        %v10092 = vpop.permute.xlu0 %10091
        %10093 = vrot.lane.b32.xlu0 %v9308, 122
        %v10094 = vpop.permute.xlu0 %10093
        %10095 = vrot.lane.b32.xlu0 %v9309, 122
        %v10096 = vpop.permute.xlu0 %10095
        %10097 = vrot.lane.b32.xlu0 %v9310, 122
        %v10098 = vpop.permute.xlu0 %10097
        %v10108 = vsel %vm2389, %v10051, 0
        %v10111 = vsel %vm2389, %v10052, 0
        %v10114 = vsel %vm2389, %v10053, 0
        %v10117 = vsel %vm2389, %v10054, 0
        %v10120 = vsel %vm2389, %v10055, 0
        %v10123 = vsel %vm2389, %v10056, 0
        %v10126 = vsel %vm2389, %v10057, 0
        %v10129 = vsel %vm2389, %v10058, 0
        %v10132 = vsel %vm2389, %v10059, 0
        %v10135 = vsel %vm2389, %v10060, 0
        %v10138 = vsel %vm2389, %v10061, 0
        %v10141 = vsel %vm2389, %v10062, 0
        %v10144 = vsel %vm2389, %v10063, 0
        %v10147 = vsel %vm2389, %v10064, 0
        %v10150 = vsel %vm2389, %v10065, 0
        %v10153 = vsel %vm2389, %v10066, 0
        %v10156 = vsel %vm2389, %v10067, 0
        %v10159 = vsel %vm2389, %v10068, 0
        %v10162 = vsel %vm2389, %v10069, 0
        %v10165 = vsel %vm2389, %v10070, 0
        %v10168 = vsel %vm2389, %v10071, 0
        %v10171 = vsel %vm2389, %v10072, 0
        %v10174 = vsel %vm2389, %v10073, 0
        %v10177 = vsel %vm2389, %v10074, 0
        %v10180 = vsel %vm2389, %v10075, 0
        %v10183 = vsel %vm2389, %v10076, 0
        %v10186 = vsel %vm2389, %v10077, 0
        %v10189 = vsel %vm2389, %v10078, 0
        %v10192 = vsel %vm2389, %v10079, 0
        %v10195 = vsel %vm2389, %v10080, 0
        %v10198 = vsel %vm2389, %v10081, 0
        %v10201 = vsel %vm2389, %v10082, 0
        %10203 = vmatprep.subr.mxu0 0.0
        %10204 = vmatpush1.msra.mxu0 %v10084
        %10205 = vmatprep.subr.mxu0 0.0
        %10206 = vmatpush1.msra.mxu0 %v10086
        %10207 = vmatprep.subr.mxu0 0.0
        %10208 = vmatpush1.msra.mxu0 %v10088
        %10209 = vmatprep.subr.mxu0 0.0
        %10210 = vmatpush1.msra.mxu0 %v10090
        %10211 = vmatprep.subr.mxu0 0.0
        %10212 = vmatpush1.msra.mxu0 %v10092
        %10213 = vmatprep.subr.mxu0 0.0
        %10214 = vmatpush1.msra.mxu0 %v10094
        %10215 = vmatprep.subr.mxu0 0.0
        %10216 = vmatpush1.msra.mxu0 %v10096
        %10217 = vmatprep.subr.mxu0 0.0
        %10218 = vmatpush1.msra.mxu0 %v10098
        %10219 = vmatprep.subr.mxu0 0.0
        %10220 = vmatpush1.msra.mxu0 0.0
        %10221 = vmatprep.subr.mxu0 0.0
        %10222 = vmatpush1.msra.mxu0 0.0
        %10223 = vmatprep.subr.mxu0 0.0
        %10224 = vmatpush1.msra.mxu0 0.0
        %10225 = vmatprep.subr.mxu0 0.0
        %10226 = vmatpush1.msra.mxu0 0.0
        %10227 = vmatprep.subr.mxu0 0.0
        %10228 = vmatpush1.msra.mxu0 0.0
        %10229 = vmatprep.subr.mxu0 0.0
        %10230 = vmatpush1.msra.mxu0 0.0
        %10231 = vmatprep.subr.mxu0 0.0
        %10232 = vmatpush1.msra.mxu0 0.0
        %10233 = vmatprep.subr.mxu0 0.0
        %10234 = vmatpush1.msra.mxu0 0.0
        %10235 = vmatprep.subr.mxu0 0.0
        %10236 = vmatpush1.msra.mxu0 0.0
        %10237 = vmatprep.subr.mxu0 0.0
        %10238 = vmatpush1.msra.mxu0 0.0
        %10239 = vmatprep.subr.mxu0 0.0
        %10240 = vmatpush1.msra.mxu0 0.0
        %10241 = vmatprep.subr.mxu0 0.0
        %10242 = vmatpush1.msra.mxu0 0.0
        %10243 = vmatprep.subr.mxu0 0.0
        %10244 = vmatpush1.msra.mxu0 0.0
        %10245 = vmatprep.subr.mxu0 0.0
        %10246 = vmatpush1.msra.mxu0 0.0
        %10247 = vmatprep.subr.mxu0 0.0
        %10248 = vmatpush1.msra.mxu0 0.0
        %10249 = vmatprep.subr.mxu0 0.0
        %10250 = vmatpush1.msra.mxu0 0.0
        %10251 = vmatprep.subr.mxu0 0.0
        %10252 = vmatpush1.msra.mxu0 0.0
        %10253 = vmatprep.subr.mxu0 0.0
        %10254 = vmatpush1.msra.mxu0 0.0
        %10255 = vmatprep.subr.mxu0 0.0
        %10256 = vmatpush1.msra.mxu0 0.0
        %10257 = vmatprep.subr.mxu0 0.0
        %10258 = vmatpush1.msra.mxu0 0.0
        %10259 = vmatprep.subr.mxu0 0.0
        %10260 = vmatpush1.msra.mxu0 0.0
        %10261 = vmatprep.subr.mxu0 0.0
        %10262 = vmatpush1.msra.mxu0 0.0
        %10263 = vmatprep.subr.mxu0 0.0
        %10264 = vmatpush1.msra.mxu0 0.0
        %10265 = vmatprep.subr.mxu0 0.0
        %10266 = vmatpush1.msra.mxu0 0.0
        %10267 = vmatprep.mubr.f32.mxu0 0.0
        %10268 = vmatmul.mubr.f32.gmra.mrb[0].mxu0 %v10108
        %v10269 = vpop.f32.mrb[0].mxu0
        %v10270 = vadd.f32 0.0, %v10269
        %v10271 = vpop.f32.mrb[0].mxu0
        %10272 = vmatprep.mubr.f32.mxu0 0.0
        %10273 = vmatmul.mubr.f32.gmra.mrb[0].mxu0 %v10111
        %v10274 = vpop.f32.mrb[0].mxu0
        %v10275 = vadd.f32 0.0, %v10274
        %v10276 = vpop.f32.mrb[0].mxu0
        %10277 = vmatprep.mubr.f32.mxu0 0.0
        %10278 = vmatmul.mubr.f32.gmra.mrb[0].mxu0 %v10114
        %v10279 = vpop.f32.mrb[0].mxu0
        %v10280 = vadd.f32 0.0, %v10279
        %v10281 = vpop.f32.mrb[0].mxu0
        %10282 = vmatprep.mubr.f32.mxu0 0.0
        %10283 = vmatmul.mubr.f32.gmra.mrb[0].mxu0 %v10117
        %v10284 = vpop.f32.mrb[0].mxu0
        %v10285 = vadd.f32 0.0, %v10284
        %v10286 = vpop.f32.mrb[0].mxu0
        %10287 = vmatprep.mubr.f32.mxu0 0.0
        %10288 = vmatmul.mubr.f32.gmra.mrb[0].mxu0 %v10120
        %v10289 = vpop.f32.mrb[0].mxu0
        %v10290 = vadd.f32 0.0, %v10289
        %v10291 = vpop.f32.mrb[0].mxu0
        %10292 = vmatprep.mubr.f32.mxu0 0.0
        %10293 = vmatmul.mubr.f32.gmra.mrb[0].mxu0 %v10123
        %v10294 = vpop.f32.mrb[0].mxu0
        %v10295 = vadd.f32 0.0, %v10294
        %v10296 = vpop.f32.mrb[0].mxu0
        %10297 = vmatprep.mubr.f32.mxu0 0.0
        %10298 = vmatmul.mubr.f32.gmra.mrb[0].mxu0 %v10126
        %v10299 = vpop.f32.mrb[0].mxu0
        %v10300 = vadd.f32 0.0, %v10299
        %v10301 = vpop.f32.mrb[0].mxu0
        %10302 = vmatprep.mubr.f32.mxu0 0.0
        %10303 = vmatmul.mubr.f32.gmra.mrb[0].mxu0 %v10129
        %v10304 = vpop.f32.mrb[0].mxu0
        %v10305 = vadd.f32 0.0, %v10304
        %v10306 = vpop.f32.mrb[0].mxu0
        %10307 = vmatprep.mubr.f32.mxu0 0.0
        %10308 = vmatmul.mubr.f32.gmra.mrb[0].mxu0 %v10132
        %v10309 = vpop.f32.mrb[0].mxu0
        %v10310 = vadd.f32 0.0, %v10309
        %v10311 = vpop.f32.mrb[0].mxu0
        %10312 = vmatprep.mubr.f32.mxu0 0.0
        %10313 = vmatmul.mubr.f32.gmra.mrb[0].mxu0 %v10135
        %v10314 = vpop.f32.mrb[0].mxu0
        %v10315 = vadd.f32 0.0, %v10314
        %v10316 = vpop.f32.mrb[0].mxu0
        %10317 = vmatprep.mubr.f32.mxu0 0.0
        %10318 = vmatmul.mubr.f32.gmra.mrb[0].mxu0 %v10138
        %v10319 = vpop.f32.mrb[0].mxu0
        %v10320 = vadd.f32 0.0, %v10319
        %v10321 = vpop.f32.mrb[0].mxu0
        %10322 = vmatprep.mubr.f32.mxu0 0.0
        %10323 = vmatmul.mubr.f32.gmra.mrb[0].mxu0 %v10141
        %v10324 = vpop.f32.mrb[0].mxu0
        %v10325 = vadd.f32 0.0, %v10324
        %v10326 = vpop.f32.mrb[0].mxu0
        %10327 = vmatprep.mubr.f32.mxu0 0.0
        %10328 = vmatmul.mubr.f32.gmra.mrb[0].mxu0 %v10144
        %v10329 = vpop.f32.mrb[0].mxu0
        %v10330 = vadd.f32 0.0, %v10329
        %v10331 = vpop.f32.mrb[0].mxu0
        %10332 = vmatprep.mubr.f32.mxu0 0.0
        %10333 = vmatmul.mubr.f32.gmra.mrb[0].mxu0 %v10147
        %v10334 = vpop.f32.mrb[0].mxu0
        %v10335 = vadd.f32 0.0, %v10334
        %v10336 = vpop.f32.mrb[0].mxu0
        %10337 = vmatprep.mubr.f32.mxu0 0.0
        %10338 = vmatmul.mubr.f32.gmra.mrb[0].mxu0 %v10150
        %v10339 = vpop.f32.mrb[0].mxu0
        %v10340 = vadd.f32 0.0, %v10339
        %v10341 = vpop.f32.mrb[0].mxu0
        %10342 = vmatprep.mubr.f32.mxu0 0.0
        %10343 = vmatmul.mubr.f32.gmra.mrb[0].mxu0 %v10153
        %v10344 = vpop.f32.mrb[0].mxu0
        %v10345 = vadd.f32 0.0, %v10344
        %v10346 = vpop.f32.mrb[0].mxu0
        %10347 = vmatprep.mubr.f32.mxu0 0.0
        %10348 = vmatmul.mubr.f32.gmra.mrb[0].mxu0 %v10156
        %v10349 = vpop.f32.mrb[0].mxu0
        %v10350 = vadd.f32 0.0, %v10349
        %v10351 = vpop.f32.mrb[0].mxu0
        %10352 = vmatprep.mubr.f32.mxu0 0.0
        %10353 = vmatmul.mubr.f32.gmra.mrb[0].mxu0 %v10159
        %v10354 = vpop.f32.mrb[0].mxu0
        %v10355 = vadd.f32 0.0, %v10354
        %v10356 = vpop.f32.mrb[0].mxu0
        %10357 = vmatprep.mubr.f32.mxu0 0.0
        %10358 = vmatmul.mubr.f32.gmra.mrb[0].mxu0 %v10162
        %v10359 = vpop.f32.mrb[0].mxu0
        %v10360 = vadd.f32 0.0, %v10359
        %v10361 = vpop.f32.mrb[0].mxu0
        %10362 = vmatprep.mubr.f32.mxu0 0.0
        %10363 = vmatmul.mubr.f32.gmra.mrb[0].mxu0 %v10165
        %v10364 = vpop.f32.mrb[0].mxu0
        %v10365 = vadd.f32 0.0, %v10364
        %v10366 = vpop.f32.mrb[0].mxu0
        %10367 = vmatprep.mubr.f32.mxu0 0.0
        %10368 = vmatmul.mubr.f32.gmra.mrb[0].mxu0 %v10168
        %v10369 = vpop.f32.mrb[0].mxu0
        %v10370 = vadd.f32 0.0, %v10369
        %v10371 = vpop.f32.mrb[0].mxu0
        %10372 = vmatprep.mubr.f32.mxu0 0.0
        %10373 = vmatmul.mubr.f32.gmra.mrb[0].mxu0 %v10171
        %v10374 = vpop.f32.mrb[0].mxu0
        %v10375 = vadd.f32 0.0, %v10374
        %v10376 = vpop.f32.mrb[0].mxu0
        %10377 = vmatprep.mubr.f32.mxu0 0.0
        %10378 = vmatmul.mubr.f32.gmra.mrb[0].mxu0 %v10174
        %v10379 = vpop.f32.mrb[0].mxu0
        %v10380 = vadd.f32 0.0, %v10379
        %v10381 = vpop.f32.mrb[0].mxu0
        %10382 = vmatprep.mubr.f32.mxu0 0.0
        %10383 = vmatmul.mubr.f32.gmra.mrb[0].mxu0 %v10177
        %v10384 = vpop.f32.mrb[0].mxu0
        %v10385 = vadd.f32 0.0, %v10384
        %v10386 = vpop.f32.mrb[0].mxu0
        %10387 = vmatprep.mubr.f32.mxu0 0.0
        %10388 = vmatmul.mubr.f32.gmra.mrb[0].mxu0 %v10180
        %v10389 = vpop.f32.mrb[0].mxu0
        %v10390 = vadd.f32 0.0, %v10389
        %v10391 = vpop.f32.mrb[0].mxu0
        %10392 = vmatprep.mubr.f32.mxu0 0.0
        %10393 = vmatmul.mubr.f32.gmra.mrb[0].mxu0 %v10183
        %v10394 = vpop.f32.mrb[0].mxu0
        %v10395 = vadd.f32 0.0, %v10394
        %v10396 = vpop.f32.mrb[0].mxu0
        %10397 = vmatprep.mubr.f32.mxu0 0.0
        %10398 = vmatmul.mubr.f32.gmra.mrb[0].mxu0 %v10186
        %v10399 = vpop.f32.mrb[0].mxu0
        %v10400 = vadd.f32 0.0, %v10399
        %v10401 = vpop.f32.mrb[0].mxu0
        %10402 = vmatprep.mubr.f32.mxu0 0.0
        %10403 = vmatmul.mubr.f32.gmra.mrb[0].mxu0 %v10189
        %v10404 = vpop.f32.mrb[0].mxu0
        %v10405 = vadd.f32 0.0, %v10404
        %v10406 = vpop.f32.mrb[0].mxu0
        %10407 = vmatprep.mubr.f32.mxu0 0.0
        %10408 = vmatmul.mubr.f32.gmra.mrb[0].mxu0 %v10192
        %v10409 = vpop.f32.mrb[0].mxu0
        %v10410 = vadd.f32 0.0, %v10409
        %v10411 = vpop.f32.mrb[0].mxu0
        %10412 = vmatprep.mubr.f32.mxu0 0.0
        %10413 = vmatmul.mubr.f32.gmra.mrb[0].mxu0 %v10195
        %v10414 = vpop.f32.mrb[0].mxu0
        %v10415 = vadd.f32 0.0, %v10414
        %v10416 = vpop.f32.mrb[0].mxu0
        %10417 = vmatprep.mubr.f32.mxu0 0.0
        %10418 = vmatmul.mubr.f32.gmra.mrb[0].mxu0 %v10198
        %v10419 = vpop.f32.mrb[0].mxu0
        %v10420 = vadd.f32 0.0, %v10419
        %v10421 = vpop.f32.mrb[0].mxu0
        %10422 = vmatprep.mubr.f32.mxu0 0.0
        %10423 = vmatmul.mubr.f32.gmra.mrb[0].mxu0 %v10201
        %v10424 = vpop.f32.mrb[0].mxu0
        %v10425 = vadd.f32 0.0, %v10424
        %v10426 = vpop.f32.mrb[0].mxu0
        %10427 = vdwg.mxu0
        %v10428 = vadd.f32 %v9892, %v10270
        %v10429 = vadd.f32 %v9897, %v10275
        %v10430 = vadd.f32 %v9902, %v10280
        %v10431 = vadd.f32 %v9907, %v10285
        %v10432 = vadd.f32 %v9912, %v10290
        %v10433 = vadd.f32 %v9917, %v10295
        %v10434 = vadd.f32 %v9922, %v10300
        %v10435 = vadd.f32 %v9927, %v10305
        %v10436 = vadd.f32 %v9932, %v10310
        %v10437 = vadd.f32 %v9937, %v10315
        %v10438 = vadd.f32 %v9942, %v10320
        %v10439 = vadd.f32 %v9947, %v10325
        %v10440 = vadd.f32 %v9952, %v10330
        %v10441 = vadd.f32 %v9957, %v10335
        %v10442 = vadd.f32 %v9962, %v10340
        %v10443 = vadd.f32 %v9967, %v10345
        %v10444 = vadd.f32 %v9972, %v10350
        %v10445 = vadd.f32 %v9977, %v10355
        %v10446 = vadd.f32 %v9982, %v10360
        %v10447 = vadd.f32 %v9987, %v10365
        %v10448 = vadd.f32 %v9992, %v10370
        %v10449 = vadd.f32 %v9997, %v10375
        %v10450 = vadd.f32 %v10002, %v10380
        %v10451 = vadd.f32 %v10007, %v10385
        %v10452 = vadd.f32 %v10012, %v10390
        %v10453 = vadd.f32 %v10017, %v10395
        %v10454 = vadd.f32 %v10022, %v10400
        %v10455 = vadd.f32 %v10027, %v10405
        %v10456 = vadd.f32 %v10032, %v10410
        %v10457 = vadd.f32 %v10037, %v10415
        %v10458 = vadd.f32 %v10042, %v10420
        %v10459 = vadd.f32 %v10047, %v10425
        %s10460 = scalar_lea.vmem %s21, 768
        %v10461 = vld [vmem:[%s10460] sm:$0xff]
        %v10462 = vld [vmem:[%s10460 + $0x8] sm:$0xff]
        %v10463 = vld [vmem:[%s10460 + $0x10] sm:$0xff]
        %v10464 = vld [vmem:[%s10460 + $0x18] sm:$0xff]
        %v10465 = vld [vmem:[%s10460 + $0x20] sm:$0xff]
        %v10466 = vld [vmem:[%s10460 + $0x28] sm:$0xff]
        %v10467 = vld [vmem:[%s10460 + $0x30] sm:$0xff]
        %v10468 = vld [vmem:[%s10460 + $0x38] sm:$0xff]
        %v10469 = vld [vmem:[%s10460 + $0x40] sm:$0xff]
        %v10470 = vld [vmem:[%s10460 + $0x48] sm:$0xff]
        %v10471 = vld [vmem:[%s10460 + $0x50] sm:$0xff]
        %v10472 = vld [vmem:[%s10460 + $0x58] sm:$0xff]
        %v10473 = vld [vmem:[%s10460 + $0x60] sm:$0xff]
        %v10474 = vld [vmem:[%s10460 + $0x68] sm:$0xff]
        %v10475 = vld [vmem:[%s10460 + $0x70] sm:$0xff]
        %v10476 = vld [vmem:[%s10460 + $0x78] sm:$0xff]
        %v10477 = vld [vmem:[%s10460 + $0x80] sm:$0xff]
        %v10478 = vld [vmem:[%s10460 + $0x88] sm:$0xff]
        %v10479 = vld [vmem:[%s10460 + $0x90] sm:$0xff]
        %v10480 = vld [vmem:[%s10460 + $0x98] sm:$0xff]
        %v10481 = vld [vmem:[%s10460 + $0xa0] sm:$0xff]
        %v10482 = vld [vmem:[%s10460 + $0xa8] sm:$0xff]
        %v10483 = vld [vmem:[%s10460 + $0xb0] sm:$0xff]
        %v10484 = vld [vmem:[%s10460 + $0xb8] sm:$0xff]
        %v10485 = vld [vmem:[%s10460 + $0xc0] sm:$0xff]
        %v10486 = vld [vmem:[%s10460 + $0xc8] sm:$0xff]
        %v10487 = vld [vmem:[%s10460 + $0xd0] sm:$0xff]
        %v10488 = vld [vmem:[%s10460 + $0xd8] sm:$0xff]
        %v10489 = vld [vmem:[%s10460 + $0xe0] sm:$0xff]
        %v10490 = vld [vmem:[%s10460 + $0xe8] sm:$0xff]
        %v10491 = vld [vmem:[%s10460 + $0xf0] sm:$0xff]
        %v10492 = vld [vmem:[%s10460 + $0xf8] sm:$0xff]
        %10493 = vrot.lane.b32.xlu0 %v9303, 119
        %v10494 = vpop.permute.xlu0 %10493
        %10495 = vrot.lane.b32.xlu0 %v9304, 119
        %v10496 = vpop.permute.xlu0 %10495
        %10497 = vrot.lane.b32.xlu0 %v9305, 119
        %v10498 = vpop.permute.xlu0 %10497
        %10499 = vrot.lane.b32.xlu0 %v9306, 119
        %v10500 = vpop.permute.xlu0 %10499
        %10501 = vrot.lane.b32.xlu0 %v9307, 119
        %v10502 = vpop.permute.xlu0 %10501
        %10503 = vrot.lane.b32.xlu0 %v9308, 119
        %v10504 = vpop.permute.xlu0 %10503
        %10505 = vrot.lane.b32.xlu0 %v9309, 119
        %v10506 = vpop.permute.xlu0 %10505
        %10507 = vrot.lane.b32.xlu0 %v9310, 119
        %v10508 = vpop.permute.xlu0 %10507
        %v10518 = vsel %vm2389, %v10461, 0
        %v10521 = vsel %vm2389, %v10462, 0
        %v10524 = vsel %vm2389, %v10463, 0
        %v10527 = vsel %vm2389, %v10464, 0
        %v10530 = vsel %vm2389, %v10465, 0
        %v10533 = vsel %vm2389, %v10466, 0
        %v10536 = vsel %vm2389, %v10467, 0
        %v10539 = vsel %vm2389, %v10468, 0
        %v10542 = vsel %vm2389, %v10469, 0
        %v10545 = vsel %vm2389, %v10470, 0
        %v10548 = vsel %vm2389, %v10471, 0
        %v10551 = vsel %vm2389, %v10472, 0
        %v10554 = vsel %vm2389, %v10473, 0
        %v10557 = vsel %vm2389, %v10474, 0
        %v10560 = vsel %vm2389, %v10475, 0
        %v10563 = vsel %vm2389, %v10476, 0
        %v10566 = vsel %vm2389, %v10477, 0
        %v10569 = vsel %vm2389, %v10478, 0
        %v10572 = vsel %vm2389, %v10479, 0
        %v10575 = vsel %vm2389, %v10480, 0
        %v10578 = vsel %vm2389, %v10481, 0
        %v10581 = vsel %vm2389, %v10482, 0
        %v10584 = vsel %vm2389, %v10483, 0
        %v10587 = vsel %vm2389, %v10484, 0
        %v10590 = vsel %vm2389, %v10485, 0
        %v10593 = vsel %vm2389, %v10486, 0
        %v10596 = vsel %vm2389, %v10487, 0
        %v10599 = vsel %vm2389, %v10488, 0
        %v10602 = vsel %vm2389, %v10489, 0
        %v10605 = vsel %vm2389, %v10490, 0
        %v10608 = vsel %vm2389, %v10491, 0
        %v10611 = vsel %vm2389, %v10492, 0
        %10613 = vmatprep.subr.mxu0 0.0
        %10614 = vmatpush1.msra.mxu0 %v10494
        %10615 = vmatprep.subr.mxu0 0.0
        %10616 = vmatpush1.msra.mxu0 %v10496
        %10617 = vmatprep.subr.mxu0 0.0
        %10618 = vmatpush1.msra.mxu0 %v10498
        %10619 = vmatprep.subr.mxu0 0.0
        %10620 = vmatpush1.msra.mxu0 %v10500
        %10621 = vmatprep.subr.mxu0 0.0
        %10622 = vmatpush1.msra.mxu0 %v10502
        %10623 = vmatprep.subr.mxu0 0.0
        %10624 = vmatpush1.msra.mxu0 %v10504
        %10625 = vmatprep.subr.mxu0 0.0
        %10626 = vmatpush1.msra.mxu0 %v10506
        %10627 = vmatprep.subr.mxu0 0.0
        %10628 = vmatpush1.msra.mxu0 %v10508
        %10629 = vmatprep.subr.mxu0 0.0
        %10630 = vmatpush1.msra.mxu0 0.0
        %10631 = vmatprep.subr.mxu0 0.0
        %10632 = vmatpush1.msra.mxu0 0.0
        %10633 = vmatprep.subr.mxu0 0.0
        %10634 = vmatpush1.msra.mxu0 0.0
        %10635 = vmatprep.subr.mxu0 0.0
        %10636 = vmatpush1.msra.mxu0 0.0
        %10637 = vmatprep.subr.mxu0 0.0
        %10638 = vmatpush1.msra.mxu0 0.0
        %10639 = vmatprep.subr.mxu0 0.0
        %10640 = vmatpush1.msra.mxu0 0.0
        %10641 = vmatprep.subr.mxu0 0.0
        %10642 = vmatpush1.msra.mxu0 0.0
        %10643 = vmatprep.subr.mxu0 0.0
        %10644 = vmatpush1.msra.mxu0 0.0
        %10645 = vmatprep.subr.mxu0 0.0
        %10646 = vmatpush1.msra.mxu0 0.0
        %10647 = vmatprep.subr.mxu0 0.0
        %10648 = vmatpush1.msra.mxu0 0.0
        %10649 = vmatprep.subr.mxu0 0.0
        %10650 = vmatpush1.msra.mxu0 0.0
        %10651 = vmatprep.subr.mxu0 0.0
        %10652 = vmatpush1.msra.mxu0 0.0
        %10653 = vmatprep.subr.mxu0 0.0
        %10654 = vmatpush1.msra.mxu0 0.0
        %10655 = vmatprep.subr.mxu0 0.0
        %10656 = vmatpush1.msra.mxu0 0.0
        %10657 = vmatprep.subr.mxu0 0.0
        %10658 = vmatpush1.msra.mxu0 0.0
        %10659 = vmatprep.subr.mxu0 0.0
        %10660 = vmatpush1.msra.mxu0 0.0
        %10661 = vmatprep.subr.mxu0 0.0
        %10662 = vmatpush1.msra.mxu0 0.0
        %10663 = vmatprep.subr.mxu0 0.0
        %10664 = vmatpush1.msra.mxu0 0.0
        %10665 = vmatprep.subr.mxu0 0.0
        %10666 = vmatpush1.msra.mxu0 0.0
        %10667 = vmatprep.subr.mxu0 0.0
        %10668 = vmatpush1.msra.mxu0 0.0
        %10669 = vmatprep.subr.mxu0 0.0
        %10670 = vmatpush1.msra.mxu0 0.0
        %10671 = vmatprep.subr.mxu0 0.0
        %10672 = vmatpush1.msra.mxu0 0.0
        %10673 = vmatprep.subr.mxu0 0.0
        %10674 = vmatpush1.msra.mxu0 0.0
        %10675 = vmatprep.subr.mxu0 0.0
        %10676 = vmatpush1.msra.mxu0 0.0
        %10677 = vmatprep.mubr.f32.mxu0 0.0
        %10678 = vmatmul.mubr.f32.gmra.mrb[0].mxu0 %v10518
        %v10679 = vpop.f32.mrb[0].mxu0
        %v10680 = vadd.f32 0.0, %v10679
        %v10681 = vpop.f32.mrb[0].mxu0
        %10682 = vmatprep.mubr.f32.mxu0 0.0
        %10683 = vmatmul.mubr.f32.gmra.mrb[0].mxu0 %v10521
        %v10684 = vpop.f32.mrb[0].mxu0
        %v10685 = vadd.f32 0.0, %v10684
        %v10686 = vpop.f32.mrb[0].mxu0
        %10687 = vmatprep.mubr.f32.mxu0 0.0
        %10688 = vmatmul.mubr.f32.gmra.mrb[0].mxu0 %v10524
        %v10689 = vpop.f32.mrb[0].mxu0
        %v10690 = vadd.f32 0.0, %v10689
        %v10691 = vpop.f32.mrb[0].mxu0
        %10692 = vmatprep.mubr.f32.mxu0 0.0
        %10693 = vmatmul.mubr.f32.gmra.mrb[0].mxu0 %v10527
        %v10694 = vpop.f32.mrb[0].mxu0
        %v10695 = vadd.f32 0.0, %v10694
        %v10696 = vpop.f32.mrb[0].mxu0
        %10697 = vmatprep.mubr.f32.mxu0 0.0
        %10698 = vmatmul.mubr.f32.gmra.mrb[0].mxu0 %v10530
        %v10699 = vpop.f32.mrb[0].mxu0
        %v10700 = vadd.f32 0.0, %v10699
        %v10701 = vpop.f32.mrb[0].mxu0
        %10702 = vmatprep.mubr.f32.mxu0 0.0
        %10703 = vmatmul.mubr.f32.gmra.mrb[0].mxu0 %v10533
        %v10704 = vpop.f32.mrb[0].mxu0
        %v10705 = vadd.f32 0.0, %v10704
        %v10706 = vpop.f32.mrb[0].mxu0
        %10707 = vmatprep.mubr.f32.mxu0 0.0
        %10708 = vmatmul.mubr.f32.gmra.mrb[0].mxu0 %v10536
        %v10709 = vpop.f32.mrb[0].mxu0
        %v10710 = vadd.f32 0.0, %v10709
        %v10711 = vpop.f32.mrb[0].mxu0
        %10712 = vmatprep.mubr.f32.mxu0 0.0
        %10713 = vmatmul.mubr.f32.gmra.mrb[0].mxu0 %v10539
        %v10714 = vpop.f32.mrb[0].mxu0
        %v10715 = vadd.f32 0.0, %v10714
        %v10716 = vpop.f32.mrb[0].mxu0
        %10717 = vmatprep.mubr.f32.mxu0 0.0
        %10718 = vmatmul.mubr.f32.gmra.mrb[0].mxu0 %v10542
        %v10719 = vpop.f32.mrb[0].mxu0
        %v10720 = vadd.f32 0.0, %v10719
        %v10721 = vpop.f32.mrb[0].mxu0
        %10722 = vmatprep.mubr.f32.mxu0 0.0
        %10723 = vmatmul.mubr.f32.gmra.mrb[0].mxu0 %v10545
        %v10724 = vpop.f32.mrb[0].mxu0
        %v10725 = vadd.f32 0.0, %v10724
        %v10726 = vpop.f32.mrb[0].mxu0
        %10727 = vmatprep.mubr.f32.mxu0 0.0
        %10728 = vmatmul.mubr.f32.gmra.mrb[0].mxu0 %v10548
        %v10729 = vpop.f32.mrb[0].mxu0
        %v10730 = vadd.f32 0.0, %v10729
        %v10731 = vpop.f32.mrb[0].mxu0
        %10732 = vmatprep.mubr.f32.mxu0 0.0
        %10733 = vmatmul.mubr.f32.gmra.mrb[0].mxu0 %v10551
        %v10734 = vpop.f32.mrb[0].mxu0
        %v10735 = vadd.f32 0.0, %v10734
        %v10736 = vpop.f32.mrb[0].mxu0
        %10737 = vmatprep.mubr.f32.mxu0 0.0
        %10738 = vmatmul.mubr.f32.gmra.mrb[0].mxu0 %v10554
        %v10739 = vpop.f32.mrb[0].mxu0
        %v10740 = vadd.f32 0.0, %v10739
        %v10741 = vpop.f32.mrb[0].mxu0
        %10742 = vmatprep.mubr.f32.mxu0 0.0
        %10743 = vmatmul.mubr.f32.gmra.mrb[0].mxu0 %v10557
        %v10744 = vpop.f32.mrb[0].mxu0
        %v10745 = vadd.f32 0.0, %v10744
        %v10746 = vpop.f32.mrb[0].mxu0
        %10747 = vmatprep.mubr.f32.mxu0 0.0
        %10748 = vmatmul.mubr.f32.gmra.mrb[0].mxu0 %v10560
        %v10749 = vpop.f32.mrb[0].mxu0
        %v10750 = vadd.f32 0.0, %v10749
        %v10751 = vpop.f32.mrb[0].mxu0
        %10752 = vmatprep.mubr.f32.mxu0 0.0
        %10753 = vmatmul.mubr.f32.gmra.mrb[0].mxu0 %v10563
        %v10754 = vpop.f32.mrb[0].mxu0
        %v10755 = vadd.f32 0.0, %v10754
        %v10756 = vpop.f32.mrb[0].mxu0
        %10757 = vmatprep.mubr.f32.mxu0 0.0
        %10758 = vmatmul.mubr.f32.gmra.mrb[0].mxu0 %v10566
        %v10759 = vpop.f32.mrb[0].mxu0
        %v10760 = vadd.f32 0.0, %v10759
        %v10761 = vpop.f32.mrb[0].mxu0
        %10762 = vmatprep.mubr.f32.mxu0 0.0
        %10763 = vmatmul.mubr.f32.gmra.mrb[0].mxu0 %v10569
        %v10764 = vpop.f32.mrb[0].mxu0
        %v10765 = vadd.f32 0.0, %v10764
        %v10766 = vpop.f32.mrb[0].mxu0
        %10767 = vmatprep.mubr.f32.mxu0 0.0
        %10768 = vmatmul.mubr.f32.gmra.mrb[0].mxu0 %v10572
        %v10769 = vpop.f32.mrb[0].mxu0
        %v10770 = vadd.f32 0.0, %v10769
        %v10771 = vpop.f32.mrb[0].mxu0
        %10772 = vmatprep.mubr.f32.mxu0 0.0
        %10773 = vmatmul.mubr.f32.gmra.mrb[0].mxu0 %v10575
        %v10774 = vpop.f32.mrb[0].mxu0
        %v10775 = vadd.f32 0.0, %v10774
        %v10776 = vpop.f32.mrb[0].mxu0
        %10777 = vmatprep.mubr.f32.mxu0 0.0
        %10778 = vmatmul.mubr.f32.gmra.mrb[0].mxu0 %v10578
        %v10779 = vpop.f32.mrb[0].mxu0
        %v10780 = vadd.f32 0.0, %v10779
        %v10781 = vpop.f32.mrb[0].mxu0
        %10782 = vmatprep.mubr.f32.mxu0 0.0
        %10783 = vmatmul.mubr.f32.gmra.mrb[0].mxu0 %v10581
        %v10784 = vpop.f32.mrb[0].mxu0
        %v10785 = vadd.f32 0.0, %v10784
        %v10786 = vpop.f32.mrb[0].mxu0
        %10787 = vmatprep.mubr.f32.mxu0 0.0
        %10788 = vmatmul.mubr.f32.gmra.mrb[0].mxu0 %v10584
        %v10789 = vpop.f32.mrb[0].mxu0
        %v10790 = vadd.f32 0.0, %v10789
        %v10791 = vpop.f32.mrb[0].mxu0
        %10792 = vmatprep.mubr.f32.mxu0 0.0
        %10793 = vmatmul.mubr.f32.gmra.mrb[0].mxu0 %v10587
        %v10794 = vpop.f32.mrb[0].mxu0
        %v10795 = vadd.f32 0.0, %v10794
        %v10796 = vpop.f32.mrb[0].mxu0
        %10797 = vmatprep.mubr.f32.mxu0 0.0
        %10798 = vmatmul.mubr.f32.gmra.mrb[0].mxu0 %v10590
        %v10799 = vpop.f32.mrb[0].mxu0
        %v10800 = vadd.f32 0.0, %v10799
        %v10801 = vpop.f32.mrb[0].mxu0
        %10802 = vmatprep.mubr.f32.mxu0 0.0
        %10803 = vmatmul.mubr.f32.gmra.mrb[0].mxu0 %v10593
        %v10804 = vpop.f32.mrb[0].mxu0
        %v10805 = vadd.f32 0.0, %v10804
        %v10806 = vpop.f32.mrb[0].mxu0
        %10807 = vmatprep.mubr.f32.mxu0 0.0
        %10808 = vmatmul.mubr.f32.gmra.mrb[0].mxu0 %v10596
        %v10809 = vpop.f32.mrb[0].mxu0
        %v10810 = vadd.f32 0.0, %v10809
        %v10811 = vpop.f32.mrb[0].mxu0
        %10812 = vmatprep.mubr.f32.mxu0 0.0
        %10813 = vmatmul.mubr.f32.gmra.mrb[0].mxu0 %v10599
        %v10814 = vpop.f32.mrb[0].mxu0
        %v10815 = vadd.f32 0.0, %v10814
        %v10816 = vpop.f32.mrb[0].mxu0
        %10817 = vmatprep.mubr.f32.mxu0 0.0
        %10818 = vmatmul.mubr.f32.gmra.mrb[0].mxu0 %v10602
        %v10819 = vpop.f32.mrb[0].mxu0
        %v10820 = vadd.f32 0.0, %v10819
        %v10821 = vpop.f32.mrb[0].mxu0
        %10822 = vmatprep.mubr.f32.mxu0 0.0
        %10823 = vmatmul.mubr.f32.gmra.mrb[0].mxu0 %v10605
        %v10824 = vpop.f32.mrb[0].mxu0
        %v10825 = vadd.f32 0.0, %v10824
        %v10826 = vpop.f32.mrb[0].mxu0
        %10827 = vmatprep.mubr.f32.mxu0 0.0
        %10828 = vmatmul.mubr.f32.gmra.mrb[0].mxu0 %v10608
        %v10829 = vpop.f32.mrb[0].mxu0
        %v10830 = vadd.f32 0.0, %v10829
        %v10831 = vpop.f32.mrb[0].mxu0
        %10832 = vmatprep.mubr.f32.mxu0 0.0
        %10833 = vmatmul.mubr.f32.gmra.mrb[0].mxu0 %v10611
        %v10834 = vpop.f32.mrb[0].mxu0
        %v10835 = vadd.f32 0.0, %v10834
        %v10836 = vpop.f32.mrb[0].mxu0
        %10837 = vdwg.mxu0
        %v10838 = vadd.f32 %v10428, %v10680
        %v10839 = vadd.f32 %v10429, %v10685
        %v10840 = vadd.f32 %v10430, %v10690
        %v10841 = vadd.f32 %v10431, %v10695
        %v10842 = vadd.f32 %v10432, %v10700
        %v10843 = vadd.f32 %v10433, %v10705
        %v10844 = vadd.f32 %v10434, %v10710
        %v10845 = vadd.f32 %v10435, %v10715
        %v10846 = vadd.f32 %v10436, %v10720
        %v10847 = vadd.f32 %v10437, %v10725
        %v10848 = vadd.f32 %v10438, %v10730
        %v10849 = vadd.f32 %v10439, %v10735
        %v10850 = vadd.f32 %v10440, %v10740
        %v10851 = vadd.f32 %v10441, %v10745
        %v10852 = vadd.f32 %v10442, %v10750
        %v10853 = vadd.f32 %v10443, %v10755
        %v10854 = vadd.f32 %v10444, %v10760
        %v10855 = vadd.f32 %v10445, %v10765
        %v10856 = vadd.f32 %v10446, %v10770
        %v10857 = vadd.f32 %v10447, %v10775
        %v10858 = vadd.f32 %v10448, %v10780
        %v10859 = vadd.f32 %v10449, %v10785
        %v10860 = vadd.f32 %v10450, %v10790
        %v10861 = vadd.f32 %v10451, %v10795
        %v10862 = vadd.f32 %v10452, %v10800
        %v10863 = vadd.f32 %v10453, %v10805
        %v10864 = vadd.f32 %v10454, %v10810
        %v10865 = vadd.f32 %v10455, %v10815
        %v10866 = vadd.f32 %v10456, %v10820
        %v10867 = vadd.f32 %v10457, %v10825
        %v10868 = vadd.f32 %v10458, %v10830
        %v10869 = vadd.f32 %v10459, %v10835
        %10870 = vst.msk [vmem:[%s904] sm:$0xff] %vm2191, %v10838
        %10871 = vst.msk [vmem:[%s904 + $0x8] sm:$0xff] %vm2191, %v10839
        %10872 = vst.msk [vmem:[%s904 + $0x10] sm:$0xff] %vm2191, %v10840
        %10873 = vst.msk [vmem:[%s904 + $0x18] sm:$0xff] %vm2191, %v10841
        %10874 = vst.msk [vmem:[%s904 + $0x20] sm:$0xff] %vm2191, %v10842
        %10875 = vst.msk [vmem:[%s904 + $0x28] sm:$0xff] %vm2191, %v10843
        %10876 = vst.msk [vmem:[%s904 + $0x30] sm:$0xff] %vm2191, %v10844
        %10877 = vst.msk [vmem:[%s904 + $0x38] sm:$0xff] %vm2191, %v10845
        %10878 = vst.msk [vmem:[%s904 + $0x40] sm:$0xff] %vm2191, %v10846
        %10879 = vst.msk [vmem:[%s904 + $0x48] sm:$0xff] %vm2191, %v10847
        %10880 = vst.msk [vmem:[%s904 + $0x50] sm:$0xff] %vm2191, %v10848
        %10881 = vst.msk [vmem:[%s904 + $0x58] sm:$0xff] %vm2191, %v10849
        %10882 = vst.msk [vmem:[%s904 + $0x60] sm:$0xff] %vm2191, %v10850
        %10883 = vst.msk [vmem:[%s904 + $0x68] sm:$0xff] %vm2191, %v10851
        %10884 = vst.msk [vmem:[%s904 + $0x70] sm:$0xff] %vm2191, %v10852
        %10885 = vst.msk [vmem:[%s904 + $0x78] sm:$0xff] %vm2191, %v10853
        %10886 = vst.msk [vmem:[%s904 + $0x80] sm:$0xff] %vm2191, %v10854
        %10887 = vst.msk [vmem:[%s904 + $0x88] sm:$0xff] %vm2191, %v10855
        %10888 = vst.msk [vmem:[%s904 + $0x90] sm:$0xff] %vm2191, %v10856
        %10889 = vst.msk [vmem:[%s904 + $0x98] sm:$0xff] %vm2191, %v10857
        %10890 = vst.msk [vmem:[%s904 + $0xa0] sm:$0xff] %vm2191, %v10858
        %10891 = vst.msk [vmem:[%s904 + $0xa8] sm:$0xff] %vm2191, %v10859
        %10892 = vst.msk [vmem:[%s904 + $0xb0] sm:$0xff] %vm2191, %v10860
        %10893 = vst.msk [vmem:[%s904 + $0xb8] sm:$0xff] %vm2191, %v10861
        %10894 = vst.msk [vmem:[%s904 + $0xc0] sm:$0xff] %vm2191, %v10862
        %10895 = vst.msk [vmem:[%s904 + $0xc8] sm:$0xff] %vm2191, %v10863
        %10896 = vst.msk [vmem:[%s904 + $0xd0] sm:$0xff] %vm2191, %v10864
        %10897 = vst.msk [vmem:[%s904 + $0xd8] sm:$0xff] %vm2191, %v10865
        %10898 = vst.msk [vmem:[%s904 + $0xe0] sm:$0xff] %vm2191, %v10866
        %10899 = vst.msk [vmem:[%s904 + $0xe8] sm:$0xff] %vm2191, %v10867
        %10900 = vst.msk [vmem:[%s904 + $0xf0] sm:$0xff] %vm2191, %v10868
        %10901 = vst.msk [vmem:[%s904 + $0xf8] sm:$0xff] %vm2191, %v10869
        %p10902 = scmp.lt.s32.totalorder %s42, 1
        %s10903 = scalar_select %p10902, %s42, 1
        %s10904 = smul.addr %s10903, 32
        %s10905 = smul.addr %s10904, 8
        %s10906 = scalar_lea.vmem %s22, %s10905
        // Predicated region
        $region173: #{autoencoder_forward.1} parent=107 // pred_check
          %p10907 = pneg %p527
        $region174: #{autoencoder_forward.1} parent=107 // pred_check_branch
          %10909 = sbr.rel (%p10907) target = $region176
        $region175: #{autoencoder_forward.1} parent=107 // pred_region
          _
        $region176: #{autoencoder_forward.1} parent=107 // pred_fallthru
          _
      $region108: #{autoencoder_forward.1} parent=5 // pred_fallthru
        _
      %p10910 = scmp.le.s32.totalorder 2, %s37
      // Predicated region
      $region177: #{autoencoder_forward.1} parent=5 // pred_check
        %p10911 = pneg %p10910
      $region178: #{autoencoder_forward.1} parent=5 // pred_check_branch
        %10913 = sbr.rel (%p10911) target = $region180
      $region179: #{autoencoder_forward.1} parent=5 // pred_region
        %s10914 = ssub.s32 %s37, 2
        // Predicated region
        $region181: #{autoencoder_forward.1} parent=179 // pred_check
          %p10915 = pneg %p533
        $region182: #{autoencoder_forward.1} parent=179 // pred_check_branch
          %10917 = sbr.rel (%p10915) target = $region184
        $region183: #{autoencoder_forward.1} parent=179 // pred_region
          %p10918 = scmp.lt.s32.totalorder %s43, 1
          %s10919 = scalar_select %p10918, %s43, 1
          %s10920 = smul.addr %s10919, 32
          %s10921 = smul.addr %s10920, 8
          %s10922 = scalar_lea.vmem %s22, %s10921
        $region184: #{autoencoder_forward.1} parent=179 // pred_fallthru
          _
      $region180: #{autoencoder_forward.1} parent=5 // pred_fallthru
        _
    $region6: #{autoencoder_forward.1} parent=1 // loop_footer
      %s41 = sadd.s32 1, %s37
    $region7: #{autoencoder_forward.1} parent=1 // loop_footer_branch
      %36 = sbr.rel target = $region3
    $region8: #{autoencoder_forward.1} parent=1 // loop_exit
      _
    %10923 = vsyncpa [#allocation3], 1
    %s10924 = scalar_lea.sflag [#allocation3], 1
    %10925 = vsyncpa %s10924, 1
    %10926 = vsyncpa [#allocation5], 1
    %10927 = vsyncpa [#allocation8], 1
    %10928 = vsyncpa [#allocation11], 1
    %10929 = vsyncpa [#allocation14], 1
    %10930 = vsyncpa [#allocation17], 1
    %10931 = vsyncpa [#allocation20], 1
    %10932 = vsyncpa [#allocation23], 1
    %10933 = vsyncpa [#allocation26], 1

</llo_original>
